<compile_context>
chip_gen: v5e
topology: v5e:2x2
jax: 0.10.0
libtpu: 0.0.40
codegen_flags: <defaults>
</compile_context>

<pallas_src>
import jax
import jax.numpy as jnp
from jax.experimental import pallas as pl
from jax.experimental.pallas import tpu as pltpu


def _mlp3_kernel(x_ref, w1_ref, b1_ref, w2_ref, b2_ref, w3_ref, b3_ref, out_ref):
    # x_ref: (tm, F_in) bf16 ; w*_ref: bf16 ; b*_ref: (1, D) f32 ; out_ref: (tm, 2048) f32
    x = x_ref[...]

    h1 = jnp.dot(x, w1_ref[...], preferred_element_type=jnp.float32) + b1_ref[...]
    h1 = jnp.maximum(h1, 0.0).astype(jnp.bfloat16)          # ReLU, back to bf16 for MXU

    h2 = jnp.dot(h1, w2_ref[...], preferred_element_type=jnp.float32) + b2_ref[...]
    h2 = jnp.maximum(h2, 0.0).astype(jnp.bfloat16)

    out = jnp.dot(h2, w3_ref[...], preferred_element_type=jnp.float32) + b3_ref[...]
    out_ref[...] = out                                        # lane-dense (2048) f32 store


def projection_forward(x, params, *, tm=None):
    """Pallas forward for ProjectionLayer. x: (..., hidden_dim) float32."""
    (w1, b1), (w2, b2), (w3, b3) = params
    orig_lead = x.shape[:-1]
    f_in = x.shape[-1]
    f_out = w3.shape[1]

    x2 = x.reshape(-1, f_in).astype(jnp.float32)
    batch = x2.shape[0]

    # Row-tile: large tile for big batches, otherwise one sublane-aligned block.
    if tm is None:
        tm = 256 if batch >= 256 else max(8, ((batch + 7) // 8) * 8)
    padded = pl.cdiv(batch, tm) * tm
    if padded != batch:
        x2 = jnp.pad(x2, ((0, padded - batch), (0, 0)))

    # bf16 operands for the MXU (accumulation stays f32 inside the kernel).
    x_bf = x2.astype(jnp.bfloat16)
    w1b, w2b, w3b = (w.astype(jnp.bfloat16) for w in (w1, w2, w3))

    grid = (padded // tm,)
    out = pl.pallas_call(
        _mlp3_kernel,
        grid=grid,
        out_shape=jax.ShapeDtypeStruct((padded, f_out), jnp.float32),
        in_specs=[
            pl.BlockSpec((tm, f_in), lambda i: (i, 0)),      # x rows stream per tile
            pl.BlockSpec(w1b.shape, lambda i: (0, 0)),       # weights resident
            pl.BlockSpec(b1.shape, lambda i: (0, 0)),
            pl.BlockSpec(w2b.shape, lambda i: (0, 0)),
            pl.BlockSpec(b2.shape, lambda i: (0, 0)),
            pl.BlockSpec(w3b.shape, lambda i: (0, 0)),
            pl.BlockSpec(b3.shape, lambda i: (0, 0)),
        ],
        out_specs=pl.BlockSpec((tm, f_out), lambda i: (i, 0)),
        compiler_params=pltpu.CompilerParams(
            dimension_semantics=("parallel",),               # megacore split on v7x
            vmem_limit_bytes=64 << 20,
        ),
    )(x_bf, w1b, b1, w2b, b2, w3b, b3)

    out = out[:batch]
    return out.reshape(*orig_lead, f_out)


def projection_ref(x, params):
    """Pure-JAX reference using the same bf16-matmul / f32-accumulate recipe."""
    (w1, b1), (w2, b2), (w3, b3) = params
    h = x.astype(jnp.bfloat16)
    h = jnp.dot(h, w1.astype(jnp.bfloat16), preferred_element_type=jnp.float32) + b1
    h = jnp.maximum(h, 0.0).astype(jnp.bfloat16)
    h = jnp.dot(h, w2.astype(jnp.bfloat16), preferred_element_type=jnp.float32) + b2
    h = jnp.maximum(h, 0.0).astype(jnp.bfloat16)
    return jnp.dot(h, w3.astype(jnp.bfloat16), preferred_element_type=jnp.float32) + b3


def init_projection_params(key, hidden_dim, dims=(512, 1024, 2048)):
    """torch.nn.Linear-style uniform(-1/sqrt(fan_in), 1/sqrt(fan_in)) init."""
    params = []
    fin = hidden_dim
    for fout in dims:
        key, kw, kb = jax.random.split(key, 3)
        bound = 1.0 / jnp.sqrt(jnp.float32(fin))
        w = jax.random.uniform(kw, (fin, fout), jnp.float32, -bound, bound)
        b = jax.random.uniform(kb, (1, fout), jnp.float32, -bound, bound)
        params.append((w, b))
        fin = fout
    return params


if __name__ == "__main__":
    BATCH, HIDDEN_DIM = 16, 32

    key = jax.random.PRNGKey(0)
    k_x, k_p = jax.random.split(key)

    x = jax.random.normal(k_x, (BATCH, HIDDEN_DIM), jnp.float32)
    params = init_projection_params(k_p, HIDDEN_DIM)

    out = projection_forward(x, params)
    out = jax.block_until_ready(out)
    ref = jax.block_until_ready(projection_ref(x, params))

    assert out.shape == (BATCH, 2048)
    assert bool(jnp.all(jnp.isfinite(out)))
    assert bool(jnp.allclose(out, ref, rtol=2e-2, atol=2e-2))
    print("KERNEL_OK")
</pallas_src>

<mosaic_0001>
module attributes {stable_mosaic.version = 11 : i64} {
  func.func @_mlp3_kernel(%arg0: i32, %arg1: memref<16x32xbf16, #tpu.memory_space<vmem>>, %arg2: memref<32x512xbf16, #tpu.memory_space<vmem>>, %arg3: memref<1x512xf32, #tpu.memory_space<vmem>>, %arg4: memref<512x1024xbf16, #tpu.memory_space<vmem>>, %arg5: memref<1x1024xf32, #tpu.memory_space<vmem>>, %arg6: memref<1024x2048xbf16, #tpu.memory_space<vmem>>, %arg7: memref<1x2048xf32, #tpu.memory_space<vmem>>, %arg8: memref<16x2048xf32, #tpu.memory_space<vmem>>) attributes {dimension_semantics = [#tpu.dimension_semantics<parallel>], iteration_bounds = array<i64: 1>, scalar_prefetch = 0 : i64, scratch_operands = 0 : i64, tpu.core_type = #tpu.core_type<tc>, window_params = [{transform_indices = @transform_0, window_bounds = array<i64: 16, 32>}, {pipeline_mode = #tpu.pipeline_mode<synchronous>, transform_indices = @transform_1, window_bounds = array<i64: 32, 512>}, {pipeline_mode = #tpu.pipeline_mode<synchronous>, transform_indices = @transform_2, window_bounds = array<i64: 1, 512>}, {pipeline_mode = #tpu.pipeline_mode<synchronous>, transform_indices = @transform_3, window_bounds = array<i64: 512, 1024>}, {pipeline_mode = #tpu.pipeline_mode<synchronous>, transform_indices = @transform_4, window_bounds = array<i64: 1, 1024>}, {pipeline_mode = #tpu.pipeline_mode<synchronous>, transform_indices = @transform_5, window_bounds = array<i64: 1024, 2048>}, {pipeline_mode = #tpu.pipeline_mode<synchronous>, transform_indices = @transform_6, window_bounds = array<i64: 1, 2048>}, {transform_indices = @transform_7, window_bounds = array<i64: 16, 2048>}]} {
    %c0 = arith.constant 0 : index
    %c0_0 = arith.constant 0 : index
    %0 = vector.load %arg1[%c0, %c0_0] : memref<16x32xbf16, #tpu.memory_space<vmem>>, vector<16x32xbf16>
    %c0_1 = arith.constant 0 : index
    %c0_2 = arith.constant 0 : index
    %1 = vector.load %arg2[%c0_1, %c0_2] : memref<32x512xbf16, #tpu.memory_space<vmem>>, vector<32x512xbf16>
    %cst = arith.constant dense<0.000000e+00> : vector<16x512xf32>
    %2 = tpu.matmul %0, %1, %cst {dimension_numbers = #tpu.dot_dimension_numbers<[1], [0], [0], [1], [0, 0, 1, 1], [], []>} : vector<16x32xbf16>, vector<32x512xbf16>, vector<16x512xf32> -> vector<16x512xf32>
    %c0_3 = arith.constant 0 : index
    %c0_4 = arith.constant 0 : index
    %3 = vector.load %arg3[%c0_3, %c0_4] : memref<1x512xf32, #tpu.memory_space<vmem>>, vector<1x512xf32>
    %4 = vector.broadcast %3 : vector<1x512xf32> to vector<16x512xf32>
    %5 = arith.addf %2, %4 : vector<16x512xf32>
    %cst_5 = arith.constant 0.000000e+00 : f32
    %6 = vector.broadcast %cst_5 : f32 to vector<16x512xf32>
    %7 = arith.maximumf %5, %6 : vector<16x512xf32>
    %8 = arith.truncf %7 : vector<16x512xf32> to vector<16x512xbf16>
    %c0_6 = arith.constant 0 : index
    %c0_7 = arith.constant 0 : index
    %9 = vector.load %arg4[%c0_6, %c0_7] : memref<512x1024xbf16, #tpu.memory_space<vmem>>, vector<512x1024xbf16>
    %cst_8 = arith.constant dense<0.000000e+00> : vector<16x1024xf32>
    %10 = tpu.matmul %8, %9, %cst_8 {dimension_numbers = #tpu.dot_dimension_numbers<[1], [0], [0], [1], [0, 0, 1, 1], [], []>} : vector<16x512xbf16>, vector<512x1024xbf16>, vector<16x1024xf32> -> vector<16x1024xf32>
    %c0_9 = arith.constant 0 : index
    %c0_10 = arith.constant 0 : index
    %11 = vector.load %arg5[%c0_9, %c0_10] : memref<1x1024xf32, #tpu.memory_space<vmem>>, vector<1x1024xf32>
    %12 = vector.broadcast %11 : vector<1x1024xf32> to vector<16x1024xf32>
    %13 = arith.addf %10, %12 : vector<16x1024xf32>
    %cst_11 = arith.constant 0.000000e+00 : f32
    %14 = vector.broadcast %cst_11 : f32 to vector<16x1024xf32>
    %15 = arith.maximumf %13, %14 : vector<16x1024xf32>
    %16 = arith.truncf %15 : vector<16x1024xf32> to vector<16x1024xbf16>
    %c0_12 = arith.constant 0 : index
    %c0_13 = arith.constant 0 : index
    %17 = vector.load %arg6[%c0_12, %c0_13] : memref<1024x2048xbf16, #tpu.memory_space<vmem>>, vector<1024x2048xbf16>
    %cst_14 = arith.constant dense<0.000000e+00> : vector<16x2048xf32>
    %18 = tpu.matmul %16, %17, %cst_14 {dimension_numbers = #tpu.dot_dimension_numbers<[1], [0], [0], [1], [0, 0, 1, 1], [], []>} : vector<16x1024xbf16>, vector<1024x2048xbf16>, vector<16x2048xf32> -> vector<16x2048xf32>
    %c0_15 = arith.constant 0 : index
    %c0_16 = arith.constant 0 : index
    %19 = vector.load %arg7[%c0_15, %c0_16] : memref<1x2048xf32, #tpu.memory_space<vmem>>, vector<1x2048xf32>
    %20 = vector.broadcast %19 : vector<1x2048xf32> to vector<16x2048xf32>
    %21 = arith.addf %18, %20 : vector<16x2048xf32>
    %c0_17 = arith.constant 0 : index
    %c0_18 = arith.constant 0 : index
    %22 = vector.load %arg8[%c0_17, %c0_18] : memref<16x2048xf32, #tpu.memory_space<vmem>>, vector<16x2048xf32>
    tpu.vector_store %arg8[%c0_17, %c0_18], %21 {strides = array<i32>} : memref<16x2048xf32, #tpu.memory_space<vmem>>, vector<16x2048xf32>,
    return
  }
  func.func @transform_0(%arg0: i32) -> (i32, i32) {
    %c0_i32 = arith.constant 0 : i32
    %c0_i32_0 = arith.constant 0 : i32
    return %arg0, %c0_i32 : i32, i32
  }
  func.func @transform_1(%arg0: i32) -> (i32, i32) {
    %c0_i32 = arith.constant 0 : i32
    %c0_i32_0 = arith.constant 0 : i32
    %c0_i32_1 = arith.constant 0 : i32
    return %c0_i32, %c0_i32_0 : i32, i32
  }
  func.func @transform_2(%arg0: i32) -> (i32, i32) {
    %c0_i32 = arith.constant 0 : i32
    %c0_i32_0 = arith.constant 0 : i32
    %c0_i32_1 = arith.constant 0 : i32
    return %c0_i32, %c0_i32_0 : i32, i32
  }
  func.func @transform_3(%arg0: i32) -> (i32, i32) {
    %c0_i32 = arith.constant 0 : i32
    %c0_i32_0 = arith.constant 0 : i32
    %c0_i32_1 = arith.constant 0 : i32
    return %c0_i32, %c0_i32_0 : i32, i32
  }
  func.func @transform_4(%arg0: i32) -> (i32, i32) {
    %c0_i32 = arith.constant 0 : i32
    %c0_i32_0 = arith.constant 0 : i32
    %c0_i32_1 = arith.constant 0 : i32
    return %c0_i32, %c0_i32_0 : i32, i32
  }
  func.func @transform_5(%arg0: i32) -> (i32, i32) {
    %c0_i32 = arith.constant 0 : i32
    %c0_i32_0 = arith.constant 0 : i32
    %c0_i32_1 = arith.constant 0 : i32
    return %c0_i32, %c0_i32_0 : i32, i32
  }
  func.func @transform_6(%arg0: i32) -> (i32, i32) {
    %c0_i32 = arith.constant 0 : i32
    %c0_i32_0 = arith.constant 0 : i32
    %c0_i32_1 = arith.constant 0 : i32
    return %c0_i32, %c0_i32_0 : i32, i32
  }
  func.func @transform_7(%arg0: i32) -> (i32, i32) {
    %c0_i32 = arith.constant 0 : i32
    %c0_i32_0 = arith.constant 0 : i32
    return %arg0, %c0_i32 : i32, i32
  }
}

</mosaic_0001>

<llo_original>
// kernel: tpu_custom_call.1
$region0: #{tpu_custom_call.1}
  #allocation0 [shape = 'u32[]', space=smem, size = 0x4, offset = 0x4, fixed_abs, tag = 'smem constant byte address 0x4 - core index']
  #allocation1 [shape = 'u32[72,128]{1,0:T(1,128)}', space=vmem, size = 0x9000, scoped, tag = 'internal scratch']
  %s0 = inlined_call_operand.hbm [shape: bf16[16,32], index: 0, kind: input, shape index: {}]
  %s1 = inlined_call_operand.hbm [shape: bf16[32,512], index: 1, kind: input, shape index: {}]
  %s2 = inlined_call_operand.hbm [shape: f32[1,512], index: 2, kind: input, shape index: {}]
  %s3 = inlined_call_operand.hbm [shape: bf16[512,1024], index: 3, kind: input, shape index: {}]
  %s4 = inlined_call_operand.hbm [shape: f32[1,1024], index: 4, kind: input, shape index: {}]
  %s5 = inlined_call_operand.hbm [shape: bf16[1024,2048], index: 5, kind: input, shape index: {}]
  %s6 = inlined_call_operand.hbm [shape: f32[1,2048], index: 6, kind: input, shape index: {}]
  %s7 = inlined_call_operand.hbm [shape: f32[16,2048], index: 7, kind: output, shape index: {}]
  %s8 = sld [smem:[#allocation0]]
  $region66: #{tpu_custom_call.1} parent=0
    _
  %s10 = ssub.s32 1, %s8
  %s11 = scalar_select 0, %s10, %s8
  $region1: #{tpu_custom_call.1} parent=0
    #allocation2 [shape = 'u8[4096]{0}', space=vmem, size = 0x1000, scoped, tag = 'input window, operand 0, single buffered']
    #allocation3 [shape = 's32[1]{0}', space=sflag, size = 0x4, scoped, tag = 'scoped memory for tpu_custom_call.1']
    #allocation4 [shape = 's32[1]{0}', space=sflag, size = 0x4, scoped, tag = 'scoped memory for tpu_custom_call.1']
    #allocation5 [shape = 'u8[32768]{0}', space=vmem, size = 0x8000, scoped, tag = 'input window, operand 1, single buffered']
    #allocation6 [shape = 's32[1]{0}', space=sflag, size = 0x4, scoped, tag = 'scoped memory for tpu_custom_call.1']
    #allocation7 [shape = 'u8[2048]{0}', space=vmem, size = 0x800, scoped, tag = 'input window, operand 2, single buffered']
    #allocation8 [shape = 'u8[1048576]{0}', space=vmem, size = 0x100000, scoped, tag = 'input window, operand 3, single buffered']
    #allocation9 [shape = 's32[1]{0}', space=sflag, size = 0x4, scoped, tag = 'scoped memory for tpu_custom_call.1']
    #allocation10 [shape = 'u8[4096]{0}', space=vmem, size = 0x1000, scoped, tag = 'input window, operand 4, single buffered']
    #allocation11 [shape = 'u8[4194304]{0}', space=vmem, size = 0x400000, scoped, tag = 'input window, operand 5, single buffered']
    #allocation12 [shape = 's32[1]{0}', space=sflag, size = 0x4, scoped, tag = 'scoped memory for tpu_custom_call.1']
    #allocation13 [shape = 'u8[8192]{0}', space=vmem, size = 0x2000, scoped, tag = 'input window, operand 6, single buffered']
    #allocation14 [shape = 'u8[131072]{0}', space=vmem, size = 0x20000, scoped, tag = 'output window, operand 0, single buffered']
    %12 = vsyncpa [#allocation3], 0
    %13 = vsyncpa [#allocation6], 0
    %14 = vsyncpa [#allocation9], 0
    %15 = vsyncpa [#allocation12], 0
    %16 = vsyncpa [#allocation4], 0
    // Predicated region
    $region2: #{tpu_custom_call.1} parent=1 // pred_check
      _
    $region3: #{tpu_custom_call.1} parent=1 // pred_check_branch
      %18 = sbr.rel (0) target = $region5
    $region4: #{tpu_custom_call.1} parent=1 // pred_region
      %20 = vsyncadd [#allocation3], 0
      %s21 = sshll.u32 %s0, 4
      %s22 = int_to_ptr.hbm [resolvable:$true] %s21
      %s23 = sshll.u32 [#allocation2], 4
      %s24 = int_to_ptr.vmem [resolvable:$true] %s23
      %29 = dma.hbm_to_vmem [thread:$0]  %s22, 128, %s24, [#allocation3], 64, 64, 4
    $region5: #{tpu_custom_call.1} parent=1 // pred_fallthru
      _
    // Predicated region
    $region6: #{tpu_custom_call.1} parent=1 // pred_check
      _
    $region7: #{tpu_custom_call.1} parent=1 // pred_check_branch
      %31 = sbr.rel (0) target = $region9
    $region8: #{tpu_custom_call.1} parent=1 // pred_region
      %33 = vsyncadd [#allocation6], 0
      %s34 = sshll.u32 %s1, 4
      %s35 = int_to_ptr.hbm [resolvable:$true] %s34
      %s36 = sshll.u32 [#allocation5], 4
      %s37 = int_to_ptr.vmem [resolvable:$true] %s36
      %42 = dma.hbm_to_vmem [thread:$0]  %s35, 1024, %s37, [#allocation6], 256, 256, 16
    $region9: #{tpu_custom_call.1} parent=1 // pred_fallthru
      _
    // Predicated region
    $region10: #{tpu_custom_call.1} parent=1 // pred_check
      _
    $region11: #{tpu_custom_call.1} parent=1 // pred_check_branch
      %44 = sbr.rel (0) target = $region13
    $region12: #{tpu_custom_call.1} parent=1 // pred_region
      %46 = vsyncadd [#allocation6], 0
      %s48 = sshll.u32 %s2, 4
      %s49 = int_to_ptr.hbm [resolvable:$true] %s48
      %s50 = sshll.u32 [#allocation7], 4
      %s51 = int_to_ptr.vmem [resolvable:$true] %s50
      %53 = dma.hbm_to_vmem [thread:$0]  %s49, 64, %s51, [#allocation6]
    $region13: #{tpu_custom_call.1} parent=1 // pred_fallthru
      _
    // Predicated region
    $region14: #{tpu_custom_call.1} parent=1 // pred_check
      _
    $region15: #{tpu_custom_call.1} parent=1 // pred_check_branch
      %55 = sbr.rel (0) target = $region17
    $region16: #{tpu_custom_call.1} parent=1 // pred_region
      %57 = vsyncadd [#allocation9], 0
      %s58 = sshll.u32 %s3, 4
      %s59 = int_to_ptr.hbm [resolvable:$true] %s58
      %s60 = sshll.u32 [#allocation8], 4
      %s61 = int_to_ptr.vmem [resolvable:$true] %s60
      %66 = dma.hbm_to_vmem [thread:$0]  %s59, 32768, %s61, [#allocation9], 512, 512, 32
    $region17: #{tpu_custom_call.1} parent=1 // pred_fallthru
      _
    // Predicated region
    $region18: #{tpu_custom_call.1} parent=1 // pred_check
      _
    $region19: #{tpu_custom_call.1} parent=1 // pred_check_branch
      %68 = sbr.rel (0) target = $region21
    $region20: #{tpu_custom_call.1} parent=1 // pred_region
      %70 = vsyncadd [#allocation9], 0
      %s72 = sshll.u32 %s4, 4
      %s73 = int_to_ptr.hbm [resolvable:$true] %s72
      %s74 = sshll.u32 [#allocation10], 4
      %s75 = int_to_ptr.vmem [resolvable:$true] %s74
      %77 = dma.hbm_to_vmem [thread:$0]  %s73, 128, %s75, [#allocation9]
    $region21: #{tpu_custom_call.1} parent=1 // pred_fallthru
      _
    // Predicated region
    $region22: #{tpu_custom_call.1} parent=1 // pred_check
      _
    $region23: #{tpu_custom_call.1} parent=1 // pred_check_branch
      %79 = sbr.rel (0) target = $region25
    $region24: #{tpu_custom_call.1} parent=1 // pred_region
      %81 = vsyncadd [#allocation12], 0
      %s82 = sshll.u32 %s5, 4
      %s83 = int_to_ptr.hbm [resolvable:$true] %s82
      %s84 = sshll.u32 [#allocation11], 4
      %s85 = int_to_ptr.vmem [resolvable:$true] %s84
      %90 = dma.hbm_to_vmem [thread:$0]  %s83, 131072, %s85, [#allocation12], 1024, 1024, 64
    $region25: #{tpu_custom_call.1} parent=1 // pred_fallthru
      _
    // Predicated region
    $region26: #{tpu_custom_call.1} parent=1 // pred_check
      _
    $region27: #{tpu_custom_call.1} parent=1 // pred_check_branch
      %92 = sbr.rel (0) target = $region29
    $region28: #{tpu_custom_call.1} parent=1 // pred_region
      %94 = vsyncadd [#allocation12], 0
      %s96 = sshll.u32 %s6, 4
      %s97 = int_to_ptr.hbm [resolvable:$true] %s96
      %s98 = sshll.u32 [#allocation13], 4
      %s99 = int_to_ptr.vmem [resolvable:$true] %s98
      %101 = dma.hbm_to_vmem [thread:$0]  %s97, 256, %s99, [#allocation12]
    $region29: #{tpu_custom_call.1} parent=1 // pred_fallthru
      _
    // Predicated region
    $region30: #{tpu_custom_call.1} parent=1 // pred_check
      _
    $region31: #{tpu_custom_call.1} parent=1 // pred_check_branch
      %103 = sbr.rel (0) target = $region33
    $region32: #{tpu_custom_call.1} parent=1 // pred_region
      %105 = dma.done [#allocation3], 128
    $region33: #{tpu_custom_call.1} parent=1 // pred_fallthru
      _
    // Predicated region
    $region34: #{tpu_custom_call.1} parent=1 // pred_check
      _
    $region35: #{tpu_custom_call.1} parent=1 // pred_check_branch
      %107 = sbr.rel (0) target = $region37
    $region36: #{tpu_custom_call.1} parent=1 // pred_region
      %109 = dma.done [#allocation6], 1024
    $region37: #{tpu_custom_call.1} parent=1 // pred_fallthru
      _
    // Predicated region
    $region38: #{tpu_custom_call.1} parent=1 // pred_check
      _
    $region39: #{tpu_custom_call.1} parent=1 // pred_check_branch
      %111 = sbr.rel (0) target = $region41
    $region40: #{tpu_custom_call.1} parent=1 // pred_region
      %113 = dma.done [#allocation6], 64
    $region41: #{tpu_custom_call.1} parent=1 // pred_fallthru
      _
    // Predicated region
    $region42: #{tpu_custom_call.1} parent=1 // pred_check
      _
    $region43: #{tpu_custom_call.1} parent=1 // pred_check_branch
      %115 = sbr.rel (0) target = $region45
    $region44: #{tpu_custom_call.1} parent=1 // pred_region
      %117 = dma.done [#allocation9], 32768
    $region45: #{tpu_custom_call.1} parent=1 // pred_fallthru
      _
    // Predicated region
    $region46: #{tpu_custom_call.1} parent=1 // pred_check
      _
    $region47: #{tpu_custom_call.1} parent=1 // pred_check_branch
      %119 = sbr.rel (0) target = $region49
    $region48: #{tpu_custom_call.1} parent=1 // pred_region
      %121 = dma.done [#allocation9], 128
    $region49: #{tpu_custom_call.1} parent=1 // pred_fallthru
      _
    // Predicated region
    $region50: #{tpu_custom_call.1} parent=1 // pred_check
      _
    $region51: #{tpu_custom_call.1} parent=1 // pred_check_branch
      %123 = sbr.rel (0) target = $region53
    $region52: #{tpu_custom_call.1} parent=1 // pred_region
      %125 = dma.done [#allocation12], 131072
    $region53: #{tpu_custom_call.1} parent=1 // pred_fallthru
      _
    // Predicated region
    $region54: #{tpu_custom_call.1} parent=1 // pred_check
      _
    $region55: #{tpu_custom_call.1} parent=1 // pred_check_branch
      %127 = sbr.rel (0) target = $region57
    $region56: #{tpu_custom_call.1} parent=1 // pred_region
      %129 = dma.done [#allocation12], 256
    $region57: #{tpu_custom_call.1} parent=1 // pred_fallthru
      _
    %v131 = vld [vmem:[#allocation2] sm:$0xf]
    %v132 = vld [vmem:[#allocation2 + $0x4] sm:$0xf]
    %v133 = vld [vmem:[#allocation5] sm:$0xff]
    %v134 = vld [vmem:[#allocation5 + $0x8] sm:$0xff]
    %v135 = vld [vmem:[#allocation5 + $0x10] sm:$0xff]
    %v136 = vld [vmem:[#allocation5 + $0x18] sm:$0xff]
    %v137 = vld [vmem:[#allocation5 + $0x20] sm:$0xff]
    %v138 = vld [vmem:[#allocation5 + $0x28] sm:$0xff]
    %v139 = vld [vmem:[#allocation5 + $0x30] sm:$0xff]
    %v140 = vld [vmem:[#allocation5 + $0x38] sm:$0xff]
    %v141 = vld [vmem:[#allocation7] sm:$0xf]
    %v143 = vperm.slane %v141, 0
    %v144 = vperm.slane %v141, 1
    %v145 = vperm.slane %v141, 2
    %v146 = vperm.slane %v141, 3
    %v153 = vunpack.c.l.b16 %v131
    %v154 = vunpack.c.l.b16 %v132
    %v155 = vpack.c.b16 %v154, %v153
    %v164 = vunpack.c.l.b16 %v133
    %v165 = vunpack.c.h.b16 %v133
    %v166 = vunpack.c.l.b16 %v134
    %v167 = vunpack.c.h.b16 %v134
    %v168 = vunpack.c.l.b16 %v135
    %v169 = vunpack.c.h.b16 %v135
    %v170 = vunpack.c.l.b16 %v136
    %v171 = vunpack.c.h.b16 %v136
    %v172 = vunpack.c.l.b16 %v137
    %v173 = vunpack.c.h.b16 %v137
    %v174 = vunpack.c.l.b16 %v138
    %v175 = vunpack.c.h.b16 %v138
    %v176 = vunpack.c.l.b16 %v139
    %v177 = vunpack.c.h.b16 %v139
    %v178 = vunpack.c.l.b16 %v140
    %v179 = vunpack.c.h.b16 %v140
    %v180 = vpack.c.b16 %v168, %v164
    %v181 = vpack.c.b16 %v169, %v165
    %v182 = vpack.c.b16 %v170, %v166
    %v183 = vpack.c.b16 %v171, %v167
    %v184 = vpack.c.b16 %v176, %v172
    %v185 = vpack.c.b16 %v177, %v173
    %v186 = vpack.c.b16 %v178, %v174
    %v187 = vpack.c.b16 %v179, %v175
    %vm196 = vcmask 261120
    %v198 = vsel %vm196, %v155, 0
    %200 = vmatpush.bf16.msra.mxu0 0
    %201 = vmatpush.bf16.msra.mxu0 0
    %202 = vmatpush.bf16.msra.mxu0 0
    %203 = vmatpush.bf16.msra.mxu0 0
    %204 = vmatpush.bf16.msra.mxu0 0
    %205 = vmatpush.bf16.msra.mxu0 0
    %206 = vmatpush.bf16.msra.mxu0 %v184
    %207 = vmatpush.bf16.msra.mxu0 %v180
    %208 = vmatmul.bf16.gmra.mxu0 %v198
    %v209 = vpop.f32.mrf.mxu0
    %v210 = vadd.f32 %v143, %v209
    %v211 = vpop.f32.mrf.mxu0
    %v212 = vadd.f32 %v143, %v211
    %213 = vdwg.mxu0
    %214 = vmatpush.bf16.msra.mxu0 0
    %215 = vmatpush.bf16.msra.mxu0 0
    %216 = vmatpush.bf16.msra.mxu0 0
    %217 = vmatpush.bf16.msra.mxu0 0
    %218 = vmatpush.bf16.msra.mxu0 0
    %219 = vmatpush.bf16.msra.mxu0 0
    %220 = vmatpush.bf16.msra.mxu0 %v185
    %221 = vmatpush.bf16.msra.mxu0 %v181
    %222 = vmatmul.bf16.gmra.mxu0 %v198
    %v223 = vpop.f32.mrf.mxu0
    %v224 = vadd.f32 %v144, %v223
    %v225 = vpop.f32.mrf.mxu0
    %v226 = vadd.f32 %v144, %v225
    %227 = vdwg.mxu0
    %228 = vmatpush.bf16.msra.mxu0 0
    %229 = vmatpush.bf16.msra.mxu0 0
    %230 = vmatpush.bf16.msra.mxu0 0
    %231 = vmatpush.bf16.msra.mxu0 0
    %232 = vmatpush.bf16.msra.mxu0 0
    %233 = vmatpush.bf16.msra.mxu0 0
    %234 = vmatpush.bf16.msra.mxu0 %v186
    %235 = vmatpush.bf16.msra.mxu0 %v182
    %236 = vmatmul.bf16.gmra.mxu0 %v198
    %v237 = vpop.f32.mrf.mxu0
    %v238 = vadd.f32 %v145, %v237
    %v239 = vpop.f32.mrf.mxu0
    %v240 = vadd.f32 %v145, %v239
    %241 = vdwg.mxu0
    %242 = vmatpush.bf16.msra.mxu0 0
    %243 = vmatpush.bf16.msra.mxu0 0
    %244 = vmatpush.bf16.msra.mxu0 0
    %245 = vmatpush.bf16.msra.mxu0 0
    %246 = vmatpush.bf16.msra.mxu0 0
    %247 = vmatpush.bf16.msra.mxu0 0
    %248 = vmatpush.bf16.msra.mxu0 %v187
    %249 = vmatpush.bf16.msra.mxu0 %v183
    %250 = vmatmul.bf16.gmra.mxu0 %v198
    %v251 = vpop.f32.mrf.mxu0
    %v252 = vadd.f32 %v146, %v251
    %v253 = vpop.f32.mrf.mxu0
    %v254 = vadd.f32 %v146, %v253
    %255 = vdwg.mxu0
    %v256 = vmax.f32 %v210, 0.0
    %v257 = vmax.f32 %v224, 0.0
    %v258 = vmax.f32 %v238, 0.0
    %v259 = vmax.f32 %v252, 0.0
    %v260 = vmax.f32 %v212, 0.0
    %v261 = vmax.f32 %v226, 0.0
    %v262 = vmax.f32 %v240, 0.0
    %v263 = vmax.f32 %v254, 0.0
    %v264 = vpack.c.bf16 %v260, %v256
    %v265 = vpack.c.bf16 %v261, %v257
    %v266 = vpack.c.bf16 %v262, %v258
    %v267 = vpack.c.bf16 %v263, %v259
    %v268 = vld [vmem:[#allocation8] sm:$0xff]
    %v269 = vld [vmem:[#allocation8 + $0x8] sm:$0xff]
    %v270 = vld [vmem:[#allocation8 + $0x10] sm:$0xff]
    %v271 = vld [vmem:[#allocation8 + $0x18] sm:$0xff]
    %v272 = vld [vmem:[#allocation8 + $0x20] sm:$0xff]
    %v273 = vld [vmem:[#allocation8 + $0x28] sm:$0xff]
    %v274 = vld [vmem:[#allocation8 + $0x30] sm:$0xff]
    %v275 = vld [vmem:[#allocation8 + $0x38] sm:$0xff]
    %v276 = vld [vmem:[#allocation8 + $0x40] sm:$0xff]
    %v277 = vld [vmem:[#allocation8 + $0x48] sm:$0xff]
    %v278 = vld [vmem:[#allocation8 + $0x50] sm:$0xff]
    %v279 = vld [vmem:[#allocation8 + $0x58] sm:$0xff]
    %v280 = vld [vmem:[#allocation8 + $0x60] sm:$0xff]
    %v281 = vld [vmem:[#allocation8 + $0x68] sm:$0xff]
    %v282 = vld [vmem:[#allocation8 + $0x70] sm:$0xff]
    %v283 = vld [vmem:[#allocation8 + $0x78] sm:$0xff]
    %v284 = vld [vmem:[#allocation8 + $0x80] sm:$0xff]
    %v285 = vld [vmem:[#allocation8 + $0x88] sm:$0xff]
    %v286 = vld [vmem:[#allocation8 + $0x90] sm:$0xff]
    %v287 = vld [vmem:[#allocation8 + $0x98] sm:$0xff]
    %v288 = vld [vmem:[#allocation8 + $0xa0] sm:$0xff]
    %v289 = vld [vmem:[#allocation8 + $0xa8] sm:$0xff]
    %v290 = vld [vmem:[#allocation8 + $0xb0] sm:$0xff]
    %v291 = vld [vmem:[#allocation8 + $0xb8] sm:$0xff]
    %v292 = vld [vmem:[#allocation8 + $0xc0] sm:$0xff]
    %v293 = vld [vmem:[#allocation8 + $0xc8] sm:$0xff]
    %v294 = vld [vmem:[#allocation8 + $0xd0] sm:$0xff]
    %v295 = vld [vmem:[#allocation8 + $0xd8] sm:$0xff]
    %v296 = vld [vmem:[#allocation8 + $0xe0] sm:$0xff]
    %v297 = vld [vmem:[#allocation8 + $0xe8] sm:$0xff]
    %v298 = vld [vmem:[#allocation8 + $0xf0] sm:$0xff]
    %v299 = vld [vmem:[#allocation8 + $0xf8] sm:$0xff]
    %v300 = vld [vmem:[#allocation8 + $0x100] sm:$0xff]
    %v301 = vld [vmem:[#allocation8 + $0x108] sm:$0xff]
    %v302 = vld [vmem:[#allocation8 + $0x110] sm:$0xff]
    %v303 = vld [vmem:[#allocation8 + $0x118] sm:$0xff]
    %v304 = vld [vmem:[#allocation8 + $0x120] sm:$0xff]
    %v305 = vld [vmem:[#allocation8 + $0x128] sm:$0xff]
    %v306 = vld [vmem:[#allocation8 + $0x130] sm:$0xff]
    %v307 = vld [vmem:[#allocation8 + $0x138] sm:$0xff]
    %v308 = vld [vmem:[#allocation8 + $0x140] sm:$0xff]
    %v309 = vld [vmem:[#allocation8 + $0x148] sm:$0xff]
    %v310 = vld [vmem:[#allocation8 + $0x150] sm:$0xff]
    %v311 = vld [vmem:[#allocation8 + $0x158] sm:$0xff]
    %v312 = vld [vmem:[#allocation8 + $0x160] sm:$0xff]
    %v313 = vld [vmem:[#allocation8 + $0x168] sm:$0xff]
    %v314 = vld [vmem:[#allocation8 + $0x170] sm:$0xff]
    %v315 = vld [vmem:[#allocation8 + $0x178] sm:$0xff]
    %v316 = vld [vmem:[#allocation8 + $0x180] sm:$0xff]
    %v317 = vld [vmem:[#allocation8 + $0x188] sm:$0xff]
    %v318 = vld [vmem:[#allocation8 + $0x190] sm:$0xff]
    %v319 = vld [vmem:[#allocation8 + $0x198] sm:$0xff]
    %v320 = vld [vmem:[#allocation8 + $0x1a0] sm:$0xff]
    %v321 = vld [vmem:[#allocation8 + $0x1a8] sm:$0xff]
    %v322 = vld [vmem:[#allocation8 + $0x1b0] sm:$0xff]
    %v323 = vld [vmem:[#allocation8 + $0x1b8] sm:$0xff]
    %v324 = vld [vmem:[#allocation8 + $0x1c0] sm:$0xff]
    %v325 = vld [vmem:[#allocation8 + $0x1c8] sm:$0xff]
    %v326 = vld [vmem:[#allocation8 + $0x1d0] sm:$0xff]
    %v327 = vld [vmem:[#allocation8 + $0x1d8] sm:$0xff]
    %v328 = vld [vmem:[#allocation8 + $0x1e0] sm:$0xff]
    %v329 = vld [vmem:[#allocation8 + $0x1e8] sm:$0xff]
    %v330 = vld [vmem:[#allocation8 + $0x1f0] sm:$0xff]
    %v331 = vld [vmem:[#allocation8 + $0x1f8] sm:$0xff]
    %v332 = vld [vmem:[#allocation8 + $0x200] sm:$0xff]
    %v333 = vld [vmem:[#allocation8 + $0x208] sm:$0xff]
    %v334 = vld [vmem:[#allocation8 + $0x210] sm:$0xff]
    %v335 = vld [vmem:[#allocation8 + $0x218] sm:$0xff]
    %v336 = vld [vmem:[#allocation8 + $0x220] sm:$0xff]
    %v337 = vld [vmem:[#allocation8 + $0x228] sm:$0xff]
    %v338 = vld [vmem:[#allocation8 + $0x230] sm:$0xff]
    %v339 = vld [vmem:[#allocation8 + $0x238] sm:$0xff]
    %v340 = vld [vmem:[#allocation8 + $0x240] sm:$0xff]
    %v341 = vld [vmem:[#allocation8 + $0x248] sm:$0xff]
    %v342 = vld [vmem:[#allocation8 + $0x250] sm:$0xff]
    %v343 = vld [vmem:[#allocation8 + $0x258] sm:$0xff]
    %v344 = vld [vmem:[#allocation8 + $0x260] sm:$0xff]
    %v345 = vld [vmem:[#allocation8 + $0x268] sm:$0xff]
    %v346 = vld [vmem:[#allocation8 + $0x270] sm:$0xff]
    %v347 = vld [vmem:[#allocation8 + $0x278] sm:$0xff]
    %v348 = vld [vmem:[#allocation8 + $0x280] sm:$0xff]
    %v349 = vld [vmem:[#allocation8 + $0x288] sm:$0xff]
    %v350 = vld [vmem:[#allocation8 + $0x290] sm:$0xff]
    %v351 = vld [vmem:[#allocation8 + $0x298] sm:$0xff]
    %v352 = vld [vmem:[#allocation8 + $0x2a0] sm:$0xff]
    %v353 = vld [vmem:[#allocation8 + $0x2a8] sm:$0xff]
    %v354 = vld [vmem:[#allocation8 + $0x2b0] sm:$0xff]
    %v355 = vld [vmem:[#allocation8 + $0x2b8] sm:$0xff]
    %v356 = vld [vmem:[#allocation8 + $0x2c0] sm:$0xff]
    %v357 = vld [vmem:[#allocation8 + $0x2c8] sm:$0xff]
    %v358 = vld [vmem:[#allocation8 + $0x2d0] sm:$0xff]
    %v359 = vld [vmem:[#allocation8 + $0x2d8] sm:$0xff]
    %v360 = vld [vmem:[#allocation8 + $0x2e0] sm:$0xff]
    %v361 = vld [vmem:[#allocation8 + $0x2e8] sm:$0xff]
    %v362 = vld [vmem:[#allocation8 + $0x2f0] sm:$0xff]
    %v363 = vld [vmem:[#allocation8 + $0x2f8] sm:$0xff]
    %v364 = vld [vmem:[#allocation8 + $0x300] sm:$0xff]
    %v365 = vld [vmem:[#allocation8 + $0x308] sm:$0xff]
    %v366 = vld [vmem:[#allocation8 + $0x310] sm:$0xff]
    %v367 = vld [vmem:[#allocation8 + $0x318] sm:$0xff]
    %v368 = vld [vmem:[#allocation8 + $0x320] sm:$0xff]
    %v369 = vld [vmem:[#allocation8 + $0x328] sm:$0xff]
    %v370 = vld [vmem:[#allocation8 + $0x330] sm:$0xff]
    %v371 = vld [vmem:[#allocation8 + $0x338] sm:$0xff]
    %v372 = vld [vmem:[#allocation8 + $0x340] sm:$0xff]
    %v373 = vld [vmem:[#allocation8 + $0x348] sm:$0xff]
    %v374 = vld [vmem:[#allocation8 + $0x350] sm:$0xff]
    %v375 = vld [vmem:[#allocation8 + $0x358] sm:$0xff]
    %v376 = vld [vmem:[#allocation8 + $0x360] sm:$0xff]
    %v377 = vld [vmem:[#allocation8 + $0x368] sm:$0xff]
    %v378 = vld [vmem:[#allocation8 + $0x370] sm:$0xff]
    %v379 = vld [vmem:[#allocation8 + $0x378] sm:$0xff]
    %v380 = vld [vmem:[#allocation8 + $0x380] sm:$0xff]
    %v381 = vld [vmem:[#allocation8 + $0x388] sm:$0xff]
    %v382 = vld [vmem:[#allocation8 + $0x390] sm:$0xff]
    %v383 = vld [vmem:[#allocation8 + $0x398] sm:$0xff]
    %v384 = vld [vmem:[#allocation8 + $0x3a0] sm:$0xff]
    %v385 = vld [vmem:[#allocation8 + $0x3a8] sm:$0xff]
    %v386 = vld [vmem:[#allocation8 + $0x3b0] sm:$0xff]
    %v387 = vld [vmem:[#allocation8 + $0x3b8] sm:$0xff]
    %v388 = vld [vmem:[#allocation8 + $0x3c0] sm:$0xff]
    %v389 = vld [vmem:[#allocation8 + $0x3c8] sm:$0xff]
    %v390 = vld [vmem:[#allocation8 + $0x3d0] sm:$0xff]
    %v391 = vld [vmem:[#allocation8 + $0x3d8] sm:$0xff]
    %v392 = vld [vmem:[#allocation8 + $0x3e0] sm:$0xff]
    %v393 = vld [vmem:[#allocation8 + $0x3e8] sm:$0xff]
    %v394 = vld [vmem:[#allocation8 + $0x3f0] sm:$0xff]
    %v395 = vld [vmem:[#allocation8 + $0x3f8] sm:$0xff]
    %v396 = vld [vmem:[#allocation8 + $0x400] sm:$0xff]
    %v397 = vld [vmem:[#allocation8 + $0x408] sm:$0xff]
    %v398 = vld [vmem:[#allocation8 + $0x410] sm:$0xff]
    %v399 = vld [vmem:[#allocation8 + $0x418] sm:$0xff]
    %v400 = vld [vmem:[#allocation8 + $0x420] sm:$0xff]
    %v401 = vld [vmem:[#allocation8 + $0x428] sm:$0xff]
    %v402 = vld [vmem:[#allocation8 + $0x430] sm:$0xff]
    %v403 = vld [vmem:[#allocation8 + $0x438] sm:$0xff]
    %v404 = vld [vmem:[#allocation8 + $0x440] sm:$0xff]
    %v405 = vld [vmem:[#allocation8 + $0x448] sm:$0xff]
    %v406 = vld [vmem:[#allocation8 + $0x450] sm:$0xff]
    %v407 = vld [vmem:[#allocation8 + $0x458] sm:$0xff]
    %v408 = vld [vmem:[#allocation8 + $0x460] sm:$0xff]
    %v409 = vld [vmem:[#allocation8 + $0x468] sm:$0xff]
    %v410 = vld [vmem:[#allocation8 + $0x470] sm:$0xff]
    %v411 = vld [vmem:[#allocation8 + $0x478] sm:$0xff]
    %v412 = vld [vmem:[#allocation8 + $0x480] sm:$0xff]
    %v413 = vld [vmem:[#allocation8 + $0x488] sm:$0xff]
    %v414 = vld [vmem:[#allocation8 + $0x490] sm:$0xff]
    %v415 = vld [vmem:[#allocation8 + $0x498] sm:$0xff]
    %v416 = vld [vmem:[#allocation8 + $0x4a0] sm:$0xff]
    %v417 = vld [vmem:[#allocation8 + $0x4a8] sm:$0xff]
    %v418 = vld [vmem:[#allocation8 + $0x4b0] sm:$0xff]
    %v419 = vld [vmem:[#allocation8 + $0x4b8] sm:$0xff]
    %v420 = vld [vmem:[#allocation8 + $0x4c0] sm:$0xff]
    %v421 = vld [vmem:[#allocation8 + $0x4c8] sm:$0xff]
    %v422 = vld [vmem:[#allocation8 + $0x4d0] sm:$0xff]
    %v423 = vld [vmem:[#allocation8 + $0x4d8] sm:$0xff]
    %v424 = vld [vmem:[#allocation8 + $0x4e0] sm:$0xff]
    %v425 = vld [vmem:[#allocation8 + $0x4e8] sm:$0xff]
    %v426 = vld [vmem:[#allocation8 + $0x4f0] sm:$0xff]
    %v427 = vld [vmem:[#allocation8 + $0x4f8] sm:$0xff]
    %v428 = vld [vmem:[#allocation8 + $0x500] sm:$0xff]
    %v429 = vld [vmem:[#allocation8 + $0x508] sm:$0xff]
    %v430 = vld [vmem:[#allocation8 + $0x510] sm:$0xff]
    %v431 = vld [vmem:[#allocation8 + $0x518] sm:$0xff]
    %v432 = vld [vmem:[#allocation8 + $0x520] sm:$0xff]
    %v433 = vld [vmem:[#allocation8 + $0x528] sm:$0xff]
    %v434 = vld [vmem:[#allocation8 + $0x530] sm:$0xff]
    %v435 = vld [vmem:[#allocation8 + $0x538] sm:$0xff]
    %v436 = vld [vmem:[#allocation8 + $0x540] sm:$0xff]
    %v437 = vld [vmem:[#allocation8 + $0x548] sm:$0xff]
    %v438 = vld [vmem:[#allocation8 + $0x550] sm:$0xff]
    %v439 = vld [vmem:[#allocation8 + $0x558] sm:$0xff]
    %v440 = vld [vmem:[#allocation8 + $0x560] sm:$0xff]
    %v441 = vld [vmem:[#allocation8 + $0x568] sm:$0xff]
    %v442 = vld [vmem:[#allocation8 + $0x570] sm:$0xff]
    %v443 = vld [vmem:[#allocation8 + $0x578] sm:$0xff]
    %v444 = vld [vmem:[#allocation8 + $0x580] sm:$0xff]
    %v445 = vld [vmem:[#allocation8 + $0x588] sm:$0xff]
    %v446 = vld [vmem:[#allocation8 + $0x590] sm:$0xff]
    %v447 = vld [vmem:[#allocation8 + $0x598] sm:$0xff]
    %v448 = vld [vmem:[#allocation8 + $0x5a0] sm:$0xff]
    %v449 = vld [vmem:[#allocation8 + $0x5a8] sm:$0xff]
    %v450 = vld [vmem:[#allocation8 + $0x5b0] sm:$0xff]
    %v451 = vld [vmem:[#allocation8 + $0x5b8] sm:$0xff]
    %v452 = vld [vmem:[#allocation8 + $0x5c0] sm:$0xff]
    %v453 = vld [vmem:[#allocation8 + $0x5c8] sm:$0xff]
    %v454 = vld [vmem:[#allocation8 + $0x5d0] sm:$0xff]
    %v455 = vld [vmem:[#allocation8 + $0x5d8] sm:$0xff]
    %v456 = vld [vmem:[#allocation8 + $0x5e0] sm:$0xff]
    %v457 = vld [vmem:[#allocation8 + $0x5e8] sm:$0xff]
    %v458 = vld [vmem:[#allocation8 + $0x5f0] sm:$0xff]
    %v459 = vld [vmem:[#allocation8 + $0x5f8] sm:$0xff]
    %v460 = vld [vmem:[#allocation8 + $0x600] sm:$0xff]
    %v461 = vld [vmem:[#allocation8 + $0x608] sm:$0xff]
    %v462 = vld [vmem:[#allocation8 + $0x610] sm:$0xff]
    %v463 = vld [vmem:[#allocation8 + $0x618] sm:$0xff]
    %v464 = vld [vmem:[#allocation8 + $0x620] sm:$0xff]
    %v465 = vld [vmem:[#allocation8 + $0x628] sm:$0xff]
    %v466 = vld [vmem:[#allocation8 + $0x630] sm:$0xff]
    %v467 = vld [vmem:[#allocation8 + $0x638] sm:$0xff]
    %v468 = vld [vmem:[#allocation8 + $0x640] sm:$0xff]
    %v469 = vld [vmem:[#allocation8 + $0x648] sm:$0xff]
    %v470 = vld [vmem:[#allocation8 + $0x650] sm:$0xff]
    %v471 = vld [vmem:[#allocation8 + $0x658] sm:$0xff]
    %v472 = vld [vmem:[#allocation8 + $0x660] sm:$0xff]
    %v473 = vld [vmem:[#allocation8 + $0x668] sm:$0xff]
    %v474 = vld [vmem:[#allocation8 + $0x670] sm:$0xff]
    %v475 = vld [vmem:[#allocation8 + $0x678] sm:$0xff]
    %v476 = vld [vmem:[#allocation8 + $0x680] sm:$0xff]
    %v477 = vld [vmem:[#allocation8 + $0x688] sm:$0xff]
    %v478 = vld [vmem:[#allocation8 + $0x690] sm:$0xff]
    %v479 = vld [vmem:[#allocation8 + $0x698] sm:$0xff]
    %v480 = vld [vmem:[#allocation8 + $0x6a0] sm:$0xff]
    %v481 = vld [vmem:[#allocation8 + $0x6a8] sm:$0xff]
    %v482 = vld [vmem:[#allocation8 + $0x6b0] sm:$0xff]
    %v483 = vld [vmem:[#allocation8 + $0x6b8] sm:$0xff]
    %v484 = vld [vmem:[#allocation8 + $0x6c0] sm:$0xff]
    %v485 = vld [vmem:[#allocation8 + $0x6c8] sm:$0xff]
    %v486 = vld [vmem:[#allocation8 + $0x6d0] sm:$0xff]
    %v487 = vld [vmem:[#allocation8 + $0x6d8] sm:$0xff]
    %v488 = vld [vmem:[#allocation8 + $0x6e0] sm:$0xff]
    %v489 = vld [vmem:[#allocation8 + $0x6e8] sm:$0xff]
    %v490 = vld [vmem:[#allocation8 + $0x6f0] sm:$0xff]
    %v491 = vld [vmem:[#allocation8 + $0x6f8] sm:$0xff]
    %v492 = vld [vmem:[#allocation8 + $0x700] sm:$0xff]
    %v493 = vld [vmem:[#allocation8 + $0x708] sm:$0xff]
    %v494 = vld [vmem:[#allocation8 + $0x710] sm:$0xff]
    %v495 = vld [vmem:[#allocation8 + $0x718] sm:$0xff]
    %v496 = vld [vmem:[#allocation8 + $0x720] sm:$0xff]
    %v497 = vld [vmem:[#allocation8 + $0x728] sm:$0xff]
    %v498 = vld [vmem:[#allocation8 + $0x730] sm:$0xff]
    %v499 = vld [vmem:[#allocation8 + $0x738] sm:$0xff]
    %v500 = vld [vmem:[#allocation8 + $0x740] sm:$0xff]
    %v501 = vld [vmem:[#allocation8 + $0x748] sm:$0xff]
    %v502 = vld [vmem:[#allocation8 + $0x750] sm:$0xff]
    %v503 = vld [vmem:[#allocation8 + $0x758] sm:$0xff]
    %v504 = vld [vmem:[#allocation8 + $0x760] sm:$0xff]
    %v505 = vld [vmem:[#allocation8 + $0x768] sm:$0xff]
    %v506 = vld [vmem:[#allocation8 + $0x770] sm:$0xff]
    %v507 = vld [vmem:[#allocation8 + $0x778] sm:$0xff]
    %v508 = vld [vmem:[#allocation8 + $0x780] sm:$0xff]
    %v509 = vld [vmem:[#allocation8 + $0x788] sm:$0xff]
    %v510 = vld [vmem:[#allocation8 + $0x790] sm:$0xff]
    %v511 = vld [vmem:[#allocation8 + $0x798] sm:$0xff]
    %v512 = vld [vmem:[#allocation8 + $0x7a0] sm:$0xff]
    %v513 = vld [vmem:[#allocation8 + $0x7a8] sm:$0xff]
    %v514 = vld [vmem:[#allocation8 + $0x7b0] sm:$0xff]
    %v515 = vld [vmem:[#allocation8 + $0x7b8] sm:$0xff]
    %v516 = vld [vmem:[#allocation8 + $0x7c0] sm:$0xff]
    %v517 = vld [vmem:[#allocation8 + $0x7c8] sm:$0xff]
    %v518 = vld [vmem:[#allocation8 + $0x7d0] sm:$0xff]
    %v519 = vld [vmem:[#allocation8 + $0x7d8] sm:$0xff]
    %v520 = vld [vmem:[#allocation8 + $0x7e0] sm:$0xff]
    %v521 = vld [vmem:[#allocation8 + $0x7e8] sm:$0xff]
    %v522 = vld [vmem:[#allocation8 + $0x7f0] sm:$0xff]
    %v523 = vld [vmem:[#allocation8 + $0x7f8] sm:$0xff]
    %v524 = vld [vmem:[#allocation10] sm:$0xff]
    %v526 = vperm.slane %v524, 0
    %v527 = vperm.slane %v524, 1
    %v528 = vperm.slane %v524, 2
    %v529 = vperm.slane %v524, 3
    %v530 = vperm.slane %v524, 4
    %v531 = vperm.slane %v524, 5
    %v532 = vperm.slane %v524, 6
    %v533 = vperm.slane %v524, 7
    %v798 = vunpack.c.l.b16 %v268
    %v799 = vunpack.c.h.b16 %v268
    %v800 = vunpack.c.l.b16 %v269
    %v801 = vunpack.c.h.b16 %v269
    %v802 = vunpack.c.l.b16 %v270
    %v803 = vunpack.c.h.b16 %v270
    %v804 = vunpack.c.l.b16 %v271
    %v805 = vunpack.c.h.b16 %v271
    %v806 = vunpack.c.l.b16 %v272
    %v807 = vunpack.c.h.b16 %v272
    %v808 = vunpack.c.l.b16 %v273
    %v809 = vunpack.c.h.b16 %v273
    %v810 = vunpack.c.l.b16 %v274
    %v811 = vunpack.c.h.b16 %v274
    %v812 = vunpack.c.l.b16 %v275
    %v813 = vunpack.c.h.b16 %v275
    %v814 = vunpack.c.l.b16 %v276
    %v815 = vunpack.c.h.b16 %v276
    %v816 = vunpack.c.l.b16 %v277
    %v817 = vunpack.c.h.b16 %v277
    %v818 = vunpack.c.l.b16 %v278
    %v819 = vunpack.c.h.b16 %v278
    %v820 = vunpack.c.l.b16 %v279
    %v821 = vunpack.c.h.b16 %v279
    %v822 = vunpack.c.l.b16 %v280
    %v823 = vunpack.c.h.b16 %v280
    %v824 = vunpack.c.l.b16 %v281
    %v825 = vunpack.c.h.b16 %v281
    %v826 = vunpack.c.l.b16 %v282
    %v827 = vunpack.c.h.b16 %v282
    %v828 = vunpack.c.l.b16 %v283
    %v829 = vunpack.c.h.b16 %v283
    %v830 = vunpack.c.l.b16 %v284
    %v831 = vunpack.c.h.b16 %v284
    %v832 = vunpack.c.l.b16 %v285
    %v833 = vunpack.c.h.b16 %v285
    %v834 = vunpack.c.l.b16 %v286
    %v835 = vunpack.c.h.b16 %v286
    %v836 = vunpack.c.l.b16 %v287
    %v837 = vunpack.c.h.b16 %v287
    %v838 = vunpack.c.l.b16 %v288
    %v839 = vunpack.c.h.b16 %v288
    %v840 = vunpack.c.l.b16 %v289
    %v841 = vunpack.c.h.b16 %v289
    %v842 = vunpack.c.l.b16 %v290
    %v843 = vunpack.c.h.b16 %v290
    %v844 = vunpack.c.l.b16 %v291
    %v845 = vunpack.c.h.b16 %v291
    %v846 = vunpack.c.l.b16 %v292
    %v847 = vunpack.c.h.b16 %v292
    %v848 = vunpack.c.l.b16 %v293
    %v849 = vunpack.c.h.b16 %v293
    %v850 = vunpack.c.l.b16 %v294
    %v851 = vunpack.c.h.b16 %v294
    %v852 = vunpack.c.l.b16 %v295
    %v853 = vunpack.c.h.b16 %v295
    %v854 = vunpack.c.l.b16 %v296
    %v855 = vunpack.c.h.b16 %v296
    %v856 = vunpack.c.l.b16 %v297
    %v857 = vunpack.c.h.b16 %v297
    %v858 = vunpack.c.l.b16 %v298
    %v859 = vunpack.c.h.b16 %v298
    %v860 = vunpack.c.l.b16 %v299
    %v861 = vunpack.c.h.b16 %v299
    %v862 = vunpack.c.l.b16 %v300
    %v863 = vunpack.c.h.b16 %v300
    %v864 = vunpack.c.l.b16 %v301
    %v865 = vunpack.c.h.b16 %v301
    %v866 = vunpack.c.l.b16 %v302
    %v867 = vunpack.c.h.b16 %v302
    %v868 = vunpack.c.l.b16 %v303
    %v869 = vunpack.c.h.b16 %v303
    %v870 = vunpack.c.l.b16 %v304
    %v871 = vunpack.c.h.b16 %v304
    %v872 = vunpack.c.l.b16 %v305
    %v873 = vunpack.c.h.b16 %v305
    %v874 = vunpack.c.l.b16 %v306
    %v875 = vunpack.c.h.b16 %v306
    %v876 = vunpack.c.l.b16 %v307
    %v877 = vunpack.c.h.b16 %v307
    %v878 = vunpack.c.l.b16 %v308
    %v879 = vunpack.c.h.b16 %v308
    %v880 = vunpack.c.l.b16 %v309
    %v881 = vunpack.c.h.b16 %v309
    %v882 = vunpack.c.l.b16 %v310
    %v883 = vunpack.c.h.b16 %v310
    %v884 = vunpack.c.l.b16 %v311
    %v885 = vunpack.c.h.b16 %v311
    %v886 = vunpack.c.l.b16 %v312
    %v887 = vunpack.c.h.b16 %v312
    %v888 = vunpack.c.l.b16 %v313
    %v889 = vunpack.c.h.b16 %v313
    %v890 = vunpack.c.l.b16 %v314
    %v891 = vunpack.c.h.b16 %v314
    %v892 = vunpack.c.l.b16 %v315
    %v893 = vunpack.c.h.b16 %v315
    %v894 = vunpack.c.l.b16 %v316
    %v895 = vunpack.c.h.b16 %v316
    %v896 = vunpack.c.l.b16 %v317
    %v897 = vunpack.c.h.b16 %v317
    %v898 = vunpack.c.l.b16 %v318
    %v899 = vunpack.c.h.b16 %v318
    %v900 = vunpack.c.l.b16 %v319
    %v901 = vunpack.c.h.b16 %v319
    %v902 = vunpack.c.l.b16 %v320
    %v903 = vunpack.c.h.b16 %v320
    %v904 = vunpack.c.l.b16 %v321
    %v905 = vunpack.c.h.b16 %v321
    %v906 = vunpack.c.l.b16 %v322
    %v907 = vunpack.c.h.b16 %v322
    %v908 = vunpack.c.l.b16 %v323
    %v909 = vunpack.c.h.b16 %v323
    %v910 = vunpack.c.l.b16 %v324
    %v911 = vunpack.c.h.b16 %v324
    %v912 = vunpack.c.l.b16 %v325
    %v913 = vunpack.c.h.b16 %v325
    %v914 = vunpack.c.l.b16 %v326
    %v915 = vunpack.c.h.b16 %v326
    %v916 = vunpack.c.l.b16 %v327
    %v917 = vunpack.c.h.b16 %v327
    %v918 = vunpack.c.l.b16 %v328
    %v919 = vunpack.c.h.b16 %v328
    %v920 = vunpack.c.l.b16 %v329
    %v921 = vunpack.c.h.b16 %v329
    %v922 = vunpack.c.l.b16 %v330
    %v923 = vunpack.c.h.b16 %v330
    %v924 = vunpack.c.l.b16 %v331
    %v925 = vunpack.c.h.b16 %v331
    %v926 = vunpack.c.l.b16 %v332
    %v927 = vunpack.c.h.b16 %v332
    %v928 = vunpack.c.l.b16 %v333
    %v929 = vunpack.c.h.b16 %v333
    %v930 = vunpack.c.l.b16 %v334
    %v931 = vunpack.c.h.b16 %v334
    %v932 = vunpack.c.l.b16 %v335
    %v933 = vunpack.c.h.b16 %v335
    %v934 = vunpack.c.l.b16 %v336
    %v935 = vunpack.c.h.b16 %v336
    %v936 = vunpack.c.l.b16 %v337
    %v937 = vunpack.c.h.b16 %v337
    %v938 = vunpack.c.l.b16 %v338
    %v939 = vunpack.c.h.b16 %v338
    %v940 = vunpack.c.l.b16 %v339
    %v941 = vunpack.c.h.b16 %v339
    %v942 = vunpack.c.l.b16 %v340
    %v943 = vunpack.c.h.b16 %v340
    %v944 = vunpack.c.l.b16 %v341
    %v945 = vunpack.c.h.b16 %v341
    %v946 = vunpack.c.l.b16 %v342
    %v947 = vunpack.c.h.b16 %v342
    %v948 = vunpack.c.l.b16 %v343
    %v949 = vunpack.c.h.b16 %v343
    %v950 = vunpack.c.l.b16 %v344
    %v951 = vunpack.c.h.b16 %v344
    %v952 = vunpack.c.l.b16 %v345
    %v953 = vunpack.c.h.b16 %v345
    %v954 = vunpack.c.l.b16 %v346
    %v955 = vunpack.c.h.b16 %v346
    %v956 = vunpack.c.l.b16 %v347
    %v957 = vunpack.c.h.b16 %v347
    %v958 = vunpack.c.l.b16 %v348
    %v959 = vunpack.c.h.b16 %v348
    %v960 = vunpack.c.l.b16 %v349
    %v961 = vunpack.c.h.b16 %v349
    %v962 = vunpack.c.l.b16 %v350
    %v963 = vunpack.c.h.b16 %v350
    %v964 = vunpack.c.l.b16 %v351
    %v965 = vunpack.c.h.b16 %v351
    %v966 = vunpack.c.l.b16 %v352
    %v967 = vunpack.c.h.b16 %v352
    %v968 = vunpack.c.l.b16 %v353
    %v969 = vunpack.c.h.b16 %v353
    %v970 = vunpack.c.l.b16 %v354
    %v971 = vunpack.c.h.b16 %v354
    %v972 = vunpack.c.l.b16 %v355
    %v973 = vunpack.c.h.b16 %v355
    %v974 = vunpack.c.l.b16 %v356
    %v975 = vunpack.c.h.b16 %v356
    %v976 = vunpack.c.l.b16 %v357
    %v977 = vunpack.c.h.b16 %v357
    %v978 = vunpack.c.l.b16 %v358
    %v979 = vunpack.c.h.b16 %v358
    %v980 = vunpack.c.l.b16 %v359
    %v981 = vunpack.c.h.b16 %v359
    %v982 = vunpack.c.l.b16 %v360
    %v983 = vunpack.c.h.b16 %v360
    %v984 = vunpack.c.l.b16 %v361
    %v985 = vunpack.c.h.b16 %v361
    %v986 = vunpack.c.l.b16 %v362
    %v987 = vunpack.c.h.b16 %v362
    %v988 = vunpack.c.l.b16 %v363
    %v989 = vunpack.c.h.b16 %v363
    %v990 = vunpack.c.l.b16 %v364
    %v991 = vunpack.c.h.b16 %v364
    %v992 = vunpack.c.l.b16 %v365
    %v993 = vunpack.c.h.b16 %v365
    %v994 = vunpack.c.l.b16 %v366
    %v995 = vunpack.c.h.b16 %v366
    %v996 = vunpack.c.l.b16 %v367
    %v997 = vunpack.c.h.b16 %v367
    %v998 = vunpack.c.l.b16 %v368
    %v999 = vunpack.c.h.b16 %v368
    %v1000 = vunpack.c.l.b16 %v369
    %v1001 = vunpack.c.h.b16 %v369
    %v1002 = vunpack.c.l.b16 %v370
    %v1003 = vunpack.c.h.b16 %v370
    %v1004 = vunpack.c.l.b16 %v371
    %v1005 = vunpack.c.h.b16 %v371
    %v1006 = vunpack.c.l.b16 %v372
    %v1007 = vunpack.c.h.b16 %v372
    %v1008 = vunpack.c.l.b16 %v373
    %v1009 = vunpack.c.h.b16 %v373
    %v1010 = vunpack.c.l.b16 %v374
    %v1011 = vunpack.c.h.b16 %v374
    %v1012 = vunpack.c.l.b16 %v375
    %v1013 = vunpack.c.h.b16 %v375
    %v1014 = vunpack.c.l.b16 %v376
    %v1015 = vunpack.c.h.b16 %v376
    %v1016 = vunpack.c.l.b16 %v377
    %v1017 = vunpack.c.h.b16 %v377
    %v1018 = vunpack.c.l.b16 %v378
    %v1019 = vunpack.c.h.b16 %v378
    %v1020 = vunpack.c.l.b16 %v379
    %v1021 = vunpack.c.h.b16 %v379
    %v1022 = vunpack.c.l.b16 %v380
    %v1023 = vunpack.c.h.b16 %v380
    %v1024 = vunpack.c.l.b16 %v381
    %v1025 = vunpack.c.h.b16 %v381
    %v1026 = vunpack.c.l.b16 %v382
    %v1027 = vunpack.c.h.b16 %v382
    %v1028 = vunpack.c.l.b16 %v383
    %v1029 = vunpack.c.h.b16 %v383
    %v1030 = vunpack.c.l.b16 %v384
    %v1031 = vunpack.c.h.b16 %v384
    %v1032 = vunpack.c.l.b16 %v385
    %v1033 = vunpack.c.h.b16 %v385
    %v1034 = vunpack.c.l.b16 %v386
    %v1035 = vunpack.c.h.b16 %v386
    %v1036 = vunpack.c.l.b16 %v387
    %v1037 = vunpack.c.h.b16 %v387
    %v1038 = vunpack.c.l.b16 %v388
    %v1039 = vunpack.c.h.b16 %v388
    %v1040 = vunpack.c.l.b16 %v389
    %v1041 = vunpack.c.h.b16 %v389
    %v1042 = vunpack.c.l.b16 %v390
    %v1043 = vunpack.c.h.b16 %v390
    %v1044 = vunpack.c.l.b16 %v391
    %v1045 = vunpack.c.h.b16 %v391
    %v1046 = vunpack.c.l.b16 %v392
    %v1047 = vunpack.c.h.b16 %v392
    %v1048 = vunpack.c.l.b16 %v393
    %v1049 = vunpack.c.h.b16 %v393
    %v1050 = vunpack.c.l.b16 %v394
    %v1051 = vunpack.c.h.b16 %v394
    %v1052 = vunpack.c.l.b16 %v395
    %v1053 = vunpack.c.h.b16 %v395
    %v1054 = vunpack.c.l.b16 %v396
    %v1055 = vunpack.c.h.b16 %v396
    %v1056 = vunpack.c.l.b16 %v397
    %v1057 = vunpack.c.h.b16 %v397
    %v1058 = vunpack.c.l.b16 %v398
    %v1059 = vunpack.c.h.b16 %v398
    %v1060 = vunpack.c.l.b16 %v399
    %v1061 = vunpack.c.h.b16 %v399
    %v1062 = vunpack.c.l.b16 %v400
    %v1063 = vunpack.c.h.b16 %v400
    %v1064 = vunpack.c.l.b16 %v401
    %v1065 = vunpack.c.h.b16 %v401
    %v1066 = vunpack.c.l.b16 %v402
    %v1067 = vunpack.c.h.b16 %v402
    %v1068 = vunpack.c.l.b16 %v403
    %v1069 = vunpack.c.h.b16 %v403
    %v1070 = vunpack.c.l.b16 %v404
    %v1071 = vunpack.c.h.b16 %v404
    %v1072 = vunpack.c.l.b16 %v405
    %v1073 = vunpack.c.h.b16 %v405
    %v1074 = vunpack.c.l.b16 %v406
    %v1075 = vunpack.c.h.b16 %v406
    %v1076 = vunpack.c.l.b16 %v407
    %v1077 = vunpack.c.h.b16 %v407
    %v1078 = vunpack.c.l.b16 %v408
    %v1079 = vunpack.c.h.b16 %v408
    %v1080 = vunpack.c.l.b16 %v409
    %v1081 = vunpack.c.h.b16 %v409
    %v1082 = vunpack.c.l.b16 %v410
    %v1083 = vunpack.c.h.b16 %v410
    %v1084 = vunpack.c.l.b16 %v411
    %v1085 = vunpack.c.h.b16 %v411
    %v1086 = vunpack.c.l.b16 %v412
    %v1087 = vunpack.c.h.b16 %v412
    %v1088 = vunpack.c.l.b16 %v413
    %v1089 = vunpack.c.h.b16 %v413
    %v1090 = vunpack.c.l.b16 %v414
    %v1091 = vunpack.c.h.b16 %v414
    %v1092 = vunpack.c.l.b16 %v415
    %v1093 = vunpack.c.h.b16 %v415
    %v1094 = vunpack.c.l.b16 %v416
    %v1095 = vunpack.c.h.b16 %v416
    %v1096 = vunpack.c.l.b16 %v417
    %v1097 = vunpack.c.h.b16 %v417
    %v1098 = vunpack.c.l.b16 %v418
    %v1099 = vunpack.c.h.b16 %v418
    %v1100 = vunpack.c.l.b16 %v419
    %v1101 = vunpack.c.h.b16 %v419
    %v1102 = vunpack.c.l.b16 %v420
    %v1103 = vunpack.c.h.b16 %v420
    %v1104 = vunpack.c.l.b16 %v421
    %v1105 = vunpack.c.h.b16 %v421
    %v1106 = vunpack.c.l.b16 %v422
    %v1107 = vunpack.c.h.b16 %v422
    %v1108 = vunpack.c.l.b16 %v423
    %v1109 = vunpack.c.h.b16 %v423
    %v1110 = vunpack.c.l.b16 %v424
    %v1111 = vunpack.c.h.b16 %v424
    %v1112 = vunpack.c.l.b16 %v425
    %v1113 = vunpack.c.h.b16 %v425
    %v1114 = vunpack.c.l.b16 %v426
    %v1115 = vunpack.c.h.b16 %v426
    %v1116 = vunpack.c.l.b16 %v427
    %v1117 = vunpack.c.h.b16 %v427
    %v1118 = vunpack.c.l.b16 %v428
    %v1119 = vunpack.c.h.b16 %v428
    %v1120 = vunpack.c.l.b16 %v429
    %v1121 = vunpack.c.h.b16 %v429
    %v1122 = vunpack.c.l.b16 %v430
    %v1123 = vunpack.c.h.b16 %v430
    %v1124 = vunpack.c.l.b16 %v431
    %v1125 = vunpack.c.h.b16 %v431
    %v1126 = vunpack.c.l.b16 %v432
    %v1127 = vunpack.c.h.b16 %v432
    %v1128 = vunpack.c.l.b16 %v433
    %v1129 = vunpack.c.h.b16 %v433
    %v1130 = vunpack.c.l.b16 %v434
    %v1131 = vunpack.c.h.b16 %v434
    %v1132 = vunpack.c.l.b16 %v435
    %v1133 = vunpack.c.h.b16 %v435
    %v1134 = vunpack.c.l.b16 %v436
    %v1135 = vunpack.c.h.b16 %v436
    %v1136 = vunpack.c.l.b16 %v437
    %v1137 = vunpack.c.h.b16 %v437
    %v1138 = vunpack.c.l.b16 %v438
    %v1139 = vunpack.c.h.b16 %v438
    %v1140 = vunpack.c.l.b16 %v439
    %v1141 = vunpack.c.h.b16 %v439
    %v1142 = vunpack.c.l.b16 %v440
    %v1143 = vunpack.c.h.b16 %v440
    %v1144 = vunpack.c.l.b16 %v441
    %v1145 = vunpack.c.h.b16 %v441
    %v1146 = vunpack.c.l.b16 %v442
    %v1147 = vunpack.c.h.b16 %v442
    %v1148 = vunpack.c.l.b16 %v443
    %v1149 = vunpack.c.h.b16 %v443
    %v1150 = vunpack.c.l.b16 %v444
    %v1151 = vunpack.c.h.b16 %v444
    %v1152 = vunpack.c.l.b16 %v445
    %v1153 = vunpack.c.h.b16 %v445
    %v1154 = vunpack.c.l.b16 %v446
    %v1155 = vunpack.c.h.b16 %v446
    %v1156 = vunpack.c.l.b16 %v447
    %v1157 = vunpack.c.h.b16 %v447
    %v1158 = vunpack.c.l.b16 %v448
    %v1159 = vunpack.c.h.b16 %v448
    %v1160 = vunpack.c.l.b16 %v449
    %v1161 = vunpack.c.h.b16 %v449
    %v1162 = vunpack.c.l.b16 %v450
    %v1163 = vunpack.c.h.b16 %v450
    %v1164 = vunpack.c.l.b16 %v451
    %v1165 = vunpack.c.h.b16 %v451
    %v1166 = vunpack.c.l.b16 %v452
    %v1167 = vunpack.c.h.b16 %v452
    %v1168 = vunpack.c.l.b16 %v453
    %v1169 = vunpack.c.h.b16 %v453
    %v1170 = vunpack.c.l.b16 %v454
    %v1171 = vunpack.c.h.b16 %v454
    %v1172 = vunpack.c.l.b16 %v455
    %v1173 = vunpack.c.h.b16 %v455
    %v1174 = vunpack.c.l.b16 %v456
    %v1175 = vunpack.c.h.b16 %v456
    %v1176 = vunpack.c.l.b16 %v457
    %v1177 = vunpack.c.h.b16 %v457
    %v1178 = vunpack.c.l.b16 %v458
    %v1179 = vunpack.c.h.b16 %v458
    %v1180 = vunpack.c.l.b16 %v459
    %v1181 = vunpack.c.h.b16 %v459
    %v1182 = vunpack.c.l.b16 %v460
    %v1183 = vunpack.c.h.b16 %v460
    %v1184 = vunpack.c.l.b16 %v461
    %v1185 = vunpack.c.h.b16 %v461
    %v1186 = vunpack.c.l.b16 %v462
    %v1187 = vunpack.c.h.b16 %v462
    %v1188 = vunpack.c.l.b16 %v463
    %v1189 = vunpack.c.h.b16 %v463
    %v1190 = vunpack.c.l.b16 %v464
    %v1191 = vunpack.c.h.b16 %v464
    %v1192 = vunpack.c.l.b16 %v465
    %v1193 = vunpack.c.h.b16 %v465
    %v1194 = vunpack.c.l.b16 %v466
    %v1195 = vunpack.c.h.b16 %v466
    %v1196 = vunpack.c.l.b16 %v467
    %v1197 = vunpack.c.h.b16 %v467
    %v1198 = vunpack.c.l.b16 %v468
    %v1199 = vunpack.c.h.b16 %v468
    %v1200 = vunpack.c.l.b16 %v469
    %v1201 = vunpack.c.h.b16 %v469
    %v1202 = vunpack.c.l.b16 %v470
    %v1203 = vunpack.c.h.b16 %v470
    %v1204 = vunpack.c.l.b16 %v471
    %v1205 = vunpack.c.h.b16 %v471
    %v1206 = vunpack.c.l.b16 %v472
    %v1207 = vunpack.c.h.b16 %v472
    %v1208 = vunpack.c.l.b16 %v473
    %v1209 = vunpack.c.h.b16 %v473
    %v1210 = vunpack.c.l.b16 %v474
    %v1211 = vunpack.c.h.b16 %v474
    %v1212 = vunpack.c.l.b16 %v475
    %v1213 = vunpack.c.h.b16 %v475
    %v1214 = vunpack.c.l.b16 %v476
    %v1215 = vunpack.c.h.b16 %v476
    %v1216 = vunpack.c.l.b16 %v477
    %v1217 = vunpack.c.h.b16 %v477
    %v1218 = vunpack.c.l.b16 %v478
    %v1219 = vunpack.c.h.b16 %v478
    %v1220 = vunpack.c.l.b16 %v479
    %v1221 = vunpack.c.h.b16 %v479
    %v1222 = vunpack.c.l.b16 %v480
    %v1223 = vunpack.c.h.b16 %v480
    %v1224 = vunpack.c.l.b16 %v481
    %v1225 = vunpack.c.h.b16 %v481
    %v1226 = vunpack.c.l.b16 %v482
    %v1227 = vunpack.c.h.b16 %v482
    %v1228 = vunpack.c.l.b16 %v483
    %v1229 = vunpack.c.h.b16 %v483
    %v1230 = vunpack.c.l.b16 %v484
    %v1231 = vunpack.c.h.b16 %v484
    %v1232 = vunpack.c.l.b16 %v485
    %v1233 = vunpack.c.h.b16 %v485
    %v1234 = vunpack.c.l.b16 %v486
    %v1235 = vunpack.c.h.b16 %v486
    %v1236 = vunpack.c.l.b16 %v487
    %v1237 = vunpack.c.h.b16 %v487
    %v1238 = vunpack.c.l.b16 %v488
    %v1239 = vunpack.c.h.b16 %v488
    %v1240 = vunpack.c.l.b16 %v489
    %v1241 = vunpack.c.h.b16 %v489
    %v1242 = vunpack.c.l.b16 %v490
    %v1243 = vunpack.c.h.b16 %v490
    %v1244 = vunpack.c.l.b16 %v491
    %v1245 = vunpack.c.h.b16 %v491
    %v1246 = vunpack.c.l.b16 %v492
    %v1247 = vunpack.c.h.b16 %v492
    %v1248 = vunpack.c.l.b16 %v493
    %v1249 = vunpack.c.h.b16 %v493
    %v1250 = vunpack.c.l.b16 %v494
    %v1251 = vunpack.c.h.b16 %v494
    %v1252 = vunpack.c.l.b16 %v495
    %v1253 = vunpack.c.h.b16 %v495
    %v1254 = vunpack.c.l.b16 %v496
    %v1255 = vunpack.c.h.b16 %v496
    %v1256 = vunpack.c.l.b16 %v497
    %v1257 = vunpack.c.h.b16 %v497
    %v1258 = vunpack.c.l.b16 %v498
    %v1259 = vunpack.c.h.b16 %v498
    %v1260 = vunpack.c.l.b16 %v499
    %v1261 = vunpack.c.h.b16 %v499
    %v1262 = vunpack.c.l.b16 %v500
    %v1263 = vunpack.c.h.b16 %v500
    %v1264 = vunpack.c.l.b16 %v501
    %v1265 = vunpack.c.h.b16 %v501
    %v1266 = vunpack.c.l.b16 %v502
    %v1267 = vunpack.c.h.b16 %v502
    %v1268 = vunpack.c.l.b16 %v503
    %v1269 = vunpack.c.h.b16 %v503
    %v1270 = vunpack.c.l.b16 %v504
    %v1271 = vunpack.c.h.b16 %v504
    %v1272 = vunpack.c.l.b16 %v505
    %v1273 = vunpack.c.h.b16 %v505
    %v1274 = vunpack.c.l.b16 %v506
    %v1275 = vunpack.c.h.b16 %v506
    %v1276 = vunpack.c.l.b16 %v507
    %v1277 = vunpack.c.h.b16 %v507
    %v1278 = vunpack.c.l.b16 %v508
    %v1279 = vunpack.c.h.b16 %v508
    %v1280 = vunpack.c.l.b16 %v509
    %v1281 = vunpack.c.h.b16 %v509
    %v1282 = vunpack.c.l.b16 %v510
    %v1283 = vunpack.c.h.b16 %v510
    %v1284 = vunpack.c.l.b16 %v511
    %v1285 = vunpack.c.h.b16 %v511
    %v1286 = vunpack.c.l.b16 %v512
    %v1287 = vunpack.c.h.b16 %v512
    %v1288 = vunpack.c.l.b16 %v513
    %v1289 = vunpack.c.h.b16 %v513
    %v1290 = vunpack.c.l.b16 %v514
    %v1291 = vunpack.c.h.b16 %v514
    %v1292 = vunpack.c.l.b16 %v515
    %v1293 = vunpack.c.h.b16 %v515
    %v1294 = vunpack.c.l.b16 %v516
    %v1295 = vunpack.c.h.b16 %v516
    %v1296 = vunpack.c.l.b16 %v517
    %v1297 = vunpack.c.h.b16 %v517
    %v1298 = vunpack.c.l.b16 %v518
    %v1299 = vunpack.c.h.b16 %v518
    %v1300 = vunpack.c.l.b16 %v519
    %v1301 = vunpack.c.h.b16 %v519
    %v1302 = vunpack.c.l.b16 %v520
    %v1303 = vunpack.c.h.b16 %v520
    %v1304 = vunpack.c.l.b16 %v521
    %v1305 = vunpack.c.h.b16 %v521
    %v1306 = vunpack.c.l.b16 %v522
    %v1307 = vunpack.c.h.b16 %v522
    %v1308 = vunpack.c.l.b16 %v523
    %v1309 = vunpack.c.h.b16 %v523
    %v1310 = vpack.c.b16 %v806, %v798
    %v1311 = vpack.c.b16 %v807, %v799
    %v1312 = vpack.c.b16 %v808, %v800
    %v1313 = vpack.c.b16 %v809, %v801
    %v1314 = vpack.c.b16 %v810, %v802
    %v1315 = vpack.c.b16 %v811, %v803
    %v1316 = vpack.c.b16 %v812, %v804
    %v1317 = vpack.c.b16 %v813, %v805
    %v1318 = vpack.c.b16 %v822, %v814
    %v1319 = vpack.c.b16 %v823, %v815
    %v1320 = vpack.c.b16 %v824, %v816
    %v1321 = vpack.c.b16 %v825, %v817
    %v1322 = vpack.c.b16 %v826, %v818
    %v1323 = vpack.c.b16 %v827, %v819
    %v1324 = vpack.c.b16 %v828, %v820
    %v1325 = vpack.c.b16 %v829, %v821
    %v1326 = vpack.c.b16 %v838, %v830
    %v1327 = vpack.c.b16 %v839, %v831
    %v1328 = vpack.c.b16 %v840, %v832
    %v1329 = vpack.c.b16 %v841, %v833
    %v1330 = vpack.c.b16 %v842, %v834
    %v1331 = vpack.c.b16 %v843, %v835
    %v1332 = vpack.c.b16 %v844, %v836
    %v1333 = vpack.c.b16 %v845, %v837
    %v1334 = vpack.c.b16 %v854, %v846
    %v1335 = vpack.c.b16 %v855, %v847
    %v1336 = vpack.c.b16 %v856, %v848
    %v1337 = vpack.c.b16 %v857, %v849
    %v1338 = vpack.c.b16 %v858, %v850
    %v1339 = vpack.c.b16 %v859, %v851
    %v1340 = vpack.c.b16 %v860, %v852
    %v1341 = vpack.c.b16 %v861, %v853
    %v1342 = vpack.c.b16 %v870, %v862
    %v1343 = vpack.c.b16 %v871, %v863
    %v1344 = vpack.c.b16 %v872, %v864
    %v1345 = vpack.c.b16 %v873, %v865
    %v1346 = vpack.c.b16 %v874, %v866
    %v1347 = vpack.c.b16 %v875, %v867
    %v1348 = vpack.c.b16 %v876, %v868
    %v1349 = vpack.c.b16 %v877, %v869
    %v1350 = vpack.c.b16 %v886, %v878
    %v1351 = vpack.c.b16 %v887, %v879
    %v1352 = vpack.c.b16 %v888, %v880
    %v1353 = vpack.c.b16 %v889, %v881
    %v1354 = vpack.c.b16 %v890, %v882
    %v1355 = vpack.c.b16 %v891, %v883
    %v1356 = vpack.c.b16 %v892, %v884
    %v1357 = vpack.c.b16 %v893, %v885
    %v1358 = vpack.c.b16 %v902, %v894
    %v1359 = vpack.c.b16 %v903, %v895
    %v1360 = vpack.c.b16 %v904, %v896
    %v1361 = vpack.c.b16 %v905, %v897
    %v1362 = vpack.c.b16 %v906, %v898
    %v1363 = vpack.c.b16 %v907, %v899
    %v1364 = vpack.c.b16 %v908, %v900
    %v1365 = vpack.c.b16 %v909, %v901
    %v1366 = vpack.c.b16 %v918, %v910
    %v1367 = vpack.c.b16 %v919, %v911
    %v1368 = vpack.c.b16 %v920, %v912
    %v1369 = vpack.c.b16 %v921, %v913
    %v1370 = vpack.c.b16 %v922, %v914
    %v1371 = vpack.c.b16 %v923, %v915
    %v1372 = vpack.c.b16 %v924, %v916
    %v1373 = vpack.c.b16 %v925, %v917
    %v1374 = vpack.c.b16 %v934, %v926
    %v1375 = vpack.c.b16 %v935, %v927
    %v1376 = vpack.c.b16 %v936, %v928
    %v1377 = vpack.c.b16 %v937, %v929
    %v1378 = vpack.c.b16 %v938, %v930
    %v1379 = vpack.c.b16 %v939, %v931
    %v1380 = vpack.c.b16 %v940, %v932
    %v1381 = vpack.c.b16 %v941, %v933
    %v1382 = vpack.c.b16 %v950, %v942
    %v1383 = vpack.c.b16 %v951, %v943
    %v1384 = vpack.c.b16 %v952, %v944
    %v1385 = vpack.c.b16 %v953, %v945
    %v1386 = vpack.c.b16 %v954, %v946
    %v1387 = vpack.c.b16 %v955, %v947
    %v1388 = vpack.c.b16 %v956, %v948
    %v1389 = vpack.c.b16 %v957, %v949
    %v1390 = vpack.c.b16 %v966, %v958
    %v1391 = vpack.c.b16 %v967, %v959
    %v1392 = vpack.c.b16 %v968, %v960
    %v1393 = vpack.c.b16 %v969, %v961
    %v1394 = vpack.c.b16 %v970, %v962
    %v1395 = vpack.c.b16 %v971, %v963
    %v1396 = vpack.c.b16 %v972, %v964
    %v1397 = vpack.c.b16 %v973, %v965
    %v1398 = vpack.c.b16 %v982, %v974
    %v1399 = vpack.c.b16 %v983, %v975
    %v1400 = vpack.c.b16 %v984, %v976
    %v1401 = vpack.c.b16 %v985, %v977
    %v1402 = vpack.c.b16 %v986, %v978
    %v1403 = vpack.c.b16 %v987, %v979
    %v1404 = vpack.c.b16 %v988, %v980
    %v1405 = vpack.c.b16 %v989, %v981
    %v1406 = vpack.c.b16 %v998, %v990
    %v1407 = vpack.c.b16 %v999, %v991
    %v1408 = vpack.c.b16 %v1000, %v992
    %v1409 = vpack.c.b16 %v1001, %v993
    %v1410 = vpack.c.b16 %v1002, %v994
    %v1411 = vpack.c.b16 %v1003, %v995
    %v1412 = vpack.c.b16 %v1004, %v996
    %v1413 = vpack.c.b16 %v1005, %v997
    %v1414 = vpack.c.b16 %v1014, %v1006
    %v1415 = vpack.c.b16 %v1015, %v1007
    %v1416 = vpack.c.b16 %v1016, %v1008
    %v1417 = vpack.c.b16 %v1017, %v1009
    %v1418 = vpack.c.b16 %v1018, %v1010
    %v1419 = vpack.c.b16 %v1019, %v1011
    %v1420 = vpack.c.b16 %v1020, %v1012
    %v1421 = vpack.c.b16 %v1021, %v1013
    %v1422 = vpack.c.b16 %v1030, %v1022
    %v1423 = vpack.c.b16 %v1031, %v1023
    %v1424 = vpack.c.b16 %v1032, %v1024
    %v1425 = vpack.c.b16 %v1033, %v1025
    %v1426 = vpack.c.b16 %v1034, %v1026
    %v1427 = vpack.c.b16 %v1035, %v1027
    %v1428 = vpack.c.b16 %v1036, %v1028
    %v1429 = vpack.c.b16 %v1037, %v1029
    %v1430 = vpack.c.b16 %v1046, %v1038
    %v1431 = vpack.c.b16 %v1047, %v1039
    %v1432 = vpack.c.b16 %v1048, %v1040
    %v1433 = vpack.c.b16 %v1049, %v1041
    %v1434 = vpack.c.b16 %v1050, %v1042
    %v1435 = vpack.c.b16 %v1051, %v1043
    %v1436 = vpack.c.b16 %v1052, %v1044
    %v1437 = vpack.c.b16 %v1053, %v1045
    %v1438 = vpack.c.b16 %v1062, %v1054
    %v1439 = vpack.c.b16 %v1063, %v1055
    %v1440 = vpack.c.b16 %v1064, %v1056
    %v1441 = vpack.c.b16 %v1065, %v1057
    %v1442 = vpack.c.b16 %v1066, %v1058
    %v1443 = vpack.c.b16 %v1067, %v1059
    %v1444 = vpack.c.b16 %v1068, %v1060
    %v1445 = vpack.c.b16 %v1069, %v1061
    %v1446 = vpack.c.b16 %v1078, %v1070
    %v1447 = vpack.c.b16 %v1079, %v1071
    %v1448 = vpack.c.b16 %v1080, %v1072
    %v1449 = vpack.c.b16 %v1081, %v1073
    %v1450 = vpack.c.b16 %v1082, %v1074
    %v1451 = vpack.c.b16 %v1083, %v1075
    %v1452 = vpack.c.b16 %v1084, %v1076
    %v1453 = vpack.c.b16 %v1085, %v1077
    %v1454 = vpack.c.b16 %v1094, %v1086
    %v1455 = vpack.c.b16 %v1095, %v1087
    %v1456 = vpack.c.b16 %v1096, %v1088
    %v1457 = vpack.c.b16 %v1097, %v1089
    %v1458 = vpack.c.b16 %v1098, %v1090
    %v1459 = vpack.c.b16 %v1099, %v1091
    %v1460 = vpack.c.b16 %v1100, %v1092
    %v1461 = vpack.c.b16 %v1101, %v1093
    %v1462 = vpack.c.b16 %v1110, %v1102
    %v1463 = vpack.c.b16 %v1111, %v1103
    %v1464 = vpack.c.b16 %v1112, %v1104
    %v1465 = vpack.c.b16 %v1113, %v1105
    %v1466 = vpack.c.b16 %v1114, %v1106
    %v1467 = vpack.c.b16 %v1115, %v1107
    %v1468 = vpack.c.b16 %v1116, %v1108
    %v1469 = vpack.c.b16 %v1117, %v1109
    %v1470 = vpack.c.b16 %v1126, %v1118
    %v1471 = vpack.c.b16 %v1127, %v1119
    %v1472 = vpack.c.b16 %v1128, %v1120
    %v1473 = vpack.c.b16 %v1129, %v1121
    %v1474 = vpack.c.b16 %v1130, %v1122
    %v1475 = vpack.c.b16 %v1131, %v1123
    %v1476 = vpack.c.b16 %v1132, %v1124
    %v1477 = vpack.c.b16 %v1133, %v1125
    %v1478 = vpack.c.b16 %v1142, %v1134
    %v1479 = vpack.c.b16 %v1143, %v1135
    %v1480 = vpack.c.b16 %v1144, %v1136
    %v1481 = vpack.c.b16 %v1145, %v1137
    %v1482 = vpack.c.b16 %v1146, %v1138
    %v1483 = vpack.c.b16 %v1147, %v1139
    %v1484 = vpack.c.b16 %v1148, %v1140
    %v1485 = vpack.c.b16 %v1149, %v1141
    %v1486 = vpack.c.b16 %v1158, %v1150
    %v1487 = vpack.c.b16 %v1159, %v1151
    %v1488 = vpack.c.b16 %v1160, %v1152
    %v1489 = vpack.c.b16 %v1161, %v1153
    %v1490 = vpack.c.b16 %v1162, %v1154
    %v1491 = vpack.c.b16 %v1163, %v1155
    %v1492 = vpack.c.b16 %v1164, %v1156
    %v1493 = vpack.c.b16 %v1165, %v1157
    %v1494 = vpack.c.b16 %v1174, %v1166
    %v1495 = vpack.c.b16 %v1175, %v1167
    %v1496 = vpack.c.b16 %v1176, %v1168
    %v1497 = vpack.c.b16 %v1177, %v1169
    %v1498 = vpack.c.b16 %v1178, %v1170
    %v1499 = vpack.c.b16 %v1179, %v1171
    %v1500 = vpack.c.b16 %v1180, %v1172
    %v1501 = vpack.c.b16 %v1181, %v1173
    %v1502 = vpack.c.b16 %v1190, %v1182
    %v1503 = vpack.c.b16 %v1191, %v1183
    %v1504 = vpack.c.b16 %v1192, %v1184
    %v1505 = vpack.c.b16 %v1193, %v1185
    %v1506 = vpack.c.b16 %v1194, %v1186
    %v1507 = vpack.c.b16 %v1195, %v1187
    %v1508 = vpack.c.b16 %v1196, %v1188
    %v1509 = vpack.c.b16 %v1197, %v1189
    %v1510 = vpack.c.b16 %v1206, %v1198
    %v1511 = vpack.c.b16 %v1207, %v1199
    %v1512 = vpack.c.b16 %v1208, %v1200
    %v1513 = vpack.c.b16 %v1209, %v1201
    %v1514 = vpack.c.b16 %v1210, %v1202
    %v1515 = vpack.c.b16 %v1211, %v1203
    %v1516 = vpack.c.b16 %v1212, %v1204
    %v1517 = vpack.c.b16 %v1213, %v1205
    %v1518 = vpack.c.b16 %v1222, %v1214
    %v1519 = vpack.c.b16 %v1223, %v1215
    %v1520 = vpack.c.b16 %v1224, %v1216
    %v1521 = vpack.c.b16 %v1225, %v1217
    %v1522 = vpack.c.b16 %v1226, %v1218
    %v1523 = vpack.c.b16 %v1227, %v1219
    %v1524 = vpack.c.b16 %v1228, %v1220
    %v1525 = vpack.c.b16 %v1229, %v1221
    %v1526 = vpack.c.b16 %v1238, %v1230
    %v1527 = vpack.c.b16 %v1239, %v1231
    %v1528 = vpack.c.b16 %v1240, %v1232
    %v1529 = vpack.c.b16 %v1241, %v1233
    %v1530 = vpack.c.b16 %v1242, %v1234
    %v1531 = vpack.c.b16 %v1243, %v1235
    %v1532 = vpack.c.b16 %v1244, %v1236
    %v1533 = vpack.c.b16 %v1245, %v1237
    %v1534 = vpack.c.b16 %v1254, %v1246
    %v1535 = vpack.c.b16 %v1255, %v1247
    %v1536 = vpack.c.b16 %v1256, %v1248
    %v1537 = vpack.c.b16 %v1257, %v1249
    %v1538 = vpack.c.b16 %v1258, %v1250
    %v1539 = vpack.c.b16 %v1259, %v1251
    %v1540 = vpack.c.b16 %v1260, %v1252
    %v1541 = vpack.c.b16 %v1261, %v1253
    %v1542 = vpack.c.b16 %v1270, %v1262
    %v1543 = vpack.c.b16 %v1271, %v1263
    %v1544 = vpack.c.b16 %v1272, %v1264
    %v1545 = vpack.c.b16 %v1273, %v1265
    %v1546 = vpack.c.b16 %v1274, %v1266
    %v1547 = vpack.c.b16 %v1275, %v1267
    %v1548 = vpack.c.b16 %v1276, %v1268
    %v1549 = vpack.c.b16 %v1277, %v1269
    %v1550 = vpack.c.b16 %v1286, %v1278
    %v1551 = vpack.c.b16 %v1287, %v1279
    %v1552 = vpack.c.b16 %v1288, %v1280
    %v1553 = vpack.c.b16 %v1289, %v1281
    %v1554 = vpack.c.b16 %v1290, %v1282
    %v1555 = vpack.c.b16 %v1291, %v1283
    %v1556 = vpack.c.b16 %v1292, %v1284
    %v1557 = vpack.c.b16 %v1293, %v1285
    %v1558 = vpack.c.b16 %v1302, %v1294
    %v1559 = vpack.c.b16 %v1303, %v1295
    %v1560 = vpack.c.b16 %v1304, %v1296
    %v1561 = vpack.c.b16 %v1305, %v1297
    %v1562 = vpack.c.b16 %v1306, %v1298
    %v1563 = vpack.c.b16 %v1307, %v1299
    %v1564 = vpack.c.b16 %v1308, %v1300
    %v1565 = vpack.c.b16 %v1309, %v1301
    %1822 = vmatpush.bf16.msra.mxu0 %v1366
    %1823 = vmatpush.bf16.msra.mxu0 %v1358
    %1824 = vmatpush.bf16.msra.mxu0 %v1350
    %1825 = vmatpush.bf16.msra.mxu0 %v1342
    %1826 = vmatpush.bf16.msra.mxu0 %v1334
    %1827 = vmatpush.bf16.msra.mxu0 %v1326
    %1828 = vmatpush.bf16.msra.mxu0 %v1318
    %1829 = vmatpush.bf16.msra.mxu0 %v1310
    %1830 = vmatmul.bf16.gmra.mxu0 %v264
    %v1831 = vpop.f32.mrf.mxu0
    %v1832 = vadd.f32 %v526, %v1831
    %v1833 = vpop.f32.mrf.mxu0
    %v1834 = vadd.f32 %v526, %v1833
    %1835 = vdwg.mxu0
    %1836 = vmatpush.bf16.msra.mxu0 %v1430
    %1837 = vmatpush.bf16.msra.mxu0 %v1422
    %1838 = vmatpush.bf16.msra.mxu0 %v1414
    %1839 = vmatpush.bf16.msra.mxu0 %v1406
    %1840 = vmatpush.bf16.msra.mxu0 %v1398
    %1841 = vmatpush.bf16.msra.mxu0 %v1390
    %1842 = vmatpush.bf16.msra.mxu0 %v1382
    %1843 = vmatpush.bf16.msra.mxu0 %v1374
    %1844 = vmatmul.bf16.gmra.mxu0 %v265
    %v1845 = vpop.f32.mrf.mxu0
    %v1846 = vadd.f32 %v1832, %v1845
    %v1847 = vpop.f32.mrf.mxu0
    %v1848 = vadd.f32 %v1834, %v1847
    %1849 = vdwg.mxu0
    %1850 = vmatpush.bf16.msra.mxu0 %v1494
    %1851 = vmatpush.bf16.msra.mxu0 %v1486
    %1852 = vmatpush.bf16.msra.mxu0 %v1478
    %1853 = vmatpush.bf16.msra.mxu0 %v1470
    %1854 = vmatpush.bf16.msra.mxu0 %v1462
    %1855 = vmatpush.bf16.msra.mxu0 %v1454
    %1856 = vmatpush.bf16.msra.mxu0 %v1446
    %1857 = vmatpush.bf16.msra.mxu0 %v1438
    %1858 = vmatmul.bf16.gmra.mxu0 %v266
    %v1859 = vpop.f32.mrf.mxu0
    %v1860 = vadd.f32 %v1846, %v1859
    %v1861 = vpop.f32.mrf.mxu0
    %v1862 = vadd.f32 %v1848, %v1861
    %1863 = vdwg.mxu0
    %1864 = vmatpush.bf16.msra.mxu0 %v1558
    %1865 = vmatpush.bf16.msra.mxu0 %v1550
    %1866 = vmatpush.bf16.msra.mxu0 %v1542
    %1867 = vmatpush.bf16.msra.mxu0 %v1534
    %1868 = vmatpush.bf16.msra.mxu0 %v1526
    %1869 = vmatpush.bf16.msra.mxu0 %v1518
    %1870 = vmatpush.bf16.msra.mxu0 %v1510
    %1871 = vmatpush.bf16.msra.mxu0 %v1502
    %1872 = vmatmul.bf16.gmra.mxu0 %v267
    %v1873 = vpop.f32.mrf.mxu0
    %v1874 = vadd.f32 %v1860, %v1873
    %v1875 = vpop.f32.mrf.mxu0
    %v1876 = vadd.f32 %v1862, %v1875
    %1877 = vdwg.mxu0
    %1878 = vmatpush.bf16.msra.mxu0 %v1367
    %1879 = vmatpush.bf16.msra.mxu0 %v1359
    %1880 = vmatpush.bf16.msra.mxu0 %v1351
    %1881 = vmatpush.bf16.msra.mxu0 %v1343
    %1882 = vmatpush.bf16.msra.mxu0 %v1335
    %1883 = vmatpush.bf16.msra.mxu0 %v1327
    %1884 = vmatpush.bf16.msra.mxu0 %v1319
    %1885 = vmatpush.bf16.msra.mxu0 %v1311
    %1886 = vmatmul.bf16.gmra.mxu0 %v264
    %v1887 = vpop.f32.mrf.mxu0
    %v1888 = vadd.f32 %v527, %v1887
    %v1889 = vpop.f32.mrf.mxu0
    %v1890 = vadd.f32 %v527, %v1889
    %1891 = vdwg.mxu0
    %1892 = vmatpush.bf16.msra.mxu0 %v1431
    %1893 = vmatpush.bf16.msra.mxu0 %v1423
    %1894 = vmatpush.bf16.msra.mxu0 %v1415
    %1895 = vmatpush.bf16.msra.mxu0 %v1407
    %1896 = vmatpush.bf16.msra.mxu0 %v1399
    %1897 = vmatpush.bf16.msra.mxu0 %v1391
    %1898 = vmatpush.bf16.msra.mxu0 %v1383
    %1899 = vmatpush.bf16.msra.mxu0 %v1375
    %1900 = vmatmul.bf16.gmra.mxu0 %v265
    %v1901 = vpop.f32.mrf.mxu0
    %v1902 = vadd.f32 %v1888, %v1901
    %v1903 = vpop.f32.mrf.mxu0
    %v1904 = vadd.f32 %v1890, %v1903
    %1905 = vdwg.mxu0
    %1906 = vmatpush.bf16.msra.mxu0 %v1495
    %1907 = vmatpush.bf16.msra.mxu0 %v1487
    %1908 = vmatpush.bf16.msra.mxu0 %v1479
    %1909 = vmatpush.bf16.msra.mxu0 %v1471
    %1910 = vmatpush.bf16.msra.mxu0 %v1463
    %1911 = vmatpush.bf16.msra.mxu0 %v1455
    %1912 = vmatpush.bf16.msra.mxu0 %v1447
    %1913 = vmatpush.bf16.msra.mxu0 %v1439
    %1914 = vmatmul.bf16.gmra.mxu0 %v266
    %v1915 = vpop.f32.mrf.mxu0
    %v1916 = vadd.f32 %v1902, %v1915
    %v1917 = vpop.f32.mrf.mxu0
    %v1918 = vadd.f32 %v1904, %v1917
    %1919 = vdwg.mxu0
    %1920 = vmatpush.bf16.msra.mxu0 %v1559
    %1921 = vmatpush.bf16.msra.mxu0 %v1551
    %1922 = vmatpush.bf16.msra.mxu0 %v1543
    %1923 = vmatpush.bf16.msra.mxu0 %v1535
    %1924 = vmatpush.bf16.msra.mxu0 %v1527
    %1925 = vmatpush.bf16.msra.mxu0 %v1519
    %1926 = vmatpush.bf16.msra.mxu0 %v1511
    %1927 = vmatpush.bf16.msra.mxu0 %v1503
    %1928 = vmatmul.bf16.gmra.mxu0 %v267
    %v1929 = vpop.f32.mrf.mxu0
    %v1930 = vadd.f32 %v1916, %v1929
    %v1931 = vpop.f32.mrf.mxu0
    %v1932 = vadd.f32 %v1918, %v1931
    %1933 = vdwg.mxu0
    %1934 = vmatpush.bf16.msra.mxu0 %v1368
    %1935 = vmatpush.bf16.msra.mxu0 %v1360
    %1936 = vmatpush.bf16.msra.mxu0 %v1352
    %1937 = vmatpush.bf16.msra.mxu0 %v1344
    %1938 = vmatpush.bf16.msra.mxu0 %v1336
    %1939 = vmatpush.bf16.msra.mxu0 %v1328
    %1940 = vmatpush.bf16.msra.mxu0 %v1320
    %1941 = vmatpush.bf16.msra.mxu0 %v1312
    %1942 = vmatmul.bf16.gmra.mxu0 %v264
    %v1943 = vpop.f32.mrf.mxu0
    %v1944 = vadd.f32 %v528, %v1943
    %v1945 = vpop.f32.mrf.mxu0
    %v1946 = vadd.f32 %v528, %v1945
    %1947 = vdwg.mxu0
    %1948 = vmatpush.bf16.msra.mxu0 %v1432
    %1949 = vmatpush.bf16.msra.mxu0 %v1424
    %1950 = vmatpush.bf16.msra.mxu0 %v1416
    %1951 = vmatpush.bf16.msra.mxu0 %v1408
    %1952 = vmatpush.bf16.msra.mxu0 %v1400
    %1953 = vmatpush.bf16.msra.mxu0 %v1392
    %1954 = vmatpush.bf16.msra.mxu0 %v1384
    %1955 = vmatpush.bf16.msra.mxu0 %v1376
    %1956 = vmatmul.bf16.gmra.mxu0 %v265
    %v1957 = vpop.f32.mrf.mxu0
    %v1958 = vadd.f32 %v1944, %v1957
    %v1959 = vpop.f32.mrf.mxu0
    %v1960 = vadd.f32 %v1946, %v1959
    %1961 = vdwg.mxu0
    %1962 = vmatpush.bf16.msra.mxu0 %v1496
    %1963 = vmatpush.bf16.msra.mxu0 %v1488
    %1964 = vmatpush.bf16.msra.mxu0 %v1480
    %1965 = vmatpush.bf16.msra.mxu0 %v1472
    %1966 = vmatpush.bf16.msra.mxu0 %v1464
    %1967 = vmatpush.bf16.msra.mxu0 %v1456
    %1968 = vmatpush.bf16.msra.mxu0 %v1448
    %1969 = vmatpush.bf16.msra.mxu0 %v1440
    %1970 = vmatmul.bf16.gmra.mxu0 %v266
    %v1971 = vpop.f32.mrf.mxu0
    %v1972 = vadd.f32 %v1958, %v1971
    %v1973 = vpop.f32.mrf.mxu0
    %v1974 = vadd.f32 %v1960, %v1973
    %1975 = vdwg.mxu0
    %1976 = vmatpush.bf16.msra.mxu0 %v1560
    %1977 = vmatpush.bf16.msra.mxu0 %v1552
    %1978 = vmatpush.bf16.msra.mxu0 %v1544
    %1979 = vmatpush.bf16.msra.mxu0 %v1536
    %1980 = vmatpush.bf16.msra.mxu0 %v1528
    %1981 = vmatpush.bf16.msra.mxu0 %v1520
    %1982 = vmatpush.bf16.msra.mxu0 %v1512
    %1983 = vmatpush.bf16.msra.mxu0 %v1504
    %1984 = vmatmul.bf16.gmra.mxu0 %v267
    %v1985 = vpop.f32.mrf.mxu0
    %v1986 = vadd.f32 %v1972, %v1985
    %v1987 = vpop.f32.mrf.mxu0
    %v1988 = vadd.f32 %v1974, %v1987
    %1989 = vdwg.mxu0
    %1990 = vmatpush.bf16.msra.mxu0 %v1369
    %1991 = vmatpush.bf16.msra.mxu0 %v1361
    %1992 = vmatpush.bf16.msra.mxu0 %v1353
    %1993 = vmatpush.bf16.msra.mxu0 %v1345
    %1994 = vmatpush.bf16.msra.mxu0 %v1337
    %1995 = vmatpush.bf16.msra.mxu0 %v1329
    %1996 = vmatpush.bf16.msra.mxu0 %v1321
    %1997 = vmatpush.bf16.msra.mxu0 %v1313
    %1998 = vmatmul.bf16.gmra.mxu0 %v264
    %v1999 = vpop.f32.mrf.mxu0
    %v2000 = vadd.f32 %v529, %v1999
    %v2001 = vpop.f32.mrf.mxu0
    %v2002 = vadd.f32 %v529, %v2001
    %2003 = vdwg.mxu0
    %2004 = vmatpush.bf16.msra.mxu0 %v1433
    %2005 = vmatpush.bf16.msra.mxu0 %v1425
    %2006 = vmatpush.bf16.msra.mxu0 %v1417
    %2007 = vmatpush.bf16.msra.mxu0 %v1409
    %2008 = vmatpush.bf16.msra.mxu0 %v1401
    %2009 = vmatpush.bf16.msra.mxu0 %v1393
    %2010 = vmatpush.bf16.msra.mxu0 %v1385
    %2011 = vmatpush.bf16.msra.mxu0 %v1377
    %2012 = vmatmul.bf16.gmra.mxu0 %v265
    %v2013 = vpop.f32.mrf.mxu0
    %v2014 = vadd.f32 %v2000, %v2013
    %v2015 = vpop.f32.mrf.mxu0
    %v2016 = vadd.f32 %v2002, %v2015
    %2017 = vdwg.mxu0
    %2018 = vmatpush.bf16.msra.mxu0 %v1497
    %2019 = vmatpush.bf16.msra.mxu0 %v1489
    %2020 = vmatpush.bf16.msra.mxu0 %v1481
    %2021 = vmatpush.bf16.msra.mxu0 %v1473
    %2022 = vmatpush.bf16.msra.mxu0 %v1465
    %2023 = vmatpush.bf16.msra.mxu0 %v1457
    %2024 = vmatpush.bf16.msra.mxu0 %v1449
    %2025 = vmatpush.bf16.msra.mxu0 %v1441
    %2026 = vmatmul.bf16.gmra.mxu0 %v266
    %v2027 = vpop.f32.mrf.mxu0
    %v2028 = vadd.f32 %v2014, %v2027
    %v2029 = vpop.f32.mrf.mxu0
    %v2030 = vadd.f32 %v2016, %v2029
    %2031 = vdwg.mxu0
    %2032 = vmatpush.bf16.msra.mxu0 %v1561
    %2033 = vmatpush.bf16.msra.mxu0 %v1553
    %2034 = vmatpush.bf16.msra.mxu0 %v1545
    %2035 = vmatpush.bf16.msra.mxu0 %v1537
    %2036 = vmatpush.bf16.msra.mxu0 %v1529
    %2037 = vmatpush.bf16.msra.mxu0 %v1521
    %2038 = vmatpush.bf16.msra.mxu0 %v1513
    %2039 = vmatpush.bf16.msra.mxu0 %v1505
    %2040 = vmatmul.bf16.gmra.mxu0 %v267
    %v2041 = vpop.f32.mrf.mxu0
    %v2042 = vadd.f32 %v2028, %v2041
    %v2043 = vpop.f32.mrf.mxu0
    %v2044 = vadd.f32 %v2030, %v2043
    %2045 = vdwg.mxu0
    %2046 = vmatpush.bf16.msra.mxu0 %v1370
    %2047 = vmatpush.bf16.msra.mxu0 %v1362
    %2048 = vmatpush.bf16.msra.mxu0 %v1354
    %2049 = vmatpush.bf16.msra.mxu0 %v1346
    %2050 = vmatpush.bf16.msra.mxu0 %v1338
    %2051 = vmatpush.bf16.msra.mxu0 %v1330
    %2052 = vmatpush.bf16.msra.mxu0 %v1322
    %2053 = vmatpush.bf16.msra.mxu0 %v1314
    %2054 = vmatmul.bf16.gmra.mxu0 %v264
    %v2055 = vpop.f32.mrf.mxu0
    %v2056 = vadd.f32 %v530, %v2055
    %v2057 = vpop.f32.mrf.mxu0
    %v2058 = vadd.f32 %v530, %v2057
    %2059 = vdwg.mxu0
    %2060 = vmatpush.bf16.msra.mxu0 %v1434
    %2061 = vmatpush.bf16.msra.mxu0 %v1426
    %2062 = vmatpush.bf16.msra.mxu0 %v1418
    %2063 = vmatpush.bf16.msra.mxu0 %v1410
    %2064 = vmatpush.bf16.msra.mxu0 %v1402
    %2065 = vmatpush.bf16.msra.mxu0 %v1394
    %2066 = vmatpush.bf16.msra.mxu0 %v1386
    %2067 = vmatpush.bf16.msra.mxu0 %v1378
    %2068 = vmatmul.bf16.gmra.mxu0 %v265
    %v2069 = vpop.f32.mrf.mxu0
    %v2070 = vadd.f32 %v2056, %v2069
    %v2071 = vpop.f32.mrf.mxu0
    %v2072 = vadd.f32 %v2058, %v2071
    %2073 = vdwg.mxu0
    %2074 = vmatpush.bf16.msra.mxu0 %v1498
    %2075 = vmatpush.bf16.msra.mxu0 %v1490
    %2076 = vmatpush.bf16.msra.mxu0 %v1482
    %2077 = vmatpush.bf16.msra.mxu0 %v1474
    %2078 = vmatpush.bf16.msra.mxu0 %v1466
    %2079 = vmatpush.bf16.msra.mxu0 %v1458
    %2080 = vmatpush.bf16.msra.mxu0 %v1450
    %2081 = vmatpush.bf16.msra.mxu0 %v1442
    %2082 = vmatmul.bf16.gmra.mxu0 %v266
    %v2083 = vpop.f32.mrf.mxu0
    %v2084 = vadd.f32 %v2070, %v2083
    %v2085 = vpop.f32.mrf.mxu0
    %v2086 = vadd.f32 %v2072, %v2085
    %2087 = vdwg.mxu0
    %2088 = vmatpush.bf16.msra.mxu0 %v1562
    %2089 = vmatpush.bf16.msra.mxu0 %v1554
    %2090 = vmatpush.bf16.msra.mxu0 %v1546
    %2091 = vmatpush.bf16.msra.mxu0 %v1538
    %2092 = vmatpush.bf16.msra.mxu0 %v1530
    %2093 = vmatpush.bf16.msra.mxu0 %v1522
    %2094 = vmatpush.bf16.msra.mxu0 %v1514
    %2095 = vmatpush.bf16.msra.mxu0 %v1506
    %2096 = vmatmul.bf16.gmra.mxu0 %v267
    %v2097 = vpop.f32.mrf.mxu0
    %v2098 = vadd.f32 %v2084, %v2097
    %v2099 = vpop.f32.mrf.mxu0
    %v2100 = vadd.f32 %v2086, %v2099
    %2101 = vdwg.mxu0
    %2102 = vmatpush.bf16.msra.mxu0 %v1371
    %2103 = vmatpush.bf16.msra.mxu0 %v1363
    %2104 = vmatpush.bf16.msra.mxu0 %v1355
    %2105 = vmatpush.bf16.msra.mxu0 %v1347
    %2106 = vmatpush.bf16.msra.mxu0 %v1339
    %2107 = vmatpush.bf16.msra.mxu0 %v1331
    %2108 = vmatpush.bf16.msra.mxu0 %v1323
    %2109 = vmatpush.bf16.msra.mxu0 %v1315
    %2110 = vmatmul.bf16.gmra.mxu0 %v264
    %v2111 = vpop.f32.mrf.mxu0
    %v2112 = vadd.f32 %v531, %v2111
    %v2113 = vpop.f32.mrf.mxu0
    %v2114 = vadd.f32 %v531, %v2113
    %2115 = vdwg.mxu0
    %2116 = vmatpush.bf16.msra.mxu0 %v1435
    %2117 = vmatpush.bf16.msra.mxu0 %v1427
    %2118 = vmatpush.bf16.msra.mxu0 %v1419
    %2119 = vmatpush.bf16.msra.mxu0 %v1411
    %2120 = vmatpush.bf16.msra.mxu0 %v1403
    %2121 = vmatpush.bf16.msra.mxu0 %v1395
    %2122 = vmatpush.bf16.msra.mxu0 %v1387
    %2123 = vmatpush.bf16.msra.mxu0 %v1379
    %2124 = vmatmul.bf16.gmra.mxu0 %v265
    %v2125 = vpop.f32.mrf.mxu0
    %v2126 = vadd.f32 %v2112, %v2125
    %v2127 = vpop.f32.mrf.mxu0
    %v2128 = vadd.f32 %v2114, %v2127
    %2129 = vdwg.mxu0
    %2130 = vmatpush.bf16.msra.mxu0 %v1499
    %2131 = vmatpush.bf16.msra.mxu0 %v1491
    %2132 = vmatpush.bf16.msra.mxu0 %v1483
    %2133 = vmatpush.bf16.msra.mxu0 %v1475
    %2134 = vmatpush.bf16.msra.mxu0 %v1467
    %2135 = vmatpush.bf16.msra.mxu0 %v1459
    %2136 = vmatpush.bf16.msra.mxu0 %v1451
    %2137 = vmatpush.bf16.msra.mxu0 %v1443
    %2138 = vmatmul.bf16.gmra.mxu0 %v266
    %v2139 = vpop.f32.mrf.mxu0
    %v2140 = vadd.f32 %v2126, %v2139
    %v2141 = vpop.f32.mrf.mxu0
    %v2142 = vadd.f32 %v2128, %v2141
    %2143 = vdwg.mxu0
    %2144 = vmatpush.bf16.msra.mxu0 %v1563
    %2145 = vmatpush.bf16.msra.mxu0 %v1555
    %2146 = vmatpush.bf16.msra.mxu0 %v1547
    %2147 = vmatpush.bf16.msra.mxu0 %v1539
    %2148 = vmatpush.bf16.msra.mxu0 %v1531
    %2149 = vmatpush.bf16.msra.mxu0 %v1523
    %2150 = vmatpush.bf16.msra.mxu0 %v1515
    %2151 = vmatpush.bf16.msra.mxu0 %v1507
    %2152 = vmatmul.bf16.gmra.mxu0 %v267
    %v2153 = vpop.f32.mrf.mxu0
    %v2154 = vadd.f32 %v2140, %v2153
    %v2155 = vpop.f32.mrf.mxu0
    %v2156 = vadd.f32 %v2142, %v2155
    %2157 = vdwg.mxu0
    %2158 = vmatpush.bf16.msra.mxu0 %v1372
    %2159 = vmatpush.bf16.msra.mxu0 %v1364
    %2160 = vmatpush.bf16.msra.mxu0 %v1356
    %2161 = vmatpush.bf16.msra.mxu0 %v1348
    %2162 = vmatpush.bf16.msra.mxu0 %v1340
    %2163 = vmatpush.bf16.msra.mxu0 %v1332
    %2164 = vmatpush.bf16.msra.mxu0 %v1324
    %2165 = vmatpush.bf16.msra.mxu0 %v1316
    %2166 = vmatmul.bf16.gmra.mxu0 %v264
    %v2167 = vpop.f32.mrf.mxu0
    %v2168 = vadd.f32 %v532, %v2167
    %v2169 = vpop.f32.mrf.mxu0
    %v2170 = vadd.f32 %v532, %v2169
    %2171 = vdwg.mxu0
    %2172 = vmatpush.bf16.msra.mxu0 %v1436
    %2173 = vmatpush.bf16.msra.mxu0 %v1428
    %2174 = vmatpush.bf16.msra.mxu0 %v1420
    %2175 = vmatpush.bf16.msra.mxu0 %v1412
    %2176 = vmatpush.bf16.msra.mxu0 %v1404
    %2177 = vmatpush.bf16.msra.mxu0 %v1396
    %2178 = vmatpush.bf16.msra.mxu0 %v1388
    %2179 = vmatpush.bf16.msra.mxu0 %v1380
    %2180 = vmatmul.bf16.gmra.mxu0 %v265
    %v2181 = vpop.f32.mrf.mxu0
    %v2182 = vadd.f32 %v2168, %v2181
    %v2183 = vpop.f32.mrf.mxu0
    %v2184 = vadd.f32 %v2170, %v2183
    %2185 = vdwg.mxu0
    %2186 = vmatpush.bf16.msra.mxu0 %v1500
    %2187 = vmatpush.bf16.msra.mxu0 %v1492
    %2188 = vmatpush.bf16.msra.mxu0 %v1484
    %2189 = vmatpush.bf16.msra.mxu0 %v1476
    %2190 = vmatpush.bf16.msra.mxu0 %v1468
    %2191 = vmatpush.bf16.msra.mxu0 %v1460
    %2192 = vmatpush.bf16.msra.mxu0 %v1452
    %2193 = vmatpush.bf16.msra.mxu0 %v1444
    %2194 = vmatmul.bf16.gmra.mxu0 %v266
    %v2195 = vpop.f32.mrf.mxu0
    %v2196 = vadd.f32 %v2182, %v2195
    %v2197 = vpop.f32.mrf.mxu0
    %v2198 = vadd.f32 %v2184, %v2197
    %2199 = vdwg.mxu0
    %2200 = vmatpush.bf16.msra.mxu0 %v1564
    %2201 = vmatpush.bf16.msra.mxu0 %v1556
    %2202 = vmatpush.bf16.msra.mxu0 %v1548
    %2203 = vmatpush.bf16.msra.mxu0 %v1540
    %2204 = vmatpush.bf16.msra.mxu0 %v1532
    %2205 = vmatpush.bf16.msra.mxu0 %v1524
    %2206 = vmatpush.bf16.msra.mxu0 %v1516
    %2207 = vmatpush.bf16.msra.mxu0 %v1508
    %2208 = vmatmul.bf16.gmra.mxu0 %v267
    %v2209 = vpop.f32.mrf.mxu0
    %v2210 = vadd.f32 %v2196, %v2209
    %v2211 = vpop.f32.mrf.mxu0
    %v2212 = vadd.f32 %v2198, %v2211
    %2213 = vdwg.mxu0
    %2214 = vmatpush.bf16.msra.mxu0 %v1373
    %2215 = vmatpush.bf16.msra.mxu0 %v1365
    %2216 = vmatpush.bf16.msra.mxu0 %v1357
    %2217 = vmatpush.bf16.msra.mxu0 %v1349
    %2218 = vmatpush.bf16.msra.mxu0 %v1341
    %2219 = vmatpush.bf16.msra.mxu0 %v1333
    %2220 = vmatpush.bf16.msra.mxu0 %v1325
    %2221 = vmatpush.bf16.msra.mxu0 %v1317
    %2222 = vmatmul.bf16.gmra.mxu0 %v264
    %v2223 = vpop.f32.mrf.mxu0
    %v2224 = vadd.f32 %v533, %v2223
    %v2225 = vpop.f32.mrf.mxu0
    %v2226 = vadd.f32 %v533, %v2225
    %2227 = vdwg.mxu0
    %2228 = vmatpush.bf16.msra.mxu0 %v1437
    %2229 = vmatpush.bf16.msra.mxu0 %v1429
    %2230 = vmatpush.bf16.msra.mxu0 %v1421
    %2231 = vmatpush.bf16.msra.mxu0 %v1413
    %2232 = vmatpush.bf16.msra.mxu0 %v1405
    %2233 = vmatpush.bf16.msra.mxu0 %v1397
    %2234 = vmatpush.bf16.msra.mxu0 %v1389
    %2235 = vmatpush.bf16.msra.mxu0 %v1381
    %2236 = vmatmul.bf16.gmra.mxu0 %v265
    %v2237 = vpop.f32.mrf.mxu0
    %v2238 = vadd.f32 %v2224, %v2237
    %v2239 = vpop.f32.mrf.mxu0
    %v2240 = vadd.f32 %v2226, %v2239
    %2241 = vdwg.mxu0
    %2242 = vmatpush.bf16.msra.mxu0 %v1501
    %2243 = vmatpush.bf16.msra.mxu0 %v1493
    %2244 = vmatpush.bf16.msra.mxu0 %v1485
    %2245 = vmatpush.bf16.msra.mxu0 %v1477
    %2246 = vmatpush.bf16.msra.mxu0 %v1469
    %2247 = vmatpush.bf16.msra.mxu0 %v1461
    %2248 = vmatpush.bf16.msra.mxu0 %v1453
    %2249 = vmatpush.bf16.msra.mxu0 %v1445
    %2250 = vmatmul.bf16.gmra.mxu0 %v266
    %v2251 = vpop.f32.mrf.mxu0
    %v2252 = vadd.f32 %v2238, %v2251
    %v2253 = vpop.f32.mrf.mxu0
    %v2254 = vadd.f32 %v2240, %v2253
    %2255 = vdwg.mxu0
    %2256 = vmatpush.bf16.msra.mxu0 %v1565
    %2257 = vmatpush.bf16.msra.mxu0 %v1557
    %2258 = vmatpush.bf16.msra.mxu0 %v1549
    %2259 = vmatpush.bf16.msra.mxu0 %v1541
    %2260 = vmatpush.bf16.msra.mxu0 %v1533
    %2261 = vmatpush.bf16.msra.mxu0 %v1525
    %2262 = vmatpush.bf16.msra.mxu0 %v1517
    %2263 = vmatpush.bf16.msra.mxu0 %v1509
    %2264 = vmatmul.bf16.gmra.mxu0 %v267
    %v2265 = vpop.f32.mrf.mxu0
    %v2266 = vadd.f32 %v2252, %v2265
    %v2267 = vpop.f32.mrf.mxu0
    %v2268 = vadd.f32 %v2254, %v2267
    %2269 = vdwg.mxu0
    %v2270 = vmax.f32 %v1874, 0.0
    %v2271 = vmax.f32 %v1930, 0.0
    %v2272 = vmax.f32 %v1986, 0.0
    %v2273 = vmax.f32 %v2042, 0.0
    %v2274 = vmax.f32 %v2098, 0.0
    %v2275 = vmax.f32 %v2154, 0.0
    %v2276 = vmax.f32 %v2210, 0.0
    %v2277 = vmax.f32 %v2266, 0.0
    %v2278 = vmax.f32 %v1876, 0.0
    %v2279 = vmax.f32 %v1932, 0.0
    %v2280 = vmax.f32 %v1988, 0.0
    %v2281 = vmax.f32 %v2044, 0.0
    %v2282 = vmax.f32 %v2100, 0.0
    %v2283 = vmax.f32 %v2156, 0.0
    %v2284 = vmax.f32 %v2212, 0.0
    %v2285 = vmax.f32 %v2268, 0.0
    %v2286 = vpack.c.bf16 %v2278, %v2270
    %v2287 = vpack.c.bf16 %v2279, %v2271
    %v2288 = vpack.c.bf16 %v2280, %v2272
    %v2289 = vpack.c.bf16 %v2281, %v2273
    %v2290 = vpack.c.bf16 %v2282, %v2274
    %v2291 = vpack.c.bf16 %v2283, %v2275
    %v2292 = vpack.c.bf16 %v2284, %v2276
    %v2293 = vpack.c.bf16 %v2285, %v2277
    %v2294 = vld [vmem:[#allocation11] sm:$0xff]
    %v2295 = vld [vmem:[#allocation11 + $0x8] sm:$0xff]
    %v2296 = vld [vmem:[#allocation11 + $0x10] sm:$0xff]
    %v2297 = vld [vmem:[#allocation11 + $0x18] sm:$0xff]
    %v2298 = vld [vmem:[#allocation11 + $0x20] sm:$0xff]
    %v2299 = vld [vmem:[#allocation11 + $0x28] sm:$0xff]
    %v2300 = vld [vmem:[#allocation11 + $0x30] sm:$0xff]
    %v2301 = vld [vmem:[#allocation11 + $0x38] sm:$0xff]
    %v2302 = vld [vmem:[#allocation11 + $0x40] sm:$0xff]
    %v2303 = vld [vmem:[#allocation11 + $0x48] sm:$0xff]
    %v2304 = vld [vmem:[#allocation11 + $0x50] sm:$0xff]
    %v2305 = vld [vmem:[#allocation11 + $0x58] sm:$0xff]
    %v2306 = vld [vmem:[#allocation11 + $0x60] sm:$0xff]
    %v2307 = vld [vmem:[#allocation11 + $0x68] sm:$0xff]
    %v2308 = vld [vmem:[#allocation11 + $0x70] sm:$0xff]
    %v2309 = vld [vmem:[#allocation11 + $0x78] sm:$0xff]
    %v2310 = vld [vmem:[#allocation11 + $0x80] sm:$0xff]
    %v2311 = vld [vmem:[#allocation11 + $0x88] sm:$0xff]
    %v2312 = vld [vmem:[#allocation11 + $0x90] sm:$0xff]
    %v2313 = vld [vmem:[#allocation11 + $0x98] sm:$0xff]
    %v2314 = vld [vmem:[#allocation11 + $0xa0] sm:$0xff]
    %v2315 = vld [vmem:[#allocation11 + $0xa8] sm:$0xff]
    %v2316 = vld [vmem:[#allocation11 + $0xb0] sm:$0xff]
    %v2317 = vld [vmem:[#allocation11 + $0xb8] sm:$0xff]
    %v2318 = vld [vmem:[#allocation11 + $0xc0] sm:$0xff]
    %v2319 = vld [vmem:[#allocation11 + $0xc8] sm:$0xff]
    %v2320 = vld [vmem:[#allocation11 + $0xd0] sm:$0xff]
    %v2321 = vld [vmem:[#allocation11 + $0xd8] sm:$0xff]
    %v2322 = vld [vmem:[#allocation11 + $0xe0] sm:$0xff]
    %v2323 = vld [vmem:[#allocation11 + $0xe8] sm:$0xff]
    %v2324 = vld [vmem:[#allocation11 + $0xf0] sm:$0xff]
    %v2325 = vld [vmem:[#allocation11 + $0xf8] sm:$0xff]
    %v2326 = vld [vmem:[#allocation11 + $0x100] sm:$0xff]
    %v2327 = vld [vmem:[#allocation11 + $0x108] sm:$0xff]
    %v2328 = vld [vmem:[#allocation11 + $0x110] sm:$0xff]
    %v2329 = vld [vmem:[#allocation11 + $0x118] sm:$0xff]
    %v2330 = vld [vmem:[#allocation11 + $0x120] sm:$0xff]
    %v2331 = vld [vmem:[#allocation11 + $0x128] sm:$0xff]
    %v2332 = vld [vmem:[#allocation11 + $0x130] sm:$0xff]
    %v2333 = vld [vmem:[#allocation11 + $0x138] sm:$0xff]
    %v2334 = vld [vmem:[#allocation11 + $0x140] sm:$0xff]
    %v2335 = vld [vmem:[#allocation11 + $0x148] sm:$0xff]
    %v2336 = vld [vmem:[#allocation11 + $0x150] sm:$0xff]
    %v2337 = vld [vmem:[#allocation11 + $0x158] sm:$0xff]
    %v2338 = vld [vmem:[#allocation11 + $0x160] sm:$0xff]
    %v2339 = vld [vmem:[#allocation11 + $0x168] sm:$0xff]
    %v2340 = vld [vmem:[#allocation11 + $0x170] sm:$0xff]
    %v2341 = vld [vmem:[#allocation11 + $0x178] sm:$0xff]
    %v2342 = vld [vmem:[#allocation11 + $0x180] sm:$0xff]
    %v2343 = vld [vmem:[#allocation11 + $0x188] sm:$0xff]
    %v2344 = vld [vmem:[#allocation11 + $0x190] sm:$0xff]
    %v2345 = vld [vmem:[#allocation11 + $0x198] sm:$0xff]
    %v2346 = vld [vmem:[#allocation11 + $0x1a0] sm:$0xff]
    %v2347 = vld [vmem:[#allocation11 + $0x1a8] sm:$0xff]
    %v2348 = vld [vmem:[#allocation11 + $0x1b0] sm:$0xff]
    %v2349 = vld [vmem:[#allocation11 + $0x1b8] sm:$0xff]
    %v2350 = vld [vmem:[#allocation11 + $0x1c0] sm:$0xff]
    %v2351 = vld [vmem:[#allocation11 + $0x1c8] sm:$0xff]
    %v2352 = vld [vmem:[#allocation11 + $0x1d0] sm:$0xff]
    %v2353 = vld [vmem:[#allocation11 + $0x1d8] sm:$0xff]
    %v2354 = vld [vmem:[#allocation11 + $0x1e0] sm:$0xff]
    %v2355 = vld [vmem:[#allocation11 + $0x1e8] sm:$0xff]
    %v2356 = vld [vmem:[#allocation11 + $0x1f0] sm:$0xff]
    %v2357 = vld [vmem:[#allocation11 + $0x1f8] sm:$0xff]
    %v2358 = vld [vmem:[#allocation11 + $0x200] sm:$0xff]
    %v2359 = vld [vmem:[#allocation11 + $0x208] sm:$0xff]
    %v2360 = vld [vmem:[#allocation11 + $0x210] sm:$0xff]
    %v2361 = vld [vmem:[#allocation11 + $0x218] sm:$0xff]
    %v2362 = vld [vmem:[#allocation11 + $0x220] sm:$0xff]
    %v2363 = vld [vmem:[#allocation11 + $0x228] sm:$0xff]
    %v2364 = vld [vmem:[#allocation11 + $0x230] sm:$0xff]
    %v2365 = vld [vmem:[#allocation11 + $0x238] sm:$0xff]
    %v2366 = vld [vmem:[#allocation11 + $0x240] sm:$0xff]
    %v2367 = vld [vmem:[#allocation11 + $0x248] sm:$0xff]
    %v2368 = vld [vmem:[#allocation11 + $0x250] sm:$0xff]
    %v2369 = vld [vmem:[#allocation11 + $0x258] sm:$0xff]
    %v2370 = vld [vmem:[#allocation11 + $0x260] sm:$0xff]
    %v2371 = vld [vmem:[#allocation11 + $0x268] sm:$0xff]
    %v2372 = vld [vmem:[#allocation11 + $0x270] sm:$0xff]
    %v2373 = vld [vmem:[#allocation11 + $0x278] sm:$0xff]
    %v2374 = vld [vmem:[#allocation11 + $0x280] sm:$0xff]
    %v2375 = vld [vmem:[#allocation11 + $0x288] sm:$0xff]
    %v2376 = vld [vmem:[#allocation11 + $0x290] sm:$0xff]
    %v2377 = vld [vmem:[#allocation11 + $0x298] sm:$0xff]
    %v2378 = vld [vmem:[#allocation11 + $0x2a0] sm:$0xff]
    %v2379 = vld [vmem:[#allocation11 + $0x2a8] sm:$0xff]
    %v2380 = vld [vmem:[#allocation11 + $0x2b0] sm:$0xff]
    %v2381 = vld [vmem:[#allocation11 + $0x2b8] sm:$0xff]
    %v2382 = vld [vmem:[#allocation11 + $0x2c0] sm:$0xff]
    %v2383 = vld [vmem:[#allocation11 + $0x2c8] sm:$0xff]
    %v2384 = vld [vmem:[#allocation11 + $0x2d0] sm:$0xff]
    %v2385 = vld [vmem:[#allocation11 + $0x2d8] sm:$0xff]
    %v2386 = vld [vmem:[#allocation11 + $0x2e0] sm:$0xff]
    %v2387 = vld [vmem:[#allocation11 + $0x2e8] sm:$0xff]
    %v2388 = vld [vmem:[#allocation11 + $0x2f0] sm:$0xff]
    %v2389 = vld [vmem:[#allocation11 + $0x2f8] sm:$0xff]
    %v2390 = vld [vmem:[#allocation11 + $0x300] sm:$0xff]
    %v2391 = vld [vmem:[#allocation11 + $0x308] sm:$0xff]
    %v2392 = vld [vmem:[#allocation11 + $0x310] sm:$0xff]
    %v2393 = vld [vmem:[#allocation11 + $0x318] sm:$0xff]
    %v2394 = vld [vmem:[#allocation11 + $0x320] sm:$0xff]
    %v2395 = vld [vmem:[#allocation11 + $0x328] sm:$0xff]
    %v2396 = vld [vmem:[#allocation11 + $0x330] sm:$0xff]
    %v2397 = vld [vmem:[#allocation11 + $0x338] sm:$0xff]
    %v2398 = vld [vmem:[#allocation11 + $0x340] sm:$0xff]
    %v2399 = vld [vmem:[#allocation11 + $0x348] sm:$0xff]
    %v2400 = vld [vmem:[#allocation11 + $0x350] sm:$0xff]
    %v2401 = vld [vmem:[#allocation11 + $0x358] sm:$0xff]
    %v2402 = vld [vmem:[#allocation11 + $0x360] sm:$0xff]
    %v2403 = vld [vmem:[#allocation11 + $0x368] sm:$0xff]
    %v2404 = vld [vmem:[#allocation11 + $0x370] sm:$0xff]
    %v2405 = vld [vmem:[#allocation11 + $0x378] sm:$0xff]
    %v2406 = vld [vmem:[#allocation11 + $0x380] sm:$0xff]
    %v2407 = vld [vmem:[#allocation11 + $0x388] sm:$0xff]
    %v2408 = vld [vmem:[#allocation11 + $0x390] sm:$0xff]
    %v2409 = vld [vmem:[#allocation11 + $0x398] sm:$0xff]
    %v2410 = vld [vmem:[#allocation11 + $0x3a0] sm:$0xff]
    %v2411 = vld [vmem:[#allocation11 + $0x3a8] sm:$0xff]
    %v2412 = vld [vmem:[#allocation11 + $0x3b0] sm:$0xff]
    %v2413 = vld [vmem:[#allocation11 + $0x3b8] sm:$0xff]
    %v2414 = vld [vmem:[#allocation11 + $0x3c0] sm:$0xff]
    %v2415 = vld [vmem:[#allocation11 + $0x3c8] sm:$0xff]
    %v2416 = vld [vmem:[#allocation11 + $0x3d0] sm:$0xff]
    %v2417 = vld [vmem:[#allocation11 + $0x3d8] sm:$0xff]
    %v2418 = vld [vmem:[#allocation11 + $0x3e0] sm:$0xff]
    %v2419 = vld [vmem:[#allocation11 + $0x3e8] sm:$0xff]
    %v2420 = vld [vmem:[#allocation11 + $0x3f0] sm:$0xff]
    %v2421 = vld [vmem:[#allocation11 + $0x3f8] sm:$0xff]
    %v2422 = vld [vmem:[#allocation11 + $0x400] sm:$0xff]
    %v2423 = vld [vmem:[#allocation11 + $0x408] sm:$0xff]
    %v2424 = vld [vmem:[#allocation11 + $0x410] sm:$0xff]
    %v2425 = vld [vmem:[#allocation11 + $0x418] sm:$0xff]
    %v2426 = vld [vmem:[#allocation11 + $0x420] sm:$0xff]
    %v2427 = vld [vmem:[#allocation11 + $0x428] sm:$0xff]
    %v2428 = vld [vmem:[#allocation11 + $0x430] sm:$0xff]
    %v2429 = vld [vmem:[#allocation11 + $0x438] sm:$0xff]
    %v2430 = vld [vmem:[#allocation11 + $0x440] sm:$0xff]
    %v2431 = vld [vmem:[#allocation11 + $0x448] sm:$0xff]
    %v2432 = vld [vmem:[#allocation11 + $0x450] sm:$0xff]
    %v2433 = vld [vmem:[#allocation11 + $0x458] sm:$0xff]
    %v2434 = vld [vmem:[#allocation11 + $0x460] sm:$0xff]
    %v2435 = vld [vmem:[#allocation11 + $0x468] sm:$0xff]
    %v2436 = vld [vmem:[#allocation11 + $0x470] sm:$0xff]
    %v2437 = vld [vmem:[#allocation11 + $0x478] sm:$0xff]
    %v2438 = vld [vmem:[#allocation11 + $0x480] sm:$0xff]
    %v2439 = vld [vmem:[#allocation11 + $0x488] sm:$0xff]
    %v2440 = vld [vmem:[#allocation11 + $0x490] sm:$0xff]
    %v2441 = vld [vmem:[#allocation11 + $0x498] sm:$0xff]
    %v2442 = vld [vmem:[#allocation11 + $0x4a0] sm:$0xff]
    %v2443 = vld [vmem:[#allocation11 + $0x4a8] sm:$0xff]
    %v2444 = vld [vmem:[#allocation11 + $0x4b0] sm:$0xff]
    %v2445 = vld [vmem:[#allocation11 + $0x4b8] sm:$0xff]
    %v2446 = vld [vmem:[#allocation11 + $0x4c0] sm:$0xff]
    %v2447 = vld [vmem:[#allocation11 + $0x4c8] sm:$0xff]
    %v2448 = vld [vmem:[#allocation11 + $0x4d0] sm:$0xff]
    %v2449 = vld [vmem:[#allocation11 + $0x4d8] sm:$0xff]
    %v2450 = vld [vmem:[#allocation11 + $0x4e0] sm:$0xff]
    %v2451 = vld [vmem:[#allocation11 + $0x4e8] sm:$0xff]
    %v2452 = vld [vmem:[#allocation11 + $0x4f0] sm:$0xff]
    %v2453 = vld [vmem:[#allocation11 + $0x4f8] sm:$0xff]
    %v2454 = vld [vmem:[#allocation11 + $0x500] sm:$0xff]
    %v2455 = vld [vmem:[#allocation11 + $0x508] sm:$0xff]
    %v2456 = vld [vmem:[#allocation11 + $0x510] sm:$0xff]
    %v2457 = vld [vmem:[#allocation11 + $0x518] sm:$0xff]
    %v2458 = vld [vmem:[#allocation11 + $0x520] sm:$0xff]
    %v2459 = vld [vmem:[#allocation11 + $0x528] sm:$0xff]
    %v2460 = vld [vmem:[#allocation11 + $0x530] sm:$0xff]
    %v2461 = vld [vmem:[#allocation11 + $0x538] sm:$0xff]
    %v2462 = vld [vmem:[#allocation11 + $0x540] sm:$0xff]
    %v2463 = vld [vmem:[#allocation11 + $0x548] sm:$0xff]
    %v2464 = vld [vmem:[#allocation11 + $0x550] sm:$0xff]
    %v2465 = vld [vmem:[#allocation11 + $0x558] sm:$0xff]
    %v2466 = vld [vmem:[#allocation11 + $0x560] sm:$0xff]
    %v2467 = vld [vmem:[#allocation11 + $0x568] sm:$0xff]
    %v2468 = vld [vmem:[#allocation11 + $0x570] sm:$0xff]
    %v2469 = vld [vmem:[#allocation11 + $0x578] sm:$0xff]
    %v2470 = vld [vmem:[#allocation11 + $0x580] sm:$0xff]
    %v2471 = vld [vmem:[#allocation11 + $0x588] sm:$0xff]
    %v2472 = vld [vmem:[#allocation11 + $0x590] sm:$0xff]
    %v2473 = vld [vmem:[#allocation11 + $0x598] sm:$0xff]
    %v2474 = vld [vmem:[#allocation11 + $0x5a0] sm:$0xff]
    %v2475 = vld [vmem:[#allocation11 + $0x5a8] sm:$0xff]
    %v2476 = vld [vmem:[#allocation11 + $0x5b0] sm:$0xff]
    %v2477 = vld [vmem:[#allocation11 + $0x5b8] sm:$0xff]
    %v2478 = vld [vmem:[#allocation11 + $0x5c0] sm:$0xff]
    %v2479 = vld [vmem:[#allocation11 + $0x5c8] sm:$0xff]
    %v2480 = vld [vmem:[#allocation11 + $0x5d0] sm:$0xff]
    %v2481 = vld [vmem:[#allocation11 + $0x5d8] sm:$0xff]
    %v2482 = vld [vmem:[#allocation11 + $0x5e0] sm:$0xff]
    %v2483 = vld [vmem:[#allocation11 + $0x5e8] sm:$0xff]
    %v2484 = vld [vmem:[#allocation11 + $0x5f0] sm:$0xff]
    %v2485 = vld [vmem:[#allocation11 + $0x5f8] sm:$0xff]
    %v2486 = vld [vmem:[#allocation11 + $0x600] sm:$0xff]
    %v2487 = vld [vmem:[#allocation11 + $0x608] sm:$0xff]
    %v2488 = vld [vmem:[#allocation11 + $0x610] sm:$0xff]
    %v2489 = vld [vmem:[#allocation11 + $0x618] sm:$0xff]
    %v2490 = vld [vmem:[#allocation11 + $0x620] sm:$0xff]
    %v2491 = vld [vmem:[#allocation11 + $0x628] sm:$0xff]
    %v2492 = vld [vmem:[#allocation11 + $0x630] sm:$0xff]
    %v2493 = vld [vmem:[#allocation11 + $0x638] sm:$0xff]
    %v2494 = vld [vmem:[#allocation11 + $0x640] sm:$0xff]
    %v2495 = vld [vmem:[#allocation11 + $0x648] sm:$0xff]
    %v2496 = vld [vmem:[#allocation11 + $0x650] sm:$0xff]
    %v2497 = vld [vmem:[#allocation11 + $0x658] sm:$0xff]
    %v2498 = vld [vmem:[#allocation11 + $0x660] sm:$0xff]
    %v2499 = vld [vmem:[#allocation11 + $0x668] sm:$0xff]
    %v2500 = vld [vmem:[#allocation11 + $0x670] sm:$0xff]
    %v2501 = vld [vmem:[#allocation11 + $0x678] sm:$0xff]
    %v2502 = vld [vmem:[#allocation11 + $0x680] sm:$0xff]
    %v2503 = vld [vmem:[#allocation11 + $0x688] sm:$0xff]
    %v2504 = vld [vmem:[#allocation11 + $0x690] sm:$0xff]
    %v2505 = vld [vmem:[#allocation11 + $0x698] sm:$0xff]
    %v2506 = vld [vmem:[#allocation11 + $0x6a0] sm:$0xff]
    %v2507 = vld [vmem:[#allocation11 + $0x6a8] sm:$0xff]
    %v2508 = vld [vmem:[#allocation11 + $0x6b0] sm:$0xff]
    %v2509 = vld [vmem:[#allocation11 + $0x6b8] sm:$0xff]
    %v2510 = vld [vmem:[#allocation11 + $0x6c0] sm:$0xff]
    %v2511 = vld [vmem:[#allocation11 + $0x6c8] sm:$0xff]
    %v2512 = vld [vmem:[#allocation11 + $0x6d0] sm:$0xff]
    %v2513 = vld [vmem:[#allocation11 + $0x6d8] sm:$0xff]
    %v2514 = vld [vmem:[#allocation11 + $0x6e0] sm:$0xff]
    %v2515 = vld [vmem:[#allocation11 + $0x6e8] sm:$0xff]
    %v2516 = vld [vmem:[#allocation11 + $0x6f0] sm:$0xff]
    %v2517 = vld [vmem:[#allocation11 + $0x6f8] sm:$0xff]
    %v2518 = vld [vmem:[#allocation11 + $0x700] sm:$0xff]
    %v2519 = vld [vmem:[#allocation11 + $0x708] sm:$0xff]
    %v2520 = vld [vmem:[#allocation11 + $0x710] sm:$0xff]
    %v2521 = vld [vmem:[#allocation11 + $0x718] sm:$0xff]
    %v2522 = vld [vmem:[#allocation11 + $0x720] sm:$0xff]
    %v2523 = vld [vmem:[#allocation11 + $0x728] sm:$0xff]
    %v2524 = vld [vmem:[#allocation11 + $0x730] sm:$0xff]
    %v2525 = vld [vmem:[#allocation11 + $0x738] sm:$0xff]
    %v2526 = vld [vmem:[#allocation11 + $0x740] sm:$0xff]
    %v2527 = vld [vmem:[#allocation11 + $0x748] sm:$0xff]
    %v2528 = vld [vmem:[#allocation11 + $0x750] sm:$0xff]
    %v2529 = vld [vmem:[#allocation11 + $0x758] sm:$0xff]
    %v2530 = vld [vmem:[#allocation11 + $0x760] sm:$0xff]
    %v2531 = vld [vmem:[#allocation11 + $0x768] sm:$0xff]
    %v2532 = vld [vmem:[#allocation11 + $0x770] sm:$0xff]
    %v2533 = vld [vmem:[#allocation11 + $0x778] sm:$0xff]
    %v2534 = vld [vmem:[#allocation11 + $0x780] sm:$0xff]
    %v2535 = vld [vmem:[#allocation11 + $0x788] sm:$0xff]
    %v2536 = vld [vmem:[#allocation11 + $0x790] sm:$0xff]
    %v2537 = vld [vmem:[#allocation11 + $0x798] sm:$0xff]
    %v2538 = vld [vmem:[#allocation11 + $0x7a0] sm:$0xff]
    %v2539 = vld [vmem:[#allocation11 + $0x7a8] sm:$0xff]
    %v2540 = vld [vmem:[#allocation11 + $0x7b0] sm:$0xff]
    %v2541 = vld [vmem:[#allocation11 + $0x7b8] sm:$0xff]
    %v2542 = vld [vmem:[#allocation11 + $0x7c0] sm:$0xff]
    %v2543 = vld [vmem:[#allocation11 + $0x7c8] sm:$0xff]
    %v2544 = vld [vmem:[#allocation11 + $0x7d0] sm:$0xff]
    %v2545 = vld [vmem:[#allocation11 + $0x7d8] sm:$0xff]
    %v2546 = vld [vmem:[#allocation11 + $0x7e0] sm:$0xff]
    %v2547 = vld [vmem:[#allocation11 + $0x7e8] sm:$0xff]
    %v2548 = vld [vmem:[#allocation11 + $0x7f0] sm:$0xff]
    %v2549 = vld [vmem:[#allocation11 + $0x7f8] sm:$0xff]
    %v2550 = vld [vmem:[#allocation11 + $0x800] sm:$0xff]
    %v2551 = vld [vmem:[#allocation11 + $0x808] sm:$0xff]
    %v2552 = vld [vmem:[#allocation11 + $0x810] sm:$0xff]
    %v2553 = vld [vmem:[#allocation11 + $0x818] sm:$0xff]
    %v2554 = vld [vmem:[#allocation11 + $0x820] sm:$0xff]
    %v2555 = vld [vmem:[#allocation11 + $0x828] sm:$0xff]
    %v2556 = vld [vmem:[#allocation11 + $0x830] sm:$0xff]
    %v2557 = vld [vmem:[#allocation11 + $0x838] sm:$0xff]
    %v2558 = vld [vmem:[#allocation11 + $0x840] sm:$0xff]
    %v2559 = vld [vmem:[#allocation11 + $0x848] sm:$0xff]
    %v2560 = vld [vmem:[#allocation11 + $0x850] sm:$0xff]
    %v2561 = vld [vmem:[#allocation11 + $0x858] sm:$0xff]
    %v2562 = vld [vmem:[#allocation11 + $0x860] sm:$0xff]
    %v2563 = vld [vmem:[#allocation11 + $0x868] sm:$0xff]
    %v2564 = vld [vmem:[#allocation11 + $0x870] sm:$0xff]
    %v2565 = vld [vmem:[#allocation11 + $0x878] sm:$0xff]
    %v2566 = vld [vmem:[#allocation11 + $0x880] sm:$0xff]
    %v2567 = vld [vmem:[#allocation11 + $0x888] sm:$0xff]
    %v2568 = vld [vmem:[#allocation11 + $0x890] sm:$0xff]
    %v2569 = vld [vmem:[#allocation11 + $0x898] sm:$0xff]
    %v2570 = vld [vmem:[#allocation11 + $0x8a0] sm:$0xff]
    %v2571 = vld [vmem:[#allocation11 + $0x8a8] sm:$0xff]
    %v2572 = vld [vmem:[#allocation11 + $0x8b0] sm:$0xff]
    %v2573 = vld [vmem:[#allocation11 + $0x8b8] sm:$0xff]
    %v2574 = vld [vmem:[#allocation11 + $0x8c0] sm:$0xff]
    %v2575 = vld [vmem:[#allocation11 + $0x8c8] sm:$0xff]
    %v2576 = vld [vmem:[#allocation11 + $0x8d0] sm:$0xff]
    %v2577 = vld [vmem:[#allocation11 + $0x8d8] sm:$0xff]
    %v2578 = vld [vmem:[#allocation11 + $0x8e0] sm:$0xff]
    %v2579 = vld [vmem:[#allocation11 + $0x8e8] sm:$0xff]
    %v2580 = vld [vmem:[#allocation11 + $0x8f0] sm:$0xff]
    %v2581 = vld [vmem:[#allocation11 + $0x8f8] sm:$0xff]
    %v2582 = vld [vmem:[#allocation11 + $0x900] sm:$0xff]
    %v2583 = vld [vmem:[#allocation11 + $0x908] sm:$0xff]
    %v2584 = vld [vmem:[#allocation11 + $0x910] sm:$0xff]
    %v2585 = vld [vmem:[#allocation11 + $0x918] sm:$0xff]
    %v2586 = vld [vmem:[#allocation11 + $0x920] sm:$0xff]
    %v2587 = vld [vmem:[#allocation11 + $0x928] sm:$0xff]
    %v2588 = vld [vmem:[#allocation11 + $0x930] sm:$0xff]
    %v2589 = vld [vmem:[#allocation11 + $0x938] sm:$0xff]
    %v2590 = vld [vmem:[#allocation11 + $0x940] sm:$0xff]
    %v2591 = vld [vmem:[#allocation11 + $0x948] sm:$0xff]
    %v2592 = vld [vmem:[#allocation11 + $0x950] sm:$0xff]
    %v2593 = vld [vmem:[#allocation11 + $0x958] sm:$0xff]
    %v2594 = vld [vmem:[#allocation11 + $0x960] sm:$0xff]
    %v2595 = vld [vmem:[#allocation11 + $0x968] sm:$0xff]
    %v2596 = vld [vmem:[#allocation11 + $0x970] sm:$0xff]
    %v2597 = vld [vmem:[#allocation11 + $0x978] sm:$0xff]
    %v2598 = vld [vmem:[#allocation11 + $0x980] sm:$0xff]
    %v2599 = vld [vmem:[#allocation11 + $0x988] sm:$0xff]
    %v2600 = vld [vmem:[#allocation11 + $0x990] sm:$0xff]
    %v2601 = vld [vmem:[#allocation11 + $0x998] sm:$0xff]
    %v2602 = vld [vmem:[#allocation11 + $0x9a0] sm:$0xff]
    %v2603 = vld [vmem:[#allocation11 + $0x9a8] sm:$0xff]
    %v2604 = vld [vmem:[#allocation11 + $0x9b0] sm:$0xff]
    %v2605 = vld [vmem:[#allocation11 + $0x9b8] sm:$0xff]
    %v2606 = vld [vmem:[#allocation11 + $0x9c0] sm:$0xff]
    %v2607 = vld [vmem:[#allocation11 + $0x9c8] sm:$0xff]
    %v2608 = vld [vmem:[#allocation11 + $0x9d0] sm:$0xff]
    %v2609 = vld [vmem:[#allocation11 + $0x9d8] sm:$0xff]
    %v2610 = vld [vmem:[#allocation11 + $0x9e0] sm:$0xff]
    %v2611 = vld [vmem:[#allocation11 + $0x9e8] sm:$0xff]
    %v2612 = vld [vmem:[#allocation11 + $0x9f0] sm:$0xff]
    %v2613 = vld [vmem:[#allocation11 + $0x9f8] sm:$0xff]
    %v2614 = vld [vmem:[#allocation11 + $0xa00] sm:$0xff]
    %v2615 = vld [vmem:[#allocation11 + $0xa08] sm:$0xff]
    %v2616 = vld [vmem:[#allocation11 + $0xa10] sm:$0xff]
    %v2617 = vld [vmem:[#allocation11 + $0xa18] sm:$0xff]
    %v2618 = vld [vmem:[#allocation11 + $0xa20] sm:$0xff]
    %v2619 = vld [vmem:[#allocation11 + $0xa28] sm:$0xff]
    %v2620 = vld [vmem:[#allocation11 + $0xa30] sm:$0xff]
    %v2621 = vld [vmem:[#allocation11 + $0xa38] sm:$0xff]
    %v2622 = vld [vmem:[#allocation11 + $0xa40] sm:$0xff]
    %v2623 = vld [vmem:[#allocation11 + $0xa48] sm:$0xff]
    %v2624 = vld [vmem:[#allocation11 + $0xa50] sm:$0xff]
    %v2625 = vld [vmem:[#allocation11 + $0xa58] sm:$0xff]
    %v2626 = vld [vmem:[#allocation11 + $0xa60] sm:$0xff]
    %v2627 = vld [vmem:[#allocation11 + $0xa68] sm:$0xff]
    %v2628 = vld [vmem:[#allocation11 + $0xa70] sm:$0xff]
    %v2629 = vld [vmem:[#allocation11 + $0xa78] sm:$0xff]
    %v2630 = vld [vmem:[#allocation11 + $0xa80] sm:$0xff]
    %v2631 = vld [vmem:[#allocation11 + $0xa88] sm:$0xff]
    %v2632 = vld [vmem:[#allocation11 + $0xa90] sm:$0xff]
    %v2633 = vld [vmem:[#allocation11 + $0xa98] sm:$0xff]
    %v2634 = vld [vmem:[#allocation11 + $0xaa0] sm:$0xff]
    %v2635 = vld [vmem:[#allocation11 + $0xaa8] sm:$0xff]
    %v2636 = vld [vmem:[#allocation11 + $0xab0] sm:$0xff]
    %v2637 = vld [vmem:[#allocation11 + $0xab8] sm:$0xff]
    %v2638 = vld [vmem:[#allocation11 + $0xac0] sm:$0xff]
    %v2639 = vld [vmem:[#allocation11 + $0xac8] sm:$0xff]
    %v2640 = vld [vmem:[#allocation11 + $0xad0] sm:$0xff]
    %v2641 = vld [vmem:[#allocation11 + $0xad8] sm:$0xff]
    %v2642 = vld [vmem:[#allocation11 + $0xae0] sm:$0xff]
    %v2643 = vld [vmem:[#allocation11 + $0xae8] sm:$0xff]
    %v2644 = vld [vmem:[#allocation11 + $0xaf0] sm:$0xff]
    %v2645 = vld [vmem:[#allocation11 + $0xaf8] sm:$0xff]
    %v2646 = vld [vmem:[#allocation11 + $0xb00] sm:$0xff]
    %v2647 = vld [vmem:[#allocation11 + $0xb08] sm:$0xff]
    %v2648 = vld [vmem:[#allocation11 + $0xb10] sm:$0xff]
    %v2649 = vld [vmem:[#allocation11 + $0xb18] sm:$0xff]
    %v2650 = vld [vmem:[#allocation11 + $0xb20] sm:$0xff]
    %v2651 = vld [vmem:[#allocation11 + $0xb28] sm:$0xff]
    %v2652 = vld [vmem:[#allocation11 + $0xb30] sm:$0xff]
    %v2653 = vld [vmem:[#allocation11 + $0xb38] sm:$0xff]
    %v2654 = vld [vmem:[#allocation11 + $0xb40] sm:$0xff]
    %v2655 = vld [vmem:[#allocation11 + $0xb48] sm:$0xff]
    %v2656 = vld [vmem:[#allocation11 + $0xb50] sm:$0xff]
    %v2657 = vld [vmem:[#allocation11 + $0xb58] sm:$0xff]
    %v2658 = vld [vmem:[#allocation11 + $0xb60] sm:$0xff]
    %v2659 = vld [vmem:[#allocation11 + $0xb68] sm:$0xff]
    %v2660 = vld [vmem:[#allocation11 + $0xb70] sm:$0xff]
    %v2661 = vld [vmem:[#allocation11 + $0xb78] sm:$0xff]
    %v2662 = vld [vmem:[#allocation11 + $0xb80] sm:$0xff]
    %v2663 = vld [vmem:[#allocation11 + $0xb88] sm:$0xff]
    %v2664 = vld [vmem:[#allocation11 + $0xb90] sm:$0xff]
    %v2665 = vld [vmem:[#allocation11 + $0xb98] sm:$0xff]
    %v2666 = vld [vmem:[#allocation11 + $0xba0] sm:$0xff]
    %v2667 = vld [vmem:[#allocation11 + $0xba8] sm:$0xff]
    %v2668 = vld [vmem:[#allocation11 + $0xbb0] sm:$0xff]
    %v2669 = vld [vmem:[#allocation11 + $0xbb8] sm:$0xff]
    %v2670 = vld [vmem:[#allocation11 + $0xbc0] sm:$0xff]
    %v2671 = vld [vmem:[#allocation11 + $0xbc8] sm:$0xff]
    %v2672 = vld [vmem:[#allocation11 + $0xbd0] sm:$0xff]
    %v2673 = vld [vmem:[#allocation11 + $0xbd8] sm:$0xff]
    %v2674 = vld [vmem:[#allocation11 + $0xbe0] sm:$0xff]
    %v2675 = vld [vmem:[#allocation11 + $0xbe8] sm:$0xff]
    %v2676 = vld [vmem:[#allocation11 + $0xbf0] sm:$0xff]
    %v2677 = vld [vmem:[#allocation11 + $0xbf8] sm:$0xff]
    %v2678 = vld [vmem:[#allocation11 + $0xc00] sm:$0xff]
    %v2679 = vld [vmem:[#allocation11 + $0xc08] sm:$0xff]
    %v2680 = vld [vmem:[#allocation11 + $0xc10] sm:$0xff]
    %v2681 = vld [vmem:[#allocation11 + $0xc18] sm:$0xff]
    %v2682 = vld [vmem:[#allocation11 + $0xc20] sm:$0xff]
    %v2683 = vld [vmem:[#allocation11 + $0xc28] sm:$0xff]
    %v2684 = vld [vmem:[#allocation11 + $0xc30] sm:$0xff]
    %v2685 = vld [vmem:[#allocation11 + $0xc38] sm:$0xff]
    %v2686 = vld [vmem:[#allocation11 + $0xc40] sm:$0xff]
    %v2687 = vld [vmem:[#allocation11 + $0xc48] sm:$0xff]
    %v2688 = vld [vmem:[#allocation11 + $0xc50] sm:$0xff]
    %v2689 = vld [vmem:[#allocation11 + $0xc58] sm:$0xff]
    %v2690 = vld [vmem:[#allocation11 + $0xc60] sm:$0xff]
    %v2691 = vld [vmem:[#allocation11 + $0xc68] sm:$0xff]
    %v2692 = vld [vmem:[#allocation11 + $0xc70] sm:$0xff]
    %v2693 = vld [vmem:[#allocation11 + $0xc78] sm:$0xff]
    %v2694 = vld [vmem:[#allocation11 + $0xc80] sm:$0xff]
    %v2695 = vld [vmem:[#allocation11 + $0xc88] sm:$0xff]
    %v2696 = vld [vmem:[#allocation11 + $0xc90] sm:$0xff]
    %v2697 = vld [vmem:[#allocation11 + $0xc98] sm:$0xff]
    %v2698 = vld [vmem:[#allocation11 + $0xca0] sm:$0xff]
    %v2699 = vld [vmem:[#allocation11 + $0xca8] sm:$0xff]
    %v2700 = vld [vmem:[#allocation11 + $0xcb0] sm:$0xff]
    %v2701 = vld [vmem:[#allocation11 + $0xcb8] sm:$0xff]
    %v2702 = vld [vmem:[#allocation11 + $0xcc0] sm:$0xff]
    %v2703 = vld [vmem:[#allocation11 + $0xcc8] sm:$0xff]
    %v2704 = vld [vmem:[#allocation11 + $0xcd0] sm:$0xff]
    %v2705 = vld [vmem:[#allocation11 + $0xcd8] sm:$0xff]
    %v2706 = vld [vmem:[#allocation11 + $0xce0] sm:$0xff]
    %v2707 = vld [vmem:[#allocation11 + $0xce8] sm:$0xff]
    %v2708 = vld [vmem:[#allocation11 + $0xcf0] sm:$0xff]
    %v2709 = vld [vmem:[#allocation11 + $0xcf8] sm:$0xff]
    %v2710 = vld [vmem:[#allocation11 + $0xd00] sm:$0xff]
    %v2711 = vld [vmem:[#allocation11 + $0xd08] sm:$0xff]
    %v2712 = vld [vmem:[#allocation11 + $0xd10] sm:$0xff]
    %v2713 = vld [vmem:[#allocation11 + $0xd18] sm:$0xff]
    %v2714 = vld [vmem:[#allocation11 + $0xd20] sm:$0xff]
    %v2715 = vld [vmem:[#allocation11 + $0xd28] sm:$0xff]
    %v2716 = vld [vmem:[#allocation11 + $0xd30] sm:$0xff]
    %v2717 = vld [vmem:[#allocation11 + $0xd38] sm:$0xff]
    %v2718 = vld [vmem:[#allocation11 + $0xd40] sm:$0xff]
    %v2719 = vld [vmem:[#allocation11 + $0xd48] sm:$0xff]
    %v2720 = vld [vmem:[#allocation11 + $0xd50] sm:$0xff]
    %v2721 = vld [vmem:[#allocation11 + $0xd58] sm:$0xff]
    %v2722 = vld [vmem:[#allocation11 + $0xd60] sm:$0xff]
    %v2723 = vld [vmem:[#allocation11 + $0xd68] sm:$0xff]
    %v2724 = vld [vmem:[#allocation11 + $0xd70] sm:$0xff]
    %v2725 = vld [vmem:[#allocation11 + $0xd78] sm:$0xff]
    %v2726 = vld [vmem:[#allocation11 + $0xd80] sm:$0xff]
    %v2727 = vld [vmem:[#allocation11 + $0xd88] sm:$0xff]
    %v2728 = vld [vmem:[#allocation11 + $0xd90] sm:$0xff]
    %v2729 = vld [vmem:[#allocation11 + $0xd98] sm:$0xff]
    %v2730 = vld [vmem:[#allocation11 + $0xda0] sm:$0xff]
    %v2731 = vld [vmem:[#allocation11 + $0xda8] sm:$0xff]
    %v2732 = vld [vmem:[#allocation11 + $0xdb0] sm:$0xff]
    %v2733 = vld [vmem:[#allocation11 + $0xdb8] sm:$0xff]
    %v2734 = vld [vmem:[#allocation11 + $0xdc0] sm:$0xff]
    %v2735 = vld [vmem:[#allocation11 + $0xdc8] sm:$0xff]
    %v2736 = vld [vmem:[#allocation11 + $0xdd0] sm:$0xff]
    %v2737 = vld [vmem:[#allocation11 + $0xdd8] sm:$0xff]
    %v2738 = vld [vmem:[#allocation11 + $0xde0] sm:$0xff]
    %v2739 = vld [vmem:[#allocation11 + $0xde8] sm:$0xff]
    %v2740 = vld [vmem:[#allocation11 + $0xdf0] sm:$0xff]
    %v2741 = vld [vmem:[#allocation11 + $0xdf8] sm:$0xff]
    %v2742 = vld [vmem:[#allocation11 + $0xe00] sm:$0xff]
    %v2743 = vld [vmem:[#allocation11 + $0xe08] sm:$0xff]
    %v2744 = vld [vmem:[#allocation11 + $0xe10] sm:$0xff]
    %v2745 = vld [vmem:[#allocation11 + $0xe18] sm:$0xff]
    %v2746 = vld [vmem:[#allocation11 + $0xe20] sm:$0xff]
    %v2747 = vld [vmem:[#allocation11 + $0xe28] sm:$0xff]
    %v2748 = vld [vmem:[#allocation11 + $0xe30] sm:$0xff]
    %v2749 = vld [vmem:[#allocation11 + $0xe38] sm:$0xff]
    %v2750 = vld [vmem:[#allocation11 + $0xe40] sm:$0xff]
    %v2751 = vld [vmem:[#allocation11 + $0xe48] sm:$0xff]
    %v2752 = vld [vmem:[#allocation11 + $0xe50] sm:$0xff]
    %v2753 = vld [vmem:[#allocation11 + $0xe58] sm:$0xff]
    %v2754 = vld [vmem:[#allocation11 + $0xe60] sm:$0xff]
    %v2755 = vld [vmem:[#allocation11 + $0xe68] sm:$0xff]
    %v2756 = vld [vmem:[#allocation11 + $0xe70] sm:$0xff]
    %v2757 = vld [vmem:[#allocation11 + $0xe78] sm:$0xff]
    %v2758 = vld [vmem:[#allocation11 + $0xe80] sm:$0xff]
    %v2759 = vld [vmem:[#allocation11 + $0xe88] sm:$0xff]
    %v2760 = vld [vmem:[#allocation11 + $0xe90] sm:$0xff]
    %v2761 = vld [vmem:[#allocation11 + $0xe98] sm:$0xff]
    %v2762 = vld [vmem:[#allocation11 + $0xea0] sm:$0xff]
    %v2763 = vld [vmem:[#allocation11 + $0xea8] sm:$0xff]
    %v2764 = vld [vmem:[#allocation11 + $0xeb0] sm:$0xff]
    %v2765 = vld [vmem:[#allocation11 + $0xeb8] sm:$0xff]
    %v2766 = vld [vmem:[#allocation11 + $0xec0] sm:$0xff]
    %v2767 = vld [vmem:[#allocation11 + $0xec8] sm:$0xff]
    %v2768 = vld [vmem:[#allocation11 + $0xed0] sm:$0xff]
    %v2769 = vld [vmem:[#allocation11 + $0xed8] sm:$0xff]
    %v2770 = vld [vmem:[#allocation11 + $0xee0] sm:$0xff]
    %v2771 = vld [vmem:[#allocation11 + $0xee8] sm:$0xff]
    %v2772 = vld [vmem:[#allocation11 + $0xef0] sm:$0xff]
    %v2773 = vld [vmem:[#allocation11 + $0xef8] sm:$0xff]
    %v2774 = vld [vmem:[#allocation11 + $0xf00] sm:$0xff]
    %v2775 = vld [vmem:[#allocation11 + $0xf08] sm:$0xff]
    %v2776 = vld [vmem:[#allocation11 + $0xf10] sm:$0xff]
    %v2777 = vld [vmem:[#allocation11 + $0xf18] sm:$0xff]
    %v2778 = vld [vmem:[#allocation11 + $0xf20] sm:$0xff]
    %v2779 = vld [vmem:[#allocation11 + $0xf28] sm:$0xff]
    %v2780 = vld [vmem:[#allocation11 + $0xf30] sm:$0xff]
    %v2781 = vld [vmem:[#allocation11 + $0xf38] sm:$0xff]
    %v2782 = vld [vmem:[#allocation11 + $0xf40] sm:$0xff]
    %v2783 = vld [vmem:[#allocation11 + $0xf48] sm:$0xff]
    %v2784 = vld [vmem:[#allocation11 + $0xf50] sm:$0xff]
    %v2785 = vld [vmem:[#allocation11 + $0xf58] sm:$0xff]
    %v2786 = vld [vmem:[#allocation11 + $0xf60] sm:$0xff]
    %v2787 = vld [vmem:[#allocation11 + $0xf68] sm:$0xff]
    %v2788 = vld [vmem:[#allocation11 + $0xf70] sm:$0xff]
    %v2789 = vld [vmem:[#allocation11 + $0xf78] sm:$0xff]
    %v2790 = vld [vmem:[#allocation11 + $0xf80] sm:$0xff]
    %v2791 = vld [vmem:[#allocation11 + $0xf88] sm:$0xff]
    %v2792 = vld [vmem:[#allocation11 + $0xf90] sm:$0xff]
    %v2793 = vld [vmem:[#allocation11 + $0xf98] sm:$0xff]
    %v2794 = vld [vmem:[#allocation11 + $0xfa0] sm:$0xff]
    %v2795 = vld [vmem:[#allocation11 + $0xfa8] sm:$0xff]
    %v2796 = vld [vmem:[#allocation11 + $0xfb0] sm:$0xff]
    %v2797 = vld [vmem:[#allocation11 + $0xfb8] sm:$0xff]
    %v2798 = vld [vmem:[#allocation11 + $0xfc0] sm:$0xff]
    %v2799 = vld [vmem:[#allocation11 + $0xfc8] sm:$0xff]
    %v2800 = vld [vmem:[#allocation11 + $0xfd0] sm:$0xff]
    %v2801 = vld [vmem:[#allocation11 + $0xfd8] sm:$0xff]
    %v2802 = vld [vmem:[#allocation11 + $0xfe0] sm:$0xff]
    %v2803 = vld [vmem:[#allocation11 + $0xfe8] sm:$0xff]
    %v2804 = vld [vmem:[#allocation11 + $0xff0] sm:$0xff]
    %v2805 = vld [vmem:[#allocation11 + $0xff8] sm:$0xff]
    %v2806 = vld [vmem:[#allocation11 + $0x1000] sm:$0xff]
    %v2807 = vld [vmem:[#allocation11 + $0x1008] sm:$0xff]
    %v2808 = vld [vmem:[#allocation11 + $0x1010] sm:$0xff]
    %v2809 = vld [vmem:[#allocation11 + $0x1018] sm:$0xff]
    %v2810 = vld [vmem:[#allocation11 + $0x1020] sm:$0xff]
    %v2811 = vld [vmem:[#allocation11 + $0x1028] sm:$0xff]
    %v2812 = vld [vmem:[#allocation11 + $0x1030] sm:$0xff]
    %v2813 = vld [vmem:[#allocation11 + $0x1038] sm:$0xff]
    %v2814 = vld [vmem:[#allocation11 + $0x1040] sm:$0xff]
    %v2815 = vld [vmem:[#allocation11 + $0x1048] sm:$0xff]
    %v2816 = vld [vmem:[#allocation11 + $0x1050] sm:$0xff]
    %v2817 = vld [vmem:[#allocation11 + $0x1058] sm:$0xff]
    %v2818 = vld [vmem:[#allocation11 + $0x1060] sm:$0xff]
    %v2819 = vld [vmem:[#allocation11 + $0x1068] sm:$0xff]
    %v2820 = vld [vmem:[#allocation11 + $0x1070] sm:$0xff]
    %v2821 = vld [vmem:[#allocation11 + $0x1078] sm:$0xff]
    %v2822 = vld [vmem:[#allocation11 + $0x1080] sm:$0xff]
    %v2823 = vld [vmem:[#allocation11 + $0x1088] sm:$0xff]
    %v2824 = vld [vmem:[#allocation11 + $0x1090] sm:$0xff]
    %v2825 = vld [vmem:[#allocation11 + $0x1098] sm:$0xff]
    %v2826 = vld [vmem:[#allocation11 + $0x10a0] sm:$0xff]
    %v2827 = vld [vmem:[#allocation11 + $0x10a8] sm:$0xff]
    %v2828 = vld [vmem:[#allocation11 + $0x10b0] sm:$0xff]
    %v2829 = vld [vmem:[#allocation11 + $0x10b8] sm:$0xff]
    %v2830 = vld [vmem:[#allocation11 + $0x10c0] sm:$0xff]
    %v2831 = vld [vmem:[#allocation11 + $0x10c8] sm:$0xff]
    %v2832 = vld [vmem:[#allocation11 + $0x10d0] sm:$0xff]
    %v2833 = vld [vmem:[#allocation11 + $0x10d8] sm:$0xff]
    %v2834 = vld [vmem:[#allocation11 + $0x10e0] sm:$0xff]
    %v2835 = vld [vmem:[#allocation11 + $0x10e8] sm:$0xff]
    %v2836 = vld [vmem:[#allocation11 + $0x10f0] sm:$0xff]
    %v2837 = vld [vmem:[#allocation11 + $0x10f8] sm:$0xff]
    %v2838 = vld [vmem:[#allocation11 + $0x1100] sm:$0xff]
    %v2839 = vld [vmem:[#allocation11 + $0x1108] sm:$0xff]
    %v2840 = vld [vmem:[#allocation11 + $0x1110] sm:$0xff]
    %v2841 = vld [vmem:[#allocation11 + $0x1118] sm:$0xff]
    %v2842 = vld [vmem:[#allocation11 + $0x1120] sm:$0xff]
    %v2843 = vld [vmem:[#allocation11 + $0x1128] sm:$0xff]
    %v2844 = vld [vmem:[#allocation11 + $0x1130] sm:$0xff]
    %v2845 = vld [vmem:[#allocation11 + $0x1138] sm:$0xff]
    %v2846 = vld [vmem:[#allocation11 + $0x1140] sm:$0xff]
    %v2847 = vld [vmem:[#allocation11 + $0x1148] sm:$0xff]
    %v2848 = vld [vmem:[#allocation11 + $0x1150] sm:$0xff]
    %v2849 = vld [vmem:[#allocation11 + $0x1158] sm:$0xff]
    %v2850 = vld [vmem:[#allocation11 + $0x1160] sm:$0xff]
    %v2851 = vld [vmem:[#allocation11 + $0x1168] sm:$0xff]
    %v2852 = vld [vmem:[#allocation11 + $0x1170] sm:$0xff]
    %v2853 = vld [vmem:[#allocation11 + $0x1178] sm:$0xff]
    %v2854 = vld [vmem:[#allocation11 + $0x1180] sm:$0xff]
    %v2855 = vld [vmem:[#allocation11 + $0x1188] sm:$0xff]
    %v2856 = vld [vmem:[#allocation11 + $0x1190] sm:$0xff]
    %v2857 = vld [vmem:[#allocation11 + $0x1198] sm:$0xff]
    %v2858 = vld [vmem:[#allocation11 + $0x11a0] sm:$0xff]
    %v2859 = vld [vmem:[#allocation11 + $0x11a8] sm:$0xff]
    %v2860 = vld [vmem:[#allocation11 + $0x11b0] sm:$0xff]
    %v2861 = vld [vmem:[#allocation11 + $0x11b8] sm:$0xff]
    %v2862 = vld [vmem:[#allocation11 + $0x11c0] sm:$0xff]
    %v2863 = vld [vmem:[#allocation11 + $0x11c8] sm:$0xff]
    %v2864 = vld [vmem:[#allocation11 + $0x11d0] sm:$0xff]
    %v2865 = vld [vmem:[#allocation11 + $0x11d8] sm:$0xff]
    %v2866 = vld [vmem:[#allocation11 + $0x11e0] sm:$0xff]
    %v2867 = vld [vmem:[#allocation11 + $0x11e8] sm:$0xff]
    %v2868 = vld [vmem:[#allocation11 + $0x11f0] sm:$0xff]
    %v2869 = vld [vmem:[#allocation11 + $0x11f8] sm:$0xff]
    %v2870 = vld [vmem:[#allocation11 + $0x1200] sm:$0xff]
    %v2871 = vld [vmem:[#allocation11 + $0x1208] sm:$0xff]
    %v2872 = vld [vmem:[#allocation11 + $0x1210] sm:$0xff]
    %v2873 = vld [vmem:[#allocation11 + $0x1218] sm:$0xff]
    %v2874 = vld [vmem:[#allocation11 + $0x1220] sm:$0xff]
    %v2875 = vld [vmem:[#allocation11 + $0x1228] sm:$0xff]
    %v2876 = vld [vmem:[#allocation11 + $0x1230] sm:$0xff]
    %v2877 = vld [vmem:[#allocation11 + $0x1238] sm:$0xff]
    %v2878 = vld [vmem:[#allocation11 + $0x1240] sm:$0xff]
    %v2879 = vld [vmem:[#allocation11 + $0x1248] sm:$0xff]
    %v2880 = vld [vmem:[#allocation11 + $0x1250] sm:$0xff]
    %v2881 = vld [vmem:[#allocation11 + $0x1258] sm:$0xff]
    %v2882 = vld [vmem:[#allocation11 + $0x1260] sm:$0xff]
    %v2883 = vld [vmem:[#allocation11 + $0x1268] sm:$0xff]
    %v2884 = vld [vmem:[#allocation11 + $0x1270] sm:$0xff]
    %v2885 = vld [vmem:[#allocation11 + $0x1278] sm:$0xff]
    %v2886 = vld [vmem:[#allocation11 + $0x1280] sm:$0xff]
    %v2887 = vld [vmem:[#allocation11 + $0x1288] sm:$0xff]
    %v2888 = vld [vmem:[#allocation11 + $0x1290] sm:$0xff]
    %v2889 = vld [vmem:[#allocation11 + $0x1298] sm:$0xff]
    %v2890 = vld [vmem:[#allocation11 + $0x12a0] sm:$0xff]
    %v2891 = vld [vmem:[#allocation11 + $0x12a8] sm:$0xff]
    %v2892 = vld [vmem:[#allocation11 + $0x12b0] sm:$0xff]
    %v2893 = vld [vmem:[#allocation11 + $0x12b8] sm:$0xff]
    %v2894 = vld [vmem:[#allocation11 + $0x12c0] sm:$0xff]
    %v2895 = vld [vmem:[#allocation11 + $0x12c8] sm:$0xff]
    %v2896 = vld [vmem:[#allocation11 + $0x12d0] sm:$0xff]
    %v2897 = vld [vmem:[#allocation11 + $0x12d8] sm:$0xff]
    %v2898 = vld [vmem:[#allocation11 + $0x12e0] sm:$0xff]
    %v2899 = vld [vmem:[#allocation11 + $0x12e8] sm:$0xff]
    %v2900 = vld [vmem:[#allocation11 + $0x12f0] sm:$0xff]
    %v2901 = vld [vmem:[#allocation11 + $0x12f8] sm:$0xff]
    %v2902 = vld [vmem:[#allocation11 + $0x1300] sm:$0xff]
    %v2903 = vld [vmem:[#allocation11 + $0x1308] sm:$0xff]
    %v2904 = vld [vmem:[#allocation11 + $0x1310] sm:$0xff]
    %v2905 = vld [vmem:[#allocation11 + $0x1318] sm:$0xff]
    %v2906 = vld [vmem:[#allocation11 + $0x1320] sm:$0xff]
    %v2907 = vld [vmem:[#allocation11 + $0x1328] sm:$0xff]
    %v2908 = vld [vmem:[#allocation11 + $0x1330] sm:$0xff]
    %v2909 = vld [vmem:[#allocation11 + $0x1338] sm:$0xff]
    %v2910 = vld [vmem:[#allocation11 + $0x1340] sm:$0xff]
    %v2911 = vld [vmem:[#allocation11 + $0x1348] sm:$0xff]
    %v2912 = vld [vmem:[#allocation11 + $0x1350] sm:$0xff]
    %v2913 = vld [vmem:[#allocation11 + $0x1358] sm:$0xff]
    %v2914 = vld [vmem:[#allocation11 + $0x1360] sm:$0xff]
    %v2915 = vld [vmem:[#allocation11 + $0x1368] sm:$0xff]
    %v2916 = vld [vmem:[#allocation11 + $0x1370] sm:$0xff]
    %v2917 = vld [vmem:[#allocation11 + $0x1378] sm:$0xff]
    %v2918 = vld [vmem:[#allocation11 + $0x1380] sm:$0xff]
    %v2919 = vld [vmem:[#allocation11 + $0x1388] sm:$0xff]
    %v2920 = vld [vmem:[#allocation11 + $0x1390] sm:$0xff]
    %v2921 = vld [vmem:[#allocation11 + $0x1398] sm:$0xff]
    %v2922 = vld [vmem:[#allocation11 + $0x13a0] sm:$0xff]
    %v2923 = vld [vmem:[#allocation11 + $0x13a8] sm:$0xff]
    %v2924 = vld [vmem:[#allocation11 + $0x13b0] sm:$0xff]
    %v2925 = vld [vmem:[#allocation11 + $0x13b8] sm:$0xff]
    %v2926 = vld [vmem:[#allocation11 + $0x13c0] sm:$0xff]
    %v2927 = vld [vmem:[#allocation11 + $0x13c8] sm:$0xff]
    %v2928 = vld [vmem:[#allocation11 + $0x13d0] sm:$0xff]
    %v2929 = vld [vmem:[#allocation11 + $0x13d8] sm:$0xff]
    %v2930 = vld [vmem:[#allocation11 + $0x13e0] sm:$0xff]
    %v2931 = vld [vmem:[#allocation11 + $0x13e8] sm:$0xff]
    %v2932 = vld [vmem:[#allocation11 + $0x13f0] sm:$0xff]
    %v2933 = vld [vmem:[#allocation11 + $0x13f8] sm:$0xff]
    %v2934 = vld [vmem:[#allocation11 + $0x1400] sm:$0xff]
    %v2935 = vld [vmem:[#allocation11 + $0x1408] sm:$0xff]
    %v2936 = vld [vmem:[#allocation11 + $0x1410] sm:$0xff]
    %v2937 = vld [vmem:[#allocation11 + $0x1418] sm:$0xff]
    %v2938 = vld [vmem:[#allocation11 + $0x1420] sm:$0xff]
    %v2939 = vld [vmem:[#allocation11 + $0x1428] sm:$0xff]
    %v2940 = vld [vmem:[#allocation11 + $0x1430] sm:$0xff]
    %v2941 = vld [vmem:[#allocation11 + $0x1438] sm:$0xff]
    %v2942 = vld [vmem:[#allocation11 + $0x1440] sm:$0xff]
    %v2943 = vld [vmem:[#allocation11 + $0x1448] sm:$0xff]
    %v2944 = vld [vmem:[#allocation11 + $0x1450] sm:$0xff]
    %v2945 = vld [vmem:[#allocation11 + $0x1458] sm:$0xff]
    %v2946 = vld [vmem:[#allocation11 + $0x1460] sm:$0xff]
    %v2947 = vld [vmem:[#allocation11 + $0x1468] sm:$0xff]
    %v2948 = vld [vmem:[#allocation11 + $0x1470] sm:$0xff]
    %v2949 = vld [vmem:[#allocation11 + $0x1478] sm:$0xff]
    %v2950 = vld [vmem:[#allocation11 + $0x1480] sm:$0xff]
    %v2951 = vld [vmem:[#allocation11 + $0x1488] sm:$0xff]
    %v2952 = vld [vmem:[#allocation11 + $0x1490] sm:$0xff]
    %v2953 = vld [vmem:[#allocation11 + $0x1498] sm:$0xff]
    %v2954 = vld [vmem:[#allocation11 + $0x14a0] sm:$0xff]
    %v2955 = vld [vmem:[#allocation11 + $0x14a8] sm:$0xff]
    %v2956 = vld [vmem:[#allocation11 + $0x14b0] sm:$0xff]
    %v2957 = vld [vmem:[#allocation11 + $0x14b8] sm:$0xff]
    %v2958 = vld [vmem:[#allocation11 + $0x14c0] sm:$0xff]
    %v2959 = vld [vmem:[#allocation11 + $0x14c8] sm:$0xff]
    %v2960 = vld [vmem:[#allocation11 + $0x14d0] sm:$0xff]
    %v2961 = vld [vmem:[#allocation11 + $0x14d8] sm:$0xff]
    %v2962 = vld [vmem:[#allocation11 + $0x14e0] sm:$0xff]
    %v2963 = vld [vmem:[#allocation11 + $0x14e8] sm:$0xff]
    %v2964 = vld [vmem:[#allocation11 + $0x14f0] sm:$0xff]
    %v2965 = vld [vmem:[#allocation11 + $0x14f8] sm:$0xff]
    %v2966 = vld [vmem:[#allocation11 + $0x1500] sm:$0xff]
    %v2967 = vld [vmem:[#allocation11 + $0x1508] sm:$0xff]
    %v2968 = vld [vmem:[#allocation11 + $0x1510] sm:$0xff]
    %v2969 = vld [vmem:[#allocation11 + $0x1518] sm:$0xff]
    %v2970 = vld [vmem:[#allocation11 + $0x1520] sm:$0xff]
    %v2971 = vld [vmem:[#allocation11 + $0x1528] sm:$0xff]
    %v2972 = vld [vmem:[#allocation11 + $0x1530] sm:$0xff]
    %v2973 = vld [vmem:[#allocation11 + $0x1538] sm:$0xff]
    %v2974 = vld [vmem:[#allocation11 + $0x1540] sm:$0xff]
    %v2975 = vld [vmem:[#allocation11 + $0x1548] sm:$0xff]
    %v2976 = vld [vmem:[#allocation11 + $0x1550] sm:$0xff]
    %v2977 = vld [vmem:[#allocation11 + $0x1558] sm:$0xff]
    %v2978 = vld [vmem:[#allocation11 + $0x1560] sm:$0xff]
    %v2979 = vld [vmem:[#allocation11 + $0x1568] sm:$0xff]
    %v2980 = vld [vmem:[#allocation11 + $0x1570] sm:$0xff]
    %v2981 = vld [vmem:[#allocation11 + $0x1578] sm:$0xff]
    %v2982 = vld [vmem:[#allocation11 + $0x1580] sm:$0xff]
    %v2983 = vld [vmem:[#allocation11 + $0x1588] sm:$0xff]
    %v2984 = vld [vmem:[#allocation11 + $0x1590] sm:$0xff]
    %v2985 = vld [vmem:[#allocation11 + $0x1598] sm:$0xff]
    %v2986 = vld [vmem:[#allocation11 + $0x15a0] sm:$0xff]
    %v2987 = vld [vmem:[#allocation11 + $0x15a8] sm:$0xff]
    %v2988 = vld [vmem:[#allocation11 + $0x15b0] sm:$0xff]
    %v2989 = vld [vmem:[#allocation11 + $0x15b8] sm:$0xff]
    %v2990 = vld [vmem:[#allocation11 + $0x15c0] sm:$0xff]
    %v2991 = vld [vmem:[#allocation11 + $0x15c8] sm:$0xff]
    %v2992 = vld [vmem:[#allocation11 + $0x15d0] sm:$0xff]
    %v2993 = vld [vmem:[#allocation11 + $0x15d8] sm:$0xff]
    %v2994 = vld [vmem:[#allocation11 + $0x15e0] sm:$0xff]
    %v2995 = vld [vmem:[#allocation11 + $0x15e8] sm:$0xff]
    %v2996 = vld [vmem:[#allocation11 + $0x15f0] sm:$0xff]
    %v2997 = vld [vmem:[#allocation11 + $0x15f8] sm:$0xff]
    %v2998 = vld [vmem:[#allocation11 + $0x1600] sm:$0xff]
    %v2999 = vld [vmem:[#allocation11 + $0x1608] sm:$0xff]
    %v3000 = vld [vmem:[#allocation11 + $0x1610] sm:$0xff]
    %v3001 = vld [vmem:[#allocation11 + $0x1618] sm:$0xff]
    %v3002 = vld [vmem:[#allocation11 + $0x1620] sm:$0xff]
    %v3003 = vld [vmem:[#allocation11 + $0x1628] sm:$0xff]
    %v3004 = vld [vmem:[#allocation11 + $0x1630] sm:$0xff]
    %v3005 = vld [vmem:[#allocation11 + $0x1638] sm:$0xff]
    %v3006 = vld [vmem:[#allocation11 + $0x1640] sm:$0xff]
    %v3007 = vld [vmem:[#allocation11 + $0x1648] sm:$0xff]
    %v3008 = vld [vmem:[#allocation11 + $0x1650] sm:$0xff]
    %v3009 = vld [vmem:[#allocation11 + $0x1658] sm:$0xff]
    %v3010 = vld [vmem:[#allocation11 + $0x1660] sm:$0xff]
    %v3011 = vld [vmem:[#allocation11 + $0x1668] sm:$0xff]
    %v3012 = vld [vmem:[#allocation11 + $0x1670] sm:$0xff]
    %v3013 = vld [vmem:[#allocation11 + $0x1678] sm:$0xff]
    %v3014 = vld [vmem:[#allocation11 + $0x1680] sm:$0xff]
    %v3015 = vld [vmem:[#allocation11 + $0x1688] sm:$0xff]
    %v3016 = vld [vmem:[#allocation11 + $0x1690] sm:$0xff]
    %v3017 = vld [vmem:[#allocation11 + $0x1698] sm:$0xff]
    %v3018 = vld [vmem:[#allocation11 + $0x16a0] sm:$0xff]
    %v3019 = vld [vmem:[#allocation11 + $0x16a8] sm:$0xff]
    %v3020 = vld [vmem:[#allocation11 + $0x16b0] sm:$0xff]
    %v3021 = vld [vmem:[#allocation11 + $0x16b8] sm:$0xff]
    %v3022 = vld [vmem:[#allocation11 + $0x16c0] sm:$0xff]
    %v3023 = vld [vmem:[#allocation11 + $0x16c8] sm:$0xff]
    %v3024 = vld [vmem:[#allocation11 + $0x16d0] sm:$0xff]
    %v3025 = vld [vmem:[#allocation11 + $0x16d8] sm:$0xff]
    %v3026 = vld [vmem:[#allocation11 + $0x16e0] sm:$0xff]
    %v3027 = vld [vmem:[#allocation11 + $0x16e8] sm:$0xff]
    %v3028 = vld [vmem:[#allocation11 + $0x16f0] sm:$0xff]
    %v3029 = vld [vmem:[#allocation11 + $0x16f8] sm:$0xff]
    %v3030 = vld [vmem:[#allocation11 + $0x1700] sm:$0xff]
    %v3031 = vld [vmem:[#allocation11 + $0x1708] sm:$0xff]
    %v3032 = vld [vmem:[#allocation11 + $0x1710] sm:$0xff]
    %v3033 = vld [vmem:[#allocation11 + $0x1718] sm:$0xff]
    %v3034 = vld [vmem:[#allocation11 + $0x1720] sm:$0xff]
    %v3035 = vld [vmem:[#allocation11 + $0x1728] sm:$0xff]
    %v3036 = vld [vmem:[#allocation11 + $0x1730] sm:$0xff]
    %v3037 = vld [vmem:[#allocation11 + $0x1738] sm:$0xff]
    %v3038 = vld [vmem:[#allocation11 + $0x1740] sm:$0xff]
    %v3039 = vld [vmem:[#allocation11 + $0x1748] sm:$0xff]
    %v3040 = vld [vmem:[#allocation11 + $0x1750] sm:$0xff]
    %v3041 = vld [vmem:[#allocation11 + $0x1758] sm:$0xff]
    %v3042 = vld [vmem:[#allocation11 + $0x1760] sm:$0xff]
    %v3043 = vld [vmem:[#allocation11 + $0x1768] sm:$0xff]
    %v3044 = vld [vmem:[#allocation11 + $0x1770] sm:$0xff]
    %v3045 = vld [vmem:[#allocation11 + $0x1778] sm:$0xff]
    %v3046 = vld [vmem:[#allocation11 + $0x1780] sm:$0xff]
    %v3047 = vld [vmem:[#allocation11 + $0x1788] sm:$0xff]
    %v3048 = vld [vmem:[#allocation11 + $0x1790] sm:$0xff]
    %v3049 = vld [vmem:[#allocation11 + $0x1798] sm:$0xff]
    %v3050 = vld [vmem:[#allocation11 + $0x17a0] sm:$0xff]
    %v3051 = vld [vmem:[#allocation11 + $0x17a8] sm:$0xff]
    %v3052 = vld [vmem:[#allocation11 + $0x17b0] sm:$0xff]
    %v3053 = vld [vmem:[#allocation11 + $0x17b8] sm:$0xff]
    %v3054 = vld [vmem:[#allocation11 + $0x17c0] sm:$0xff]
    %v3055 = vld [vmem:[#allocation11 + $0x17c8] sm:$0xff]
    %v3056 = vld [vmem:[#allocation11 + $0x17d0] sm:$0xff]
    %v3057 = vld [vmem:[#allocation11 + $0x17d8] sm:$0xff]
    %v3058 = vld [vmem:[#allocation11 + $0x17e0] sm:$0xff]
    %v3059 = vld [vmem:[#allocation11 + $0x17e8] sm:$0xff]
    %v3060 = vld [vmem:[#allocation11 + $0x17f0] sm:$0xff]
    %v3061 = vld [vmem:[#allocation11 + $0x17f8] sm:$0xff]
    %v3062 = vld [vmem:[#allocation11 + $0x1800] sm:$0xff]
    %v3063 = vld [vmem:[#allocation11 + $0x1808] sm:$0xff]
    %v3064 = vld [vmem:[#allocation11 + $0x1810] sm:$0xff]
    %v3065 = vld [vmem:[#allocation11 + $0x1818] sm:$0xff]
    %v3066 = vld [vmem:[#allocation11 + $0x1820] sm:$0xff]
    %v3067 = vld [vmem:[#allocation11 + $0x1828] sm:$0xff]
    %v3068 = vld [vmem:[#allocation11 + $0x1830] sm:$0xff]
    %v3069 = vld [vmem:[#allocation11 + $0x1838] sm:$0xff]
    %v3070 = vld [vmem:[#allocation11 + $0x1840] sm:$0xff]
    %v3071 = vld [vmem:[#allocation11 + $0x1848] sm:$0xff]
    %v3072 = vld [vmem:[#allocation11 + $0x1850] sm:$0xff]
    %v3073 = vld [vmem:[#allocation11 + $0x1858] sm:$0xff]
    %v3074 = vld [vmem:[#allocation11 + $0x1860] sm:$0xff]
    %v3075 = vld [vmem:[#allocation11 + $0x1868] sm:$0xff]
    %v3076 = vld [vmem:[#allocation11 + $0x1870] sm:$0xff]
    %v3077 = vld [vmem:[#allocation11 + $0x1878] sm:$0xff]
    %v3078 = vld [vmem:[#allocation11 + $0x1880] sm:$0xff]
    %v3079 = vld [vmem:[#allocation11 + $0x1888] sm:$0xff]
    %v3080 = vld [vmem:[#allocation11 + $0x1890] sm:$0xff]
    %v3081 = vld [vmem:[#allocation11 + $0x1898] sm:$0xff]
    %v3082 = vld [vmem:[#allocation11 + $0x18a0] sm:$0xff]
    %v3083 = vld [vmem:[#allocation11 + $0x18a8] sm:$0xff]
    %v3084 = vld [vmem:[#allocation11 + $0x18b0] sm:$0xff]
    %v3085 = vld [vmem:[#allocation11 + $0x18b8] sm:$0xff]
    %v3086 = vld [vmem:[#allocation11 + $0x18c0] sm:$0xff]
    %v3087 = vld [vmem:[#allocation11 + $0x18c8] sm:$0xff]
    %v3088 = vld [vmem:[#allocation11 + $0x18d0] sm:$0xff]
    %v3089 = vld [vmem:[#allocation11 + $0x18d8] sm:$0xff]
    %v3090 = vld [vmem:[#allocation11 + $0x18e0] sm:$0xff]
    %v3091 = vld [vmem:[#allocation11 + $0x18e8] sm:$0xff]
    %v3092 = vld [vmem:[#allocation11 + $0x18f0] sm:$0xff]
    %v3093 = vld [vmem:[#allocation11 + $0x18f8] sm:$0xff]
    %v3094 = vld [vmem:[#allocation11 + $0x1900] sm:$0xff]
    %v3095 = vld [vmem:[#allocation11 + $0x1908] sm:$0xff]
    %v3096 = vld [vmem:[#allocation11 + $0x1910] sm:$0xff]
    %v3097 = vld [vmem:[#allocation11 + $0x1918] sm:$0xff]
    %v3098 = vld [vmem:[#allocation11 + $0x1920] sm:$0xff]
    %v3099 = vld [vmem:[#allocation11 + $0x1928] sm:$0xff]
    %v3100 = vld [vmem:[#allocation11 + $0x1930] sm:$0xff]
    %v3101 = vld [vmem:[#allocation11 + $0x1938] sm:$0xff]
    %v3102 = vld [vmem:[#allocation11 + $0x1940] sm:$0xff]
    %v3103 = vld [vmem:[#allocation11 + $0x1948] sm:$0xff]
    %v3104 = vld [vmem:[#allocation11 + $0x1950] sm:$0xff]
    %v3105 = vld [vmem:[#allocation11 + $0x1958] sm:$0xff]
    %v3106 = vld [vmem:[#allocation11 + $0x1960] sm:$0xff]
    %v3107 = vld [vmem:[#allocation11 + $0x1968] sm:$0xff]
    %v3108 = vld [vmem:[#allocation11 + $0x1970] sm:$0xff]
    %v3109 = vld [vmem:[#allocation11 + $0x1978] sm:$0xff]
    %v3110 = vld [vmem:[#allocation11 + $0x1980] sm:$0xff]
    %v3111 = vld [vmem:[#allocation11 + $0x1988] sm:$0xff]
    %v3112 = vld [vmem:[#allocation11 + $0x1990] sm:$0xff]
    %v3113 = vld [vmem:[#allocation11 + $0x1998] sm:$0xff]
    %v3114 = vld [vmem:[#allocation11 + $0x19a0] sm:$0xff]
    %v3115 = vld [vmem:[#allocation11 + $0x19a8] sm:$0xff]
    %v3116 = vld [vmem:[#allocation11 + $0x19b0] sm:$0xff]
    %v3117 = vld [vmem:[#allocation11 + $0x19b8] sm:$0xff]
    %v3118 = vld [vmem:[#allocation11 + $0x19c0] sm:$0xff]
    %v3119 = vld [vmem:[#allocation11 + $0x19c8] sm:$0xff]
    %v3120 = vld [vmem:[#allocation11 + $0x19d0] sm:$0xff]
    %v3121 = vld [vmem:[#allocation11 + $0x19d8] sm:$0xff]
    %v3122 = vld [vmem:[#allocation11 + $0x19e0] sm:$0xff]
    %v3123 = vld [vmem:[#allocation11 + $0x19e8] sm:$0xff]
    %v3124 = vld [vmem:[#allocation11 + $0x19f0] sm:$0xff]
    %v3125 = vld [vmem:[#allocation11 + $0x19f8] sm:$0xff]
    %v3126 = vld [vmem:[#allocation11 + $0x1a00] sm:$0xff]
    %v3127 = vld [vmem:[#allocation11 + $0x1a08] sm:$0xff]
    %v3128 = vld [vmem:[#allocation11 + $0x1a10] sm:$0xff]
    %v3129 = vld [vmem:[#allocation11 + $0x1a18] sm:$0xff]
    %v3130 = vld [vmem:[#allocation11 + $0x1a20] sm:$0xff]
    %v3131 = vld [vmem:[#allocation11 + $0x1a28] sm:$0xff]
    %v3132 = vld [vmem:[#allocation11 + $0x1a30] sm:$0xff]
    %v3133 = vld [vmem:[#allocation11 + $0x1a38] sm:$0xff]
    %v3134 = vld [vmem:[#allocation11 + $0x1a40] sm:$0xff]
    %v3135 = vld [vmem:[#allocation11 + $0x1a48] sm:$0xff]
    %v3136 = vld [vmem:[#allocation11 + $0x1a50] sm:$0xff]
    %v3137 = vld [vmem:[#allocation11 + $0x1a58] sm:$0xff]
    %v3138 = vld [vmem:[#allocation11 + $0x1a60] sm:$0xff]
    %v3139 = vld [vmem:[#allocation11 + $0x1a68] sm:$0xff]
    %v3140 = vld [vmem:[#allocation11 + $0x1a70] sm:$0xff]
    %v3141 = vld [vmem:[#allocation11 + $0x1a78] sm:$0xff]
    %v3142 = vld [vmem:[#allocation11 + $0x1a80] sm:$0xff]
    %v3143 = vld [vmem:[#allocation11 + $0x1a88] sm:$0xff]
    %v3144 = vld [vmem:[#allocation11 + $0x1a90] sm:$0xff]
    %v3145 = vld [vmem:[#allocation11 + $0x1a98] sm:$0xff]
    %v3146 = vld [vmem:[#allocation11 + $0x1aa0] sm:$0xff]
    %v3147 = vld [vmem:[#allocation11 + $0x1aa8] sm:$0xff]
    %v3148 = vld [vmem:[#allocation11 + $0x1ab0] sm:$0xff]
    %v3149 = vld [vmem:[#allocation11 + $0x1ab8] sm:$0xff]
    %v3150 = vld [vmem:[#allocation11 + $0x1ac0] sm:$0xff]
    %v3151 = vld [vmem:[#allocation11 + $0x1ac8] sm:$0xff]
    %v3152 = vld [vmem:[#allocation11 + $0x1ad0] sm:$0xff]
    %v3153 = vld [vmem:[#allocation11 + $0x1ad8] sm:$0xff]
    %v3154 = vld [vmem:[#allocation11 + $0x1ae0] sm:$0xff]
    %v3155 = vld [vmem:[#allocation11 + $0x1ae8] sm:$0xff]
    %v3156 = vld [vmem:[#allocation11 + $0x1af0] sm:$0xff]
    %v3157 = vld [vmem:[#allocation11 + $0x1af8] sm:$0xff]
    %v3158 = vld [vmem:[#allocation11 + $0x1b00] sm:$0xff]
    %v3159 = vld [vmem:[#allocation11 + $0x1b08] sm:$0xff]
    %v3160 = vld [vmem:[#allocation11 + $0x1b10] sm:$0xff]
    %v3161 = vld [vmem:[#allocation11 + $0x1b18] sm:$0xff]
    %v3162 = vld [vmem:[#allocation11 + $0x1b20] sm:$0xff]
    %v3163 = vld [vmem:[#allocation11 + $0x1b28] sm:$0xff]
    %v3164 = vld [vmem:[#allocation11 + $0x1b30] sm:$0xff]
    %v3165 = vld [vmem:[#allocation11 + $0x1b38] sm:$0xff]
    %v3166 = vld [vmem:[#allocation11 + $0x1b40] sm:$0xff]
    %v3167 = vld [vmem:[#allocation11 + $0x1b48] sm:$0xff]
    %v3168 = vld [vmem:[#allocation11 + $0x1b50] sm:$0xff]
    %v3169 = vld [vmem:[#allocation11 + $0x1b58] sm:$0xff]
    %v3170 = vld [vmem:[#allocation11 + $0x1b60] sm:$0xff]
    %v3171 = vld [vmem:[#allocation11 + $0x1b68] sm:$0xff]
    %v3172 = vld [vmem:[#allocation11 + $0x1b70] sm:$0xff]
    %v3173 = vld [vmem:[#allocation11 + $0x1b78] sm:$0xff]
    %v3174 = vld [vmem:[#allocation11 + $0x1b80] sm:$0xff]
    %v3175 = vld [vmem:[#allocation11 + $0x1b88] sm:$0xff]
    %v3176 = vld [vmem:[#allocation11 + $0x1b90] sm:$0xff]
    %v3177 = vld [vmem:[#allocation11 + $0x1b98] sm:$0xff]
    %v3178 = vld [vmem:[#allocation11 + $0x1ba0] sm:$0xff]
    %v3179 = vld [vmem:[#allocation11 + $0x1ba8] sm:$0xff]
    %v3180 = vld [vmem:[#allocation11 + $0x1bb0] sm:$0xff]
    %v3181 = vld [vmem:[#allocation11 + $0x1bb8] sm:$0xff]
    %v3182 = vld [vmem:[#allocation11 + $0x1bc0] sm:$0xff]
    %v3183 = vld [vmem:[#allocation11 + $0x1bc8] sm:$0xff]
    %v3184 = vld [vmem:[#allocation11 + $0x1bd0] sm:$0xff]
    %v3185 = vld [vmem:[#allocation11 + $0x1bd8] sm:$0xff]
    %v3186 = vld [vmem:[#allocation11 + $0x1be0] sm:$0xff]
    %v3187 = vld [vmem:[#allocation11 + $0x1be8] sm:$0xff]
    %v3188 = vld [vmem:[#allocation11 + $0x1bf0] sm:$0xff]
    %v3189 = vld [vmem:[#allocation11 + $0x1bf8] sm:$0xff]
    %v3190 = vld [vmem:[#allocation11 + $0x1c00] sm:$0xff]
    %v3191 = vld [vmem:[#allocation11 + $0x1c08] sm:$0xff]
    %v3192 = vld [vmem:[#allocation11 + $0x1c10] sm:$0xff]
    %v3193 = vld [vmem:[#allocation11 + $0x1c18] sm:$0xff]
    %v3194 = vld [vmem:[#allocation11 + $0x1c20] sm:$0xff]
    %v3195 = vld [vmem:[#allocation11 + $0x1c28] sm:$0xff]
    %v3196 = vld [vmem:[#allocation11 + $0x1c30] sm:$0xff]
    %v3197 = vld [vmem:[#allocation11 + $0x1c38] sm:$0xff]
    %v3198 = vld [vmem:[#allocation11 + $0x1c40] sm:$0xff]
    %v3199 = vld [vmem:[#allocation11 + $0x1c48] sm:$0xff]
    %v3200 = vld [vmem:[#allocation11 + $0x1c50] sm:$0xff]
    %v3201 = vld [vmem:[#allocation11 + $0x1c58] sm:$0xff]
    %v3202 = vld [vmem:[#allocation11 + $0x1c60] sm:$0xff]
    %v3203 = vld [vmem:[#allocation11 + $0x1c68] sm:$0xff]
    %v3204 = vld [vmem:[#allocation11 + $0x1c70] sm:$0xff]
    %v3205 = vld [vmem:[#allocation11 + $0x1c78] sm:$0xff]
    %v3206 = vld [vmem:[#allocation11 + $0x1c80] sm:$0xff]
    %v3207 = vld [vmem:[#allocation11 + $0x1c88] sm:$0xff]
    %v3208 = vld [vmem:[#allocation11 + $0x1c90] sm:$0xff]
    %v3209 = vld [vmem:[#allocation11 + $0x1c98] sm:$0xff]
    %v3210 = vld [vmem:[#allocation11 + $0x1ca0] sm:$0xff]
    %v3211 = vld [vmem:[#allocation11 + $0x1ca8] sm:$0xff]
    %v3212 = vld [vmem:[#allocation11 + $0x1cb0] sm:$0xff]
    %v3213 = vld [vmem:[#allocation11 + $0x1cb8] sm:$0xff]
    %v3214 = vld [vmem:[#allocation11 + $0x1cc0] sm:$0xff]
    %v3215 = vld [vmem:[#allocation11 + $0x1cc8] sm:$0xff]
    %v3216 = vld [vmem:[#allocation11 + $0x1cd0] sm:$0xff]
    %v3217 = vld [vmem:[#allocation11 + $0x1cd8] sm:$0xff]
    %v3218 = vld [vmem:[#allocation11 + $0x1ce0] sm:$0xff]
    %v3219 = vld [vmem:[#allocation11 + $0x1ce8] sm:$0xff]
    %v3220 = vld [vmem:[#allocation11 + $0x1cf0] sm:$0xff]
    %v3221 = vld [vmem:[#allocation11 + $0x1cf8] sm:$0xff]
    %v3222 = vld [vmem:[#allocation11 + $0x1d00] sm:$0xff]
    %v3223 = vld [vmem:[#allocation11 + $0x1d08] sm:$0xff]
    %v3224 = vld [vmem:[#allocation11 + $0x1d10] sm:$0xff]
    %v3225 = vld [vmem:[#allocation11 + $0x1d18] sm:$0xff]
    %v3226 = vld [vmem:[#allocation11 + $0x1d20] sm:$0xff]
    %v3227 = vld [vmem:[#allocation11 + $0x1d28] sm:$0xff]
    %v3228 = vld [vmem:[#allocation11 + $0x1d30] sm:$0xff]
    %v3229 = vld [vmem:[#allocation11 + $0x1d38] sm:$0xff]
    %v3230 = vld [vmem:[#allocation11 + $0x1d40] sm:$0xff]
    %v3231 = vld [vmem:[#allocation11 + $0x1d48] sm:$0xff]
    %v3232 = vld [vmem:[#allocation11 + $0x1d50] sm:$0xff]
    %v3233 = vld [vmem:[#allocation11 + $0x1d58] sm:$0xff]
    %v3234 = vld [vmem:[#allocation11 + $0x1d60] sm:$0xff]
    %v3235 = vld [vmem:[#allocation11 + $0x1d68] sm:$0xff]
    %v3236 = vld [vmem:[#allocation11 + $0x1d70] sm:$0xff]
    %v3237 = vld [vmem:[#allocation11 + $0x1d78] sm:$0xff]
    %v3238 = vld [vmem:[#allocation11 + $0x1d80] sm:$0xff]
    %v3239 = vld [vmem:[#allocation11 + $0x1d88] sm:$0xff]
    %v3240 = vld [vmem:[#allocation11 + $0x1d90] sm:$0xff]
    %v3241 = vld [vmem:[#allocation11 + $0x1d98] sm:$0xff]
    %v3242 = vld [vmem:[#allocation11 + $0x1da0] sm:$0xff]
    %v3243 = vld [vmem:[#allocation11 + $0x1da8] sm:$0xff]
    %v3244 = vld [vmem:[#allocation11 + $0x1db0] sm:$0xff]
    %v3245 = vld [vmem:[#allocation11 + $0x1db8] sm:$0xff]
    %v3246 = vld [vmem:[#allocation11 + $0x1dc0] sm:$0xff]
    %v3247 = vld [vmem:[#allocation11 + $0x1dc8] sm:$0xff]
    %v3248 = vld [vmem:[#allocation11 + $0x1dd0] sm:$0xff]
    %v3249 = vld [vmem:[#allocation11 + $0x1dd8] sm:$0xff]
    %v3250 = vld [vmem:[#allocation11 + $0x1de0] sm:$0xff]
    %v3251 = vld [vmem:[#allocation11 + $0x1de8] sm:$0xff]
    %v3252 = vld [vmem:[#allocation11 + $0x1df0] sm:$0xff]
    %v3253 = vld [vmem:[#allocation11 + $0x1df8] sm:$0xff]
    %v3254 = vld [vmem:[#allocation11 + $0x1e00] sm:$0xff]
    %v3255 = vld [vmem:[#allocation11 + $0x1e08] sm:$0xff]
    %v3256 = vld [vmem:[#allocation11 + $0x1e10] sm:$0xff]
    %v3257 = vld [vmem:[#allocation11 + $0x1e18] sm:$0xff]
    %v3258 = vld [vmem:[#allocation11 + $0x1e20] sm:$0xff]
    %v3259 = vld [vmem:[#allocation11 + $0x1e28] sm:$0xff]
    %v3260 = vld [vmem:[#allocation11 + $0x1e30] sm:$0xff]
    %v3261 = vld [vmem:[#allocation11 + $0x1e38] sm:$0xff]
    %v3262 = vld [vmem:[#allocation11 + $0x1e40] sm:$0xff]
    %v3263 = vld [vmem:[#allocation11 + $0x1e48] sm:$0xff]
    %v3264 = vld [vmem:[#allocation11 + $0x1e50] sm:$0xff]
    %v3265 = vld [vmem:[#allocation11 + $0x1e58] sm:$0xff]
    %v3266 = vld [vmem:[#allocation11 + $0x1e60] sm:$0xff]
    %v3267 = vld [vmem:[#allocation11 + $0x1e68] sm:$0xff]
    %v3268 = vld [vmem:[#allocation11 + $0x1e70] sm:$0xff]
    %v3269 = vld [vmem:[#allocation11 + $0x1e78] sm:$0xff]
    %v3270 = vld [vmem:[#allocation11 + $0x1e80] sm:$0xff]
    %v3271 = vld [vmem:[#allocation11 + $0x1e88] sm:$0xff]
    %v3272 = vld [vmem:[#allocation11 + $0x1e90] sm:$0xff]
    %v3273 = vld [vmem:[#allocation11 + $0x1e98] sm:$0xff]
    %v3274 = vld [vmem:[#allocation11 + $0x1ea0] sm:$0xff]
    %v3275 = vld [vmem:[#allocation11 + $0x1ea8] sm:$0xff]
    %v3276 = vld [vmem:[#allocation11 + $0x1eb0] sm:$0xff]
    %v3277 = vld [vmem:[#allocation11 + $0x1eb8] sm:$0xff]
    %v3278 = vld [vmem:[#allocation11 + $0x1ec0] sm:$0xff]
    %v3279 = vld [vmem:[#allocation11 + $0x1ec8] sm:$0xff]
    %v3280 = vld [vmem:[#allocation11 + $0x1ed0] sm:$0xff]
    %v3281 = vld [vmem:[#allocation11 + $0x1ed8] sm:$0xff]
    %v3282 = vld [vmem:[#allocation11 + $0x1ee0] sm:$0xff]
    %v3283 = vld [vmem:[#allocation11 + $0x1ee8] sm:$0xff]
    %v3284 = vld [vmem:[#allocation11 + $0x1ef0] sm:$0xff]
    %v3285 = vld [vmem:[#allocation11 + $0x1ef8] sm:$0xff]
    %v3286 = vld [vmem:[#allocation11 + $0x1f00] sm:$0xff]
    %v3287 = vld [vmem:[#allocation11 + $0x1f08] sm:$0xff]
    %v3288 = vld [vmem:[#allocation11 + $0x1f10] sm:$0xff]
    %v3289 = vld [vmem:[#allocation11 + $0x1f18] sm:$0xff]
    %v3290 = vld [vmem:[#allocation11 + $0x1f20] sm:$0xff]
    %v3291 = vld [vmem:[#allocation11 + $0x1f28] sm:$0xff]
    %v3292 = vld [vmem:[#allocation11 + $0x1f30] sm:$0xff]
    %v3293 = vld [vmem:[#allocation11 + $0x1f38] sm:$0xff]
    %v3294 = vld [vmem:[#allocation11 + $0x1f40] sm:$0xff]
    %v3295 = vld [vmem:[#allocation11 + $0x1f48] sm:$0xff]
    %v3296 = vld [vmem:[#allocation11 + $0x1f50] sm:$0xff]
    %v3297 = vld [vmem:[#allocation11 + $0x1f58] sm:$0xff]
    %v3298 = vld [vmem:[#allocation11 + $0x1f60] sm:$0xff]
    %v3299 = vld [vmem:[#allocation11 + $0x1f68] sm:$0xff]
    %v3300 = vld [vmem:[#allocation11 + $0x1f70] sm:$0xff]
    %v3301 = vld [vmem:[#allocation11 + $0x1f78] sm:$0xff]
    %v3302 = vld [vmem:[#allocation11 + $0x1f80] sm:$0xff]
    %v3303 = vld [vmem:[#allocation11 + $0x1f88] sm:$0xff]
    %v3304 = vld [vmem:[#allocation11 + $0x1f90] sm:$0xff]
    %v3305 = vld [vmem:[#allocation11 + $0x1f98] sm:$0xff]
    %v3306 = vld [vmem:[#allocation11 + $0x1fa0] sm:$0xff]
    %v3307 = vld [vmem:[#allocation11 + $0x1fa8] sm:$0xff]
    %v3308 = vld [vmem:[#allocation11 + $0x1fb0] sm:$0xff]
    %v3309 = vld [vmem:[#allocation11 + $0x1fb8] sm:$0xff]
    %v3310 = vld [vmem:[#allocation11 + $0x1fc0] sm:$0xff]
    %v3311 = vld [vmem:[#allocation11 + $0x1fc8] sm:$0xff]
    %v3312 = vld [vmem:[#allocation11 + $0x1fd0] sm:$0xff]
    %v3313 = vld [vmem:[#allocation11 + $0x1fd8] sm:$0xff]
    %v3314 = vld [vmem:[#allocation11 + $0x1fe0] sm:$0xff]
    %v3315 = vld [vmem:[#allocation11 + $0x1fe8] sm:$0xff]
    %v3316 = vld [vmem:[#allocation11 + $0x1ff0] sm:$0xff]
    %v3317 = vld [vmem:[#allocation11 + $0x1ff8] sm:$0xff]
    %v3318 = vld [vmem:[#allocation13] sm:$0xff]
    %v3319 = vld [vmem:[#allocation13 + $0x8] sm:$0xff]
    %v3322 = vperm.slane %v3318, 0
    %v3323 = vperm.slane %v3318, 1
    %v3324 = vperm.slane %v3318, 2
    %v3325 = vperm.slane %v3318, 3
    %v3326 = vperm.slane %v3318, 4
    %v3327 = vperm.slane %v3318, 5
    %v3328 = vperm.slane %v3318, 6
    %v3329 = vperm.slane %v3318, 7
    %v3330 = vperm.slane %v3319, 0
    %v3331 = vperm.slane %v3319, 1
    %v3332 = vperm.slane %v3319, 2
    %v3333 = vperm.slane %v3319, 3
    %v3334 = vperm.slane %v3319, 4
    %v3335 = vperm.slane %v3319, 5
    %v3336 = vperm.slane %v3319, 6
    %v3337 = vperm.slane %v3319, 7
    %v4378 = vunpack.c.l.b16 %v2294
    %v4379 = vunpack.c.h.b16 %v2294
    %v4380 = vunpack.c.l.b16 %v2295
    %v4381 = vunpack.c.h.b16 %v2295
    %v4382 = vunpack.c.l.b16 %v2296
    %v4383 = vunpack.c.h.b16 %v2296
    %v4384 = vunpack.c.l.b16 %v2297
    %v4385 = vunpack.c.h.b16 %v2297
    %v4386 = vunpack.c.l.b16 %v2298
    %v4387 = vunpack.c.h.b16 %v2298
    %v4388 = vunpack.c.l.b16 %v2299
    %v4389 = vunpack.c.h.b16 %v2299
    %v4390 = vunpack.c.l.b16 %v2300
    %v4391 = vunpack.c.h.b16 %v2300
    %v4392 = vunpack.c.l.b16 %v2301
    %v4393 = vunpack.c.h.b16 %v2301
    %v4394 = vunpack.c.l.b16 %v2302
    %v4395 = vunpack.c.h.b16 %v2302
    %v4396 = vunpack.c.l.b16 %v2303
    %v4397 = vunpack.c.h.b16 %v2303
    %v4398 = vunpack.c.l.b16 %v2304
    %v4399 = vunpack.c.h.b16 %v2304
    %v4400 = vunpack.c.l.b16 %v2305
    %v4401 = vunpack.c.h.b16 %v2305
    %v4402 = vunpack.c.l.b16 %v2306
    %v4403 = vunpack.c.h.b16 %v2306
    %v4404 = vunpack.c.l.b16 %v2307
    %v4405 = vunpack.c.h.b16 %v2307
    %v4406 = vunpack.c.l.b16 %v2308
    %v4407 = vunpack.c.h.b16 %v2308
    %v4408 = vunpack.c.l.b16 %v2309
    %v4409 = vunpack.c.h.b16 %v2309
    %v4410 = vunpack.c.l.b16 %v2310
    %v4411 = vunpack.c.h.b16 %v2310
    %v4412 = vunpack.c.l.b16 %v2311
    %v4413 = vunpack.c.h.b16 %v2311
    %v4414 = vunpack.c.l.b16 %v2312
    %v4415 = vunpack.c.h.b16 %v2312
    %v4416 = vunpack.c.l.b16 %v2313
    %v4417 = vunpack.c.h.b16 %v2313
    %v4418 = vunpack.c.l.b16 %v2314
    %v4419 = vunpack.c.h.b16 %v2314
    %v4420 = vunpack.c.l.b16 %v2315
    %v4421 = vunpack.c.h.b16 %v2315
    %v4422 = vunpack.c.l.b16 %v2316
    %v4423 = vunpack.c.h.b16 %v2316
    %v4424 = vunpack.c.l.b16 %v2317
    %v4425 = vunpack.c.h.b16 %v2317
    %v4426 = vunpack.c.l.b16 %v2318
    %v4427 = vunpack.c.h.b16 %v2318
    %v4428 = vunpack.c.l.b16 %v2319
    %v4429 = vunpack.c.h.b16 %v2319
    %v4430 = vunpack.c.l.b16 %v2320
    %v4431 = vunpack.c.h.b16 %v2320
    %v4432 = vunpack.c.l.b16 %v2321
    %v4433 = vunpack.c.h.b16 %v2321
    %v4434 = vunpack.c.l.b16 %v2322
    %v4435 = vunpack.c.h.b16 %v2322
    %v4436 = vunpack.c.l.b16 %v2323
    %v4437 = vunpack.c.h.b16 %v2323
    %v4438 = vunpack.c.l.b16 %v2324
    %v4439 = vunpack.c.h.b16 %v2324
    %v4440 = vunpack.c.l.b16 %v2325
    %v4441 = vunpack.c.h.b16 %v2325
    %v4442 = vunpack.c.l.b16 %v2326
    %v4443 = vunpack.c.h.b16 %v2326
    %v4444 = vunpack.c.l.b16 %v2327
    %v4445 = vunpack.c.h.b16 %v2327
    %v4446 = vunpack.c.l.b16 %v2328
    %v4447 = vunpack.c.h.b16 %v2328
    %v4448 = vunpack.c.l.b16 %v2329
    %v4449 = vunpack.c.h.b16 %v2329
    %v4450 = vunpack.c.l.b16 %v2330
    %v4451 = vunpack.c.h.b16 %v2330
    %v4452 = vunpack.c.l.b16 %v2331
    %v4453 = vunpack.c.h.b16 %v2331
    %v4454 = vunpack.c.l.b16 %v2332
    %v4455 = vunpack.c.h.b16 %v2332
    %v4456 = vunpack.c.l.b16 %v2333
    %v4457 = vunpack.c.h.b16 %v2333
    %v4458 = vunpack.c.l.b16 %v2334
    %v4459 = vunpack.c.h.b16 %v2334
    %v4460 = vunpack.c.l.b16 %v2335
    %v4461 = vunpack.c.h.b16 %v2335
    %v4462 = vunpack.c.l.b16 %v2336
    %v4463 = vunpack.c.h.b16 %v2336
    %v4464 = vunpack.c.l.b16 %v2337
    %v4465 = vunpack.c.h.b16 %v2337
    %v4466 = vunpack.c.l.b16 %v2338
    %v4467 = vunpack.c.h.b16 %v2338
    %v4468 = vunpack.c.l.b16 %v2339
    %v4469 = vunpack.c.h.b16 %v2339
    %v4470 = vunpack.c.l.b16 %v2340
    %v4471 = vunpack.c.h.b16 %v2340
    %v4472 = vunpack.c.l.b16 %v2341
    %v4473 = vunpack.c.h.b16 %v2341
    %v4474 = vunpack.c.l.b16 %v2342
    %v4475 = vunpack.c.h.b16 %v2342
    %v4476 = vunpack.c.l.b16 %v2343
    %v4477 = vunpack.c.h.b16 %v2343
    %v4478 = vunpack.c.l.b16 %v2344
    %v4479 = vunpack.c.h.b16 %v2344
    %v4480 = vunpack.c.l.b16 %v2345
    %v4481 = vunpack.c.h.b16 %v2345
    %v4482 = vunpack.c.l.b16 %v2346
    %v4483 = vunpack.c.h.b16 %v2346
    %v4484 = vunpack.c.l.b16 %v2347
    %v4485 = vunpack.c.h.b16 %v2347
    %v4486 = vunpack.c.l.b16 %v2348
    %v4487 = vunpack.c.h.b16 %v2348
    %v4488 = vunpack.c.l.b16 %v2349
    %v4489 = vunpack.c.h.b16 %v2349
    %v4490 = vunpack.c.l.b16 %v2350
    %v4491 = vunpack.c.h.b16 %v2350
    %v4492 = vunpack.c.l.b16 %v2351
    %v4493 = vunpack.c.h.b16 %v2351
    %v4494 = vunpack.c.l.b16 %v2352
    %v4495 = vunpack.c.h.b16 %v2352
    %v4496 = vunpack.c.l.b16 %v2353
    %v4497 = vunpack.c.h.b16 %v2353
    %v4498 = vunpack.c.l.b16 %v2354
    %v4499 = vunpack.c.h.b16 %v2354
    %v4500 = vunpack.c.l.b16 %v2355
    %v4501 = vunpack.c.h.b16 %v2355
    %v4502 = vunpack.c.l.b16 %v2356
    %v4503 = vunpack.c.h.b16 %v2356
    %v4504 = vunpack.c.l.b16 %v2357
    %v4505 = vunpack.c.h.b16 %v2357
    %v4506 = vunpack.c.l.b16 %v2358
    %v4507 = vunpack.c.h.b16 %v2358
    %v4508 = vunpack.c.l.b16 %v2359
    %v4509 = vunpack.c.h.b16 %v2359
    %v4510 = vunpack.c.l.b16 %v2360
    %v4511 = vunpack.c.h.b16 %v2360
    %v4512 = vunpack.c.l.b16 %v2361
    %v4513 = vunpack.c.h.b16 %v2361
    %v4514 = vunpack.c.l.b16 %v2362
    %v4515 = vunpack.c.h.b16 %v2362
    %v4516 = vunpack.c.l.b16 %v2363
    %v4517 = vunpack.c.h.b16 %v2363
    %v4518 = vunpack.c.l.b16 %v2364
    %v4519 = vunpack.c.h.b16 %v2364
    %v4520 = vunpack.c.l.b16 %v2365
    %v4521 = vunpack.c.h.b16 %v2365
    %v4522 = vunpack.c.l.b16 %v2366
    %v4523 = vunpack.c.h.b16 %v2366
    %v4524 = vunpack.c.l.b16 %v2367
    %v4525 = vunpack.c.h.b16 %v2367
    %v4526 = vunpack.c.l.b16 %v2368
    %v4527 = vunpack.c.h.b16 %v2368
    %v4528 = vunpack.c.l.b16 %v2369
    %v4529 = vunpack.c.h.b16 %v2369
    %v4530 = vunpack.c.l.b16 %v2370
    %v4531 = vunpack.c.h.b16 %v2370
    %v4532 = vunpack.c.l.b16 %v2371
    %v4533 = vunpack.c.h.b16 %v2371
    %v4534 = vunpack.c.l.b16 %v2372
    %v4535 = vunpack.c.h.b16 %v2372
    %v4536 = vunpack.c.l.b16 %v2373
    %v4537 = vunpack.c.h.b16 %v2373
    %v4538 = vunpack.c.l.b16 %v2374
    %v4539 = vunpack.c.h.b16 %v2374
    %v4540 = vunpack.c.l.b16 %v2375
    %v4541 = vunpack.c.h.b16 %v2375
    %v4542 = vunpack.c.l.b16 %v2376
    %v4543 = vunpack.c.h.b16 %v2376
    %v4544 = vunpack.c.l.b16 %v2377
    %v4545 = vunpack.c.h.b16 %v2377
    %v4546 = vunpack.c.l.b16 %v2378
    %v4547 = vunpack.c.h.b16 %v2378
    %v4548 = vunpack.c.l.b16 %v2379
    %v4549 = vunpack.c.h.b16 %v2379
    %v4550 = vunpack.c.l.b16 %v2380
    %v4551 = vunpack.c.h.b16 %v2380
    %v4552 = vunpack.c.l.b16 %v2381
    %v4553 = vunpack.c.h.b16 %v2381
    %v4554 = vunpack.c.l.b16 %v2382
    %v4555 = vunpack.c.h.b16 %v2382
    %v4556 = vunpack.c.l.b16 %v2383
    %v4557 = vunpack.c.h.b16 %v2383
    %v4558 = vunpack.c.l.b16 %v2384
    %v4559 = vunpack.c.h.b16 %v2384
    %v4560 = vunpack.c.l.b16 %v2385
    %v4561 = vunpack.c.h.b16 %v2385
    %v4562 = vunpack.c.l.b16 %v2386
    %v4563 = vunpack.c.h.b16 %v2386
    %v4564 = vunpack.c.l.b16 %v2387
    %v4565 = vunpack.c.h.b16 %v2387
    %v4566 = vunpack.c.l.b16 %v2388
    %v4567 = vunpack.c.h.b16 %v2388
    %v4568 = vunpack.c.l.b16 %v2389
    %v4569 = vunpack.c.h.b16 %v2389
    %v4570 = vunpack.c.l.b16 %v2390
    %v4571 = vunpack.c.h.b16 %v2390
    %v4572 = vunpack.c.l.b16 %v2391
    %v4573 = vunpack.c.h.b16 %v2391
    %v4574 = vunpack.c.l.b16 %v2392
    %v4575 = vunpack.c.h.b16 %v2392
    %v4576 = vunpack.c.l.b16 %v2393
    %v4577 = vunpack.c.h.b16 %v2393
    %v4578 = vunpack.c.l.b16 %v2394
    %v4579 = vunpack.c.h.b16 %v2394
    %v4580 = vunpack.c.l.b16 %v2395
    %v4581 = vunpack.c.h.b16 %v2395
    %v4582 = vunpack.c.l.b16 %v2396
    %v4583 = vunpack.c.h.b16 %v2396
    %v4584 = vunpack.c.l.b16 %v2397
    %v4585 = vunpack.c.h.b16 %v2397
    %v4586 = vunpack.c.l.b16 %v2398
    %v4587 = vunpack.c.h.b16 %v2398
    %v4588 = vunpack.c.l.b16 %v2399
    %v4589 = vunpack.c.h.b16 %v2399
    %v4590 = vunpack.c.l.b16 %v2400
    %v4591 = vunpack.c.h.b16 %v2400
    %v4592 = vunpack.c.l.b16 %v2401
    %v4593 = vunpack.c.h.b16 %v2401
    %v4594 = vunpack.c.l.b16 %v2402
    %v4595 = vunpack.c.h.b16 %v2402
    %v4596 = vunpack.c.l.b16 %v2403
    %v4597 = vunpack.c.h.b16 %v2403
    %v4598 = vunpack.c.l.b16 %v2404
    %v4599 = vunpack.c.h.b16 %v2404
    %v4600 = vunpack.c.l.b16 %v2405
    %v4601 = vunpack.c.h.b16 %v2405
    %v4602 = vunpack.c.l.b16 %v2406
    %v4603 = vunpack.c.h.b16 %v2406
    %v4604 = vunpack.c.l.b16 %v2407
    %v4605 = vunpack.c.h.b16 %v2407
    %v4606 = vunpack.c.l.b16 %v2408
    %v4607 = vunpack.c.h.b16 %v2408
    %v4608 = vunpack.c.l.b16 %v2409
    %v4609 = vunpack.c.h.b16 %v2409
    %v4610 = vunpack.c.l.b16 %v2410
    %v4611 = vunpack.c.h.b16 %v2410
    %v4612 = vunpack.c.l.b16 %v2411
    %v4613 = vunpack.c.h.b16 %v2411
    %v4614 = vunpack.c.l.b16 %v2412
    %v4615 = vunpack.c.h.b16 %v2412
    %v4616 = vunpack.c.l.b16 %v2413
    %v4617 = vunpack.c.h.b16 %v2413
    %v4618 = vunpack.c.l.b16 %v2414
    %v4619 = vunpack.c.h.b16 %v2414
    %v4620 = vunpack.c.l.b16 %v2415
    %v4621 = vunpack.c.h.b16 %v2415
    %v4622 = vunpack.c.l.b16 %v2416
    %v4623 = vunpack.c.h.b16 %v2416
    %v4624 = vunpack.c.l.b16 %v2417
    %v4625 = vunpack.c.h.b16 %v2417
    %v4626 = vunpack.c.l.b16 %v2418
    %v4627 = vunpack.c.h.b16 %v2418
    %v4628 = vunpack.c.l.b16 %v2419
    %v4629 = vunpack.c.h.b16 %v2419
    %v4630 = vunpack.c.l.b16 %v2420
    %v4631 = vunpack.c.h.b16 %v2420
    %v4632 = vunpack.c.l.b16 %v2421
    %v4633 = vunpack.c.h.b16 %v2421
    %v4634 = vunpack.c.l.b16 %v2422
    %v4635 = vunpack.c.h.b16 %v2422
    %v4636 = vunpack.c.l.b16 %v2423
    %v4637 = vunpack.c.h.b16 %v2423
    %v4638 = vunpack.c.l.b16 %v2424
    %v4639 = vunpack.c.h.b16 %v2424
    %v4640 = vunpack.c.l.b16 %v2425
    %v4641 = vunpack.c.h.b16 %v2425
    %v4642 = vunpack.c.l.b16 %v2426
    %v4643 = vunpack.c.h.b16 %v2426
    %v4644 = vunpack.c.l.b16 %v2427
    %v4645 = vunpack.c.h.b16 %v2427
    %v4646 = vunpack.c.l.b16 %v2428
    %v4647 = vunpack.c.h.b16 %v2428
    %v4648 = vunpack.c.l.b16 %v2429
    %v4649 = vunpack.c.h.b16 %v2429
    %v4650 = vunpack.c.l.b16 %v2430
    %v4651 = vunpack.c.h.b16 %v2430
    %v4652 = vunpack.c.l.b16 %v2431
    %v4653 = vunpack.c.h.b16 %v2431
    %v4654 = vunpack.c.l.b16 %v2432
    %v4655 = vunpack.c.h.b16 %v2432
    %v4656 = vunpack.c.l.b16 %v2433
    %v4657 = vunpack.c.h.b16 %v2433
    %v4658 = vunpack.c.l.b16 %v2434
    %v4659 = vunpack.c.h.b16 %v2434
    %v4660 = vunpack.c.l.b16 %v2435
    %v4661 = vunpack.c.h.b16 %v2435
    %v4662 = vunpack.c.l.b16 %v2436
    %v4663 = vunpack.c.h.b16 %v2436
    %v4664 = vunpack.c.l.b16 %v2437
    %v4665 = vunpack.c.h.b16 %v2437
    %v4666 = vunpack.c.l.b16 %v2438
    %v4667 = vunpack.c.h.b16 %v2438
    %v4668 = vunpack.c.l.b16 %v2439
    %v4669 = vunpack.c.h.b16 %v2439
    %v4670 = vunpack.c.l.b16 %v2440
    %v4671 = vunpack.c.h.b16 %v2440
    %v4672 = vunpack.c.l.b16 %v2441
    %v4673 = vunpack.c.h.b16 %v2441
    %v4674 = vunpack.c.l.b16 %v2442
    %v4675 = vunpack.c.h.b16 %v2442
    %v4676 = vunpack.c.l.b16 %v2443
    %v4677 = vunpack.c.h.b16 %v2443
    %v4678 = vunpack.c.l.b16 %v2444
    %v4679 = vunpack.c.h.b16 %v2444
    %v4680 = vunpack.c.l.b16 %v2445
    %v4681 = vunpack.c.h.b16 %v2445
    %v4682 = vunpack.c.l.b16 %v2446
    %v4683 = vunpack.c.h.b16 %v2446
    %v4684 = vunpack.c.l.b16 %v2447
    %v4685 = vunpack.c.h.b16 %v2447
    %v4686 = vunpack.c.l.b16 %v2448
    %v4687 = vunpack.c.h.b16 %v2448
    %v4688 = vunpack.c.l.b16 %v2449
    %v4689 = vunpack.c.h.b16 %v2449
    %v4690 = vunpack.c.l.b16 %v2450
    %v4691 = vunpack.c.h.b16 %v2450
    %v4692 = vunpack.c.l.b16 %v2451
    %v4693 = vunpack.c.h.b16 %v2451
    %v4694 = vunpack.c.l.b16 %v2452
    %v4695 = vunpack.c.h.b16 %v2452
    %v4696 = vunpack.c.l.b16 %v2453
    %v4697 = vunpack.c.h.b16 %v2453
    %v4698 = vunpack.c.l.b16 %v2454
    %v4699 = vunpack.c.h.b16 %v2454
    %v4700 = vunpack.c.l.b16 %v2455
    %v4701 = vunpack.c.h.b16 %v2455
    %v4702 = vunpack.c.l.b16 %v2456
    %v4703 = vunpack.c.h.b16 %v2456
    %v4704 = vunpack.c.l.b16 %v2457
    %v4705 = vunpack.c.h.b16 %v2457
    %v4706 = vunpack.c.l.b16 %v2458
    %v4707 = vunpack.c.h.b16 %v2458
    %v4708 = vunpack.c.l.b16 %v2459
    %v4709 = vunpack.c.h.b16 %v2459
    %v4710 = vunpack.c.l.b16 %v2460
    %v4711 = vunpack.c.h.b16 %v2460
    %v4712 = vunpack.c.l.b16 %v2461
    %v4713 = vunpack.c.h.b16 %v2461
    %v4714 = vunpack.c.l.b16 %v2462
    %v4715 = vunpack.c.h.b16 %v2462
    %v4716 = vunpack.c.l.b16 %v2463
    %v4717 = vunpack.c.h.b16 %v2463
    %v4718 = vunpack.c.l.b16 %v2464
    %v4719 = vunpack.c.h.b16 %v2464
    %v4720 = vunpack.c.l.b16 %v2465
    %v4721 = vunpack.c.h.b16 %v2465
    %v4722 = vunpack.c.l.b16 %v2466
    %v4723 = vunpack.c.h.b16 %v2466
    %v4724 = vunpack.c.l.b16 %v2467
    %v4725 = vunpack.c.h.b16 %v2467
    %v4726 = vunpack.c.l.b16 %v2468
    %v4727 = vunpack.c.h.b16 %v2468
    %v4728 = vunpack.c.l.b16 %v2469
    %v4729 = vunpack.c.h.b16 %v2469
    %v4730 = vunpack.c.l.b16 %v2470
    %v4731 = vunpack.c.h.b16 %v2470
    %v4732 = vunpack.c.l.b16 %v2471
    %v4733 = vunpack.c.h.b16 %v2471
    %v4734 = vunpack.c.l.b16 %v2472
    %v4735 = vunpack.c.h.b16 %v2472
    %v4736 = vunpack.c.l.b16 %v2473
    %v4737 = vunpack.c.h.b16 %v2473
    %v4738 = vunpack.c.l.b16 %v2474
    %v4739 = vunpack.c.h.b16 %v2474
    %v4740 = vunpack.c.l.b16 %v2475
    %v4741 = vunpack.c.h.b16 %v2475
    %v4742 = vunpack.c.l.b16 %v2476
    %v4743 = vunpack.c.h.b16 %v2476
    %v4744 = vunpack.c.l.b16 %v2477
    %v4745 = vunpack.c.h.b16 %v2477
    %v4746 = vunpack.c.l.b16 %v2478
    %v4747 = vunpack.c.h.b16 %v2478
    %v4748 = vunpack.c.l.b16 %v2479
    %v4749 = vunpack.c.h.b16 %v2479
    %v4750 = vunpack.c.l.b16 %v2480
    %v4751 = vunpack.c.h.b16 %v2480
    %v4752 = vunpack.c.l.b16 %v2481
    %v4753 = vunpack.c.h.b16 %v2481
    %v4754 = vunpack.c.l.b16 %v2482
    %v4755 = vunpack.c.h.b16 %v2482
    %v4756 = vunpack.c.l.b16 %v2483
    %v4757 = vunpack.c.h.b16 %v2483
    %v4758 = vunpack.c.l.b16 %v2484
    %v4759 = vunpack.c.h.b16 %v2484
    %v4760 = vunpack.c.l.b16 %v2485
    %v4761 = vunpack.c.h.b16 %v2485
    %v4762 = vunpack.c.l.b16 %v2486
    %v4763 = vunpack.c.h.b16 %v2486
    %v4764 = vunpack.c.l.b16 %v2487
    %v4765 = vunpack.c.h.b16 %v2487
    %v4766 = vunpack.c.l.b16 %v2488
    %v4767 = vunpack.c.h.b16 %v2488
    %v4768 = vunpack.c.l.b16 %v2489
    %v4769 = vunpack.c.h.b16 %v2489
    %v4770 = vunpack.c.l.b16 %v2490
    %v4771 = vunpack.c.h.b16 %v2490
    %v4772 = vunpack.c.l.b16 %v2491
    %v4773 = vunpack.c.h.b16 %v2491
    %v4774 = vunpack.c.l.b16 %v2492
    %v4775 = vunpack.c.h.b16 %v2492
    %v4776 = vunpack.c.l.b16 %v2493
    %v4777 = vunpack.c.h.b16 %v2493
    %v4778 = vunpack.c.l.b16 %v2494
    %v4779 = vunpack.c.h.b16 %v2494
    %v4780 = vunpack.c.l.b16 %v2495
    %v4781 = vunpack.c.h.b16 %v2495
    %v4782 = vunpack.c.l.b16 %v2496
    %v4783 = vunpack.c.h.b16 %v2496
    %v4784 = vunpack.c.l.b16 %v2497
    %v4785 = vunpack.c.h.b16 %v2497
    %v4786 = vunpack.c.l.b16 %v2498
    %v4787 = vunpack.c.h.b16 %v2498
    %v4788 = vunpack.c.l.b16 %v2499
    %v4789 = vunpack.c.h.b16 %v2499
    %v4790 = vunpack.c.l.b16 %v2500
    %v4791 = vunpack.c.h.b16 %v2500
    %v4792 = vunpack.c.l.b16 %v2501
    %v4793 = vunpack.c.h.b16 %v2501
    %v4794 = vunpack.c.l.b16 %v2502
    %v4795 = vunpack.c.h.b16 %v2502
    %v4796 = vunpack.c.l.b16 %v2503
    %v4797 = vunpack.c.h.b16 %v2503
    %v4798 = vunpack.c.l.b16 %v2504
    %v4799 = vunpack.c.h.b16 %v2504
    %v4800 = vunpack.c.l.b16 %v2505
    %v4801 = vunpack.c.h.b16 %v2505
    %v4802 = vunpack.c.l.b16 %v2506
    %v4803 = vunpack.c.h.b16 %v2506
    %v4804 = vunpack.c.l.b16 %v2507
    %v4805 = vunpack.c.h.b16 %v2507
    %v4806 = vunpack.c.l.b16 %v2508
    %v4807 = vunpack.c.h.b16 %v2508
    %v4808 = vunpack.c.l.b16 %v2509
    %v4809 = vunpack.c.h.b16 %v2509
    %v4810 = vunpack.c.l.b16 %v2510
    %v4811 = vunpack.c.h.b16 %v2510
    %v4812 = vunpack.c.l.b16 %v2511
    %v4813 = vunpack.c.h.b16 %v2511
    %v4814 = vunpack.c.l.b16 %v2512
    %v4815 = vunpack.c.h.b16 %v2512
    %v4816 = vunpack.c.l.b16 %v2513
    %v4817 = vunpack.c.h.b16 %v2513
    %v4818 = vunpack.c.l.b16 %v2514
    %v4819 = vunpack.c.h.b16 %v2514
    %v4820 = vunpack.c.l.b16 %v2515
    %v4821 = vunpack.c.h.b16 %v2515
    %v4822 = vunpack.c.l.b16 %v2516
    %v4823 = vunpack.c.h.b16 %v2516
    %v4824 = vunpack.c.l.b16 %v2517
    %v4825 = vunpack.c.h.b16 %v2517
    %v4826 = vunpack.c.l.b16 %v2518
    %v4827 = vunpack.c.h.b16 %v2518
    %v4828 = vunpack.c.l.b16 %v2519
    %v4829 = vunpack.c.h.b16 %v2519
    %v4830 = vunpack.c.l.b16 %v2520
    %v4831 = vunpack.c.h.b16 %v2520
    %v4832 = vunpack.c.l.b16 %v2521
    %v4833 = vunpack.c.h.b16 %v2521
    %v4834 = vunpack.c.l.b16 %v2522
    %v4835 = vunpack.c.h.b16 %v2522
    %v4836 = vunpack.c.l.b16 %v2523
    %v4837 = vunpack.c.h.b16 %v2523
    %v4838 = vunpack.c.l.b16 %v2524
    %v4839 = vunpack.c.h.b16 %v2524
    %v4840 = vunpack.c.l.b16 %v2525
    %v4841 = vunpack.c.h.b16 %v2525
    %v4842 = vunpack.c.l.b16 %v2526
    %v4843 = vunpack.c.h.b16 %v2526
    %v4844 = vunpack.c.l.b16 %v2527
    %v4845 = vunpack.c.h.b16 %v2527
    %v4846 = vunpack.c.l.b16 %v2528
    %v4847 = vunpack.c.h.b16 %v2528
    %v4848 = vunpack.c.l.b16 %v2529
    %v4849 = vunpack.c.h.b16 %v2529
    %v4850 = vunpack.c.l.b16 %v2530
    %v4851 = vunpack.c.h.b16 %v2530
    %v4852 = vunpack.c.l.b16 %v2531
    %v4853 = vunpack.c.h.b16 %v2531
    %v4854 = vunpack.c.l.b16 %v2532
    %v4855 = vunpack.c.h.b16 %v2532
    %v4856 = vunpack.c.l.b16 %v2533
    %v4857 = vunpack.c.h.b16 %v2533
    %v4858 = vunpack.c.l.b16 %v2534
    %v4859 = vunpack.c.h.b16 %v2534
    %v4860 = vunpack.c.l.b16 %v2535
    %v4861 = vunpack.c.h.b16 %v2535
    %v4862 = vunpack.c.l.b16 %v2536
    %v4863 = vunpack.c.h.b16 %v2536
    %v4864 = vunpack.c.l.b16 %v2537
    %v4865 = vunpack.c.h.b16 %v2537
    %v4866 = vunpack.c.l.b16 %v2538
    %v4867 = vunpack.c.h.b16 %v2538
    %v4868 = vunpack.c.l.b16 %v2539
    %v4869 = vunpack.c.h.b16 %v2539
    %v4870 = vunpack.c.l.b16 %v2540
    %v4871 = vunpack.c.h.b16 %v2540
    %v4872 = vunpack.c.l.b16 %v2541
    %v4873 = vunpack.c.h.b16 %v2541
    %v4874 = vunpack.c.l.b16 %v2542
    %v4875 = vunpack.c.h.b16 %v2542
    %v4876 = vunpack.c.l.b16 %v2543
    %v4877 = vunpack.c.h.b16 %v2543
    %v4878 = vunpack.c.l.b16 %v2544
    %v4879 = vunpack.c.h.b16 %v2544
    %v4880 = vunpack.c.l.b16 %v2545
    %v4881 = vunpack.c.h.b16 %v2545
    %v4882 = vunpack.c.l.b16 %v2546
    %v4883 = vunpack.c.h.b16 %v2546
    %v4884 = vunpack.c.l.b16 %v2547
    %v4885 = vunpack.c.h.b16 %v2547
    %v4886 = vunpack.c.l.b16 %v2548
    %v4887 = vunpack.c.h.b16 %v2548
    %v4888 = vunpack.c.l.b16 %v2549
    %v4889 = vunpack.c.h.b16 %v2549
    %v4890 = vunpack.c.l.b16 %v2550
    %v4891 = vunpack.c.h.b16 %v2550
    %v4892 = vunpack.c.l.b16 %v2551
    %v4893 = vunpack.c.h.b16 %v2551
    %v4894 = vunpack.c.l.b16 %v2552
    %v4895 = vunpack.c.h.b16 %v2552
    %v4896 = vunpack.c.l.b16 %v2553
    %v4897 = vunpack.c.h.b16 %v2553
    %v4898 = vunpack.c.l.b16 %v2554
    %v4899 = vunpack.c.h.b16 %v2554
    %v4900 = vunpack.c.l.b16 %v2555
    %v4901 = vunpack.c.h.b16 %v2555
    %v4902 = vunpack.c.l.b16 %v2556
    %v4903 = vunpack.c.h.b16 %v2556
    %v4904 = vunpack.c.l.b16 %v2557
    %v4905 = vunpack.c.h.b16 %v2557
    %v4906 = vunpack.c.l.b16 %v2558
    %v4907 = vunpack.c.h.b16 %v2558
    %v4908 = vunpack.c.l.b16 %v2559
    %v4909 = vunpack.c.h.b16 %v2559
    %v4910 = vunpack.c.l.b16 %v2560
    %v4911 = vunpack.c.h.b16 %v2560
    %v4912 = vunpack.c.l.b16 %v2561
    %v4913 = vunpack.c.h.b16 %v2561
    %v4914 = vunpack.c.l.b16 %v2562
    %v4915 = vunpack.c.h.b16 %v2562
    %v4916 = vunpack.c.l.b16 %v2563
    %v4917 = vunpack.c.h.b16 %v2563
    %v4918 = vunpack.c.l.b16 %v2564
    %v4919 = vunpack.c.h.b16 %v2564
    %v4920 = vunpack.c.l.b16 %v2565
    %v4921 = vunpack.c.h.b16 %v2565
    %v4922 = vunpack.c.l.b16 %v2566
    %v4923 = vunpack.c.h.b16 %v2566
    %v4924 = vunpack.c.l.b16 %v2567
    %v4925 = vunpack.c.h.b16 %v2567
    %v4926 = vunpack.c.l.b16 %v2568
    %v4927 = vunpack.c.h.b16 %v2568
    %v4928 = vunpack.c.l.b16 %v2569
    %v4929 = vunpack.c.h.b16 %v2569
    %v4930 = vunpack.c.l.b16 %v2570
    %v4931 = vunpack.c.h.b16 %v2570
    %v4932 = vunpack.c.l.b16 %v2571
    %v4933 = vunpack.c.h.b16 %v2571
    %v4934 = vunpack.c.l.b16 %v2572
    %v4935 = vunpack.c.h.b16 %v2572
    %v4936 = vunpack.c.l.b16 %v2573
    %v4937 = vunpack.c.h.b16 %v2573
    %v4938 = vunpack.c.l.b16 %v2574
    %v4939 = vunpack.c.h.b16 %v2574
    %v4940 = vunpack.c.l.b16 %v2575
    %v4941 = vunpack.c.h.b16 %v2575
    %v4942 = vunpack.c.l.b16 %v2576
    %v4943 = vunpack.c.h.b16 %v2576
    %v4944 = vunpack.c.l.b16 %v2577
    %v4945 = vunpack.c.h.b16 %v2577
    %v4946 = vunpack.c.l.b16 %v2578
    %v4947 = vunpack.c.h.b16 %v2578
    %v4948 = vunpack.c.l.b16 %v2579
    %v4949 = vunpack.c.h.b16 %v2579
    %v4950 = vunpack.c.l.b16 %v2580
    %v4951 = vunpack.c.h.b16 %v2580
    %v4952 = vunpack.c.l.b16 %v2581
    %v4953 = vunpack.c.h.b16 %v2581
    %v4954 = vunpack.c.l.b16 %v2582
    %v4955 = vunpack.c.h.b16 %v2582
    %v4956 = vunpack.c.l.b16 %v2583
    %v4957 = vunpack.c.h.b16 %v2583
    %v4958 = vunpack.c.l.b16 %v2584
    %v4959 = vunpack.c.h.b16 %v2584
    %v4960 = vunpack.c.l.b16 %v2585
    %v4961 = vunpack.c.h.b16 %v2585
    %v4962 = vunpack.c.l.b16 %v2586
    %v4963 = vunpack.c.h.b16 %v2586
    %v4964 = vunpack.c.l.b16 %v2587
    %v4965 = vunpack.c.h.b16 %v2587
    %v4966 = vunpack.c.l.b16 %v2588
    %v4967 = vunpack.c.h.b16 %v2588
    %v4968 = vunpack.c.l.b16 %v2589
    %v4969 = vunpack.c.h.b16 %v2589
    %v4970 = vunpack.c.l.b16 %v2590
    %v4971 = vunpack.c.h.b16 %v2590
    %v4972 = vunpack.c.l.b16 %v2591
    %v4973 = vunpack.c.h.b16 %v2591
    %v4974 = vunpack.c.l.b16 %v2592
    %v4975 = vunpack.c.h.b16 %v2592
    %v4976 = vunpack.c.l.b16 %v2593
    %v4977 = vunpack.c.h.b16 %v2593
    %v4978 = vunpack.c.l.b16 %v2594
    %v4979 = vunpack.c.h.b16 %v2594
    %v4980 = vunpack.c.l.b16 %v2595
    %v4981 = vunpack.c.h.b16 %v2595
    %v4982 = vunpack.c.l.b16 %v2596
    %v4983 = vunpack.c.h.b16 %v2596
    %v4984 = vunpack.c.l.b16 %v2597
    %v4985 = vunpack.c.h.b16 %v2597
    %v4986 = vunpack.c.l.b16 %v2598
    %v4987 = vunpack.c.h.b16 %v2598
    %v4988 = vunpack.c.l.b16 %v2599
    %v4989 = vunpack.c.h.b16 %v2599
    %v4990 = vunpack.c.l.b16 %v2600
    %v4991 = vunpack.c.h.b16 %v2600
    %v4992 = vunpack.c.l.b16 %v2601
    %v4993 = vunpack.c.h.b16 %v2601
    %v4994 = vunpack.c.l.b16 %v2602
    %v4995 = vunpack.c.h.b16 %v2602
    %v4996 = vunpack.c.l.b16 %v2603
    %v4997 = vunpack.c.h.b16 %v2603
    %v4998 = vunpack.c.l.b16 %v2604
    %v4999 = vunpack.c.h.b16 %v2604
    %v5000 = vunpack.c.l.b16 %v2605
    %v5001 = vunpack.c.h.b16 %v2605
    %v5002 = vunpack.c.l.b16 %v2606
    %v5003 = vunpack.c.h.b16 %v2606
    %v5004 = vunpack.c.l.b16 %v2607
    %v5005 = vunpack.c.h.b16 %v2607
    %v5006 = vunpack.c.l.b16 %v2608
    %v5007 = vunpack.c.h.b16 %v2608
    %v5008 = vunpack.c.l.b16 %v2609
    %v5009 = vunpack.c.h.b16 %v2609
    %v5010 = vunpack.c.l.b16 %v2610
    %v5011 = vunpack.c.h.b16 %v2610
    %v5012 = vunpack.c.l.b16 %v2611
    %v5013 = vunpack.c.h.b16 %v2611
    %v5014 = vunpack.c.l.b16 %v2612
    %v5015 = vunpack.c.h.b16 %v2612
    %v5016 = vunpack.c.l.b16 %v2613
    %v5017 = vunpack.c.h.b16 %v2613
    %v5018 = vunpack.c.l.b16 %v2614
    %v5019 = vunpack.c.h.b16 %v2614
    %v5020 = vunpack.c.l.b16 %v2615
    %v5021 = vunpack.c.h.b16 %v2615
    %v5022 = vunpack.c.l.b16 %v2616
    %v5023 = vunpack.c.h.b16 %v2616
    %v5024 = vunpack.c.l.b16 %v2617
    %v5025 = vunpack.c.h.b16 %v2617
    %v5026 = vunpack.c.l.b16 %v2618
    %v5027 = vunpack.c.h.b16 %v2618
    %v5028 = vunpack.c.l.b16 %v2619
    %v5029 = vunpack.c.h.b16 %v2619
    %v5030 = vunpack.c.l.b16 %v2620
    %v5031 = vunpack.c.h.b16 %v2620
    %v5032 = vunpack.c.l.b16 %v2621
    %v5033 = vunpack.c.h.b16 %v2621
    %v5034 = vunpack.c.l.b16 %v2622
    %v5035 = vunpack.c.h.b16 %v2622
    %v5036 = vunpack.c.l.b16 %v2623
    %v5037 = vunpack.c.h.b16 %v2623
    %v5038 = vunpack.c.l.b16 %v2624
    %v5039 = vunpack.c.h.b16 %v2624
    %v5040 = vunpack.c.l.b16 %v2625
    %v5041 = vunpack.c.h.b16 %v2625
    %v5042 = vunpack.c.l.b16 %v2626
    %v5043 = vunpack.c.h.b16 %v2626
    %v5044 = vunpack.c.l.b16 %v2627
    %v5045 = vunpack.c.h.b16 %v2627
    %v5046 = vunpack.c.l.b16 %v2628
    %v5047 = vunpack.c.h.b16 %v2628
    %v5048 = vunpack.c.l.b16 %v2629
    %v5049 = vunpack.c.h.b16 %v2629
    %v5050 = vunpack.c.l.b16 %v2630
    %v5051 = vunpack.c.h.b16 %v2630
    %v5052 = vunpack.c.l.b16 %v2631
    %v5053 = vunpack.c.h.b16 %v2631
    %v5054 = vunpack.c.l.b16 %v2632
    %v5055 = vunpack.c.h.b16 %v2632
    %v5056 = vunpack.c.l.b16 %v2633
    %v5057 = vunpack.c.h.b16 %v2633
    %v5058 = vunpack.c.l.b16 %v2634
    %v5059 = vunpack.c.h.b16 %v2634
    %v5060 = vunpack.c.l.b16 %v2635
    %v5061 = vunpack.c.h.b16 %v2635
    %v5062 = vunpack.c.l.b16 %v2636
    %v5063 = vunpack.c.h.b16 %v2636
    %v5064 = vunpack.c.l.b16 %v2637
    %v5065 = vunpack.c.h.b16 %v2637
    %v5066 = vunpack.c.l.b16 %v2638
    %v5067 = vunpack.c.h.b16 %v2638
    %v5068 = vunpack.c.l.b16 %v2639
    %v5069 = vunpack.c.h.b16 %v2639
    %v5070 = vunpack.c.l.b16 %v2640
    %v5071 = vunpack.c.h.b16 %v2640
    %v5072 = vunpack.c.l.b16 %v2641
    %v5073 = vunpack.c.h.b16 %v2641
    %v5074 = vunpack.c.l.b16 %v2642
    %v5075 = vunpack.c.h.b16 %v2642
    %v5076 = vunpack.c.l.b16 %v2643
    %v5077 = vunpack.c.h.b16 %v2643
    %v5078 = vunpack.c.l.b16 %v2644
    %v5079 = vunpack.c.h.b16 %v2644
    %v5080 = vunpack.c.l.b16 %v2645
    %v5081 = vunpack.c.h.b16 %v2645
    %v5082 = vunpack.c.l.b16 %v2646
    %v5083 = vunpack.c.h.b16 %v2646
    %v5084 = vunpack.c.l.b16 %v2647
    %v5085 = vunpack.c.h.b16 %v2647
    %v5086 = vunpack.c.l.b16 %v2648
    %v5087 = vunpack.c.h.b16 %v2648
    %v5088 = vunpack.c.l.b16 %v2649
    %v5089 = vunpack.c.h.b16 %v2649
    %v5090 = vunpack.c.l.b16 %v2650
    %v5091 = vunpack.c.h.b16 %v2650
    %v5092 = vunpack.c.l.b16 %v2651
    %v5093 = vunpack.c.h.b16 %v2651
    %v5094 = vunpack.c.l.b16 %v2652
    %v5095 = vunpack.c.h.b16 %v2652
    %v5096 = vunpack.c.l.b16 %v2653
    %v5097 = vunpack.c.h.b16 %v2653
    %v5098 = vunpack.c.l.b16 %v2654
    %v5099 = vunpack.c.h.b16 %v2654
    %v5100 = vunpack.c.l.b16 %v2655
    %v5101 = vunpack.c.h.b16 %v2655
    %v5102 = vunpack.c.l.b16 %v2656
    %v5103 = vunpack.c.h.b16 %v2656
    %v5104 = vunpack.c.l.b16 %v2657
    %v5105 = vunpack.c.h.b16 %v2657
    %v5106 = vunpack.c.l.b16 %v2658
    %v5107 = vunpack.c.h.b16 %v2658
    %v5108 = vunpack.c.l.b16 %v2659
    %v5109 = vunpack.c.h.b16 %v2659
    %v5110 = vunpack.c.l.b16 %v2660
    %v5111 = vunpack.c.h.b16 %v2660
    %v5112 = vunpack.c.l.b16 %v2661
    %v5113 = vunpack.c.h.b16 %v2661
    %v5114 = vunpack.c.l.b16 %v2662
    %v5115 = vunpack.c.h.b16 %v2662
    %v5116 = vunpack.c.l.b16 %v2663
    %v5117 = vunpack.c.h.b16 %v2663
    %v5118 = vunpack.c.l.b16 %v2664
    %v5119 = vunpack.c.h.b16 %v2664
    %v5120 = vunpack.c.l.b16 %v2665
    %v5121 = vunpack.c.h.b16 %v2665
    %v5122 = vunpack.c.l.b16 %v2666
    %v5123 = vunpack.c.h.b16 %v2666
    %v5124 = vunpack.c.l.b16 %v2667
    %v5125 = vunpack.c.h.b16 %v2667
    %v5126 = vunpack.c.l.b16 %v2668
    %v5127 = vunpack.c.h.b16 %v2668
    %v5128 = vunpack.c.l.b16 %v2669
    %v5129 = vunpack.c.h.b16 %v2669
    %v5130 = vunpack.c.l.b16 %v2670
    %v5131 = vunpack.c.h.b16 %v2670
    %v5132 = vunpack.c.l.b16 %v2671
    %v5133 = vunpack.c.h.b16 %v2671
    %v5134 = vunpack.c.l.b16 %v2672
    %v5135 = vunpack.c.h.b16 %v2672
    %v5136 = vunpack.c.l.b16 %v2673
    %v5137 = vunpack.c.h.b16 %v2673
    %v5138 = vunpack.c.l.b16 %v2674
    %v5139 = vunpack.c.h.b16 %v2674
    %v5140 = vunpack.c.l.b16 %v2675
    %v5141 = vunpack.c.h.b16 %v2675
    %v5142 = vunpack.c.l.b16 %v2676
    %v5143 = vunpack.c.h.b16 %v2676
    %v5144 = vunpack.c.l.b16 %v2677
    %v5145 = vunpack.c.h.b16 %v2677
    %v5146 = vunpack.c.l.b16 %v2678
    %v5147 = vunpack.c.h.b16 %v2678
    %v5148 = vunpack.c.l.b16 %v2679
    %v5149 = vunpack.c.h.b16 %v2679
    %v5150 = vunpack.c.l.b16 %v2680
    %v5151 = vunpack.c.h.b16 %v2680
    %v5152 = vunpack.c.l.b16 %v2681
    %v5153 = vunpack.c.h.b16 %v2681
    %v5154 = vunpack.c.l.b16 %v2682
    %v5155 = vunpack.c.h.b16 %v2682
    %v5156 = vunpack.c.l.b16 %v2683
    %v5157 = vunpack.c.h.b16 %v2683
    %v5158 = vunpack.c.l.b16 %v2684
    %v5159 = vunpack.c.h.b16 %v2684
    %v5160 = vunpack.c.l.b16 %v2685
    %v5161 = vunpack.c.h.b16 %v2685
    %v5162 = vunpack.c.l.b16 %v2686
    %v5163 = vunpack.c.h.b16 %v2686
    %v5164 = vunpack.c.l.b16 %v2687
    %v5165 = vunpack.c.h.b16 %v2687
    %v5166 = vunpack.c.l.b16 %v2688
    %v5167 = vunpack.c.h.b16 %v2688
    %v5168 = vunpack.c.l.b16 %v2689
    %v5169 = vunpack.c.h.b16 %v2689
    %v5170 = vunpack.c.l.b16 %v2690
    %v5171 = vunpack.c.h.b16 %v2690
    %v5172 = vunpack.c.l.b16 %v2691
    %v5173 = vunpack.c.h.b16 %v2691
    %v5174 = vunpack.c.l.b16 %v2692
    %v5175 = vunpack.c.h.b16 %v2692
    %v5176 = vunpack.c.l.b16 %v2693
    %v5177 = vunpack.c.h.b16 %v2693
    %v5178 = vunpack.c.l.b16 %v2694
    %v5179 = vunpack.c.h.b16 %v2694
    %v5180 = vunpack.c.l.b16 %v2695
    %v5181 = vunpack.c.h.b16 %v2695
    %v5182 = vunpack.c.l.b16 %v2696
    %v5183 = vunpack.c.h.b16 %v2696
    %v5184 = vunpack.c.l.b16 %v2697
    %v5185 = vunpack.c.h.b16 %v2697
    %v5186 = vunpack.c.l.b16 %v2698
    %v5187 = vunpack.c.h.b16 %v2698
    %v5188 = vunpack.c.l.b16 %v2699
    %v5189 = vunpack.c.h.b16 %v2699
    %v5190 = vunpack.c.l.b16 %v2700
    %v5191 = vunpack.c.h.b16 %v2700
    %v5192 = vunpack.c.l.b16 %v2701
    %v5193 = vunpack.c.h.b16 %v2701
    %v5194 = vunpack.c.l.b16 %v2702
    %v5195 = vunpack.c.h.b16 %v2702
    %v5196 = vunpack.c.l.b16 %v2703
    %v5197 = vunpack.c.h.b16 %v2703
    %v5198 = vunpack.c.l.b16 %v2704
    %v5199 = vunpack.c.h.b16 %v2704
    %v5200 = vunpack.c.l.b16 %v2705
    %v5201 = vunpack.c.h.b16 %v2705
    %v5202 = vunpack.c.l.b16 %v2706
    %v5203 = vunpack.c.h.b16 %v2706
    %v5204 = vunpack.c.l.b16 %v2707
    %v5205 = vunpack.c.h.b16 %v2707
    %v5206 = vunpack.c.l.b16 %v2708
    %v5207 = vunpack.c.h.b16 %v2708
    %v5208 = vunpack.c.l.b16 %v2709
    %v5209 = vunpack.c.h.b16 %v2709
    %v5210 = vunpack.c.l.b16 %v2710
    %v5211 = vunpack.c.h.b16 %v2710
    %v5212 = vunpack.c.l.b16 %v2711
    %v5213 = vunpack.c.h.b16 %v2711
    %v5214 = vunpack.c.l.b16 %v2712
    %v5215 = vunpack.c.h.b16 %v2712
    %v5216 = vunpack.c.l.b16 %v2713
    %v5217 = vunpack.c.h.b16 %v2713
    %v5218 = vunpack.c.l.b16 %v2714
    %v5219 = vunpack.c.h.b16 %v2714
    %v5220 = vunpack.c.l.b16 %v2715
    %v5221 = vunpack.c.h.b16 %v2715
    %v5222 = vunpack.c.l.b16 %v2716
    %v5223 = vunpack.c.h.b16 %v2716
    %v5224 = vunpack.c.l.b16 %v2717
    %v5225 = vunpack.c.h.b16 %v2717
    %v5226 = vunpack.c.l.b16 %v2718
    %v5227 = vunpack.c.h.b16 %v2718
    %v5228 = vunpack.c.l.b16 %v2719
    %v5229 = vunpack.c.h.b16 %v2719
    %v5230 = vunpack.c.l.b16 %v2720
    %v5231 = vunpack.c.h.b16 %v2720
    %v5232 = vunpack.c.l.b16 %v2721
    %v5233 = vunpack.c.h.b16 %v2721
    %v5234 = vunpack.c.l.b16 %v2722
    %v5235 = vunpack.c.h.b16 %v2722
    %v5236 = vunpack.c.l.b16 %v2723
    %v5237 = vunpack.c.h.b16 %v2723
    %v5238 = vunpack.c.l.b16 %v2724
    %v5239 = vunpack.c.h.b16 %v2724
    %v5240 = vunpack.c.l.b16 %v2725
    %v5241 = vunpack.c.h.b16 %v2725
    %v5242 = vunpack.c.l.b16 %v2726
    %v5243 = vunpack.c.h.b16 %v2726
    %v5244 = vunpack.c.l.b16 %v2727
    %v5245 = vunpack.c.h.b16 %v2727
    %v5246 = vunpack.c.l.b16 %v2728
    %v5247 = vunpack.c.h.b16 %v2728
    %v5248 = vunpack.c.l.b16 %v2729
    %v5249 = vunpack.c.h.b16 %v2729
    %v5250 = vunpack.c.l.b16 %v2730
    %v5251 = vunpack.c.h.b16 %v2730
    %v5252 = vunpack.c.l.b16 %v2731
    %v5253 = vunpack.c.h.b16 %v2731
    %v5254 = vunpack.c.l.b16 %v2732
    %v5255 = vunpack.c.h.b16 %v2732
    %v5256 = vunpack.c.l.b16 %v2733
    %v5257 = vunpack.c.h.b16 %v2733
    %v5258 = vunpack.c.l.b16 %v2734
    %v5259 = vunpack.c.h.b16 %v2734
    %v5260 = vunpack.c.l.b16 %v2735
    %v5261 = vunpack.c.h.b16 %v2735
    %v5262 = vunpack.c.l.b16 %v2736
    %v5263 = vunpack.c.h.b16 %v2736
    %v5264 = vunpack.c.l.b16 %v2737
    %v5265 = vunpack.c.h.b16 %v2737
    %v5266 = vunpack.c.l.b16 %v2738
    %v5267 = vunpack.c.h.b16 %v2738
    %v5268 = vunpack.c.l.b16 %v2739
    %v5269 = vunpack.c.h.b16 %v2739
    %v5270 = vunpack.c.l.b16 %v2740
    %v5271 = vunpack.c.h.b16 %v2740
    %v5272 = vunpack.c.l.b16 %v2741
    %v5273 = vunpack.c.h.b16 %v2741
    %v5274 = vunpack.c.l.b16 %v2742
    %v5275 = vunpack.c.h.b16 %v2742
    %v5276 = vunpack.c.l.b16 %v2743
    %v5277 = vunpack.c.h.b16 %v2743
    %v5278 = vunpack.c.l.b16 %v2744
    %v5279 = vunpack.c.h.b16 %v2744
    %v5280 = vunpack.c.l.b16 %v2745
    %v5281 = vunpack.c.h.b16 %v2745
    %v5282 = vunpack.c.l.b16 %v2746
    %v5283 = vunpack.c.h.b16 %v2746
    %v5284 = vunpack.c.l.b16 %v2747
    %v5285 = vunpack.c.h.b16 %v2747
    %v5286 = vunpack.c.l.b16 %v2748
    %v5287 = vunpack.c.h.b16 %v2748
    %v5288 = vunpack.c.l.b16 %v2749
    %v5289 = vunpack.c.h.b16 %v2749
    %v5290 = vunpack.c.l.b16 %v2750
    %v5291 = vunpack.c.h.b16 %v2750
    %v5292 = vunpack.c.l.b16 %v2751
    %v5293 = vunpack.c.h.b16 %v2751
    %v5294 = vunpack.c.l.b16 %v2752
    %v5295 = vunpack.c.h.b16 %v2752
    %v5296 = vunpack.c.l.b16 %v2753
    %v5297 = vunpack.c.h.b16 %v2753
    %v5298 = vunpack.c.l.b16 %v2754
    %v5299 = vunpack.c.h.b16 %v2754
    %v5300 = vunpack.c.l.b16 %v2755
    %v5301 = vunpack.c.h.b16 %v2755
    %v5302 = vunpack.c.l.b16 %v2756
    %v5303 = vunpack.c.h.b16 %v2756
    %v5304 = vunpack.c.l.b16 %v2757
    %v5305 = vunpack.c.h.b16 %v2757
    %v5306 = vunpack.c.l.b16 %v2758
    %v5307 = vunpack.c.h.b16 %v2758
    %v5308 = vunpack.c.l.b16 %v2759
    %v5309 = vunpack.c.h.b16 %v2759
    %v5310 = vunpack.c.l.b16 %v2760
    %v5311 = vunpack.c.h.b16 %v2760
    %v5312 = vunpack.c.l.b16 %v2761
    %v5313 = vunpack.c.h.b16 %v2761
    %v5314 = vunpack.c.l.b16 %v2762
    %v5315 = vunpack.c.h.b16 %v2762
    %v5316 = vunpack.c.l.b16 %v2763
    %v5317 = vunpack.c.h.b16 %v2763
    %v5318 = vunpack.c.l.b16 %v2764
    %v5319 = vunpack.c.h.b16 %v2764
    %v5320 = vunpack.c.l.b16 %v2765
    %v5321 = vunpack.c.h.b16 %v2765
    %v5322 = vunpack.c.l.b16 %v2766
    %v5323 = vunpack.c.h.b16 %v2766
    %v5324 = vunpack.c.l.b16 %v2767
    %v5325 = vunpack.c.h.b16 %v2767
    %v5326 = vunpack.c.l.b16 %v2768
    %v5327 = vunpack.c.h.b16 %v2768
    %v5328 = vunpack.c.l.b16 %v2769
    %v5329 = vunpack.c.h.b16 %v2769
    %v5330 = vunpack.c.l.b16 %v2770
    %v5331 = vunpack.c.h.b16 %v2770
    %v5332 = vunpack.c.l.b16 %v2771
    %v5333 = vunpack.c.h.b16 %v2771
    %v5334 = vunpack.c.l.b16 %v2772
    %v5335 = vunpack.c.h.b16 %v2772
    %v5336 = vunpack.c.l.b16 %v2773
    %v5337 = vunpack.c.h.b16 %v2773
    %v5338 = vunpack.c.l.b16 %v2774
    %v5339 = vunpack.c.h.b16 %v2774
    %v5340 = vunpack.c.l.b16 %v2775
    %v5341 = vunpack.c.h.b16 %v2775
    %v5342 = vunpack.c.l.b16 %v2776
    %v5343 = vunpack.c.h.b16 %v2776
    %v5344 = vunpack.c.l.b16 %v2777
    %v5345 = vunpack.c.h.b16 %v2777
    %v5346 = vunpack.c.l.b16 %v2778
    %v5347 = vunpack.c.h.b16 %v2778
    %v5348 = vunpack.c.l.b16 %v2779
    %v5349 = vunpack.c.h.b16 %v2779
    %v5350 = vunpack.c.l.b16 %v2780
    %v5351 = vunpack.c.h.b16 %v2780
    %v5352 = vunpack.c.l.b16 %v2781
    %v5353 = vunpack.c.h.b16 %v2781
    %v5354 = vunpack.c.l.b16 %v2782
    %v5355 = vunpack.c.h.b16 %v2782
    %v5356 = vunpack.c.l.b16 %v2783
    %v5357 = vunpack.c.h.b16 %v2783
    %v5358 = vunpack.c.l.b16 %v2784
    %v5359 = vunpack.c.h.b16 %v2784
    %v5360 = vunpack.c.l.b16 %v2785
    %v5361 = vunpack.c.h.b16 %v2785
    %v5362 = vunpack.c.l.b16 %v2786
    %v5363 = vunpack.c.h.b16 %v2786
    %v5364 = vunpack.c.l.b16 %v2787
    %v5365 = vunpack.c.h.b16 %v2787
    %v5366 = vunpack.c.l.b16 %v2788
    %v5367 = vunpack.c.h.b16 %v2788
    %v5368 = vunpack.c.l.b16 %v2789
    %v5369 = vunpack.c.h.b16 %v2789
    %v5370 = vunpack.c.l.b16 %v2790
    %v5371 = vunpack.c.h.b16 %v2790
    %v5372 = vunpack.c.l.b16 %v2791
    %v5373 = vunpack.c.h.b16 %v2791
    %v5374 = vunpack.c.l.b16 %v2792
    %v5375 = vunpack.c.h.b16 %v2792
    %v5376 = vunpack.c.l.b16 %v2793
    %v5377 = vunpack.c.h.b16 %v2793
    %v5378 = vunpack.c.l.b16 %v2794
    %v5379 = vunpack.c.h.b16 %v2794
    %v5380 = vunpack.c.l.b16 %v2795
    %v5381 = vunpack.c.h.b16 %v2795
    %v5382 = vunpack.c.l.b16 %v2796
    %v5383 = vunpack.c.h.b16 %v2796
    %v5384 = vunpack.c.l.b16 %v2797
    %v5385 = vunpack.c.h.b16 %v2797
    %v5386 = vunpack.c.l.b16 %v2798
    %v5387 = vunpack.c.h.b16 %v2798
    %v5388 = vunpack.c.l.b16 %v2799
    %v5389 = vunpack.c.h.b16 %v2799
    %v5390 = vunpack.c.l.b16 %v2800
    %v5391 = vunpack.c.h.b16 %v2800
    %v5392 = vunpack.c.l.b16 %v2801
    %v5393 = vunpack.c.h.b16 %v2801
    %v5394 = vunpack.c.l.b16 %v2802
    %v5395 = vunpack.c.h.b16 %v2802
    %v5396 = vunpack.c.l.b16 %v2803
    %v5397 = vunpack.c.h.b16 %v2803
    %v5398 = vunpack.c.l.b16 %v2804
    %v5399 = vunpack.c.h.b16 %v2804
    %v5400 = vunpack.c.l.b16 %v2805
    %v5401 = vunpack.c.h.b16 %v2805
    %v5402 = vunpack.c.l.b16 %v2806
    %v5403 = vunpack.c.h.b16 %v2806
    %v5404 = vunpack.c.l.b16 %v2807
    %v5405 = vunpack.c.h.b16 %v2807
    %v5406 = vunpack.c.l.b16 %v2808
    %v5407 = vunpack.c.h.b16 %v2808
    %v5408 = vunpack.c.l.b16 %v2809
    %v5409 = vunpack.c.h.b16 %v2809
    %v5410 = vunpack.c.l.b16 %v2810
    %v5411 = vunpack.c.h.b16 %v2810
    %v5412 = vunpack.c.l.b16 %v2811
    %v5413 = vunpack.c.h.b16 %v2811
    %v5414 = vunpack.c.l.b16 %v2812
    %v5415 = vunpack.c.h.b16 %v2812
    %v5416 = vunpack.c.l.b16 %v2813
    %v5417 = vunpack.c.h.b16 %v2813
    %v5418 = vunpack.c.l.b16 %v2814
    %v5419 = vunpack.c.h.b16 %v2814
    %v5420 = vunpack.c.l.b16 %v2815
    %v5421 = vunpack.c.h.b16 %v2815
    %v5422 = vunpack.c.l.b16 %v2816
    %v5423 = vunpack.c.h.b16 %v2816
    %v5424 = vunpack.c.l.b16 %v2817
    %v5425 = vunpack.c.h.b16 %v2817
    %v5426 = vunpack.c.l.b16 %v2818
    %v5427 = vunpack.c.h.b16 %v2818
    %v5428 = vunpack.c.l.b16 %v2819
    %v5429 = vunpack.c.h.b16 %v2819
    %v5430 = vunpack.c.l.b16 %v2820
    %v5431 = vunpack.c.h.b16 %v2820
    %v5432 = vunpack.c.l.b16 %v2821
    %v5433 = vunpack.c.h.b16 %v2821
    %v5434 = vunpack.c.l.b16 %v2822
    %v5435 = vunpack.c.h.b16 %v2822
    %v5436 = vunpack.c.l.b16 %v2823
    %v5437 = vunpack.c.h.b16 %v2823
    %v5438 = vunpack.c.l.b16 %v2824
    %v5439 = vunpack.c.h.b16 %v2824
    %v5440 = vunpack.c.l.b16 %v2825
    %v5441 = vunpack.c.h.b16 %v2825
    %v5442 = vunpack.c.l.b16 %v2826
    %v5443 = vunpack.c.h.b16 %v2826
    %v5444 = vunpack.c.l.b16 %v2827
    %v5445 = vunpack.c.h.b16 %v2827
    %v5446 = vunpack.c.l.b16 %v2828
    %v5447 = vunpack.c.h.b16 %v2828
    %v5448 = vunpack.c.l.b16 %v2829
    %v5449 = vunpack.c.h.b16 %v2829
    %v5450 = vunpack.c.l.b16 %v2830
    %v5451 = vunpack.c.h.b16 %v2830
    %v5452 = vunpack.c.l.b16 %v2831
    %v5453 = vunpack.c.h.b16 %v2831
    %v5454 = vunpack.c.l.b16 %v2832
    %v5455 = vunpack.c.h.b16 %v2832
    %v5456 = vunpack.c.l.b16 %v2833
    %v5457 = vunpack.c.h.b16 %v2833
    %v5458 = vunpack.c.l.b16 %v2834
    %v5459 = vunpack.c.h.b16 %v2834
    %v5460 = vunpack.c.l.b16 %v2835
    %v5461 = vunpack.c.h.b16 %v2835
    %v5462 = vunpack.c.l.b16 %v2836
    %v5463 = vunpack.c.h.b16 %v2836
    %v5464 = vunpack.c.l.b16 %v2837
    %v5465 = vunpack.c.h.b16 %v2837
    %v5466 = vunpack.c.l.b16 %v2838
    %v5467 = vunpack.c.h.b16 %v2838
    %v5468 = vunpack.c.l.b16 %v2839
    %v5469 = vunpack.c.h.b16 %v2839
    %v5470 = vunpack.c.l.b16 %v2840
    %v5471 = vunpack.c.h.b16 %v2840
    %v5472 = vunpack.c.l.b16 %v2841
    %v5473 = vunpack.c.h.b16 %v2841
    %v5474 = vunpack.c.l.b16 %v2842
    %v5475 = vunpack.c.h.b16 %v2842
    %v5476 = vunpack.c.l.b16 %v2843
    %v5477 = vunpack.c.h.b16 %v2843
    %v5478 = vunpack.c.l.b16 %v2844
    %v5479 = vunpack.c.h.b16 %v2844
    %v5480 = vunpack.c.l.b16 %v2845
    %v5481 = vunpack.c.h.b16 %v2845
    %v5482 = vunpack.c.l.b16 %v2846
    %v5483 = vunpack.c.h.b16 %v2846
    %v5484 = vunpack.c.l.b16 %v2847
    %v5485 = vunpack.c.h.b16 %v2847
    %v5486 = vunpack.c.l.b16 %v2848
    %v5487 = vunpack.c.h.b16 %v2848
    %v5488 = vunpack.c.l.b16 %v2849
    %v5489 = vunpack.c.h.b16 %v2849
    %v5490 = vunpack.c.l.b16 %v2850
    %v5491 = vunpack.c.h.b16 %v2850
    %v5492 = vunpack.c.l.b16 %v2851
    %v5493 = vunpack.c.h.b16 %v2851
    %v5494 = vunpack.c.l.b16 %v2852
    %v5495 = vunpack.c.h.b16 %v2852
    %v5496 = vunpack.c.l.b16 %v2853
    %v5497 = vunpack.c.h.b16 %v2853
    %v5498 = vunpack.c.l.b16 %v2854
    %v5499 = vunpack.c.h.b16 %v2854
    %v5500 = vunpack.c.l.b16 %v2855
    %v5501 = vunpack.c.h.b16 %v2855
    %v5502 = vunpack.c.l.b16 %v2856
    %v5503 = vunpack.c.h.b16 %v2856
    %v5504 = vunpack.c.l.b16 %v2857
    %v5505 = vunpack.c.h.b16 %v2857
    %v5506 = vunpack.c.l.b16 %v2858
    %v5507 = vunpack.c.h.b16 %v2858
    %v5508 = vunpack.c.l.b16 %v2859
    %v5509 = vunpack.c.h.b16 %v2859
    %v5510 = vunpack.c.l.b16 %v2860
    %v5511 = vunpack.c.h.b16 %v2860
    %v5512 = vunpack.c.l.b16 %v2861
    %v5513 = vunpack.c.h.b16 %v2861
    %v5514 = vunpack.c.l.b16 %v2862
    %v5515 = vunpack.c.h.b16 %v2862
    %v5516 = vunpack.c.l.b16 %v2863
    %v5517 = vunpack.c.h.b16 %v2863
    %v5518 = vunpack.c.l.b16 %v2864
    %v5519 = vunpack.c.h.b16 %v2864
    %v5520 = vunpack.c.l.b16 %v2865
    %v5521 = vunpack.c.h.b16 %v2865
    %v5522 = vunpack.c.l.b16 %v2866
    %v5523 = vunpack.c.h.b16 %v2866
    %v5524 = vunpack.c.l.b16 %v2867
    %v5525 = vunpack.c.h.b16 %v2867
    %v5526 = vunpack.c.l.b16 %v2868
    %v5527 = vunpack.c.h.b16 %v2868
    %v5528 = vunpack.c.l.b16 %v2869
    %v5529 = vunpack.c.h.b16 %v2869
    %v5530 = vunpack.c.l.b16 %v2870
    %v5531 = vunpack.c.h.b16 %v2870
    %v5532 = vunpack.c.l.b16 %v2871
    %v5533 = vunpack.c.h.b16 %v2871
    %v5534 = vunpack.c.l.b16 %v2872
    %v5535 = vunpack.c.h.b16 %v2872
    %v5536 = vunpack.c.l.b16 %v2873
    %v5537 = vunpack.c.h.b16 %v2873
    %v5538 = vunpack.c.l.b16 %v2874
    %v5539 = vunpack.c.h.b16 %v2874
    %v5540 = vunpack.c.l.b16 %v2875
    %v5541 = vunpack.c.h.b16 %v2875
    %v5542 = vunpack.c.l.b16 %v2876
    %v5543 = vunpack.c.h.b16 %v2876
    %v5544 = vunpack.c.l.b16 %v2877
    %v5545 = vunpack.c.h.b16 %v2877
    %v5546 = vunpack.c.l.b16 %v2878
    %v5547 = vunpack.c.h.b16 %v2878
    %v5548 = vunpack.c.l.b16 %v2879
    %v5549 = vunpack.c.h.b16 %v2879
    %v5550 = vunpack.c.l.b16 %v2880
    %v5551 = vunpack.c.h.b16 %v2880
    %v5552 = vunpack.c.l.b16 %v2881
    %v5553 = vunpack.c.h.b16 %v2881
    %v5554 = vunpack.c.l.b16 %v2882
    %v5555 = vunpack.c.h.b16 %v2882
    %v5556 = vunpack.c.l.b16 %v2883
    %v5557 = vunpack.c.h.b16 %v2883
    %v5558 = vunpack.c.l.b16 %v2884
    %v5559 = vunpack.c.h.b16 %v2884
    %v5560 = vunpack.c.l.b16 %v2885
    %v5561 = vunpack.c.h.b16 %v2885
    %v5562 = vunpack.c.l.b16 %v2886
    %v5563 = vunpack.c.h.b16 %v2886
    %v5564 = vunpack.c.l.b16 %v2887
    %v5565 = vunpack.c.h.b16 %v2887
    %v5566 = vunpack.c.l.b16 %v2888
    %v5567 = vunpack.c.h.b16 %v2888
    %v5568 = vunpack.c.l.b16 %v2889
    %v5569 = vunpack.c.h.b16 %v2889
    %v5570 = vunpack.c.l.b16 %v2890
    %v5571 = vunpack.c.h.b16 %v2890
    %v5572 = vunpack.c.l.b16 %v2891
    %v5573 = vunpack.c.h.b16 %v2891
    %v5574 = vunpack.c.l.b16 %v2892
    %v5575 = vunpack.c.h.b16 %v2892
    %v5576 = vunpack.c.l.b16 %v2893
    %v5577 = vunpack.c.h.b16 %v2893
    %v5578 = vunpack.c.l.b16 %v2894
    %v5579 = vunpack.c.h.b16 %v2894
    %v5580 = vunpack.c.l.b16 %v2895
    %v5581 = vunpack.c.h.b16 %v2895
    %v5582 = vunpack.c.l.b16 %v2896
    %v5583 = vunpack.c.h.b16 %v2896
    %v5584 = vunpack.c.l.b16 %v2897
    %v5585 = vunpack.c.h.b16 %v2897
    %v5586 = vunpack.c.l.b16 %v2898
    %v5587 = vunpack.c.h.b16 %v2898
    %v5588 = vunpack.c.l.b16 %v2899
    %v5589 = vunpack.c.h.b16 %v2899
    %v5590 = vunpack.c.l.b16 %v2900
    %v5591 = vunpack.c.h.b16 %v2900
    %v5592 = vunpack.c.l.b16 %v2901
    %v5593 = vunpack.c.h.b16 %v2901
    %v5594 = vunpack.c.l.b16 %v2902
    %v5595 = vunpack.c.h.b16 %v2902
    %v5596 = vunpack.c.l.b16 %v2903
    %v5597 = vunpack.c.h.b16 %v2903
    %v5598 = vunpack.c.l.b16 %v2904
    %v5599 = vunpack.c.h.b16 %v2904
    %v5600 = vunpack.c.l.b16 %v2905
    %v5601 = vunpack.c.h.b16 %v2905
    %v5602 = vunpack.c.l.b16 %v2906
    %v5603 = vunpack.c.h.b16 %v2906
    %v5604 = vunpack.c.l.b16 %v2907
    %v5605 = vunpack.c.h.b16 %v2907
    %v5606 = vunpack.c.l.b16 %v2908
    %v5607 = vunpack.c.h.b16 %v2908
    %v5608 = vunpack.c.l.b16 %v2909
    %v5609 = vunpack.c.h.b16 %v2909
    %v5610 = vunpack.c.l.b16 %v2910
    %v5611 = vunpack.c.h.b16 %v2910
    %v5612 = vunpack.c.l.b16 %v2911
    %v5613 = vunpack.c.h.b16 %v2911
    %v5614 = vunpack.c.l.b16 %v2912
    %v5615 = vunpack.c.h.b16 %v2912
    %v5616 = vunpack.c.l.b16 %v2913
    %v5617 = vunpack.c.h.b16 %v2913
    %v5618 = vunpack.c.l.b16 %v2914
    %v5619 = vunpack.c.h.b16 %v2914
    %v5620 = vunpack.c.l.b16 %v2915
    %v5621 = vunpack.c.h.b16 %v2915
    %v5622 = vunpack.c.l.b16 %v2916
    %v5623 = vunpack.c.h.b16 %v2916
    %v5624 = vunpack.c.l.b16 %v2917
    %v5625 = vunpack.c.h.b16 %v2917
    %v5626 = vunpack.c.l.b16 %v2918
    %v5627 = vunpack.c.h.b16 %v2918
    %v5628 = vunpack.c.l.b16 %v2919
    %v5629 = vunpack.c.h.b16 %v2919
    %v5630 = vunpack.c.l.b16 %v2920
    %v5631 = vunpack.c.h.b16 %v2920
    %v5632 = vunpack.c.l.b16 %v2921
    %v5633 = vunpack.c.h.b16 %v2921
    %v5634 = vunpack.c.l.b16 %v2922
    %v5635 = vunpack.c.h.b16 %v2922
    %v5636 = vunpack.c.l.b16 %v2923
    %v5637 = vunpack.c.h.b16 %v2923
    %v5638 = vunpack.c.l.b16 %v2924
    %v5639 = vunpack.c.h.b16 %v2924
    %v5640 = vunpack.c.l.b16 %v2925
    %v5641 = vunpack.c.h.b16 %v2925
    %v5642 = vunpack.c.l.b16 %v2926
    %v5643 = vunpack.c.h.b16 %v2926
    %v5644 = vunpack.c.l.b16 %v2927
    %v5645 = vunpack.c.h.b16 %v2927
    %v5646 = vunpack.c.l.b16 %v2928
    %v5647 = vunpack.c.h.b16 %v2928
    %v5648 = vunpack.c.l.b16 %v2929
    %v5649 = vunpack.c.h.b16 %v2929
    %v5650 = vunpack.c.l.b16 %v2930
    %v5651 = vunpack.c.h.b16 %v2930
    %v5652 = vunpack.c.l.b16 %v2931
    %v5653 = vunpack.c.h.b16 %v2931
    %v5654 = vunpack.c.l.b16 %v2932
    %v5655 = vunpack.c.h.b16 %v2932
    %v5656 = vunpack.c.l.b16 %v2933
    %v5657 = vunpack.c.h.b16 %v2933
    %v5658 = vunpack.c.l.b16 %v2934
    %v5659 = vunpack.c.h.b16 %v2934
    %v5660 = vunpack.c.l.b16 %v2935
    %v5661 = vunpack.c.h.b16 %v2935
    %v5662 = vunpack.c.l.b16 %v2936
    %v5663 = vunpack.c.h.b16 %v2936
    %v5664 = vunpack.c.l.b16 %v2937
    %v5665 = vunpack.c.h.b16 %v2937
    %v5666 = vunpack.c.l.b16 %v2938
    %v5667 = vunpack.c.h.b16 %v2938
    %v5668 = vunpack.c.l.b16 %v2939
    %v5669 = vunpack.c.h.b16 %v2939
    %v5670 = vunpack.c.l.b16 %v2940
    %v5671 = vunpack.c.h.b16 %v2940
    %v5672 = vunpack.c.l.b16 %v2941
    %v5673 = vunpack.c.h.b16 %v2941
    %v5674 = vunpack.c.l.b16 %v2942
    %v5675 = vunpack.c.h.b16 %v2942
    %v5676 = vunpack.c.l.b16 %v2943
    %v5677 = vunpack.c.h.b16 %v2943
    %v5678 = vunpack.c.l.b16 %v2944
    %v5679 = vunpack.c.h.b16 %v2944
    %v5680 = vunpack.c.l.b16 %v2945
    %v5681 = vunpack.c.h.b16 %v2945
    %v5682 = vunpack.c.l.b16 %v2946
    %v5683 = vunpack.c.h.b16 %v2946
    %v5684 = vunpack.c.l.b16 %v2947
    %v5685 = vunpack.c.h.b16 %v2947
    %v5686 = vunpack.c.l.b16 %v2948
    %v5687 = vunpack.c.h.b16 %v2948
    %v5688 = vunpack.c.l.b16 %v2949
    %v5689 = vunpack.c.h.b16 %v2949
    %v5690 = vunpack.c.l.b16 %v2950
    %v5691 = vunpack.c.h.b16 %v2950
    %v5692 = vunpack.c.l.b16 %v2951
    %v5693 = vunpack.c.h.b16 %v2951
    %v5694 = vunpack.c.l.b16 %v2952
    %v5695 = vunpack.c.h.b16 %v2952
    %v5696 = vunpack.c.l.b16 %v2953
    %v5697 = vunpack.c.h.b16 %v2953
    %v5698 = vunpack.c.l.b16 %v2954
    %v5699 = vunpack.c.h.b16 %v2954
    %v5700 = vunpack.c.l.b16 %v2955
    %v5701 = vunpack.c.h.b16 %v2955
    %v5702 = vunpack.c.l.b16 %v2956
    %v5703 = vunpack.c.h.b16 %v2956
    %v5704 = vunpack.c.l.b16 %v2957
    %v5705 = vunpack.c.h.b16 %v2957
    %v5706 = vunpack.c.l.b16 %v2958
    %v5707 = vunpack.c.h.b16 %v2958
    %v5708 = vunpack.c.l.b16 %v2959
    %v5709 = vunpack.c.h.b16 %v2959
    %v5710 = vunpack.c.l.b16 %v2960
    %v5711 = vunpack.c.h.b16 %v2960
    %v5712 = vunpack.c.l.b16 %v2961
    %v5713 = vunpack.c.h.b16 %v2961
    %v5714 = vunpack.c.l.b16 %v2962
    %v5715 = vunpack.c.h.b16 %v2962
    %v5716 = vunpack.c.l.b16 %v2963
    %v5717 = vunpack.c.h.b16 %v2963
    %v5718 = vunpack.c.l.b16 %v2964
    %v5719 = vunpack.c.h.b16 %v2964
    %v5720 = vunpack.c.l.b16 %v2965
    %v5721 = vunpack.c.h.b16 %v2965
    %v5722 = vunpack.c.l.b16 %v2966
    %v5723 = vunpack.c.h.b16 %v2966
    %v5724 = vunpack.c.l.b16 %v2967
    %v5725 = vunpack.c.h.b16 %v2967
    %v5726 = vunpack.c.l.b16 %v2968
    %v5727 = vunpack.c.h.b16 %v2968
    %v5728 = vunpack.c.l.b16 %v2969
    %v5729 = vunpack.c.h.b16 %v2969
    %v5730 = vunpack.c.l.b16 %v2970
    %v5731 = vunpack.c.h.b16 %v2970
    %v5732 = vunpack.c.l.b16 %v2971
    %v5733 = vunpack.c.h.b16 %v2971
    %v5734 = vunpack.c.l.b16 %v2972
    %v5735 = vunpack.c.h.b16 %v2972
    %v5736 = vunpack.c.l.b16 %v2973
    %v5737 = vunpack.c.h.b16 %v2973
    %v5738 = vunpack.c.l.b16 %v2974
    %v5739 = vunpack.c.h.b16 %v2974
    %v5740 = vunpack.c.l.b16 %v2975
    %v5741 = vunpack.c.h.b16 %v2975
    %v5742 = vunpack.c.l.b16 %v2976
    %v5743 = vunpack.c.h.b16 %v2976
    %v5744 = vunpack.c.l.b16 %v2977
    %v5745 = vunpack.c.h.b16 %v2977
    %v5746 = vunpack.c.l.b16 %v2978
    %v5747 = vunpack.c.h.b16 %v2978
    %v5748 = vunpack.c.l.b16 %v2979
    %v5749 = vunpack.c.h.b16 %v2979
    %v5750 = vunpack.c.l.b16 %v2980
    %v5751 = vunpack.c.h.b16 %v2980
    %v5752 = vunpack.c.l.b16 %v2981
    %v5753 = vunpack.c.h.b16 %v2981
    %v5754 = vunpack.c.l.b16 %v2982
    %v5755 = vunpack.c.h.b16 %v2982
    %v5756 = vunpack.c.l.b16 %v2983
    %v5757 = vunpack.c.h.b16 %v2983
    %v5758 = vunpack.c.l.b16 %v2984
    %v5759 = vunpack.c.h.b16 %v2984
    %v5760 = vunpack.c.l.b16 %v2985
    %v5761 = vunpack.c.h.b16 %v2985
    %v5762 = vunpack.c.l.b16 %v2986
    %v5763 = vunpack.c.h.b16 %v2986
    %v5764 = vunpack.c.l.b16 %v2987
    %v5765 = vunpack.c.h.b16 %v2987
    %v5766 = vunpack.c.l.b16 %v2988
    %v5767 = vunpack.c.h.b16 %v2988
    %v5768 = vunpack.c.l.b16 %v2989
    %v5769 = vunpack.c.h.b16 %v2989
    %v5770 = vunpack.c.l.b16 %v2990
    %v5771 = vunpack.c.h.b16 %v2990
    %v5772 = vunpack.c.l.b16 %v2991
    %v5773 = vunpack.c.h.b16 %v2991
    %v5774 = vunpack.c.l.b16 %v2992
    %v5775 = vunpack.c.h.b16 %v2992
    %v5776 = vunpack.c.l.b16 %v2993
    %v5777 = vunpack.c.h.b16 %v2993
    %v5778 = vunpack.c.l.b16 %v2994
    %v5779 = vunpack.c.h.b16 %v2994
    %v5780 = vunpack.c.l.b16 %v2995
    %v5781 = vunpack.c.h.b16 %v2995
    %v5782 = vunpack.c.l.b16 %v2996
    %v5783 = vunpack.c.h.b16 %v2996
    %v5784 = vunpack.c.l.b16 %v2997
    %v5785 = vunpack.c.h.b16 %v2997
    %v5786 = vunpack.c.l.b16 %v2998
    %v5787 = vunpack.c.h.b16 %v2998
    %v5788 = vunpack.c.l.b16 %v2999
    %v5789 = vunpack.c.h.b16 %v2999
    %v5790 = vunpack.c.l.b16 %v3000
    %v5791 = vunpack.c.h.b16 %v3000
    %v5792 = vunpack.c.l.b16 %v3001
    %v5793 = vunpack.c.h.b16 %v3001
    %v5794 = vunpack.c.l.b16 %v3002
    %v5795 = vunpack.c.h.b16 %v3002
    %v5796 = vunpack.c.l.b16 %v3003
    %v5797 = vunpack.c.h.b16 %v3003
    %v5798 = vunpack.c.l.b16 %v3004
    %v5799 = vunpack.c.h.b16 %v3004
    %v5800 = vunpack.c.l.b16 %v3005
    %v5801 = vunpack.c.h.b16 %v3005
    %v5802 = vunpack.c.l.b16 %v3006
    %v5803 = vunpack.c.h.b16 %v3006
    %v5804 = vunpack.c.l.b16 %v3007
    %v5805 = vunpack.c.h.b16 %v3007
    %v5806 = vunpack.c.l.b16 %v3008
    %v5807 = vunpack.c.h.b16 %v3008
    %v5808 = vunpack.c.l.b16 %v3009
    %v5809 = vunpack.c.h.b16 %v3009
    %v5810 = vunpack.c.l.b16 %v3010
    %v5811 = vunpack.c.h.b16 %v3010
    %v5812 = vunpack.c.l.b16 %v3011
    %v5813 = vunpack.c.h.b16 %v3011
    %v5814 = vunpack.c.l.b16 %v3012
    %v5815 = vunpack.c.h.b16 %v3012
    %v5816 = vunpack.c.l.b16 %v3013
    %v5817 = vunpack.c.h.b16 %v3013
    %v5818 = vunpack.c.l.b16 %v3014
    %v5819 = vunpack.c.h.b16 %v3014
    %v5820 = vunpack.c.l.b16 %v3015
    %v5821 = vunpack.c.h.b16 %v3015
    %v5822 = vunpack.c.l.b16 %v3016
    %v5823 = vunpack.c.h.b16 %v3016
    %v5824 = vunpack.c.l.b16 %v3017
    %v5825 = vunpack.c.h.b16 %v3017
    %v5826 = vunpack.c.l.b16 %v3018
    %v5827 = vunpack.c.h.b16 %v3018
    %v5828 = vunpack.c.l.b16 %v3019
    %v5829 = vunpack.c.h.b16 %v3019
    %v5830 = vunpack.c.l.b16 %v3020
    %v5831 = vunpack.c.h.b16 %v3020
    %v5832 = vunpack.c.l.b16 %v3021
    %v5833 = vunpack.c.h.b16 %v3021
    %v5834 = vunpack.c.l.b16 %v3022
    %v5835 = vunpack.c.h.b16 %v3022
    %v5836 = vunpack.c.l.b16 %v3023
    %v5837 = vunpack.c.h.b16 %v3023
    %v5838 = vunpack.c.l.b16 %v3024
    %v5839 = vunpack.c.h.b16 %v3024
    %v5840 = vunpack.c.l.b16 %v3025
    %v5841 = vunpack.c.h.b16 %v3025
    %v5842 = vunpack.c.l.b16 %v3026
    %v5843 = vunpack.c.h.b16 %v3026
    %v5844 = vunpack.c.l.b16 %v3027
    %v5845 = vunpack.c.h.b16 %v3027
    %v5846 = vunpack.c.l.b16 %v3028
    %v5847 = vunpack.c.h.b16 %v3028
    %v5848 = vunpack.c.l.b16 %v3029
    %v5849 = vunpack.c.h.b16 %v3029
    %v5850 = vunpack.c.l.b16 %v3030
    %v5851 = vunpack.c.h.b16 %v3030
    %v5852 = vunpack.c.l.b16 %v3031
    %v5853 = vunpack.c.h.b16 %v3031
    %v5854 = vunpack.c.l.b16 %v3032
    %v5855 = vunpack.c.h.b16 %v3032
    %v5856 = vunpack.c.l.b16 %v3033
    %v5857 = vunpack.c.h.b16 %v3033
    %v5858 = vunpack.c.l.b16 %v3034
    %v5859 = vunpack.c.h.b16 %v3034
    %v5860 = vunpack.c.l.b16 %v3035
    %v5861 = vunpack.c.h.b16 %v3035
    %v5862 = vunpack.c.l.b16 %v3036
    %v5863 = vunpack.c.h.b16 %v3036
    %v5864 = vunpack.c.l.b16 %v3037
    %v5865 = vunpack.c.h.b16 %v3037
    %v5866 = vunpack.c.l.b16 %v3038
    %v5867 = vunpack.c.h.b16 %v3038
    %v5868 = vunpack.c.l.b16 %v3039
    %v5869 = vunpack.c.h.b16 %v3039
    %v5870 = vunpack.c.l.b16 %v3040
    %v5871 = vunpack.c.h.b16 %v3040
    %v5872 = vunpack.c.l.b16 %v3041
    %v5873 = vunpack.c.h.b16 %v3041
    %v5874 = vunpack.c.l.b16 %v3042
    %v5875 = vunpack.c.h.b16 %v3042
    %v5876 = vunpack.c.l.b16 %v3043
    %v5877 = vunpack.c.h.b16 %v3043
    %v5878 = vunpack.c.l.b16 %v3044
    %v5879 = vunpack.c.h.b16 %v3044
    %v5880 = vunpack.c.l.b16 %v3045
    %v5881 = vunpack.c.h.b16 %v3045
    %v5882 = vunpack.c.l.b16 %v3046
    %v5883 = vunpack.c.h.b16 %v3046
    %v5884 = vunpack.c.l.b16 %v3047
    %v5885 = vunpack.c.h.b16 %v3047
    %v5886 = vunpack.c.l.b16 %v3048
    %v5887 = vunpack.c.h.b16 %v3048
    %v5888 = vunpack.c.l.b16 %v3049
    %v5889 = vunpack.c.h.b16 %v3049
    %v5890 = vunpack.c.l.b16 %v3050
    %v5891 = vunpack.c.h.b16 %v3050
    %v5892 = vunpack.c.l.b16 %v3051
    %v5893 = vunpack.c.h.b16 %v3051
    %v5894 = vunpack.c.l.b16 %v3052
    %v5895 = vunpack.c.h.b16 %v3052
    %v5896 = vunpack.c.l.b16 %v3053
    %v5897 = vunpack.c.h.b16 %v3053
    %v5898 = vunpack.c.l.b16 %v3054
    %v5899 = vunpack.c.h.b16 %v3054
    %v5900 = vunpack.c.l.b16 %v3055
    %v5901 = vunpack.c.h.b16 %v3055
    %v5902 = vunpack.c.l.b16 %v3056
    %v5903 = vunpack.c.h.b16 %v3056
    %v5904 = vunpack.c.l.b16 %v3057
    %v5905 = vunpack.c.h.b16 %v3057
    %v5906 = vunpack.c.l.b16 %v3058
    %v5907 = vunpack.c.h.b16 %v3058
    %v5908 = vunpack.c.l.b16 %v3059
    %v5909 = vunpack.c.h.b16 %v3059
    %v5910 = vunpack.c.l.b16 %v3060
    %v5911 = vunpack.c.h.b16 %v3060
    %v5912 = vunpack.c.l.b16 %v3061
    %v5913 = vunpack.c.h.b16 %v3061
    %v5914 = vunpack.c.l.b16 %v3062
    %v5915 = vunpack.c.h.b16 %v3062
    %v5916 = vunpack.c.l.b16 %v3063
    %v5917 = vunpack.c.h.b16 %v3063
    %v5918 = vunpack.c.l.b16 %v3064
    %v5919 = vunpack.c.h.b16 %v3064
    %v5920 = vunpack.c.l.b16 %v3065
    %v5921 = vunpack.c.h.b16 %v3065
    %v5922 = vunpack.c.l.b16 %v3066
    %v5923 = vunpack.c.h.b16 %v3066
    %v5924 = vunpack.c.l.b16 %v3067
    %v5925 = vunpack.c.h.b16 %v3067
    %v5926 = vunpack.c.l.b16 %v3068
    %v5927 = vunpack.c.h.b16 %v3068
    %v5928 = vunpack.c.l.b16 %v3069
    %v5929 = vunpack.c.h.b16 %v3069
    %v5930 = vunpack.c.l.b16 %v3070
    %v5931 = vunpack.c.h.b16 %v3070
    %v5932 = vunpack.c.l.b16 %v3071
    %v5933 = vunpack.c.h.b16 %v3071
    %v5934 = vunpack.c.l.b16 %v3072
    %v5935 = vunpack.c.h.b16 %v3072
    %v5936 = vunpack.c.l.b16 %v3073
    %v5937 = vunpack.c.h.b16 %v3073
    %v5938 = vunpack.c.l.b16 %v3074
    %v5939 = vunpack.c.h.b16 %v3074
    %v5940 = vunpack.c.l.b16 %v3075
    %v5941 = vunpack.c.h.b16 %v3075
    %v5942 = vunpack.c.l.b16 %v3076
    %v5943 = vunpack.c.h.b16 %v3076
    %v5944 = vunpack.c.l.b16 %v3077
    %v5945 = vunpack.c.h.b16 %v3077
    %v5946 = vunpack.c.l.b16 %v3078
    %v5947 = vunpack.c.h.b16 %v3078
    %v5948 = vunpack.c.l.b16 %v3079
    %v5949 = vunpack.c.h.b16 %v3079
    %v5950 = vunpack.c.l.b16 %v3080
    %v5951 = vunpack.c.h.b16 %v3080
    %v5952 = vunpack.c.l.b16 %v3081
    %v5953 = vunpack.c.h.b16 %v3081
    %v5954 = vunpack.c.l.b16 %v3082
    %v5955 = vunpack.c.h.b16 %v3082
    %v5956 = vunpack.c.l.b16 %v3083
    %v5957 = vunpack.c.h.b16 %v3083
    %v5958 = vunpack.c.l.b16 %v3084
    %v5959 = vunpack.c.h.b16 %v3084
    %v5960 = vunpack.c.l.b16 %v3085
    %v5961 = vunpack.c.h.b16 %v3085
    %v5962 = vunpack.c.l.b16 %v3086
    %v5963 = vunpack.c.h.b16 %v3086
    %v5964 = vunpack.c.l.b16 %v3087
    %v5965 = vunpack.c.h.b16 %v3087
    %v5966 = vunpack.c.l.b16 %v3088
    %v5967 = vunpack.c.h.b16 %v3088
    %v5968 = vunpack.c.l.b16 %v3089
    %v5969 = vunpack.c.h.b16 %v3089
    %v5970 = vunpack.c.l.b16 %v3090
    %v5971 = vunpack.c.h.b16 %v3090
    %v5972 = vunpack.c.l.b16 %v3091
    %v5973 = vunpack.c.h.b16 %v3091
    %v5974 = vunpack.c.l.b16 %v3092
    %v5975 = vunpack.c.h.b16 %v3092
    %v5976 = vunpack.c.l.b16 %v3093
    %v5977 = vunpack.c.h.b16 %v3093
    %v5978 = vunpack.c.l.b16 %v3094
    %v5979 = vunpack.c.h.b16 %v3094
    %v5980 = vunpack.c.l.b16 %v3095
    %v5981 = vunpack.c.h.b16 %v3095
    %v5982 = vunpack.c.l.b16 %v3096
    %v5983 = vunpack.c.h.b16 %v3096
    %v5984 = vunpack.c.l.b16 %v3097
    %v5985 = vunpack.c.h.b16 %v3097
    %v5986 = vunpack.c.l.b16 %v3098
    %v5987 = vunpack.c.h.b16 %v3098
    %v5988 = vunpack.c.l.b16 %v3099
    %v5989 = vunpack.c.h.b16 %v3099
    %v5990 = vunpack.c.l.b16 %v3100
    %v5991 = vunpack.c.h.b16 %v3100
    %v5992 = vunpack.c.l.b16 %v3101
    %v5993 = vunpack.c.h.b16 %v3101
    %v5994 = vunpack.c.l.b16 %v3102
    %v5995 = vunpack.c.h.b16 %v3102
    %v5996 = vunpack.c.l.b16 %v3103
    %v5997 = vunpack.c.h.b16 %v3103
    %v5998 = vunpack.c.l.b16 %v3104
    %v5999 = vunpack.c.h.b16 %v3104
    %v6000 = vunpack.c.l.b16 %v3105
    %v6001 = vunpack.c.h.b16 %v3105
    %v6002 = vunpack.c.l.b16 %v3106
    %v6003 = vunpack.c.h.b16 %v3106
    %v6004 = vunpack.c.l.b16 %v3107
    %v6005 = vunpack.c.h.b16 %v3107
    %v6006 = vunpack.c.l.b16 %v3108
    %v6007 = vunpack.c.h.b16 %v3108
    %v6008 = vunpack.c.l.b16 %v3109
    %v6009 = vunpack.c.h.b16 %v3109
    %v6010 = vunpack.c.l.b16 %v3110
    %v6011 = vunpack.c.h.b16 %v3110
    %v6012 = vunpack.c.l.b16 %v3111
    %v6013 = vunpack.c.h.b16 %v3111
    %v6014 = vunpack.c.l.b16 %v3112
    %v6015 = vunpack.c.h.b16 %v3112
    %v6016 = vunpack.c.l.b16 %v3113
    %v6017 = vunpack.c.h.b16 %v3113
    %v6018 = vunpack.c.l.b16 %v3114
    %v6019 = vunpack.c.h.b16 %v3114
    %v6020 = vunpack.c.l.b16 %v3115
    %v6021 = vunpack.c.h.b16 %v3115
    %v6022 = vunpack.c.l.b16 %v3116
    %v6023 = vunpack.c.h.b16 %v3116
    %v6024 = vunpack.c.l.b16 %v3117
    %v6025 = vunpack.c.h.b16 %v3117
    %v6026 = vunpack.c.l.b16 %v3118
    %v6027 = vunpack.c.h.b16 %v3118
    %v6028 = vunpack.c.l.b16 %v3119
    %v6029 = vunpack.c.h.b16 %v3119
    %v6030 = vunpack.c.l.b16 %v3120
    %v6031 = vunpack.c.h.b16 %v3120
    %v6032 = vunpack.c.l.b16 %v3121
    %v6033 = vunpack.c.h.b16 %v3121
    %v6034 = vunpack.c.l.b16 %v3122
    %v6035 = vunpack.c.h.b16 %v3122
    %v6036 = vunpack.c.l.b16 %v3123
    %v6037 = vunpack.c.h.b16 %v3123
    %v6038 = vunpack.c.l.b16 %v3124
    %v6039 = vunpack.c.h.b16 %v3124
    %v6040 = vunpack.c.l.b16 %v3125
    %v6041 = vunpack.c.h.b16 %v3125
    %v6042 = vunpack.c.l.b16 %v3126
    %v6043 = vunpack.c.h.b16 %v3126
    %v6044 = vunpack.c.l.b16 %v3127
    %v6045 = vunpack.c.h.b16 %v3127
    %v6046 = vunpack.c.l.b16 %v3128
    %v6047 = vunpack.c.h.b16 %v3128
    %v6048 = vunpack.c.l.b16 %v3129
    %v6049 = vunpack.c.h.b16 %v3129
    %v6050 = vunpack.c.l.b16 %v3130
    %v6051 = vunpack.c.h.b16 %v3130
    %v6052 = vunpack.c.l.b16 %v3131
    %v6053 = vunpack.c.h.b16 %v3131
    %v6054 = vunpack.c.l.b16 %v3132
    %v6055 = vunpack.c.h.b16 %v3132
    %v6056 = vunpack.c.l.b16 %v3133
    %v6057 = vunpack.c.h.b16 %v3133
    %v6058 = vunpack.c.l.b16 %v3134
    %v6059 = vunpack.c.h.b16 %v3134
    %v6060 = vunpack.c.l.b16 %v3135
    %v6061 = vunpack.c.h.b16 %v3135
    %v6062 = vunpack.c.l.b16 %v3136
    %v6063 = vunpack.c.h.b16 %v3136
    %v6064 = vunpack.c.l.b16 %v3137
    %v6065 = vunpack.c.h.b16 %v3137
    %v6066 = vunpack.c.l.b16 %v3138
    %v6067 = vunpack.c.h.b16 %v3138
    %v6068 = vunpack.c.l.b16 %v3139
    %v6069 = vunpack.c.h.b16 %v3139
    %v6070 = vunpack.c.l.b16 %v3140
    %v6071 = vunpack.c.h.b16 %v3140
    %v6072 = vunpack.c.l.b16 %v3141
    %v6073 = vunpack.c.h.b16 %v3141
    %v6074 = vunpack.c.l.b16 %v3142
    %v6075 = vunpack.c.h.b16 %v3142
    %v6076 = vunpack.c.l.b16 %v3143
    %v6077 = vunpack.c.h.b16 %v3143
    %v6078 = vunpack.c.l.b16 %v3144
    %v6079 = vunpack.c.h.b16 %v3144
    %v6080 = vunpack.c.l.b16 %v3145
    %v6081 = vunpack.c.h.b16 %v3145
    %v6082 = vunpack.c.l.b16 %v3146
    %v6083 = vunpack.c.h.b16 %v3146
    %v6084 = vunpack.c.l.b16 %v3147
    %v6085 = vunpack.c.h.b16 %v3147
    %v6086 = vunpack.c.l.b16 %v3148
    %v6087 = vunpack.c.h.b16 %v3148
    %v6088 = vunpack.c.l.b16 %v3149
    %v6089 = vunpack.c.h.b16 %v3149
    %v6090 = vunpack.c.l.b16 %v3150
    %v6091 = vunpack.c.h.b16 %v3150
    %v6092 = vunpack.c.l.b16 %v3151
    %v6093 = vunpack.c.h.b16 %v3151
    %v6094 = vunpack.c.l.b16 %v3152
    %v6095 = vunpack.c.h.b16 %v3152
    %v6096 = vunpack.c.l.b16 %v3153
    %v6097 = vunpack.c.h.b16 %v3153
    %v6098 = vunpack.c.l.b16 %v3154
    %v6099 = vunpack.c.h.b16 %v3154
    %v6100 = vunpack.c.l.b16 %v3155
    %v6101 = vunpack.c.h.b16 %v3155
    %v6102 = vunpack.c.l.b16 %v3156
    %v6103 = vunpack.c.h.b16 %v3156
    %v6104 = vunpack.c.l.b16 %v3157
    %v6105 = vunpack.c.h.b16 %v3157
    %v6106 = vunpack.c.l.b16 %v3158
    %v6107 = vunpack.c.h.b16 %v3158
    %v6108 = vunpack.c.l.b16 %v3159
    %v6109 = vunpack.c.h.b16 %v3159
    %v6110 = vunpack.c.l.b16 %v3160
    %v6111 = vunpack.c.h.b16 %v3160
    %v6112 = vunpack.c.l.b16 %v3161
    %v6113 = vunpack.c.h.b16 %v3161
    %v6114 = vunpack.c.l.b16 %v3162
    %v6115 = vunpack.c.h.b16 %v3162
    %v6116 = vunpack.c.l.b16 %v3163
    %v6117 = vunpack.c.h.b16 %v3163
    %v6118 = vunpack.c.l.b16 %v3164
    %v6119 = vunpack.c.h.b16 %v3164
    %v6120 = vunpack.c.l.b16 %v3165
    %v6121 = vunpack.c.h.b16 %v3165
    %v6122 = vunpack.c.l.b16 %v3166
    %v6123 = vunpack.c.h.b16 %v3166
    %v6124 = vunpack.c.l.b16 %v3167
    %v6125 = vunpack.c.h.b16 %v3167
    %v6126 = vunpack.c.l.b16 %v3168
    %v6127 = vunpack.c.h.b16 %v3168
    %v6128 = vunpack.c.l.b16 %v3169
    %v6129 = vunpack.c.h.b16 %v3169
    %v6130 = vunpack.c.l.b16 %v3170
    %v6131 = vunpack.c.h.b16 %v3170
    %v6132 = vunpack.c.l.b16 %v3171
    %v6133 = vunpack.c.h.b16 %v3171
    %v6134 = vunpack.c.l.b16 %v3172
    %v6135 = vunpack.c.h.b16 %v3172
    %v6136 = vunpack.c.l.b16 %v3173
    %v6137 = vunpack.c.h.b16 %v3173
    %v6138 = vunpack.c.l.b16 %v3174
    %v6139 = vunpack.c.h.b16 %v3174
    %v6140 = vunpack.c.l.b16 %v3175
    %v6141 = vunpack.c.h.b16 %v3175
    %v6142 = vunpack.c.l.b16 %v3176
    %v6143 = vunpack.c.h.b16 %v3176
    %v6144 = vunpack.c.l.b16 %v3177
    %v6145 = vunpack.c.h.b16 %v3177
    %v6146 = vunpack.c.l.b16 %v3178
    %v6147 = vunpack.c.h.b16 %v3178
    %v6148 = vunpack.c.l.b16 %v3179
    %v6149 = vunpack.c.h.b16 %v3179
    %v6150 = vunpack.c.l.b16 %v3180
    %v6151 = vunpack.c.h.b16 %v3180
    %v6152 = vunpack.c.l.b16 %v3181
    %v6153 = vunpack.c.h.b16 %v3181
    %v6154 = vunpack.c.l.b16 %v3182
    %v6155 = vunpack.c.h.b16 %v3182
    %v6156 = vunpack.c.l.b16 %v3183
    %v6157 = vunpack.c.h.b16 %v3183
    %v6158 = vunpack.c.l.b16 %v3184
    %v6159 = vunpack.c.h.b16 %v3184
    %v6160 = vunpack.c.l.b16 %v3185
    %v6161 = vunpack.c.h.b16 %v3185
    %v6162 = vunpack.c.l.b16 %v3186
    %v6163 = vunpack.c.h.b16 %v3186
    %v6164 = vunpack.c.l.b16 %v3187
    %v6165 = vunpack.c.h.b16 %v3187
    %v6166 = vunpack.c.l.b16 %v3188
    %v6167 = vunpack.c.h.b16 %v3188
    %v6168 = vunpack.c.l.b16 %v3189
    %v6169 = vunpack.c.h.b16 %v3189
    %v6170 = vunpack.c.l.b16 %v3190
    %v6171 = vunpack.c.h.b16 %v3190
    %v6172 = vunpack.c.l.b16 %v3191
    %v6173 = vunpack.c.h.b16 %v3191
    %v6174 = vunpack.c.l.b16 %v3192
    %v6175 = vunpack.c.h.b16 %v3192
    %v6176 = vunpack.c.l.b16 %v3193
    %v6177 = vunpack.c.h.b16 %v3193
    %v6178 = vunpack.c.l.b16 %v3194
    %v6179 = vunpack.c.h.b16 %v3194
    %v6180 = vunpack.c.l.b16 %v3195
    %v6181 = vunpack.c.h.b16 %v3195
    %v6182 = vunpack.c.l.b16 %v3196
    %v6183 = vunpack.c.h.b16 %v3196
    %v6184 = vunpack.c.l.b16 %v3197
    %v6185 = vunpack.c.h.b16 %v3197
    %v6186 = vunpack.c.l.b16 %v3198
    %v6187 = vunpack.c.h.b16 %v3198
    %v6188 = vunpack.c.l.b16 %v3199
    %v6189 = vunpack.c.h.b16 %v3199
    %v6190 = vunpack.c.l.b16 %v3200
    %v6191 = vunpack.c.h.b16 %v3200
    %v6192 = vunpack.c.l.b16 %v3201
    %v6193 = vunpack.c.h.b16 %v3201
    %v6194 = vunpack.c.l.b16 %v3202
    %v6195 = vunpack.c.h.b16 %v3202
    %v6196 = vunpack.c.l.b16 %v3203
    %v6197 = vunpack.c.h.b16 %v3203
    %v6198 = vunpack.c.l.b16 %v3204
    %v6199 = vunpack.c.h.b16 %v3204
    %v6200 = vunpack.c.l.b16 %v3205
    %v6201 = vunpack.c.h.b16 %v3205
    %v6202 = vunpack.c.l.b16 %v3206
    %v6203 = vunpack.c.h.b16 %v3206
    %v6204 = vunpack.c.l.b16 %v3207
    %v6205 = vunpack.c.h.b16 %v3207
    %v6206 = vunpack.c.l.b16 %v3208
    %v6207 = vunpack.c.h.b16 %v3208
    %v6208 = vunpack.c.l.b16 %v3209
    %v6209 = vunpack.c.h.b16 %v3209
    %v6210 = vunpack.c.l.b16 %v3210
    %v6211 = vunpack.c.h.b16 %v3210
    %v6212 = vunpack.c.l.b16 %v3211
    %v6213 = vunpack.c.h.b16 %v3211
    %v6214 = vunpack.c.l.b16 %v3212
    %v6215 = vunpack.c.h.b16 %v3212
    %v6216 = vunpack.c.l.b16 %v3213
    %v6217 = vunpack.c.h.b16 %v3213
    %v6218 = vunpack.c.l.b16 %v3214
    %v6219 = vunpack.c.h.b16 %v3214
    %v6220 = vunpack.c.l.b16 %v3215
    %v6221 = vunpack.c.h.b16 %v3215
    %v6222 = vunpack.c.l.b16 %v3216
    %v6223 = vunpack.c.h.b16 %v3216
    %v6224 = vunpack.c.l.b16 %v3217
    %v6225 = vunpack.c.h.b16 %v3217
    %v6226 = vunpack.c.l.b16 %v3218
    %v6227 = vunpack.c.h.b16 %v3218
    %v6228 = vunpack.c.l.b16 %v3219
    %v6229 = vunpack.c.h.b16 %v3219
    %v6230 = vunpack.c.l.b16 %v3220
    %v6231 = vunpack.c.h.b16 %v3220
    %v6232 = vunpack.c.l.b16 %v3221
    %v6233 = vunpack.c.h.b16 %v3221
    %v6234 = vunpack.c.l.b16 %v3222
    %v6235 = vunpack.c.h.b16 %v3222
    %v6236 = vunpack.c.l.b16 %v3223
    %v6237 = vunpack.c.h.b16 %v3223
    %v6238 = vunpack.c.l.b16 %v3224
    %v6239 = vunpack.c.h.b16 %v3224
    %v6240 = vunpack.c.l.b16 %v3225
    %v6241 = vunpack.c.h.b16 %v3225
    %v6242 = vunpack.c.l.b16 %v3226
    %v6243 = vunpack.c.h.b16 %v3226
    %v6244 = vunpack.c.l.b16 %v3227
    %v6245 = vunpack.c.h.b16 %v3227
    %v6246 = vunpack.c.l.b16 %v3228
    %v6247 = vunpack.c.h.b16 %v3228
    %v6248 = vunpack.c.l.b16 %v3229
    %v6249 = vunpack.c.h.b16 %v3229
    %v6250 = vunpack.c.l.b16 %v3230
    %v6251 = vunpack.c.h.b16 %v3230
    %v6252 = vunpack.c.l.b16 %v3231
    %v6253 = vunpack.c.h.b16 %v3231
    %v6254 = vunpack.c.l.b16 %v3232
    %v6255 = vunpack.c.h.b16 %v3232
    %v6256 = vunpack.c.l.b16 %v3233
    %v6257 = vunpack.c.h.b16 %v3233
    %v6258 = vunpack.c.l.b16 %v3234
    %v6259 = vunpack.c.h.b16 %v3234
    %v6260 = vunpack.c.l.b16 %v3235
    %v6261 = vunpack.c.h.b16 %v3235
    %v6262 = vunpack.c.l.b16 %v3236
    %v6263 = vunpack.c.h.b16 %v3236
    %v6264 = vunpack.c.l.b16 %v3237
    %v6265 = vunpack.c.h.b16 %v3237
    %v6266 = vunpack.c.l.b16 %v3238
    %v6267 = vunpack.c.h.b16 %v3238
    %v6268 = vunpack.c.l.b16 %v3239
    %v6269 = vunpack.c.h.b16 %v3239
    %v6270 = vunpack.c.l.b16 %v3240
    %v6271 = vunpack.c.h.b16 %v3240
    %v6272 = vunpack.c.l.b16 %v3241
    %v6273 = vunpack.c.h.b16 %v3241
    %v6274 = vunpack.c.l.b16 %v3242
    %v6275 = vunpack.c.h.b16 %v3242
    %v6276 = vunpack.c.l.b16 %v3243
    %v6277 = vunpack.c.h.b16 %v3243
    %v6278 = vunpack.c.l.b16 %v3244
    %v6279 = vunpack.c.h.b16 %v3244
    %v6280 = vunpack.c.l.b16 %v3245
    %v6281 = vunpack.c.h.b16 %v3245
    %v6282 = vunpack.c.l.b16 %v3246
    %v6283 = vunpack.c.h.b16 %v3246
    %v6284 = vunpack.c.l.b16 %v3247
    %v6285 = vunpack.c.h.b16 %v3247
    %v6286 = vunpack.c.l.b16 %v3248
    %v6287 = vunpack.c.h.b16 %v3248
    %v6288 = vunpack.c.l.b16 %v3249
    %v6289 = vunpack.c.h.b16 %v3249
    %v6290 = vunpack.c.l.b16 %v3250
    %v6291 = vunpack.c.h.b16 %v3250
    %v6292 = vunpack.c.l.b16 %v3251
    %v6293 = vunpack.c.h.b16 %v3251
    %v6294 = vunpack.c.l.b16 %v3252
    %v6295 = vunpack.c.h.b16 %v3252
    %v6296 = vunpack.c.l.b16 %v3253
    %v6297 = vunpack.c.h.b16 %v3253
    %v6298 = vunpack.c.l.b16 %v3254
    %v6299 = vunpack.c.h.b16 %v3254
    %v6300 = vunpack.c.l.b16 %v3255
    %v6301 = vunpack.c.h.b16 %v3255
    %v6302 = vunpack.c.l.b16 %v3256
    %v6303 = vunpack.c.h.b16 %v3256
    %v6304 = vunpack.c.l.b16 %v3257
    %v6305 = vunpack.c.h.b16 %v3257
    %v6306 = vunpack.c.l.b16 %v3258
    %v6307 = vunpack.c.h.b16 %v3258
    %v6308 = vunpack.c.l.b16 %v3259
    %v6309 = vunpack.c.h.b16 %v3259
    %v6310 = vunpack.c.l.b16 %v3260
    %v6311 = vunpack.c.h.b16 %v3260
    %v6312 = vunpack.c.l.b16 %v3261
    %v6313 = vunpack.c.h.b16 %v3261
    %v6314 = vunpack.c.l.b16 %v3262
    %v6315 = vunpack.c.h.b16 %v3262
    %v6316 = vunpack.c.l.b16 %v3263
    %v6317 = vunpack.c.h.b16 %v3263
    %v6318 = vunpack.c.l.b16 %v3264
    %v6319 = vunpack.c.h.b16 %v3264
    %v6320 = vunpack.c.l.b16 %v3265
    %v6321 = vunpack.c.h.b16 %v3265
    %v6322 = vunpack.c.l.b16 %v3266
    %v6323 = vunpack.c.h.b16 %v3266
    %v6324 = vunpack.c.l.b16 %v3267
    %v6325 = vunpack.c.h.b16 %v3267
    %v6326 = vunpack.c.l.b16 %v3268
    %v6327 = vunpack.c.h.b16 %v3268
    %v6328 = vunpack.c.l.b16 %v3269
    %v6329 = vunpack.c.h.b16 %v3269
    %v6330 = vunpack.c.l.b16 %v3270
    %v6331 = vunpack.c.h.b16 %v3270
    %v6332 = vunpack.c.l.b16 %v3271
    %v6333 = vunpack.c.h.b16 %v3271
    %v6334 = vunpack.c.l.b16 %v3272
    %v6335 = vunpack.c.h.b16 %v3272
    %v6336 = vunpack.c.l.b16 %v3273
    %v6337 = vunpack.c.h.b16 %v3273
    %v6338 = vunpack.c.l.b16 %v3274
    %v6339 = vunpack.c.h.b16 %v3274
    %v6340 = vunpack.c.l.b16 %v3275
    %v6341 = vunpack.c.h.b16 %v3275
    %v6342 = vunpack.c.l.b16 %v3276
    %v6343 = vunpack.c.h.b16 %v3276
    %v6344 = vunpack.c.l.b16 %v3277
    %v6345 = vunpack.c.h.b16 %v3277
    %v6346 = vunpack.c.l.b16 %v3278
    %v6347 = vunpack.c.h.b16 %v3278
    %v6348 = vunpack.c.l.b16 %v3279
    %v6349 = vunpack.c.h.b16 %v3279
    %v6350 = vunpack.c.l.b16 %v3280
    %v6351 = vunpack.c.h.b16 %v3280
    %v6352 = vunpack.c.l.b16 %v3281
    %v6353 = vunpack.c.h.b16 %v3281
    %v6354 = vunpack.c.l.b16 %v3282
    %v6355 = vunpack.c.h.b16 %v3282
    %v6356 = vunpack.c.l.b16 %v3283
    %v6357 = vunpack.c.h.b16 %v3283
    %v6358 = vunpack.c.l.b16 %v3284
    %v6359 = vunpack.c.h.b16 %v3284
    %v6360 = vunpack.c.l.b16 %v3285
    %v6361 = vunpack.c.h.b16 %v3285
    %v6362 = vunpack.c.l.b16 %v3286
    %v6363 = vunpack.c.h.b16 %v3286
    %v6364 = vunpack.c.l.b16 %v3287
    %v6365 = vunpack.c.h.b16 %v3287
    %v6366 = vunpack.c.l.b16 %v3288
    %v6367 = vunpack.c.h.b16 %v3288
    %v6368 = vunpack.c.l.b16 %v3289
    %v6369 = vunpack.c.h.b16 %v3289
    %v6370 = vunpack.c.l.b16 %v3290
    %v6371 = vunpack.c.h.b16 %v3290
    %v6372 = vunpack.c.l.b16 %v3291
    %v6373 = vunpack.c.h.b16 %v3291
    %v6374 = vunpack.c.l.b16 %v3292
    %v6375 = vunpack.c.h.b16 %v3292
    %v6376 = vunpack.c.l.b16 %v3293
    %v6377 = vunpack.c.h.b16 %v3293
    %v6378 = vunpack.c.l.b16 %v3294
    %v6379 = vunpack.c.h.b16 %v3294
    %v6380 = vunpack.c.l.b16 %v3295
    %v6381 = vunpack.c.h.b16 %v3295
    %v6382 = vunpack.c.l.b16 %v3296
    %v6383 = vunpack.c.h.b16 %v3296
    %v6384 = vunpack.c.l.b16 %v3297
    %v6385 = vunpack.c.h.b16 %v3297
    %v6386 = vunpack.c.l.b16 %v3298
    %v6387 = vunpack.c.h.b16 %v3298
    %v6388 = vunpack.c.l.b16 %v3299
    %v6389 = vunpack.c.h.b16 %v3299
    %v6390 = vunpack.c.l.b16 %v3300
    %v6391 = vunpack.c.h.b16 %v3300
    %v6392 = vunpack.c.l.b16 %v3301
    %v6393 = vunpack.c.h.b16 %v3301
    %v6394 = vunpack.c.l.b16 %v3302
    %v6395 = vunpack.c.h.b16 %v3302
    %v6396 = vunpack.c.l.b16 %v3303
    %v6397 = vunpack.c.h.b16 %v3303
    %v6398 = vunpack.c.l.b16 %v3304
    %v6399 = vunpack.c.h.b16 %v3304
    %v6400 = vunpack.c.l.b16 %v3305
    %v6401 = vunpack.c.h.b16 %v3305
    %v6402 = vunpack.c.l.b16 %v3306
    %v6403 = vunpack.c.h.b16 %v3306
    %v6404 = vunpack.c.l.b16 %v3307
    %v6405 = vunpack.c.h.b16 %v3307
    %v6406 = vunpack.c.l.b16 %v3308
    %v6407 = vunpack.c.h.b16 %v3308
    %v6408 = vunpack.c.l.b16 %v3309
    %v6409 = vunpack.c.h.b16 %v3309
    %v6410 = vunpack.c.l.b16 %v3310
    %v6411 = vunpack.c.h.b16 %v3310
    %v6412 = vunpack.c.l.b16 %v3311
    %v6413 = vunpack.c.h.b16 %v3311
    %v6414 = vunpack.c.l.b16 %v3312
    %v6415 = vunpack.c.h.b16 %v3312
    %v6416 = vunpack.c.l.b16 %v3313
    %v6417 = vunpack.c.h.b16 %v3313
    %v6418 = vunpack.c.l.b16 %v3314
    %v6419 = vunpack.c.h.b16 %v3314
    %v6420 = vunpack.c.l.b16 %v3315
    %v6421 = vunpack.c.h.b16 %v3315
    %v6422 = vunpack.c.l.b16 %v3316
    %v6423 = vunpack.c.h.b16 %v3316
    %v6424 = vunpack.c.l.b16 %v3317
    %v6425 = vunpack.c.h.b16 %v3317
    %v6426 = vpack.c.b16 %v4394, %v4378
    %v6427 = vpack.c.b16 %v4395, %v4379
    %v6428 = vpack.c.b16 %v4396, %v4380
    %v6429 = vpack.c.b16 %v4397, %v4381
    %v6430 = vpack.c.b16 %v4398, %v4382
    %v6431 = vpack.c.b16 %v4399, %v4383
    %v6432 = vpack.c.b16 %v4400, %v4384
    %v6433 = vpack.c.b16 %v4401, %v4385
    %v6434 = vpack.c.b16 %v4402, %v4386
    %v6435 = vpack.c.b16 %v4403, %v4387
    %v6436 = vpack.c.b16 %v4404, %v4388
    %v6437 = vpack.c.b16 %v4405, %v4389
    %v6438 = vpack.c.b16 %v4406, %v4390
    %v6439 = vpack.c.b16 %v4407, %v4391
    %v6440 = vpack.c.b16 %v4408, %v4392
    %v6441 = vpack.c.b16 %v4409, %v4393
    %v6442 = vpack.c.b16 %v4426, %v4410
    %v6443 = vpack.c.b16 %v4427, %v4411
    %v6444 = vpack.c.b16 %v4428, %v4412
    %v6445 = vpack.c.b16 %v4429, %v4413
    %v6446 = vpack.c.b16 %v4430, %v4414
    %v6447 = vpack.c.b16 %v4431, %v4415
    %v6448 = vpack.c.b16 %v4432, %v4416
    %v6449 = vpack.c.b16 %v4433, %v4417
    %v6450 = vpack.c.b16 %v4434, %v4418
    %v6451 = vpack.c.b16 %v4435, %v4419
    %v6452 = vpack.c.b16 %v4436, %v4420
    %v6453 = vpack.c.b16 %v4437, %v4421
    %v6454 = vpack.c.b16 %v4438, %v4422
    %v6455 = vpack.c.b16 %v4439, %v4423
    %v6456 = vpack.c.b16 %v4440, %v4424
    %v6457 = vpack.c.b16 %v4441, %v4425
    %v6458 = vpack.c.b16 %v4458, %v4442
    %v6459 = vpack.c.b16 %v4459, %v4443
    %v6460 = vpack.c.b16 %v4460, %v4444
    %v6461 = vpack.c.b16 %v4461, %v4445
    %v6462 = vpack.c.b16 %v4462, %v4446
    %v6463 = vpack.c.b16 %v4463, %v4447
    %v6464 = vpack.c.b16 %v4464, %v4448
    %v6465 = vpack.c.b16 %v4465, %v4449
    %v6466 = vpack.c.b16 %v4466, %v4450
    %v6467 = vpack.c.b16 %v4467, %v4451
    %v6468 = vpack.c.b16 %v4468, %v4452
    %v6469 = vpack.c.b16 %v4469, %v4453
    %v6470 = vpack.c.b16 %v4470, %v4454
    %v6471 = vpack.c.b16 %v4471, %v4455
    %v6472 = vpack.c.b16 %v4472, %v4456
    %v6473 = vpack.c.b16 %v4473, %v4457
    %v6474 = vpack.c.b16 %v4490, %v4474
    %v6475 = vpack.c.b16 %v4491, %v4475
    %v6476 = vpack.c.b16 %v4492, %v4476
    %v6477 = vpack.c.b16 %v4493, %v4477
    %v6478 = vpack.c.b16 %v4494, %v4478
    %v6479 = vpack.c.b16 %v4495, %v4479
    %v6480 = vpack.c.b16 %v4496, %v4480
    %v6481 = vpack.c.b16 %v4497, %v4481
    %v6482 = vpack.c.b16 %v4498, %v4482
    %v6483 = vpack.c.b16 %v4499, %v4483
    %v6484 = vpack.c.b16 %v4500, %v4484
    %v6485 = vpack.c.b16 %v4501, %v4485
    %v6486 = vpack.c.b16 %v4502, %v4486
    %v6487 = vpack.c.b16 %v4503, %v4487
    %v6488 = vpack.c.b16 %v4504, %v4488
    %v6489 = vpack.c.b16 %v4505, %v4489
    %v6490 = vpack.c.b16 %v4522, %v4506
    %v6491 = vpack.c.b16 %v4523, %v4507
    %v6492 = vpack.c.b16 %v4524, %v4508
    %v6493 = vpack.c.b16 %v4525, %v4509
    %v6494 = vpack.c.b16 %v4526, %v4510
    %v6495 = vpack.c.b16 %v4527, %v4511
    %v6496 = vpack.c.b16 %v4528, %v4512
    %v6497 = vpack.c.b16 %v4529, %v4513
    %v6498 = vpack.c.b16 %v4530, %v4514
    %v6499 = vpack.c.b16 %v4531, %v4515
    %v6500 = vpack.c.b16 %v4532, %v4516
    %v6501 = vpack.c.b16 %v4533, %v4517
    %v6502 = vpack.c.b16 %v4534, %v4518
    %v6503 = vpack.c.b16 %v4535, %v4519
    %v6504 = vpack.c.b16 %v4536, %v4520
    %v6505 = vpack.c.b16 %v4537, %v4521
    %v6506 = vpack.c.b16 %v4554, %v4538
    %v6507 = vpack.c.b16 %v4555, %v4539
    %v6508 = vpack.c.b16 %v4556, %v4540
    %v6509 = vpack.c.b16 %v4557, %v4541
    %v6510 = vpack.c.b16 %v4558, %v4542
    %v6511 = vpack.c.b16 %v4559, %v4543
    %v6512 = vpack.c.b16 %v4560, %v4544
    %v6513 = vpack.c.b16 %v4561, %v4545
    %v6514 = vpack.c.b16 %v4562, %v4546
    %v6515 = vpack.c.b16 %v4563, %v4547
    %v6516 = vpack.c.b16 %v4564, %v4548
    %v6517 = vpack.c.b16 %v4565, %v4549
    %v6518 = vpack.c.b16 %v4566, %v4550
    %v6519 = vpack.c.b16 %v4567, %v4551
    %v6520 = vpack.c.b16 %v4568, %v4552
    %v6521 = vpack.c.b16 %v4569, %v4553
    %v6522 = vpack.c.b16 %v4586, %v4570
    %v6523 = vpack.c.b16 %v4587, %v4571
    %v6524 = vpack.c.b16 %v4588, %v4572
    %v6525 = vpack.c.b16 %v4589, %v4573
    %v6526 = vpack.c.b16 %v4590, %v4574
    %v6527 = vpack.c.b16 %v4591, %v4575
    %v6528 = vpack.c.b16 %v4592, %v4576
    %v6529 = vpack.c.b16 %v4593, %v4577
    %v6530 = vpack.c.b16 %v4594, %v4578
    %v6531 = vpack.c.b16 %v4595, %v4579
    %v6532 = vpack.c.b16 %v4596, %v4580
    %v6533 = vpack.c.b16 %v4597, %v4581
    %v6534 = vpack.c.b16 %v4598, %v4582
    %v6535 = vpack.c.b16 %v4599, %v4583
    %v6536 = vpack.c.b16 %v4600, %v4584
    %v6537 = vpack.c.b16 %v4601, %v4585
    %v6538 = vpack.c.b16 %v4618, %v4602
    %v6539 = vpack.c.b16 %v4619, %v4603
    %v6540 = vpack.c.b16 %v4620, %v4604
    %v6541 = vpack.c.b16 %v4621, %v4605
    %v6542 = vpack.c.b16 %v4622, %v4606
    %v6543 = vpack.c.b16 %v4623, %v4607
    %v6544 = vpack.c.b16 %v4624, %v4608
    %v6545 = vpack.c.b16 %v4625, %v4609
    %v6546 = vpack.c.b16 %v4626, %v4610
    %v6547 = vpack.c.b16 %v4627, %v4611
    %v6548 = vpack.c.b16 %v4628, %v4612
    %v6549 = vpack.c.b16 %v4629, %v4613
    %v6550 = vpack.c.b16 %v4630, %v4614
    %v6551 = vpack.c.b16 %v4631, %v4615
    %v6552 = vpack.c.b16 %v4632, %v4616
    %v6553 = vpack.c.b16 %v4633, %v4617
    %v6554 = vpack.c.b16 %v4650, %v4634
    %v6555 = vpack.c.b16 %v4651, %v4635
    %v6556 = vpack.c.b16 %v4652, %v4636
    %v6557 = vpack.c.b16 %v4653, %v4637
    %v6558 = vpack.c.b16 %v4654, %v4638
    %v6559 = vpack.c.b16 %v4655, %v4639
    %v6560 = vpack.c.b16 %v4656, %v4640
    %v6561 = vpack.c.b16 %v4657, %v4641
    %v6562 = vpack.c.b16 %v4658, %v4642
    %v6563 = vpack.c.b16 %v4659, %v4643
    %v6564 = vpack.c.b16 %v4660, %v4644
    %v6565 = vpack.c.b16 %v4661, %v4645
    %v6566 = vpack.c.b16 %v4662, %v4646
    %v6567 = vpack.c.b16 %v4663, %v4647
    %v6568 = vpack.c.b16 %v4664, %v4648
    %v6569 = vpack.c.b16 %v4665, %v4649
    %v6570 = vpack.c.b16 %v4682, %v4666
    %v6571 = vpack.c.b16 %v4683, %v4667
    %v6572 = vpack.c.b16 %v4684, %v4668
    %v6573 = vpack.c.b16 %v4685, %v4669
    %v6574 = vpack.c.b16 %v4686, %v4670
    %v6575 = vpack.c.b16 %v4687, %v4671
    %v6576 = vpack.c.b16 %v4688, %v4672
    %v6577 = vpack.c.b16 %v4689, %v4673
    %v6578 = vpack.c.b16 %v4690, %v4674
    %v6579 = vpack.c.b16 %v4691, %v4675
    %v6580 = vpack.c.b16 %v4692, %v4676
    %v6581 = vpack.c.b16 %v4693, %v4677
    %v6582 = vpack.c.b16 %v4694, %v4678
    %v6583 = vpack.c.b16 %v4695, %v4679
    %v6584 = vpack.c.b16 %v4696, %v4680
    %v6585 = vpack.c.b16 %v4697, %v4681
    %v6586 = vpack.c.b16 %v4714, %v4698
    %v6587 = vpack.c.b16 %v4715, %v4699
    %v6588 = vpack.c.b16 %v4716, %v4700
    %v6589 = vpack.c.b16 %v4717, %v4701
    %v6590 = vpack.c.b16 %v4718, %v4702
    %v6591 = vpack.c.b16 %v4719, %v4703
    %v6592 = vpack.c.b16 %v4720, %v4704
    %v6593 = vpack.c.b16 %v4721, %v4705
    %v6594 = vpack.c.b16 %v4722, %v4706
    %v6595 = vpack.c.b16 %v4723, %v4707
    %v6596 = vpack.c.b16 %v4724, %v4708
    %v6597 = vpack.c.b16 %v4725, %v4709
    %v6598 = vpack.c.b16 %v4726, %v4710
    %v6599 = vpack.c.b16 %v4727, %v4711
    %v6600 = vpack.c.b16 %v4728, %v4712
    %v6601 = vpack.c.b16 %v4729, %v4713
    %v6602 = vpack.c.b16 %v4746, %v4730
    %v6603 = vpack.c.b16 %v4747, %v4731
    %v6604 = vpack.c.b16 %v4748, %v4732
    %v6605 = vpack.c.b16 %v4749, %v4733
    %v6606 = vpack.c.b16 %v4750, %v4734
    %v6607 = vpack.c.b16 %v4751, %v4735
    %v6608 = vpack.c.b16 %v4752, %v4736
    %v6609 = vpack.c.b16 %v4753, %v4737
    %v6610 = vpack.c.b16 %v4754, %v4738
    %v6611 = vpack.c.b16 %v4755, %v4739
    %v6612 = vpack.c.b16 %v4756, %v4740
    %v6613 = vpack.c.b16 %v4757, %v4741
    %v6614 = vpack.c.b16 %v4758, %v4742
    %v6615 = vpack.c.b16 %v4759, %v4743
    %v6616 = vpack.c.b16 %v4760, %v4744
    %v6617 = vpack.c.b16 %v4761, %v4745
    %v6618 = vpack.c.b16 %v4778, %v4762
    %v6619 = vpack.c.b16 %v4779, %v4763
    %v6620 = vpack.c.b16 %v4780, %v4764
    %v6621 = vpack.c.b16 %v4781, %v4765
    %v6622 = vpack.c.b16 %v4782, %v4766
    %v6623 = vpack.c.b16 %v4783, %v4767
    %v6624 = vpack.c.b16 %v4784, %v4768
    %v6625 = vpack.c.b16 %v4785, %v4769
    %v6626 = vpack.c.b16 %v4786, %v4770
    %v6627 = vpack.c.b16 %v4787, %v4771
    %v6628 = vpack.c.b16 %v4788, %v4772
    %v6629 = vpack.c.b16 %v4789, %v4773
    %v6630 = vpack.c.b16 %v4790, %v4774
    %v6631 = vpack.c.b16 %v4791, %v4775
    %v6632 = vpack.c.b16 %v4792, %v4776
    %v6633 = vpack.c.b16 %v4793, %v4777
    %v6634 = vpack.c.b16 %v4810, %v4794
    %v6635 = vpack.c.b16 %v4811, %v4795
    %v6636 = vpack.c.b16 %v4812, %v4796
    %v6637 = vpack.c.b16 %v4813, %v4797
    %v6638 = vpack.c.b16 %v4814, %v4798
    %v6639 = vpack.c.b16 %v4815, %v4799
    %v6640 = vpack.c.b16 %v4816, %v4800
    %v6641 = vpack.c.b16 %v4817, %v4801
    %v6642 = vpack.c.b16 %v4818, %v4802
    %v6643 = vpack.c.b16 %v4819, %v4803
    %v6644 = vpack.c.b16 %v4820, %v4804
    %v6645 = vpack.c.b16 %v4821, %v4805
    %v6646 = vpack.c.b16 %v4822, %v4806
    %v6647 = vpack.c.b16 %v4823, %v4807
    %v6648 = vpack.c.b16 %v4824, %v4808
    %v6649 = vpack.c.b16 %v4825, %v4809
    %v6650 = vpack.c.b16 %v4842, %v4826
    %v6651 = vpack.c.b16 %v4843, %v4827
    %v6652 = vpack.c.b16 %v4844, %v4828
    %v6653 = vpack.c.b16 %v4845, %v4829
    %v6654 = vpack.c.b16 %v4846, %v4830
    %v6655 = vpack.c.b16 %v4847, %v4831
    %v6656 = vpack.c.b16 %v4848, %v4832
    %v6657 = vpack.c.b16 %v4849, %v4833
    %v6658 = vpack.c.b16 %v4850, %v4834
    %v6659 = vpack.c.b16 %v4851, %v4835
    %v6660 = vpack.c.b16 %v4852, %v4836
    %v6661 = vpack.c.b16 %v4853, %v4837
    %v6662 = vpack.c.b16 %v4854, %v4838
    %v6663 = vpack.c.b16 %v4855, %v4839
    %v6664 = vpack.c.b16 %v4856, %v4840
    %v6665 = vpack.c.b16 %v4857, %v4841
    %v6666 = vpack.c.b16 %v4874, %v4858
    %v6667 = vpack.c.b16 %v4875, %v4859
    %v6668 = vpack.c.b16 %v4876, %v4860
    %v6669 = vpack.c.b16 %v4877, %v4861
    %v6670 = vpack.c.b16 %v4878, %v4862
    %v6671 = vpack.c.b16 %v4879, %v4863
    %v6672 = vpack.c.b16 %v4880, %v4864
    %v6673 = vpack.c.b16 %v4881, %v4865
    %v6674 = vpack.c.b16 %v4882, %v4866
    %v6675 = vpack.c.b16 %v4883, %v4867
    %v6676 = vpack.c.b16 %v4884, %v4868
    %v6677 = vpack.c.b16 %v4885, %v4869
    %v6678 = vpack.c.b16 %v4886, %v4870
    %v6679 = vpack.c.b16 %v4887, %v4871
    %v6680 = vpack.c.b16 %v4888, %v4872
    %v6681 = vpack.c.b16 %v4889, %v4873
    %v6682 = vpack.c.b16 %v4906, %v4890
    %v6683 = vpack.c.b16 %v4907, %v4891
    %v6684 = vpack.c.b16 %v4908, %v4892
    %v6685 = vpack.c.b16 %v4909, %v4893
    %v6686 = vpack.c.b16 %v4910, %v4894
    %v6687 = vpack.c.b16 %v4911, %v4895
    %v6688 = vpack.c.b16 %v4912, %v4896
    %v6689 = vpack.c.b16 %v4913, %v4897
    %v6690 = vpack.c.b16 %v4914, %v4898
    %v6691 = vpack.c.b16 %v4915, %v4899
    %v6692 = vpack.c.b16 %v4916, %v4900
    %v6693 = vpack.c.b16 %v4917, %v4901
    %v6694 = vpack.c.b16 %v4918, %v4902
    %v6695 = vpack.c.b16 %v4919, %v4903
    %v6696 = vpack.c.b16 %v4920, %v4904
    %v6697 = vpack.c.b16 %v4921, %v4905
    %v6698 = vpack.c.b16 %v4938, %v4922
    %v6699 = vpack.c.b16 %v4939, %v4923
    %v6700 = vpack.c.b16 %v4940, %v4924
    %v6701 = vpack.c.b16 %v4941, %v4925
    %v6702 = vpack.c.b16 %v4942, %v4926
    %v6703 = vpack.c.b16 %v4943, %v4927
    %v6704 = vpack.c.b16 %v4944, %v4928
    %v6705 = vpack.c.b16 %v4945, %v4929
    %v6706 = vpack.c.b16 %v4946, %v4930
    %v6707 = vpack.c.b16 %v4947, %v4931
    %v6708 = vpack.c.b16 %v4948, %v4932
    %v6709 = vpack.c.b16 %v4949, %v4933
    %v6710 = vpack.c.b16 %v4950, %v4934
    %v6711 = vpack.c.b16 %v4951, %v4935
    %v6712 = vpack.c.b16 %v4952, %v4936
    %v6713 = vpack.c.b16 %v4953, %v4937
    %v6714 = vpack.c.b16 %v4970, %v4954
    %v6715 = vpack.c.b16 %v4971, %v4955
    %v6716 = vpack.c.b16 %v4972, %v4956
    %v6717 = vpack.c.b16 %v4973, %v4957
    %v6718 = vpack.c.b16 %v4974, %v4958
    %v6719 = vpack.c.b16 %v4975, %v4959
    %v6720 = vpack.c.b16 %v4976, %v4960
    %v6721 = vpack.c.b16 %v4977, %v4961
    %v6722 = vpack.c.b16 %v4978, %v4962
    %v6723 = vpack.c.b16 %v4979, %v4963
    %v6724 = vpack.c.b16 %v4980, %v4964
    %v6725 = vpack.c.b16 %v4981, %v4965
    %v6726 = vpack.c.b16 %v4982, %v4966
    %v6727 = vpack.c.b16 %v4983, %v4967
    %v6728 = vpack.c.b16 %v4984, %v4968
    %v6729 = vpack.c.b16 %v4985, %v4969
    %v6730 = vpack.c.b16 %v5002, %v4986
    %v6731 = vpack.c.b16 %v5003, %v4987
    %v6732 = vpack.c.b16 %v5004, %v4988
    %v6733 = vpack.c.b16 %v5005, %v4989
    %v6734 = vpack.c.b16 %v5006, %v4990
    %v6735 = vpack.c.b16 %v5007, %v4991
    %v6736 = vpack.c.b16 %v5008, %v4992
    %v6737 = vpack.c.b16 %v5009, %v4993
    %v6738 = vpack.c.b16 %v5010, %v4994
    %v6739 = vpack.c.b16 %v5011, %v4995
    %v6740 = vpack.c.b16 %v5012, %v4996
    %v6741 = vpack.c.b16 %v5013, %v4997
    %v6742 = vpack.c.b16 %v5014, %v4998
    %v6743 = vpack.c.b16 %v5015, %v4999
    %v6744 = vpack.c.b16 %v5016, %v5000
    %v6745 = vpack.c.b16 %v5017, %v5001
    %v6746 = vpack.c.b16 %v5034, %v5018
    %v6747 = vpack.c.b16 %v5035, %v5019
    %v6748 = vpack.c.b16 %v5036, %v5020
    %v6749 = vpack.c.b16 %v5037, %v5021
    %v6750 = vpack.c.b16 %v5038, %v5022
    %v6751 = vpack.c.b16 %v5039, %v5023
    %v6752 = vpack.c.b16 %v5040, %v5024
    %v6753 = vpack.c.b16 %v5041, %v5025
    %v6754 = vpack.c.b16 %v5042, %v5026
    %v6755 = vpack.c.b16 %v5043, %v5027
    %v6756 = vpack.c.b16 %v5044, %v5028
    %v6757 = vpack.c.b16 %v5045, %v5029
    %v6758 = vpack.c.b16 %v5046, %v5030
    %v6759 = vpack.c.b16 %v5047, %v5031
    %v6760 = vpack.c.b16 %v5048, %v5032
    %v6761 = vpack.c.b16 %v5049, %v5033
    %v6762 = vpack.c.b16 %v5066, %v5050
    %v6763 = vpack.c.b16 %v5067, %v5051
    %v6764 = vpack.c.b16 %v5068, %v5052
    %v6765 = vpack.c.b16 %v5069, %v5053
    %v6766 = vpack.c.b16 %v5070, %v5054
    %v6767 = vpack.c.b16 %v5071, %v5055
    %v6768 = vpack.c.b16 %v5072, %v5056
    %v6769 = vpack.c.b16 %v5073, %v5057
    %v6770 = vpack.c.b16 %v5074, %v5058
    %v6771 = vpack.c.b16 %v5075, %v5059
    %v6772 = vpack.c.b16 %v5076, %v5060
    %v6773 = vpack.c.b16 %v5077, %v5061
    %v6774 = vpack.c.b16 %v5078, %v5062
    %v6775 = vpack.c.b16 %v5079, %v5063
    %v6776 = vpack.c.b16 %v5080, %v5064
    %v6777 = vpack.c.b16 %v5081, %v5065
    %v6778 = vpack.c.b16 %v5098, %v5082
    %v6779 = vpack.c.b16 %v5099, %v5083
    %v6780 = vpack.c.b16 %v5100, %v5084
    %v6781 = vpack.c.b16 %v5101, %v5085
    %v6782 = vpack.c.b16 %v5102, %v5086
    %v6783 = vpack.c.b16 %v5103, %v5087
    %v6784 = vpack.c.b16 %v5104, %v5088
    %v6785 = vpack.c.b16 %v5105, %v5089
    %v6786 = vpack.c.b16 %v5106, %v5090
    %v6787 = vpack.c.b16 %v5107, %v5091
    %v6788 = vpack.c.b16 %v5108, %v5092
    %v6789 = vpack.c.b16 %v5109, %v5093
    %v6790 = vpack.c.b16 %v5110, %v5094
    %v6791 = vpack.c.b16 %v5111, %v5095
    %v6792 = vpack.c.b16 %v5112, %v5096
    %v6793 = vpack.c.b16 %v5113, %v5097
    %v6794 = vpack.c.b16 %v5130, %v5114
    %v6795 = vpack.c.b16 %v5131, %v5115
    %v6796 = vpack.c.b16 %v5132, %v5116
    %v6797 = vpack.c.b16 %v5133, %v5117
    %v6798 = vpack.c.b16 %v5134, %v5118
    %v6799 = vpack.c.b16 %v5135, %v5119
    %v6800 = vpack.c.b16 %v5136, %v5120
    %v6801 = vpack.c.b16 %v5137, %v5121
    %v6802 = vpack.c.b16 %v5138, %v5122
    %v6803 = vpack.c.b16 %v5139, %v5123
    %v6804 = vpack.c.b16 %v5140, %v5124
    %v6805 = vpack.c.b16 %v5141, %v5125
    %v6806 = vpack.c.b16 %v5142, %v5126
    %v6807 = vpack.c.b16 %v5143, %v5127
    %v6808 = vpack.c.b16 %v5144, %v5128
    %v6809 = vpack.c.b16 %v5145, %v5129
    %v6810 = vpack.c.b16 %v5162, %v5146
    %v6811 = vpack.c.b16 %v5163, %v5147
    %v6812 = vpack.c.b16 %v5164, %v5148
    %v6813 = vpack.c.b16 %v5165, %v5149
    %v6814 = vpack.c.b16 %v5166, %v5150
    %v6815 = vpack.c.b16 %v5167, %v5151
    %v6816 = vpack.c.b16 %v5168, %v5152
    %v6817 = vpack.c.b16 %v5169, %v5153
    %v6818 = vpack.c.b16 %v5170, %v5154
    %v6819 = vpack.c.b16 %v5171, %v5155
    %v6820 = vpack.c.b16 %v5172, %v5156
    %v6821 = vpack.c.b16 %v5173, %v5157
    %v6822 = vpack.c.b16 %v5174, %v5158
    %v6823 = vpack.c.b16 %v5175, %v5159
    %v6824 = vpack.c.b16 %v5176, %v5160
    %v6825 = vpack.c.b16 %v5177, %v5161
    %v6826 = vpack.c.b16 %v5194, %v5178
    %v6827 = vpack.c.b16 %v5195, %v5179
    %v6828 = vpack.c.b16 %v5196, %v5180
    %v6829 = vpack.c.b16 %v5197, %v5181
    %v6830 = vpack.c.b16 %v5198, %v5182
    %v6831 = vpack.c.b16 %v5199, %v5183
    %v6832 = vpack.c.b16 %v5200, %v5184
    %v6833 = vpack.c.b16 %v5201, %v5185
    %v6834 = vpack.c.b16 %v5202, %v5186
    %v6835 = vpack.c.b16 %v5203, %v5187
    %v6836 = vpack.c.b16 %v5204, %v5188
    %v6837 = vpack.c.b16 %v5205, %v5189
    %v6838 = vpack.c.b16 %v5206, %v5190
    %v6839 = vpack.c.b16 %v5207, %v5191
    %v6840 = vpack.c.b16 %v5208, %v5192
    %v6841 = vpack.c.b16 %v5209, %v5193
    %v6842 = vpack.c.b16 %v5226, %v5210
    %v6843 = vpack.c.b16 %v5227, %v5211
    %v6844 = vpack.c.b16 %v5228, %v5212
    %v6845 = vpack.c.b16 %v5229, %v5213
    %v6846 = vpack.c.b16 %v5230, %v5214
    %v6847 = vpack.c.b16 %v5231, %v5215
    %v6848 = vpack.c.b16 %v5232, %v5216
    %v6849 = vpack.c.b16 %v5233, %v5217
    %v6850 = vpack.c.b16 %v5234, %v5218
    %v6851 = vpack.c.b16 %v5235, %v5219
    %v6852 = vpack.c.b16 %v5236, %v5220
    %v6853 = vpack.c.b16 %v5237, %v5221
    %v6854 = vpack.c.b16 %v5238, %v5222
    %v6855 = vpack.c.b16 %v5239, %v5223
    %v6856 = vpack.c.b16 %v5240, %v5224
    %v6857 = vpack.c.b16 %v5241, %v5225
    %v6858 = vpack.c.b16 %v5258, %v5242
    %v6859 = vpack.c.b16 %v5259, %v5243
    %v6860 = vpack.c.b16 %v5260, %v5244
    %v6861 = vpack.c.b16 %v5261, %v5245
    %v6862 = vpack.c.b16 %v5262, %v5246
    %v6863 = vpack.c.b16 %v5263, %v5247
    %v6864 = vpack.c.b16 %v5264, %v5248
    %v6865 = vpack.c.b16 %v5265, %v5249
    %v6866 = vpack.c.b16 %v5266, %v5250
    %v6867 = vpack.c.b16 %v5267, %v5251
    %v6868 = vpack.c.b16 %v5268, %v5252
    %v6869 = vpack.c.b16 %v5269, %v5253
    %v6870 = vpack.c.b16 %v5270, %v5254
    %v6871 = vpack.c.b16 %v5271, %v5255
    %v6872 = vpack.c.b16 %v5272, %v5256
    %v6873 = vpack.c.b16 %v5273, %v5257
    %v6874 = vpack.c.b16 %v5290, %v5274
    %v6875 = vpack.c.b16 %v5291, %v5275
    %v6876 = vpack.c.b16 %v5292, %v5276
    %v6877 = vpack.c.b16 %v5293, %v5277
    %v6878 = vpack.c.b16 %v5294, %v5278
    %v6879 = vpack.c.b16 %v5295, %v5279
    %v6880 = vpack.c.b16 %v5296, %v5280
    %v6881 = vpack.c.b16 %v5297, %v5281
    %v6882 = vpack.c.b16 %v5298, %v5282
    %v6883 = vpack.c.b16 %v5299, %v5283
    %v6884 = vpack.c.b16 %v5300, %v5284
    %v6885 = vpack.c.b16 %v5301, %v5285
    %v6886 = vpack.c.b16 %v5302, %v5286
    %v6887 = vpack.c.b16 %v5303, %v5287
    %v6888 = vpack.c.b16 %v5304, %v5288
    %v6889 = vpack.c.b16 %v5305, %v5289
    %v6890 = vpack.c.b16 %v5322, %v5306
    %v6891 = vpack.c.b16 %v5323, %v5307
    %v6892 = vpack.c.b16 %v5324, %v5308
    %v6893 = vpack.c.b16 %v5325, %v5309
    %v6894 = vpack.c.b16 %v5326, %v5310
    %v6895 = vpack.c.b16 %v5327, %v5311
    %v6896 = vpack.c.b16 %v5328, %v5312
    %v6897 = vpack.c.b16 %v5329, %v5313
    %v6898 = vpack.c.b16 %v5330, %v5314
    %v6899 = vpack.c.b16 %v5331, %v5315
    %v6900 = vpack.c.b16 %v5332, %v5316
    %v6901 = vpack.c.b16 %v5333, %v5317
    %v6902 = vpack.c.b16 %v5334, %v5318
    %v6903 = vpack.c.b16 %v5335, %v5319
    %v6904 = vpack.c.b16 %v5336, %v5320
    %v6905 = vpack.c.b16 %v5337, %v5321
    %v6906 = vpack.c.b16 %v5354, %v5338
    %v6907 = vpack.c.b16 %v5355, %v5339
    %v6908 = vpack.c.b16 %v5356, %v5340
    %v6909 = vpack.c.b16 %v5357, %v5341
    %v6910 = vpack.c.b16 %v5358, %v5342
    %v6911 = vpack.c.b16 %v5359, %v5343
    %v6912 = vpack.c.b16 %v5360, %v5344
    %v6913 = vpack.c.b16 %v5361, %v5345
    %v6914 = vpack.c.b16 %v5362, %v5346
    %v6915 = vpack.c.b16 %v5363, %v5347
    %v6916 = vpack.c.b16 %v5364, %v5348
    %v6917 = vpack.c.b16 %v5365, %v5349
    %v6918 = vpack.c.b16 %v5366, %v5350
    %v6919 = vpack.c.b16 %v5367, %v5351
    %v6920 = vpack.c.b16 %v5368, %v5352
    %v6921 = vpack.c.b16 %v5369, %v5353
    %v6922 = vpack.c.b16 %v5386, %v5370
    %v6923 = vpack.c.b16 %v5387, %v5371
    %v6924 = vpack.c.b16 %v5388, %v5372
    %v6925 = vpack.c.b16 %v5389, %v5373
    %v6926 = vpack.c.b16 %v5390, %v5374
    %v6927 = vpack.c.b16 %v5391, %v5375
    %v6928 = vpack.c.b16 %v5392, %v5376
    %v6929 = vpack.c.b16 %v5393, %v5377
    %v6930 = vpack.c.b16 %v5394, %v5378
    %v6931 = vpack.c.b16 %v5395, %v5379
    %v6932 = vpack.c.b16 %v5396, %v5380
    %v6933 = vpack.c.b16 %v5397, %v5381
    %v6934 = vpack.c.b16 %v5398, %v5382
    %v6935 = vpack.c.b16 %v5399, %v5383
    %v6936 = vpack.c.b16 %v5400, %v5384
    %v6937 = vpack.c.b16 %v5401, %v5385
    %v6938 = vpack.c.b16 %v5418, %v5402
    %v6939 = vpack.c.b16 %v5419, %v5403
    %v6940 = vpack.c.b16 %v5420, %v5404
    %v6941 = vpack.c.b16 %v5421, %v5405
    %v6942 = vpack.c.b16 %v5422, %v5406
    %v6943 = vpack.c.b16 %v5423, %v5407
    %v6944 = vpack.c.b16 %v5424, %v5408
    %v6945 = vpack.c.b16 %v5425, %v5409
    %v6946 = vpack.c.b16 %v5426, %v5410
    %v6947 = vpack.c.b16 %v5427, %v5411
    %v6948 = vpack.c.b16 %v5428, %v5412
    %v6949 = vpack.c.b16 %v5429, %v5413
    %v6950 = vpack.c.b16 %v5430, %v5414
    %v6951 = vpack.c.b16 %v5431, %v5415
    %v6952 = vpack.c.b16 %v5432, %v5416
    %v6953 = vpack.c.b16 %v5433, %v5417
    %v6954 = vpack.c.b16 %v5450, %v5434
    %v6955 = vpack.c.b16 %v5451, %v5435
    %v6956 = vpack.c.b16 %v5452, %v5436
    %v6957 = vpack.c.b16 %v5453, %v5437
    %v6958 = vpack.c.b16 %v5454, %v5438
    %v6959 = vpack.c.b16 %v5455, %v5439
    %v6960 = vpack.c.b16 %v5456, %v5440
    %v6961 = vpack.c.b16 %v5457, %v5441
    %v6962 = vpack.c.b16 %v5458, %v5442
    %v6963 = vpack.c.b16 %v5459, %v5443
    %v6964 = vpack.c.b16 %v5460, %v5444
    %v6965 = vpack.c.b16 %v5461, %v5445
    %v6966 = vpack.c.b16 %v5462, %v5446
    %v6967 = vpack.c.b16 %v5463, %v5447
    %v6968 = vpack.c.b16 %v5464, %v5448
    %v6969 = vpack.c.b16 %v5465, %v5449
    %v6970 = vpack.c.b16 %v5482, %v5466
    %v6971 = vpack.c.b16 %v5483, %v5467
    %v6972 = vpack.c.b16 %v5484, %v5468
    %v6973 = vpack.c.b16 %v5485, %v5469
    %v6974 = vpack.c.b16 %v5486, %v5470
    %v6975 = vpack.c.b16 %v5487, %v5471
    %v6976 = vpack.c.b16 %v5488, %v5472
    %v6977 = vpack.c.b16 %v5489, %v5473
    %v6978 = vpack.c.b16 %v5490, %v5474
    %v6979 = vpack.c.b16 %v5491, %v5475
    %v6980 = vpack.c.b16 %v5492, %v5476
    %v6981 = vpack.c.b16 %v5493, %v5477
    %v6982 = vpack.c.b16 %v5494, %v5478
    %v6983 = vpack.c.b16 %v5495, %v5479
    %v6984 = vpack.c.b16 %v5496, %v5480
    %v6985 = vpack.c.b16 %v5497, %v5481
    %v6986 = vpack.c.b16 %v5514, %v5498
    %v6987 = vpack.c.b16 %v5515, %v5499
    %v6988 = vpack.c.b16 %v5516, %v5500
    %v6989 = vpack.c.b16 %v5517, %v5501
    %v6990 = vpack.c.b16 %v5518, %v5502
    %v6991 = vpack.c.b16 %v5519, %v5503
    %v6992 = vpack.c.b16 %v5520, %v5504
    %v6993 = vpack.c.b16 %v5521, %v5505
    %v6994 = vpack.c.b16 %v5522, %v5506
    %v6995 = vpack.c.b16 %v5523, %v5507
    %v6996 = vpack.c.b16 %v5524, %v5508
    %v6997 = vpack.c.b16 %v5525, %v5509
    %v6998 = vpack.c.b16 %v5526, %v5510
    %v6999 = vpack.c.b16 %v5527, %v5511
    %v7000 = vpack.c.b16 %v5528, %v5512
    %v7001 = vpack.c.b16 %v5529, %v5513
    %v7002 = vpack.c.b16 %v5546, %v5530
    %v7003 = vpack.c.b16 %v5547, %v5531
    %v7004 = vpack.c.b16 %v5548, %v5532
    %v7005 = vpack.c.b16 %v5549, %v5533
    %v7006 = vpack.c.b16 %v5550, %v5534
    %v7007 = vpack.c.b16 %v5551, %v5535
    %v7008 = vpack.c.b16 %v5552, %v5536
    %v7009 = vpack.c.b16 %v5553, %v5537
    %v7010 = vpack.c.b16 %v5554, %v5538
    %v7011 = vpack.c.b16 %v5555, %v5539
    %v7012 = vpack.c.b16 %v5556, %v5540
    %v7013 = vpack.c.b16 %v5557, %v5541
    %v7014 = vpack.c.b16 %v5558, %v5542
    %v7015 = vpack.c.b16 %v5559, %v5543
    %v7016 = vpack.c.b16 %v5560, %v5544
    %v7017 = vpack.c.b16 %v5561, %v5545
    %v7018 = vpack.c.b16 %v5578, %v5562
    %v7019 = vpack.c.b16 %v5579, %v5563
    %v7020 = vpack.c.b16 %v5580, %v5564
    %v7021 = vpack.c.b16 %v5581, %v5565
    %v7022 = vpack.c.b16 %v5582, %v5566
    %v7023 = vpack.c.b16 %v5583, %v5567
    %v7024 = vpack.c.b16 %v5584, %v5568
    %v7025 = vpack.c.b16 %v5585, %v5569
    %v7026 = vpack.c.b16 %v5586, %v5570
    %v7027 = vpack.c.b16 %v5587, %v5571
    %v7028 = vpack.c.b16 %v5588, %v5572
    %v7029 = vpack.c.b16 %v5589, %v5573
    %v7030 = vpack.c.b16 %v5590, %v5574
    %v7031 = vpack.c.b16 %v5591, %v5575
    %v7032 = vpack.c.b16 %v5592, %v5576
    %v7033 = vpack.c.b16 %v5593, %v5577
    %v7034 = vpack.c.b16 %v5610, %v5594
    %v7035 = vpack.c.b16 %v5611, %v5595
    %v7036 = vpack.c.b16 %v5612, %v5596
    %v7037 = vpack.c.b16 %v5613, %v5597
    %v7038 = vpack.c.b16 %v5614, %v5598
    %v7039 = vpack.c.b16 %v5615, %v5599
    %v7040 = vpack.c.b16 %v5616, %v5600
    %v7041 = vpack.c.b16 %v5617, %v5601
    %v7042 = vpack.c.b16 %v5618, %v5602
    %v7043 = vpack.c.b16 %v5619, %v5603
    %v7044 = vpack.c.b16 %v5620, %v5604
    %v7045 = vpack.c.b16 %v5621, %v5605
    %v7046 = vpack.c.b16 %v5622, %v5606
    %v7047 = vpack.c.b16 %v5623, %v5607
    %v7048 = vpack.c.b16 %v5624, %v5608
    %v7049 = vpack.c.b16 %v5625, %v5609
    %v7050 = vpack.c.b16 %v5642, %v5626
    %v7051 = vpack.c.b16 %v5643, %v5627
    %v7052 = vpack.c.b16 %v5644, %v5628
    %v7053 = vpack.c.b16 %v5645, %v5629
    %v7054 = vpack.c.b16 %v5646, %v5630
    %v7055 = vpack.c.b16 %v5647, %v5631
    %v7056 = vpack.c.b16 %v5648, %v5632
    %v7057 = vpack.c.b16 %v5649, %v5633
    %v7058 = vpack.c.b16 %v5650, %v5634
    %v7059 = vpack.c.b16 %v5651, %v5635
    %v7060 = vpack.c.b16 %v5652, %v5636
    %v7061 = vpack.c.b16 %v5653, %v5637
    %v7062 = vpack.c.b16 %v5654, %v5638
    %v7063 = vpack.c.b16 %v5655, %v5639
    %v7064 = vpack.c.b16 %v5656, %v5640
    %v7065 = vpack.c.b16 %v5657, %v5641
    %v7066 = vpack.c.b16 %v5674, %v5658
    %v7067 = vpack.c.b16 %v5675, %v5659
    %v7068 = vpack.c.b16 %v5676, %v5660
    %v7069 = vpack.c.b16 %v5677, %v5661
    %v7070 = vpack.c.b16 %v5678, %v5662
    %v7071 = vpack.c.b16 %v5679, %v5663
    %v7072 = vpack.c.b16 %v5680, %v5664
    %v7073 = vpack.c.b16 %v5681, %v5665
    %v7074 = vpack.c.b16 %v5682, %v5666
    %v7075 = vpack.c.b16 %v5683, %v5667
    %v7076 = vpack.c.b16 %v5684, %v5668
    %v7077 = vpack.c.b16 %v5685, %v5669
    %v7078 = vpack.c.b16 %v5686, %v5670
    %v7079 = vpack.c.b16 %v5687, %v5671
    %v7080 = vpack.c.b16 %v5688, %v5672
    %v7081 = vpack.c.b16 %v5689, %v5673
    %v7082 = vpack.c.b16 %v5706, %v5690
    %v7083 = vpack.c.b16 %v5707, %v5691
    %v7084 = vpack.c.b16 %v5708, %v5692
    %v7085 = vpack.c.b16 %v5709, %v5693
    %v7086 = vpack.c.b16 %v5710, %v5694
    %v7087 = vpack.c.b16 %v5711, %v5695
    %v7088 = vpack.c.b16 %v5712, %v5696
    %v7089 = vpack.c.b16 %v5713, %v5697
    %v7090 = vpack.c.b16 %v5714, %v5698
    %v7091 = vpack.c.b16 %v5715, %v5699
    %v7092 = vpack.c.b16 %v5716, %v5700
    %v7093 = vpack.c.b16 %v5717, %v5701
    %v7094 = vpack.c.b16 %v5718, %v5702
    %v7095 = vpack.c.b16 %v5719, %v5703
    %v7096 = vpack.c.b16 %v5720, %v5704
    %v7097 = vpack.c.b16 %v5721, %v5705
    %v7098 = vpack.c.b16 %v5738, %v5722
    %v7099 = vpack.c.b16 %v5739, %v5723
    %v7100 = vpack.c.b16 %v5740, %v5724
    %v7101 = vpack.c.b16 %v5741, %v5725
    %v7102 = vpack.c.b16 %v5742, %v5726
    %v7103 = vpack.c.b16 %v5743, %v5727
    %v7104 = vpack.c.b16 %v5744, %v5728
    %v7105 = vpack.c.b16 %v5745, %v5729
    %v7106 = vpack.c.b16 %v5746, %v5730
    %v7107 = vpack.c.b16 %v5747, %v5731
    %v7108 = vpack.c.b16 %v5748, %v5732
    %v7109 = vpack.c.b16 %v5749, %v5733
    %v7110 = vpack.c.b16 %v5750, %v5734
    %v7111 = vpack.c.b16 %v5751, %v5735
    %v7112 = vpack.c.b16 %v5752, %v5736
    %v7113 = vpack.c.b16 %v5753, %v5737
    %v7114 = vpack.c.b16 %v5770, %v5754
    %v7115 = vpack.c.b16 %v5771, %v5755
    %v7116 = vpack.c.b16 %v5772, %v5756
    %v7117 = vpack.c.b16 %v5773, %v5757
    %v7118 = vpack.c.b16 %v5774, %v5758
    %v7119 = vpack.c.b16 %v5775, %v5759
    %v7120 = vpack.c.b16 %v5776, %v5760
    %v7121 = vpack.c.b16 %v5777, %v5761
    %v7122 = vpack.c.b16 %v5778, %v5762
    %v7123 = vpack.c.b16 %v5779, %v5763
    %v7124 = vpack.c.b16 %v5780, %v5764
    %v7125 = vpack.c.b16 %v5781, %v5765
    %v7126 = vpack.c.b16 %v5782, %v5766
    %v7127 = vpack.c.b16 %v5783, %v5767
    %v7128 = vpack.c.b16 %v5784, %v5768
    %v7129 = vpack.c.b16 %v5785, %v5769
    %v7130 = vpack.c.b16 %v5802, %v5786
    %v7131 = vpack.c.b16 %v5803, %v5787
    %v7132 = vpack.c.b16 %v5804, %v5788
    %v7133 = vpack.c.b16 %v5805, %v5789
    %v7134 = vpack.c.b16 %v5806, %v5790
    %v7135 = vpack.c.b16 %v5807, %v5791
    %v7136 = vpack.c.b16 %v5808, %v5792
    %v7137 = vpack.c.b16 %v5809, %v5793
    %v7138 = vpack.c.b16 %v5810, %v5794
    %v7139 = vpack.c.b16 %v5811, %v5795
    %v7140 = vpack.c.b16 %v5812, %v5796
    %v7141 = vpack.c.b16 %v5813, %v5797
    %v7142 = vpack.c.b16 %v5814, %v5798
    %v7143 = vpack.c.b16 %v5815, %v5799
    %v7144 = vpack.c.b16 %v5816, %v5800
    %v7145 = vpack.c.b16 %v5817, %v5801
    %v7146 = vpack.c.b16 %v5834, %v5818
    %v7147 = vpack.c.b16 %v5835, %v5819
    %v7148 = vpack.c.b16 %v5836, %v5820
    %v7149 = vpack.c.b16 %v5837, %v5821
    %v7150 = vpack.c.b16 %v5838, %v5822
    %v7151 = vpack.c.b16 %v5839, %v5823
    %v7152 = vpack.c.b16 %v5840, %v5824
    %v7153 = vpack.c.b16 %v5841, %v5825
    %v7154 = vpack.c.b16 %v5842, %v5826
    %v7155 = vpack.c.b16 %v5843, %v5827
    %v7156 = vpack.c.b16 %v5844, %v5828
    %v7157 = vpack.c.b16 %v5845, %v5829
    %v7158 = vpack.c.b16 %v5846, %v5830
    %v7159 = vpack.c.b16 %v5847, %v5831
    %v7160 = vpack.c.b16 %v5848, %v5832
    %v7161 = vpack.c.b16 %v5849, %v5833
    %v7162 = vpack.c.b16 %v5866, %v5850
    %v7163 = vpack.c.b16 %v5867, %v5851
    %v7164 = vpack.c.b16 %v5868, %v5852
    %v7165 = vpack.c.b16 %v5869, %v5853
    %v7166 = vpack.c.b16 %v5870, %v5854
    %v7167 = vpack.c.b16 %v5871, %v5855
    %v7168 = vpack.c.b16 %v5872, %v5856
    %v7169 = vpack.c.b16 %v5873, %v5857
    %v7170 = vpack.c.b16 %v5874, %v5858
    %v7171 = vpack.c.b16 %v5875, %v5859
    %v7172 = vpack.c.b16 %v5876, %v5860
    %v7173 = vpack.c.b16 %v5877, %v5861
    %v7174 = vpack.c.b16 %v5878, %v5862
    %v7175 = vpack.c.b16 %v5879, %v5863
    %v7176 = vpack.c.b16 %v5880, %v5864
    %v7177 = vpack.c.b16 %v5881, %v5865
    %v7178 = vpack.c.b16 %v5898, %v5882
    %v7179 = vpack.c.b16 %v5899, %v5883
    %v7180 = vpack.c.b16 %v5900, %v5884
    %v7181 = vpack.c.b16 %v5901, %v5885
    %v7182 = vpack.c.b16 %v5902, %v5886
    %v7183 = vpack.c.b16 %v5903, %v5887
    %v7184 = vpack.c.b16 %v5904, %v5888
    %v7185 = vpack.c.b16 %v5905, %v5889
    %v7186 = vpack.c.b16 %v5906, %v5890
    %v7187 = vpack.c.b16 %v5907, %v5891
    %v7188 = vpack.c.b16 %v5908, %v5892
    %v7189 = vpack.c.b16 %v5909, %v5893
    %v7190 = vpack.c.b16 %v5910, %v5894
    %v7191 = vpack.c.b16 %v5911, %v5895
    %v7192 = vpack.c.b16 %v5912, %v5896
    %v7193 = vpack.c.b16 %v5913, %v5897
    %v7194 = vpack.c.b16 %v5930, %v5914
    %v7195 = vpack.c.b16 %v5931, %v5915
    %v7196 = vpack.c.b16 %v5932, %v5916
    %v7197 = vpack.c.b16 %v5933, %v5917
    %v7198 = vpack.c.b16 %v5934, %v5918
    %v7199 = vpack.c.b16 %v5935, %v5919
    %v7200 = vpack.c.b16 %v5936, %v5920
    %v7201 = vpack.c.b16 %v5937, %v5921
    %v7202 = vpack.c.b16 %v5938, %v5922
    %v7203 = vpack.c.b16 %v5939, %v5923
    %v7204 = vpack.c.b16 %v5940, %v5924
    %v7205 = vpack.c.b16 %v5941, %v5925
    %v7206 = vpack.c.b16 %v5942, %v5926
    %v7207 = vpack.c.b16 %v5943, %v5927
    %v7208 = vpack.c.b16 %v5944, %v5928
    %v7209 = vpack.c.b16 %v5945, %v5929
    %v7210 = vpack.c.b16 %v5962, %v5946
    %v7211 = vpack.c.b16 %v5963, %v5947
    %v7212 = vpack.c.b16 %v5964, %v5948
    %v7213 = vpack.c.b16 %v5965, %v5949
    %v7214 = vpack.c.b16 %v5966, %v5950
    %v7215 = vpack.c.b16 %v5967, %v5951
    %v7216 = vpack.c.b16 %v5968, %v5952
    %v7217 = vpack.c.b16 %v5969, %v5953
    %v7218 = vpack.c.b16 %v5970, %v5954
    %v7219 = vpack.c.b16 %v5971, %v5955
    %v7220 = vpack.c.b16 %v5972, %v5956
    %v7221 = vpack.c.b16 %v5973, %v5957
    %v7222 = vpack.c.b16 %v5974, %v5958
    %v7223 = vpack.c.b16 %v5975, %v5959
    %v7224 = vpack.c.b16 %v5976, %v5960
    %v7225 = vpack.c.b16 %v5977, %v5961
    %v7226 = vpack.c.b16 %v5994, %v5978
    %v7227 = vpack.c.b16 %v5995, %v5979
    %v7228 = vpack.c.b16 %v5996, %v5980
    %v7229 = vpack.c.b16 %v5997, %v5981
    %v7230 = vpack.c.b16 %v5998, %v5982
    %v7231 = vpack.c.b16 %v5999, %v5983
    %v7232 = vpack.c.b16 %v6000, %v5984
    %v7233 = vpack.c.b16 %v6001, %v5985
    %v7234 = vpack.c.b16 %v6002, %v5986
    %v7235 = vpack.c.b16 %v6003, %v5987
    %v7236 = vpack.c.b16 %v6004, %v5988
    %v7237 = vpack.c.b16 %v6005, %v5989
    %v7238 = vpack.c.b16 %v6006, %v5990
    %v7239 = vpack.c.b16 %v6007, %v5991
    %v7240 = vpack.c.b16 %v6008, %v5992
    %v7241 = vpack.c.b16 %v6009, %v5993
    %v7242 = vpack.c.b16 %v6026, %v6010
    %v7243 = vpack.c.b16 %v6027, %v6011
    %v7244 = vpack.c.b16 %v6028, %v6012
    %v7245 = vpack.c.b16 %v6029, %v6013
    %v7246 = vpack.c.b16 %v6030, %v6014
    %v7247 = vpack.c.b16 %v6031, %v6015
    %v7248 = vpack.c.b16 %v6032, %v6016
    %v7249 = vpack.c.b16 %v6033, %v6017
    %v7250 = vpack.c.b16 %v6034, %v6018
    %v7251 = vpack.c.b16 %v6035, %v6019
    %v7252 = vpack.c.b16 %v6036, %v6020
    %v7253 = vpack.c.b16 %v6037, %v6021
    %v7254 = vpack.c.b16 %v6038, %v6022
    %v7255 = vpack.c.b16 %v6039, %v6023
    %v7256 = vpack.c.b16 %v6040, %v6024
    %v7257 = vpack.c.b16 %v6041, %v6025
    %v7258 = vpack.c.b16 %v6058, %v6042
    %v7259 = vpack.c.b16 %v6059, %v6043
    %v7260 = vpack.c.b16 %v6060, %v6044
    %v7261 = vpack.c.b16 %v6061, %v6045
    %v7262 = vpack.c.b16 %v6062, %v6046
    %v7263 = vpack.c.b16 %v6063, %v6047
    %v7264 = vpack.c.b16 %v6064, %v6048
    %v7265 = vpack.c.b16 %v6065, %v6049
    %v7266 = vpack.c.b16 %v6066, %v6050
    %v7267 = vpack.c.b16 %v6067, %v6051
    %v7268 = vpack.c.b16 %v6068, %v6052
    %v7269 = vpack.c.b16 %v6069, %v6053
    %v7270 = vpack.c.b16 %v6070, %v6054
    %v7271 = vpack.c.b16 %v6071, %v6055
    %v7272 = vpack.c.b16 %v6072, %v6056
    %v7273 = vpack.c.b16 %v6073, %v6057
    %v7274 = vpack.c.b16 %v6090, %v6074
    %v7275 = vpack.c.b16 %v6091, %v6075
    %v7276 = vpack.c.b16 %v6092, %v6076
    %v7277 = vpack.c.b16 %v6093, %v6077
    %v7278 = vpack.c.b16 %v6094, %v6078
    %v7279 = vpack.c.b16 %v6095, %v6079
    %v7280 = vpack.c.b16 %v6096, %v6080
    %v7281 = vpack.c.b16 %v6097, %v6081
    %v7282 = vpack.c.b16 %v6098, %v6082
    %v7283 = vpack.c.b16 %v6099, %v6083
    %v7284 = vpack.c.b16 %v6100, %v6084
    %v7285 = vpack.c.b16 %v6101, %v6085
    %v7286 = vpack.c.b16 %v6102, %v6086
    %v7287 = vpack.c.b16 %v6103, %v6087
    %v7288 = vpack.c.b16 %v6104, %v6088
    %v7289 = vpack.c.b16 %v6105, %v6089
    %v7290 = vpack.c.b16 %v6122, %v6106
    %v7291 = vpack.c.b16 %v6123, %v6107
    %v7292 = vpack.c.b16 %v6124, %v6108
    %v7293 = vpack.c.b16 %v6125, %v6109
    %v7294 = vpack.c.b16 %v6126, %v6110
    %v7295 = vpack.c.b16 %v6127, %v6111
    %v7296 = vpack.c.b16 %v6128, %v6112
    %v7297 = vpack.c.b16 %v6129, %v6113
    %v7298 = vpack.c.b16 %v6130, %v6114
    %v7299 = vpack.c.b16 %v6131, %v6115
    %v7300 = vpack.c.b16 %v6132, %v6116
    %v7301 = vpack.c.b16 %v6133, %v6117
    %v7302 = vpack.c.b16 %v6134, %v6118
    %v7303 = vpack.c.b16 %v6135, %v6119
    %v7304 = vpack.c.b16 %v6136, %v6120
    %v7305 = vpack.c.b16 %v6137, %v6121
    %v7306 = vpack.c.b16 %v6154, %v6138
    %v7307 = vpack.c.b16 %v6155, %v6139
    %v7308 = vpack.c.b16 %v6156, %v6140
    %v7309 = vpack.c.b16 %v6157, %v6141
    %v7310 = vpack.c.b16 %v6158, %v6142
    %v7311 = vpack.c.b16 %v6159, %v6143
    %v7312 = vpack.c.b16 %v6160, %v6144
    %v7313 = vpack.c.b16 %v6161, %v6145
    %v7314 = vpack.c.b16 %v6162, %v6146
    %v7315 = vpack.c.b16 %v6163, %v6147
    %v7316 = vpack.c.b16 %v6164, %v6148
    %v7317 = vpack.c.b16 %v6165, %v6149
    %v7318 = vpack.c.b16 %v6166, %v6150
    %v7319 = vpack.c.b16 %v6167, %v6151
    %v7320 = vpack.c.b16 %v6168, %v6152
    %v7321 = vpack.c.b16 %v6169, %v6153
    %v7322 = vpack.c.b16 %v6186, %v6170
    %v7323 = vpack.c.b16 %v6187, %v6171
    %v7324 = vpack.c.b16 %v6188, %v6172
    %v7325 = vpack.c.b16 %v6189, %v6173
    %v7326 = vpack.c.b16 %v6190, %v6174
    %v7327 = vpack.c.b16 %v6191, %v6175
    %v7328 = vpack.c.b16 %v6192, %v6176
    %v7329 = vpack.c.b16 %v6193, %v6177
    %v7330 = vpack.c.b16 %v6194, %v6178
    %v7331 = vpack.c.b16 %v6195, %v6179
    %v7332 = vpack.c.b16 %v6196, %v6180
    %v7333 = vpack.c.b16 %v6197, %v6181
    %v7334 = vpack.c.b16 %v6198, %v6182
    %v7335 = vpack.c.b16 %v6199, %v6183
    %v7336 = vpack.c.b16 %v6200, %v6184
    %v7337 = vpack.c.b16 %v6201, %v6185
    %v7338 = vpack.c.b16 %v6218, %v6202
    %v7339 = vpack.c.b16 %v6219, %v6203
    %v7340 = vpack.c.b16 %v6220, %v6204
    %v7341 = vpack.c.b16 %v6221, %v6205
    %v7342 = vpack.c.b16 %v6222, %v6206
    %v7343 = vpack.c.b16 %v6223, %v6207
    %v7344 = vpack.c.b16 %v6224, %v6208
    %v7345 = vpack.c.b16 %v6225, %v6209
    %v7346 = vpack.c.b16 %v6226, %v6210
    %v7347 = vpack.c.b16 %v6227, %v6211
    %v7348 = vpack.c.b16 %v6228, %v6212
    %v7349 = vpack.c.b16 %v6229, %v6213
    %v7350 = vpack.c.b16 %v6230, %v6214
    %v7351 = vpack.c.b16 %v6231, %v6215
    %v7352 = vpack.c.b16 %v6232, %v6216
    %v7353 = vpack.c.b16 %v6233, %v6217
    %v7354 = vpack.c.b16 %v6250, %v6234
    %v7355 = vpack.c.b16 %v6251, %v6235
    %v7356 = vpack.c.b16 %v6252, %v6236
    %v7357 = vpack.c.b16 %v6253, %v6237
    %v7358 = vpack.c.b16 %v6254, %v6238
    %v7359 = vpack.c.b16 %v6255, %v6239
    %v7360 = vpack.c.b16 %v6256, %v6240
    %v7361 = vpack.c.b16 %v6257, %v6241
    %v7362 = vpack.c.b16 %v6258, %v6242
    %v7363 = vpack.c.b16 %v6259, %v6243
    %v7364 = vpack.c.b16 %v6260, %v6244
    %v7365 = vpack.c.b16 %v6261, %v6245
    %v7366 = vpack.c.b16 %v6262, %v6246
    %v7367 = vpack.c.b16 %v6263, %v6247
    %v7368 = vpack.c.b16 %v6264, %v6248
    %v7369 = vpack.c.b16 %v6265, %v6249
    %v7370 = vpack.c.b16 %v6282, %v6266
    %v7371 = vpack.c.b16 %v6283, %v6267
    %v7372 = vpack.c.b16 %v6284, %v6268
    %v7373 = vpack.c.b16 %v6285, %v6269
    %v7374 = vpack.c.b16 %v6286, %v6270
    %v7375 = vpack.c.b16 %v6287, %v6271
    %v7376 = vpack.c.b16 %v6288, %v6272
    %v7377 = vpack.c.b16 %v6289, %v6273
    %v7378 = vpack.c.b16 %v6290, %v6274
    %v7379 = vpack.c.b16 %v6291, %v6275
    %v7380 = vpack.c.b16 %v6292, %v6276
    %v7381 = vpack.c.b16 %v6293, %v6277
    %v7382 = vpack.c.b16 %v6294, %v6278
    %v7383 = vpack.c.b16 %v6295, %v6279
    %v7384 = vpack.c.b16 %v6296, %v6280
    %v7385 = vpack.c.b16 %v6297, %v6281
    %v7386 = vpack.c.b16 %v6314, %v6298
    %v7387 = vpack.c.b16 %v6315, %v6299
    %v7388 = vpack.c.b16 %v6316, %v6300
    %v7389 = vpack.c.b16 %v6317, %v6301
    %v7390 = vpack.c.b16 %v6318, %v6302
    %v7391 = vpack.c.b16 %v6319, %v6303
    %v7392 = vpack.c.b16 %v6320, %v6304
    %v7393 = vpack.c.b16 %v6321, %v6305
    %v7394 = vpack.c.b16 %v6322, %v6306
    %v7395 = vpack.c.b16 %v6323, %v6307
    %v7396 = vpack.c.b16 %v6324, %v6308
    %v7397 = vpack.c.b16 %v6325, %v6309
    %v7398 = vpack.c.b16 %v6326, %v6310
    %v7399 = vpack.c.b16 %v6327, %v6311
    %v7400 = vpack.c.b16 %v6328, %v6312
    %v7401 = vpack.c.b16 %v6329, %v6313
    %v7402 = vpack.c.b16 %v6346, %v6330
    %v7403 = vpack.c.b16 %v6347, %v6331
    %v7404 = vpack.c.b16 %v6348, %v6332
    %v7405 = vpack.c.b16 %v6349, %v6333
    %v7406 = vpack.c.b16 %v6350, %v6334
    %v7407 = vpack.c.b16 %v6351, %v6335
    %v7408 = vpack.c.b16 %v6352, %v6336
    %v7409 = vpack.c.b16 %v6353, %v6337
    %v7410 = vpack.c.b16 %v6354, %v6338
    %v7411 = vpack.c.b16 %v6355, %v6339
    %v7412 = vpack.c.b16 %v6356, %v6340
    %v7413 = vpack.c.b16 %v6357, %v6341
    %v7414 = vpack.c.b16 %v6358, %v6342
    %v7415 = vpack.c.b16 %v6359, %v6343
    %v7416 = vpack.c.b16 %v6360, %v6344
    %v7417 = vpack.c.b16 %v6361, %v6345
    %v7418 = vpack.c.b16 %v6378, %v6362
    %v7419 = vpack.c.b16 %v6379, %v6363
    %v7420 = vpack.c.b16 %v6380, %v6364
    %v7421 = vpack.c.b16 %v6381, %v6365
    %v7422 = vpack.c.b16 %v6382, %v6366
    %v7423 = vpack.c.b16 %v6383, %v6367
    %v7424 = vpack.c.b16 %v6384, %v6368
    %v7425 = vpack.c.b16 %v6385, %v6369
    %v7426 = vpack.c.b16 %v6386, %v6370
    %v7427 = vpack.c.b16 %v6387, %v6371
    %v7428 = vpack.c.b16 %v6388, %v6372
    %v7429 = vpack.c.b16 %v6389, %v6373
    %v7430 = vpack.c.b16 %v6390, %v6374
    %v7431 = vpack.c.b16 %v6391, %v6375
    %v7432 = vpack.c.b16 %v6392, %v6376
    %v7433 = vpack.c.b16 %v6393, %v6377
    %v7434 = vpack.c.b16 %v6410, %v6394
    %v7435 = vpack.c.b16 %v6411, %v6395
    %v7436 = vpack.c.b16 %v6412, %v6396
    %v7437 = vpack.c.b16 %v6413, %v6397
    %v7438 = vpack.c.b16 %v6414, %v6398
    %v7439 = vpack.c.b16 %v6415, %v6399
    %v7440 = vpack.c.b16 %v6416, %v6400
    %v7441 = vpack.c.b16 %v6417, %v6401
    %v7442 = vpack.c.b16 %v6418, %v6402
    %v7443 = vpack.c.b16 %v6419, %v6403
    %v7444 = vpack.c.b16 %v6420, %v6404
    %v7445 = vpack.c.b16 %v6421, %v6405
    %v7446 = vpack.c.b16 %v6422, %v6406
    %v7447 = vpack.c.b16 %v6423, %v6407
    %v7448 = vpack.c.b16 %v6424, %v6408
    %v7449 = vpack.c.b16 %v6425, %v6409
    %8474 = vmatpush.bf16.msra.mxu0 %v6538
    %8475 = vmatpush.bf16.msra.mxu0 %v6522
    %8476 = vmatpush.bf16.msra.mxu0 %v6506
    %8477 = vmatpush.bf16.msra.mxu0 %v6490
    %8478 = vmatpush.bf16.msra.mxu0 %v6474
    %8479 = vmatpush.bf16.msra.mxu0 %v6458
    %8480 = vmatpush.bf16.msra.mxu0 %v6442
    %8481 = vmatpush.bf16.msra.mxu0 %v6426
    %8482 = vmatmul.bf16.gmra.mxu0 %v2286
    %v8483 = vpop.f32.mrf.mxu0
    %v8484 = vadd.f32 %v3322, %v8483
    %v8485 = vpop.f32.mrf.mxu0
    %v8486 = vadd.f32 %v3322, %v8485
    %8487 = vdwg.mxu0
    %8488 = vmatpush.bf16.msra.mxu0 %v6666
    %8489 = vmatpush.bf16.msra.mxu0 %v6650
    %8490 = vmatpush.bf16.msra.mxu0 %v6634
    %8491 = vmatpush.bf16.msra.mxu0 %v6618
    %8492 = vmatpush.bf16.msra.mxu0 %v6602
    %8493 = vmatpush.bf16.msra.mxu0 %v6586
    %8494 = vmatpush.bf16.msra.mxu0 %v6570
    %8495 = vmatpush.bf16.msra.mxu0 %v6554
    %8496 = vmatmul.bf16.gmra.mxu0 %v2287
    %v8497 = vpop.f32.mrf.mxu0
    %v8498 = vadd.f32 %v8484, %v8497
    %v8499 = vpop.f32.mrf.mxu0
    %v8500 = vadd.f32 %v8486, %v8499
    %8501 = vdwg.mxu0
    %8502 = vmatpush.bf16.msra.mxu0 %v6794
    %8503 = vmatpush.bf16.msra.mxu0 %v6778
    %8504 = vmatpush.bf16.msra.mxu0 %v6762
    %8505 = vmatpush.bf16.msra.mxu0 %v6746
    %8506 = vmatpush.bf16.msra.mxu0 %v6730
    %8507 = vmatpush.bf16.msra.mxu0 %v6714
    %8508 = vmatpush.bf16.msra.mxu0 %v6698
    %8509 = vmatpush.bf16.msra.mxu0 %v6682
    %8510 = vmatmul.bf16.gmra.mxu0 %v2288
    %v8511 = vpop.f32.mrf.mxu0
    %v8512 = vadd.f32 %v8498, %v8511
    %v8513 = vpop.f32.mrf.mxu0
    %v8514 = vadd.f32 %v8500, %v8513
    %8515 = vdwg.mxu0
    %8516 = vmatpush.bf16.msra.mxu0 %v6922
    %8517 = vmatpush.bf16.msra.mxu0 %v6906
    %8518 = vmatpush.bf16.msra.mxu0 %v6890
    %8519 = vmatpush.bf16.msra.mxu0 %v6874
    %8520 = vmatpush.bf16.msra.mxu0 %v6858
    %8521 = vmatpush.bf16.msra.mxu0 %v6842
    %8522 = vmatpush.bf16.msra.mxu0 %v6826
    %8523 = vmatpush.bf16.msra.mxu0 %v6810
    %8524 = vmatmul.bf16.gmra.mxu0 %v2289
    %v8525 = vpop.f32.mrf.mxu0
    %v8526 = vadd.f32 %v8512, %v8525
    %v8527 = vpop.f32.mrf.mxu0
    %v8528 = vadd.f32 %v8514, %v8527
    %8529 = vdwg.mxu0
    %8530 = vmatpush.bf16.msra.mxu0 %v7050
    %8531 = vmatpush.bf16.msra.mxu0 %v7034
    %8532 = vmatpush.bf16.msra.mxu0 %v7018
    %8533 = vmatpush.bf16.msra.mxu0 %v7002
    %8534 = vmatpush.bf16.msra.mxu0 %v6986
    %8535 = vmatpush.bf16.msra.mxu0 %v6970
    %8536 = vmatpush.bf16.msra.mxu0 %v6954
    %8537 = vmatpush.bf16.msra.mxu0 %v6938
    %8538 = vmatmul.bf16.gmra.mxu0 %v2290
    %v8539 = vpop.f32.mrf.mxu0
    %v8540 = vadd.f32 %v8526, %v8539
    %v8541 = vpop.f32.mrf.mxu0
    %v8542 = vadd.f32 %v8528, %v8541
    %8543 = vdwg.mxu0
    %8544 = vmatpush.bf16.msra.mxu0 %v7178
    %8545 = vmatpush.bf16.msra.mxu0 %v7162
    %8546 = vmatpush.bf16.msra.mxu0 %v7146
    %8547 = vmatpush.bf16.msra.mxu0 %v7130
    %8548 = vmatpush.bf16.msra.mxu0 %v7114
    %8549 = vmatpush.bf16.msra.mxu0 %v7098
    %8550 = vmatpush.bf16.msra.mxu0 %v7082
    %8551 = vmatpush.bf16.msra.mxu0 %v7066
    %8552 = vmatmul.bf16.gmra.mxu0 %v2291
    %v8553 = vpop.f32.mrf.mxu0
    %v8554 = vadd.f32 %v8540, %v8553
    %v8555 = vpop.f32.mrf.mxu0
    %v8556 = vadd.f32 %v8542, %v8555
    %8557 = vdwg.mxu0
    %8558 = vmatpush.bf16.msra.mxu0 %v7306
    %8559 = vmatpush.bf16.msra.mxu0 %v7290
    %8560 = vmatpush.bf16.msra.mxu0 %v7274
    %8561 = vmatpush.bf16.msra.mxu0 %v7258
    %8562 = vmatpush.bf16.msra.mxu0 %v7242
    %8563 = vmatpush.bf16.msra.mxu0 %v7226
    %8564 = vmatpush.bf16.msra.mxu0 %v7210
    %8565 = vmatpush.bf16.msra.mxu0 %v7194
    %8566 = vmatmul.bf16.gmra.mxu0 %v2292
    %v8567 = vpop.f32.mrf.mxu0
    %v8568 = vadd.f32 %v8554, %v8567
    %v8569 = vpop.f32.mrf.mxu0
    %v8570 = vadd.f32 %v8556, %v8569
    %8571 = vdwg.mxu0
    %8572 = vmatpush.bf16.msra.mxu0 %v7434
    %8573 = vmatpush.bf16.msra.mxu0 %v7418
    %8574 = vmatpush.bf16.msra.mxu0 %v7402
    %8575 = vmatpush.bf16.msra.mxu0 %v7386
    %8576 = vmatpush.bf16.msra.mxu0 %v7370
    %8577 = vmatpush.bf16.msra.mxu0 %v7354
    %8578 = vmatpush.bf16.msra.mxu0 %v7338
    %8579 = vmatpush.bf16.msra.mxu0 %v7322
    %8580 = vmatmul.bf16.gmra.mxu0 %v2293
    %v8581 = vpop.f32.mrf.mxu0
    %v8582 = vadd.f32 %v8568, %v8581
    %v8583 = vpop.f32.mrf.mxu0
    %v8584 = vadd.f32 %v8570, %v8583
    %8585 = vdwg.mxu0
    %8586 = vmatpush.bf16.msra.mxu0 %v6539
    %8587 = vmatpush.bf16.msra.mxu0 %v6523
    %8588 = vmatpush.bf16.msra.mxu0 %v6507
    %8589 = vmatpush.bf16.msra.mxu0 %v6491
    %8590 = vmatpush.bf16.msra.mxu0 %v6475
    %8591 = vmatpush.bf16.msra.mxu0 %v6459
    %8592 = vmatpush.bf16.msra.mxu0 %v6443
    %8593 = vmatpush.bf16.msra.mxu0 %v6427
    %8594 = vmatmul.bf16.gmra.mxu0 %v2286
    %v8595 = vpop.f32.mrf.mxu0
    %v8596 = vadd.f32 %v3323, %v8595
    %v8597 = vpop.f32.mrf.mxu0
    %v8598 = vadd.f32 %v3323, %v8597
    %8599 = vdwg.mxu0
    %8600 = vmatpush.bf16.msra.mxu0 %v6667
    %8601 = vmatpush.bf16.msra.mxu0 %v6651
    %8602 = vmatpush.bf16.msra.mxu0 %v6635
    %8603 = vmatpush.bf16.msra.mxu0 %v6619
    %8604 = vmatpush.bf16.msra.mxu0 %v6603
    %8605 = vmatpush.bf16.msra.mxu0 %v6587
    %8606 = vmatpush.bf16.msra.mxu0 %v6571
    %8607 = vmatpush.bf16.msra.mxu0 %v6555
    %8608 = vmatmul.bf16.gmra.mxu0 %v2287
    %v8609 = vpop.f32.mrf.mxu0
    %v8610 = vadd.f32 %v8596, %v8609
    %v8611 = vpop.f32.mrf.mxu0
    %v8612 = vadd.f32 %v8598, %v8611
    %8613 = vdwg.mxu0
    %8614 = vmatpush.bf16.msra.mxu0 %v6795
    %8615 = vmatpush.bf16.msra.mxu0 %v6779
    %8616 = vmatpush.bf16.msra.mxu0 %v6763
    %8617 = vmatpush.bf16.msra.mxu0 %v6747
    %8618 = vmatpush.bf16.msra.mxu0 %v6731
    %8619 = vmatpush.bf16.msra.mxu0 %v6715
    %8620 = vmatpush.bf16.msra.mxu0 %v6699
    %8621 = vmatpush.bf16.msra.mxu0 %v6683
    %8622 = vmatmul.bf16.gmra.mxu0 %v2288
    %v8623 = vpop.f32.mrf.mxu0
    %v8624 = vadd.f32 %v8610, %v8623
    %v8625 = vpop.f32.mrf.mxu0
    %v8626 = vadd.f32 %v8612, %v8625
    %8627 = vdwg.mxu0
    %8628 = vmatpush.bf16.msra.mxu0 %v6923
    %8629 = vmatpush.bf16.msra.mxu0 %v6907
    %8630 = vmatpush.bf16.msra.mxu0 %v6891
    %8631 = vmatpush.bf16.msra.mxu0 %v6875
    %8632 = vmatpush.bf16.msra.mxu0 %v6859
    %8633 = vmatpush.bf16.msra.mxu0 %v6843
    %8634 = vmatpush.bf16.msra.mxu0 %v6827
    %8635 = vmatpush.bf16.msra.mxu0 %v6811
    %8636 = vmatmul.bf16.gmra.mxu0 %v2289
    %v8637 = vpop.f32.mrf.mxu0
    %v8638 = vadd.f32 %v8624, %v8637
    %v8639 = vpop.f32.mrf.mxu0
    %v8640 = vadd.f32 %v8626, %v8639
    %8641 = vdwg.mxu0
    %8642 = vmatpush.bf16.msra.mxu0 %v7051
    %8643 = vmatpush.bf16.msra.mxu0 %v7035
    %8644 = vmatpush.bf16.msra.mxu0 %v7019
    %8645 = vmatpush.bf16.msra.mxu0 %v7003
    %8646 = vmatpush.bf16.msra.mxu0 %v6987
    %8647 = vmatpush.bf16.msra.mxu0 %v6971
    %8648 = vmatpush.bf16.msra.mxu0 %v6955
    %8649 = vmatpush.bf16.msra.mxu0 %v6939
    %8650 = vmatmul.bf16.gmra.mxu0 %v2290
    %v8651 = vpop.f32.mrf.mxu0
    %v8652 = vadd.f32 %v8638, %v8651
    %v8653 = vpop.f32.mrf.mxu0
    %v8654 = vadd.f32 %v8640, %v8653
    %8655 = vdwg.mxu0
    %8656 = vmatpush.bf16.msra.mxu0 %v7179
    %8657 = vmatpush.bf16.msra.mxu0 %v7163
    %8658 = vmatpush.bf16.msra.mxu0 %v7147
    %8659 = vmatpush.bf16.msra.mxu0 %v7131
    %8660 = vmatpush.bf16.msra.mxu0 %v7115
    %8661 = vmatpush.bf16.msra.mxu0 %v7099
    %8662 = vmatpush.bf16.msra.mxu0 %v7083
    %8663 = vmatpush.bf16.msra.mxu0 %v7067
    %8664 = vmatmul.bf16.gmra.mxu0 %v2291
    %v8665 = vpop.f32.mrf.mxu0
    %v8666 = vadd.f32 %v8652, %v8665
    %v8667 = vpop.f32.mrf.mxu0
    %v8668 = vadd.f32 %v8654, %v8667
    %8669 = vdwg.mxu0
    %8670 = vmatpush.bf16.msra.mxu0 %v7307
    %8671 = vmatpush.bf16.msra.mxu0 %v7291
    %8672 = vmatpush.bf16.msra.mxu0 %v7275
    %8673 = vmatpush.bf16.msra.mxu0 %v7259
    %8674 = vmatpush.bf16.msra.mxu0 %v7243
    %8675 = vmatpush.bf16.msra.mxu0 %v7227
    %8676 = vmatpush.bf16.msra.mxu0 %v7211
    %8677 = vmatpush.bf16.msra.mxu0 %v7195
    %8678 = vmatmul.bf16.gmra.mxu0 %v2292
    %v8679 = vpop.f32.mrf.mxu0
    %v8680 = vadd.f32 %v8666, %v8679
    %v8681 = vpop.f32.mrf.mxu0
    %v8682 = vadd.f32 %v8668, %v8681
    %8683 = vdwg.mxu0
    %8684 = vmatpush.bf16.msra.mxu0 %v7435
    %8685 = vmatpush.bf16.msra.mxu0 %v7419
    %8686 = vmatpush.bf16.msra.mxu0 %v7403
    %8687 = vmatpush.bf16.msra.mxu0 %v7387
    %8688 = vmatpush.bf16.msra.mxu0 %v7371
    %8689 = vmatpush.bf16.msra.mxu0 %v7355
    %8690 = vmatpush.bf16.msra.mxu0 %v7339
    %8691 = vmatpush.bf16.msra.mxu0 %v7323
    %8692 = vmatmul.bf16.gmra.mxu0 %v2293
    %v8693 = vpop.f32.mrf.mxu0
    %v8694 = vadd.f32 %v8680, %v8693
    %v8695 = vpop.f32.mrf.mxu0
    %v8696 = vadd.f32 %v8682, %v8695
    %8697 = vdwg.mxu0
    %8698 = vmatpush.bf16.msra.mxu0 %v6540
    %8699 = vmatpush.bf16.msra.mxu0 %v6524
    %8700 = vmatpush.bf16.msra.mxu0 %v6508
    %8701 = vmatpush.bf16.msra.mxu0 %v6492
    %8702 = vmatpush.bf16.msra.mxu0 %v6476
    %8703 = vmatpush.bf16.msra.mxu0 %v6460
    %8704 = vmatpush.bf16.msra.mxu0 %v6444
    %8705 = vmatpush.bf16.msra.mxu0 %v6428
    %8706 = vmatmul.bf16.gmra.mxu0 %v2286
    %v8707 = vpop.f32.mrf.mxu0
    %v8708 = vadd.f32 %v3324, %v8707
    %v8709 = vpop.f32.mrf.mxu0
    %v8710 = vadd.f32 %v3324, %v8709
    %8711 = vdwg.mxu0
    %8712 = vmatpush.bf16.msra.mxu0 %v6668
    %8713 = vmatpush.bf16.msra.mxu0 %v6652
    %8714 = vmatpush.bf16.msra.mxu0 %v6636
    %8715 = vmatpush.bf16.msra.mxu0 %v6620
    %8716 = vmatpush.bf16.msra.mxu0 %v6604
    %8717 = vmatpush.bf16.msra.mxu0 %v6588
    %8718 = vmatpush.bf16.msra.mxu0 %v6572
    %8719 = vmatpush.bf16.msra.mxu0 %v6556
    %8720 = vmatmul.bf16.gmra.mxu0 %v2287
    %v8721 = vpop.f32.mrf.mxu0
    %v8722 = vadd.f32 %v8708, %v8721
    %v8723 = vpop.f32.mrf.mxu0
    %v8724 = vadd.f32 %v8710, %v8723
    %8725 = vdwg.mxu0
    %8726 = vmatpush.bf16.msra.mxu0 %v6796
    %8727 = vmatpush.bf16.msra.mxu0 %v6780
    %8728 = vmatpush.bf16.msra.mxu0 %v6764
    %8729 = vmatpush.bf16.msra.mxu0 %v6748
    %8730 = vmatpush.bf16.msra.mxu0 %v6732
    %8731 = vmatpush.bf16.msra.mxu0 %v6716
    %8732 = vmatpush.bf16.msra.mxu0 %v6700
    %8733 = vmatpush.bf16.msra.mxu0 %v6684
    %8734 = vmatmul.bf16.gmra.mxu0 %v2288
    %v8735 = vpop.f32.mrf.mxu0
    %v8736 = vadd.f32 %v8722, %v8735
    %v8737 = vpop.f32.mrf.mxu0
    %v8738 = vadd.f32 %v8724, %v8737
    %8739 = vdwg.mxu0
    %8740 = vmatpush.bf16.msra.mxu0 %v6924
    %8741 = vmatpush.bf16.msra.mxu0 %v6908
    %8742 = vmatpush.bf16.msra.mxu0 %v6892
    %8743 = vmatpush.bf16.msra.mxu0 %v6876
    %8744 = vmatpush.bf16.msra.mxu0 %v6860
    %8745 = vmatpush.bf16.msra.mxu0 %v6844
    %8746 = vmatpush.bf16.msra.mxu0 %v6828
    %8747 = vmatpush.bf16.msra.mxu0 %v6812
    %8748 = vmatmul.bf16.gmra.mxu0 %v2289
    %v8749 = vpop.f32.mrf.mxu0
    %v8750 = vadd.f32 %v8736, %v8749
    %v8751 = vpop.f32.mrf.mxu0
    %v8752 = vadd.f32 %v8738, %v8751
    %8753 = vdwg.mxu0
    %8754 = vmatpush.bf16.msra.mxu0 %v7052
    %8755 = vmatpush.bf16.msra.mxu0 %v7036
    %8756 = vmatpush.bf16.msra.mxu0 %v7020
    %8757 = vmatpush.bf16.msra.mxu0 %v7004
    %8758 = vmatpush.bf16.msra.mxu0 %v6988
    %8759 = vmatpush.bf16.msra.mxu0 %v6972
    %8760 = vmatpush.bf16.msra.mxu0 %v6956
    %8761 = vmatpush.bf16.msra.mxu0 %v6940
    %8762 = vmatmul.bf16.gmra.mxu0 %v2290
    %v8763 = vpop.f32.mrf.mxu0
    %v8764 = vadd.f32 %v8750, %v8763
    %v8765 = vpop.f32.mrf.mxu0
    %v8766 = vadd.f32 %v8752, %v8765
    %8767 = vdwg.mxu0
    %8768 = vmatpush.bf16.msra.mxu0 %v7180
    %8769 = vmatpush.bf16.msra.mxu0 %v7164
    %8770 = vmatpush.bf16.msra.mxu0 %v7148
    %8771 = vmatpush.bf16.msra.mxu0 %v7132
    %8772 = vmatpush.bf16.msra.mxu0 %v7116
    %8773 = vmatpush.bf16.msra.mxu0 %v7100
    %8774 = vmatpush.bf16.msra.mxu0 %v7084
    %8775 = vmatpush.bf16.msra.mxu0 %v7068
    %8776 = vmatmul.bf16.gmra.mxu0 %v2291
    %v8777 = vpop.f32.mrf.mxu0
    %v8778 = vadd.f32 %v8764, %v8777
    %v8779 = vpop.f32.mrf.mxu0
    %v8780 = vadd.f32 %v8766, %v8779
    %8781 = vdwg.mxu0
    %8782 = vmatpush.bf16.msra.mxu0 %v7308
    %8783 = vmatpush.bf16.msra.mxu0 %v7292
    %8784 = vmatpush.bf16.msra.mxu0 %v7276
    %8785 = vmatpush.bf16.msra.mxu0 %v7260
    %8786 = vmatpush.bf16.msra.mxu0 %v7244
    %8787 = vmatpush.bf16.msra.mxu0 %v7228
    %8788 = vmatpush.bf16.msra.mxu0 %v7212
    %8789 = vmatpush.bf16.msra.mxu0 %v7196
    %8790 = vmatmul.bf16.gmra.mxu0 %v2292
    %v8791 = vpop.f32.mrf.mxu0
    %v8792 = vadd.f32 %v8778, %v8791
    %v8793 = vpop.f32.mrf.mxu0
    %v8794 = vadd.f32 %v8780, %v8793
    %8795 = vdwg.mxu0
    %8796 = vmatpush.bf16.msra.mxu0 %v7436
    %8797 = vmatpush.bf16.msra.mxu0 %v7420
    %8798 = vmatpush.bf16.msra.mxu0 %v7404
    %8799 = vmatpush.bf16.msra.mxu0 %v7388
    %8800 = vmatpush.bf16.msra.mxu0 %v7372
    %8801 = vmatpush.bf16.msra.mxu0 %v7356
    %8802 = vmatpush.bf16.msra.mxu0 %v7340
    %8803 = vmatpush.bf16.msra.mxu0 %v7324
    %8804 = vmatmul.bf16.gmra.mxu0 %v2293
    %v8805 = vpop.f32.mrf.mxu0
    %v8806 = vadd.f32 %v8792, %v8805
    %v8807 = vpop.f32.mrf.mxu0
    %v8808 = vadd.f32 %v8794, %v8807
    %8809 = vdwg.mxu0
    %8810 = vmatpush.bf16.msra.mxu0 %v6541
    %8811 = vmatpush.bf16.msra.mxu0 %v6525
    %8812 = vmatpush.bf16.msra.mxu0 %v6509
    %8813 = vmatpush.bf16.msra.mxu0 %v6493
    %8814 = vmatpush.bf16.msra.mxu0 %v6477
    %8815 = vmatpush.bf16.msra.mxu0 %v6461
    %8816 = vmatpush.bf16.msra.mxu0 %v6445
    %8817 = vmatpush.bf16.msra.mxu0 %v6429
    %8818 = vmatmul.bf16.gmra.mxu0 %v2286
    %v8819 = vpop.f32.mrf.mxu0
    %v8820 = vadd.f32 %v3325, %v8819
    %v8821 = vpop.f32.mrf.mxu0
    %v8822 = vadd.f32 %v3325, %v8821
    %8823 = vdwg.mxu0
    %8824 = vmatpush.bf16.msra.mxu0 %v6669
    %8825 = vmatpush.bf16.msra.mxu0 %v6653
    %8826 = vmatpush.bf16.msra.mxu0 %v6637
    %8827 = vmatpush.bf16.msra.mxu0 %v6621
    %8828 = vmatpush.bf16.msra.mxu0 %v6605
    %8829 = vmatpush.bf16.msra.mxu0 %v6589
    %8830 = vmatpush.bf16.msra.mxu0 %v6573
    %8831 = vmatpush.bf16.msra.mxu0 %v6557
    %8832 = vmatmul.bf16.gmra.mxu0 %v2287
    %v8833 = vpop.f32.mrf.mxu0
    %v8834 = vadd.f32 %v8820, %v8833
    %v8835 = vpop.f32.mrf.mxu0
    %v8836 = vadd.f32 %v8822, %v8835
    %8837 = vdwg.mxu0
    %8838 = vmatpush.bf16.msra.mxu0 %v6797
    %8839 = vmatpush.bf16.msra.mxu0 %v6781
    %8840 = vmatpush.bf16.msra.mxu0 %v6765
    %8841 = vmatpush.bf16.msra.mxu0 %v6749
    %8842 = vmatpush.bf16.msra.mxu0 %v6733
    %8843 = vmatpush.bf16.msra.mxu0 %v6717
    %8844 = vmatpush.bf16.msra.mxu0 %v6701
    %8845 = vmatpush.bf16.msra.mxu0 %v6685
    %8846 = vmatmul.bf16.gmra.mxu0 %v2288
    %v8847 = vpop.f32.mrf.mxu0
    %v8848 = vadd.f32 %v8834, %v8847
    %v8849 = vpop.f32.mrf.mxu0
    %v8850 = vadd.f32 %v8836, %v8849
    %8851 = vdwg.mxu0
    %8852 = vmatpush.bf16.msra.mxu0 %v6925
    %8853 = vmatpush.bf16.msra.mxu0 %v6909
    %8854 = vmatpush.bf16.msra.mxu0 %v6893
    %8855 = vmatpush.bf16.msra.mxu0 %v6877
    %8856 = vmatpush.bf16.msra.mxu0 %v6861
    %8857 = vmatpush.bf16.msra.mxu0 %v6845
    %8858 = vmatpush.bf16.msra.mxu0 %v6829
    %8859 = vmatpush.bf16.msra.mxu0 %v6813
    %8860 = vmatmul.bf16.gmra.mxu0 %v2289
    %v8861 = vpop.f32.mrf.mxu0
    %v8862 = vadd.f32 %v8848, %v8861
    %v8863 = vpop.f32.mrf.mxu0
    %v8864 = vadd.f32 %v8850, %v8863
    %8865 = vdwg.mxu0
    %8866 = vmatpush.bf16.msra.mxu0 %v7053
    %8867 = vmatpush.bf16.msra.mxu0 %v7037
    %8868 = vmatpush.bf16.msra.mxu0 %v7021
    %8869 = vmatpush.bf16.msra.mxu0 %v7005
    %8870 = vmatpush.bf16.msra.mxu0 %v6989
    %8871 = vmatpush.bf16.msra.mxu0 %v6973
    %8872 = vmatpush.bf16.msra.mxu0 %v6957
    %8873 = vmatpush.bf16.msra.mxu0 %v6941
    %8874 = vmatmul.bf16.gmra.mxu0 %v2290
    %v8875 = vpop.f32.mrf.mxu0
    %v8876 = vadd.f32 %v8862, %v8875
    %v8877 = vpop.f32.mrf.mxu0
    %v8878 = vadd.f32 %v8864, %v8877
    %8879 = vdwg.mxu0
    %8880 = vmatpush.bf16.msra.mxu0 %v7181
    %8881 = vmatpush.bf16.msra.mxu0 %v7165
    %8882 = vmatpush.bf16.msra.mxu0 %v7149
    %8883 = vmatpush.bf16.msra.mxu0 %v7133
    %8884 = vmatpush.bf16.msra.mxu0 %v7117
    %8885 = vmatpush.bf16.msra.mxu0 %v7101
    %8886 = vmatpush.bf16.msra.mxu0 %v7085
    %8887 = vmatpush.bf16.msra.mxu0 %v7069
    %8888 = vmatmul.bf16.gmra.mxu0 %v2291
    %v8889 = vpop.f32.mrf.mxu0
    %v8890 = vadd.f32 %v8876, %v8889
    %v8891 = vpop.f32.mrf.mxu0
    %v8892 = vadd.f32 %v8878, %v8891
    %8893 = vdwg.mxu0
    %8894 = vmatpush.bf16.msra.mxu0 %v7309
    %8895 = vmatpush.bf16.msra.mxu0 %v7293
    %8896 = vmatpush.bf16.msra.mxu0 %v7277
    %8897 = vmatpush.bf16.msra.mxu0 %v7261
    %8898 = vmatpush.bf16.msra.mxu0 %v7245
    %8899 = vmatpush.bf16.msra.mxu0 %v7229
    %8900 = vmatpush.bf16.msra.mxu0 %v7213
    %8901 = vmatpush.bf16.msra.mxu0 %v7197
    %8902 = vmatmul.bf16.gmra.mxu0 %v2292
    %v8903 = vpop.f32.mrf.mxu0
    %v8904 = vadd.f32 %v8890, %v8903
    %v8905 = vpop.f32.mrf.mxu0
    %v8906 = vadd.f32 %v8892, %v8905
    %8907 = vdwg.mxu0
    %8908 = vmatpush.bf16.msra.mxu0 %v7437
    %8909 = vmatpush.bf16.msra.mxu0 %v7421
    %8910 = vmatpush.bf16.msra.mxu0 %v7405
    %8911 = vmatpush.bf16.msra.mxu0 %v7389
    %8912 = vmatpush.bf16.msra.mxu0 %v7373
    %8913 = vmatpush.bf16.msra.mxu0 %v7357
    %8914 = vmatpush.bf16.msra.mxu0 %v7341
    %8915 = vmatpush.bf16.msra.mxu0 %v7325
    %8916 = vmatmul.bf16.gmra.mxu0 %v2293
    %v8917 = vpop.f32.mrf.mxu0
    %v8918 = vadd.f32 %v8904, %v8917
    %v8919 = vpop.f32.mrf.mxu0
    %v8920 = vadd.f32 %v8906, %v8919
    %8921 = vdwg.mxu0
    %8922 = vmatpush.bf16.msra.mxu0 %v6542
    %8923 = vmatpush.bf16.msra.mxu0 %v6526
    %8924 = vmatpush.bf16.msra.mxu0 %v6510
    %8925 = vmatpush.bf16.msra.mxu0 %v6494
    %8926 = vmatpush.bf16.msra.mxu0 %v6478
    %8927 = vmatpush.bf16.msra.mxu0 %v6462
    %8928 = vmatpush.bf16.msra.mxu0 %v6446
    %8929 = vmatpush.bf16.msra.mxu0 %v6430
    %8930 = vmatmul.bf16.gmra.mxu0 %v2286
    %v8931 = vpop.f32.mrf.mxu0
    %v8932 = vadd.f32 %v3326, %v8931
    %v8933 = vpop.f32.mrf.mxu0
    %v8934 = vadd.f32 %v3326, %v8933
    %8935 = vdwg.mxu0
    %8936 = vmatpush.bf16.msra.mxu0 %v6670
    %8937 = vmatpush.bf16.msra.mxu0 %v6654
    %8938 = vmatpush.bf16.msra.mxu0 %v6638
    %8939 = vmatpush.bf16.msra.mxu0 %v6622
    %8940 = vmatpush.bf16.msra.mxu0 %v6606
    %8941 = vmatpush.bf16.msra.mxu0 %v6590
    %8942 = vmatpush.bf16.msra.mxu0 %v6574
    %8943 = vmatpush.bf16.msra.mxu0 %v6558
    %8944 = vmatmul.bf16.gmra.mxu0 %v2287
    %v8945 = vpop.f32.mrf.mxu0
    %v8946 = vadd.f32 %v8932, %v8945
    %v8947 = vpop.f32.mrf.mxu0
    %v8948 = vadd.f32 %v8934, %v8947
    %8949 = vdwg.mxu0
    %8950 = vmatpush.bf16.msra.mxu0 %v6798
    %8951 = vmatpush.bf16.msra.mxu0 %v6782
    %8952 = vmatpush.bf16.msra.mxu0 %v6766
    %8953 = vmatpush.bf16.msra.mxu0 %v6750
    %8954 = vmatpush.bf16.msra.mxu0 %v6734
    %8955 = vmatpush.bf16.msra.mxu0 %v6718
    %8956 = vmatpush.bf16.msra.mxu0 %v6702
    %8957 = vmatpush.bf16.msra.mxu0 %v6686
    %8958 = vmatmul.bf16.gmra.mxu0 %v2288
    %v8959 = vpop.f32.mrf.mxu0
    %v8960 = vadd.f32 %v8946, %v8959
    %v8961 = vpop.f32.mrf.mxu0
    %v8962 = vadd.f32 %v8948, %v8961
    %8963 = vdwg.mxu0
    %8964 = vmatpush.bf16.msra.mxu0 %v6926
    %8965 = vmatpush.bf16.msra.mxu0 %v6910
    %8966 = vmatpush.bf16.msra.mxu0 %v6894
    %8967 = vmatpush.bf16.msra.mxu0 %v6878
    %8968 = vmatpush.bf16.msra.mxu0 %v6862
    %8969 = vmatpush.bf16.msra.mxu0 %v6846
    %8970 = vmatpush.bf16.msra.mxu0 %v6830
    %8971 = vmatpush.bf16.msra.mxu0 %v6814
    %8972 = vmatmul.bf16.gmra.mxu0 %v2289
    %v8973 = vpop.f32.mrf.mxu0
    %v8974 = vadd.f32 %v8960, %v8973
    %v8975 = vpop.f32.mrf.mxu0
    %v8976 = vadd.f32 %v8962, %v8975
    %8977 = vdwg.mxu0
    %8978 = vmatpush.bf16.msra.mxu0 %v7054
    %8979 = vmatpush.bf16.msra.mxu0 %v7038
    %8980 = vmatpush.bf16.msra.mxu0 %v7022
    %8981 = vmatpush.bf16.msra.mxu0 %v7006
    %8982 = vmatpush.bf16.msra.mxu0 %v6990
    %8983 = vmatpush.bf16.msra.mxu0 %v6974
    %8984 = vmatpush.bf16.msra.mxu0 %v6958
    %8985 = vmatpush.bf16.msra.mxu0 %v6942
    %8986 = vmatmul.bf16.gmra.mxu0 %v2290
    %v8987 = vpop.f32.mrf.mxu0
    %v8988 = vadd.f32 %v8974, %v8987
    %v8989 = vpop.f32.mrf.mxu0
    %v8990 = vadd.f32 %v8976, %v8989
    %8991 = vdwg.mxu0
    %8992 = vmatpush.bf16.msra.mxu0 %v7182
    %8993 = vmatpush.bf16.msra.mxu0 %v7166
    %8994 = vmatpush.bf16.msra.mxu0 %v7150
    %8995 = vmatpush.bf16.msra.mxu0 %v7134
    %8996 = vmatpush.bf16.msra.mxu0 %v7118
    %8997 = vmatpush.bf16.msra.mxu0 %v7102
    %8998 = vmatpush.bf16.msra.mxu0 %v7086
    %8999 = vmatpush.bf16.msra.mxu0 %v7070
    %9000 = vmatmul.bf16.gmra.mxu0 %v2291
    %v9001 = vpop.f32.mrf.mxu0
    %v9002 = vadd.f32 %v8988, %v9001
    %v9003 = vpop.f32.mrf.mxu0
    %v9004 = vadd.f32 %v8990, %v9003
    %9005 = vdwg.mxu0
    %9006 = vmatpush.bf16.msra.mxu0 %v7310
    %9007 = vmatpush.bf16.msra.mxu0 %v7294
    %9008 = vmatpush.bf16.msra.mxu0 %v7278
    %9009 = vmatpush.bf16.msra.mxu0 %v7262
    %9010 = vmatpush.bf16.msra.mxu0 %v7246
    %9011 = vmatpush.bf16.msra.mxu0 %v7230
    %9012 = vmatpush.bf16.msra.mxu0 %v7214
    %9013 = vmatpush.bf16.msra.mxu0 %v7198
    %9014 = vmatmul.bf16.gmra.mxu0 %v2292
    %v9015 = vpop.f32.mrf.mxu0
    %v9016 = vadd.f32 %v9002, %v9015
    %v9017 = vpop.f32.mrf.mxu0
    %v9018 = vadd.f32 %v9004, %v9017
    %9019 = vdwg.mxu0
    %9020 = vmatpush.bf16.msra.mxu0 %v7438
    %9021 = vmatpush.bf16.msra.mxu0 %v7422
    %9022 = vmatpush.bf16.msra.mxu0 %v7406
    %9023 = vmatpush.bf16.msra.mxu0 %v7390
    %9024 = vmatpush.bf16.msra.mxu0 %v7374
    %9025 = vmatpush.bf16.msra.mxu0 %v7358
    %9026 = vmatpush.bf16.msra.mxu0 %v7342
    %9027 = vmatpush.bf16.msra.mxu0 %v7326
    %9028 = vmatmul.bf16.gmra.mxu0 %v2293
    %v9029 = vpop.f32.mrf.mxu0
    %v9030 = vadd.f32 %v9016, %v9029
    %v9031 = vpop.f32.mrf.mxu0
    %v9032 = vadd.f32 %v9018, %v9031
    %9033 = vdwg.mxu0
    %9034 = vmatpush.bf16.msra.mxu0 %v6543
    %9035 = vmatpush.bf16.msra.mxu0 %v6527
    %9036 = vmatpush.bf16.msra.mxu0 %v6511
    %9037 = vmatpush.bf16.msra.mxu0 %v6495
    %9038 = vmatpush.bf16.msra.mxu0 %v6479
    %9039 = vmatpush.bf16.msra.mxu0 %v6463
    %9040 = vmatpush.bf16.msra.mxu0 %v6447
    %9041 = vmatpush.bf16.msra.mxu0 %v6431
    %9042 = vmatmul.bf16.gmra.mxu0 %v2286
    %v9043 = vpop.f32.mrf.mxu0
    %v9044 = vadd.f32 %v3327, %v9043
    %v9045 = vpop.f32.mrf.mxu0
    %v9046 = vadd.f32 %v3327, %v9045
    %9047 = vdwg.mxu0
    %9048 = vmatpush.bf16.msra.mxu0 %v6671
    %9049 = vmatpush.bf16.msra.mxu0 %v6655
    %9050 = vmatpush.bf16.msra.mxu0 %v6639
    %9051 = vmatpush.bf16.msra.mxu0 %v6623
    %9052 = vmatpush.bf16.msra.mxu0 %v6607
    %9053 = vmatpush.bf16.msra.mxu0 %v6591
    %9054 = vmatpush.bf16.msra.mxu0 %v6575
    %9055 = vmatpush.bf16.msra.mxu0 %v6559
    %9056 = vmatmul.bf16.gmra.mxu0 %v2287
    %v9057 = vpop.f32.mrf.mxu0
    %v9058 = vadd.f32 %v9044, %v9057
    %v9059 = vpop.f32.mrf.mxu0
    %v9060 = vadd.f32 %v9046, %v9059
    %9061 = vdwg.mxu0
    %9062 = vmatpush.bf16.msra.mxu0 %v6799
    %9063 = vmatpush.bf16.msra.mxu0 %v6783
    %9064 = vmatpush.bf16.msra.mxu0 %v6767
    %9065 = vmatpush.bf16.msra.mxu0 %v6751
    %9066 = vmatpush.bf16.msra.mxu0 %v6735
    %9067 = vmatpush.bf16.msra.mxu0 %v6719
    %9068 = vmatpush.bf16.msra.mxu0 %v6703
    %9069 = vmatpush.bf16.msra.mxu0 %v6687
    %9070 = vmatmul.bf16.gmra.mxu0 %v2288
    %v9071 = vpop.f32.mrf.mxu0
    %v9072 = vadd.f32 %v9058, %v9071
    %v9073 = vpop.f32.mrf.mxu0
    %v9074 = vadd.f32 %v9060, %v9073
    %9075 = vdwg.mxu0
    %9076 = vmatpush.bf16.msra.mxu0 %v6927
    %9077 = vmatpush.bf16.msra.mxu0 %v6911
    %9078 = vmatpush.bf16.msra.mxu0 %v6895
    %9079 = vmatpush.bf16.msra.mxu0 %v6879
    %9080 = vmatpush.bf16.msra.mxu0 %v6863
    %9081 = vmatpush.bf16.msra.mxu0 %v6847
    %9082 = vmatpush.bf16.msra.mxu0 %v6831
    %9083 = vmatpush.bf16.msra.mxu0 %v6815
    %9084 = vmatmul.bf16.gmra.mxu0 %v2289
    %v9085 = vpop.f32.mrf.mxu0
    %v9086 = vadd.f32 %v9072, %v9085
    %v9087 = vpop.f32.mrf.mxu0
    %v9088 = vadd.f32 %v9074, %v9087
    %9089 = vdwg.mxu0
    %9090 = vmatpush.bf16.msra.mxu0 %v7055
    %9091 = vmatpush.bf16.msra.mxu0 %v7039
    %9092 = vmatpush.bf16.msra.mxu0 %v7023
    %9093 = vmatpush.bf16.msra.mxu0 %v7007
    %9094 = vmatpush.bf16.msra.mxu0 %v6991
    %9095 = vmatpush.bf16.msra.mxu0 %v6975
    %9096 = vmatpush.bf16.msra.mxu0 %v6959
    %9097 = vmatpush.bf16.msra.mxu0 %v6943
    %9098 = vmatmul.bf16.gmra.mxu0 %v2290
    %v9099 = vpop.f32.mrf.mxu0
    %v9100 = vadd.f32 %v9086, %v9099
    %v9101 = vpop.f32.mrf.mxu0
    %v9102 = vadd.f32 %v9088, %v9101
    %9103 = vdwg.mxu0
    %9104 = vmatpush.bf16.msra.mxu0 %v7183
    %9105 = vmatpush.bf16.msra.mxu0 %v7167
    %9106 = vmatpush.bf16.msra.mxu0 %v7151
    %9107 = vmatpush.bf16.msra.mxu0 %v7135
    %9108 = vmatpush.bf16.msra.mxu0 %v7119
    %9109 = vmatpush.bf16.msra.mxu0 %v7103
    %9110 = vmatpush.bf16.msra.mxu0 %v7087
    %9111 = vmatpush.bf16.msra.mxu0 %v7071
    %9112 = vmatmul.bf16.gmra.mxu0 %v2291
    %v9113 = vpop.f32.mrf.mxu0
    %v9114 = vadd.f32 %v9100, %v9113
    %v9115 = vpop.f32.mrf.mxu0
    %v9116 = vadd.f32 %v9102, %v9115
    %9117 = vdwg.mxu0
    %9118 = vmatpush.bf16.msra.mxu0 %v7311
    %9119 = vmatpush.bf16.msra.mxu0 %v7295
    %9120 = vmatpush.bf16.msra.mxu0 %v7279
    %9121 = vmatpush.bf16.msra.mxu0 %v7263
    %9122 = vmatpush.bf16.msra.mxu0 %v7247
    %9123 = vmatpush.bf16.msra.mxu0 %v7231
    %9124 = vmatpush.bf16.msra.mxu0 %v7215
    %9125 = vmatpush.bf16.msra.mxu0 %v7199
    %9126 = vmatmul.bf16.gmra.mxu0 %v2292
    %v9127 = vpop.f32.mrf.mxu0
    %v9128 = vadd.f32 %v9114, %v9127
    %v9129 = vpop.f32.mrf.mxu0
    %v9130 = vadd.f32 %v9116, %v9129
    %9131 = vdwg.mxu0
    %9132 = vmatpush.bf16.msra.mxu0 %v7439
    %9133 = vmatpush.bf16.msra.mxu0 %v7423
    %9134 = vmatpush.bf16.msra.mxu0 %v7407
    %9135 = vmatpush.bf16.msra.mxu0 %v7391
    %9136 = vmatpush.bf16.msra.mxu0 %v7375
    %9137 = vmatpush.bf16.msra.mxu0 %v7359
    %9138 = vmatpush.bf16.msra.mxu0 %v7343
    %9139 = vmatpush.bf16.msra.mxu0 %v7327
    %9140 = vmatmul.bf16.gmra.mxu0 %v2293
    %v9141 = vpop.f32.mrf.mxu0
    %v9142 = vadd.f32 %v9128, %v9141
    %v9143 = vpop.f32.mrf.mxu0
    %v9144 = vadd.f32 %v9130, %v9143
    %9145 = vdwg.mxu0
    %9146 = vmatpush.bf16.msra.mxu0 %v6544
    %9147 = vmatpush.bf16.msra.mxu0 %v6528
    %9148 = vmatpush.bf16.msra.mxu0 %v6512
    %9149 = vmatpush.bf16.msra.mxu0 %v6496
    %9150 = vmatpush.bf16.msra.mxu0 %v6480
    %9151 = vmatpush.bf16.msra.mxu0 %v6464
    %9152 = vmatpush.bf16.msra.mxu0 %v6448
    %9153 = vmatpush.bf16.msra.mxu0 %v6432
    %9154 = vmatmul.bf16.gmra.mxu0 %v2286
    %v9155 = vpop.f32.mrf.mxu0
    %v9156 = vadd.f32 %v3328, %v9155
    %v9157 = vpop.f32.mrf.mxu0
    %v9158 = vadd.f32 %v3328, %v9157
    %9159 = vdwg.mxu0
    %9160 = vmatpush.bf16.msra.mxu0 %v6672
    %9161 = vmatpush.bf16.msra.mxu0 %v6656
    %9162 = vmatpush.bf16.msra.mxu0 %v6640
    %9163 = vmatpush.bf16.msra.mxu0 %v6624
    %9164 = vmatpush.bf16.msra.mxu0 %v6608
    %9165 = vmatpush.bf16.msra.mxu0 %v6592
    %9166 = vmatpush.bf16.msra.mxu0 %v6576
    %9167 = vmatpush.bf16.msra.mxu0 %v6560
    %9168 = vmatmul.bf16.gmra.mxu0 %v2287
    %v9169 = vpop.f32.mrf.mxu0
    %v9170 = vadd.f32 %v9156, %v9169
    %v9171 = vpop.f32.mrf.mxu0
    %v9172 = vadd.f32 %v9158, %v9171
    %9173 = vdwg.mxu0
    %9174 = vmatpush.bf16.msra.mxu0 %v6800
    %9175 = vmatpush.bf16.msra.mxu0 %v6784
    %9176 = vmatpush.bf16.msra.mxu0 %v6768
    %9177 = vmatpush.bf16.msra.mxu0 %v6752
    %9178 = vmatpush.bf16.msra.mxu0 %v6736
    %9179 = vmatpush.bf16.msra.mxu0 %v6720
    %9180 = vmatpush.bf16.msra.mxu0 %v6704
    %9181 = vmatpush.bf16.msra.mxu0 %v6688
    %9182 = vmatmul.bf16.gmra.mxu0 %v2288
    %v9183 = vpop.f32.mrf.mxu0
    %v9184 = vadd.f32 %v9170, %v9183
    %v9185 = vpop.f32.mrf.mxu0
    %v9186 = vadd.f32 %v9172, %v9185
    %9187 = vdwg.mxu0
    %9188 = vmatpush.bf16.msra.mxu0 %v6928
    %9189 = vmatpush.bf16.msra.mxu0 %v6912
    %9190 = vmatpush.bf16.msra.mxu0 %v6896
    %9191 = vmatpush.bf16.msra.mxu0 %v6880
    %9192 = vmatpush.bf16.msra.mxu0 %v6864
    %9193 = vmatpush.bf16.msra.mxu0 %v6848
    %9194 = vmatpush.bf16.msra.mxu0 %v6832
    %9195 = vmatpush.bf16.msra.mxu0 %v6816
    %9196 = vmatmul.bf16.gmra.mxu0 %v2289
    %v9197 = vpop.f32.mrf.mxu0
    %v9198 = vadd.f32 %v9184, %v9197
    %v9199 = vpop.f32.mrf.mxu0
    %v9200 = vadd.f32 %v9186, %v9199
    %9201 = vdwg.mxu0
    %9202 = vmatpush.bf16.msra.mxu0 %v7056
    %9203 = vmatpush.bf16.msra.mxu0 %v7040
    %9204 = vmatpush.bf16.msra.mxu0 %v7024
    %9205 = vmatpush.bf16.msra.mxu0 %v7008
    %9206 = vmatpush.bf16.msra.mxu0 %v6992
    %9207 = vmatpush.bf16.msra.mxu0 %v6976
    %9208 = vmatpush.bf16.msra.mxu0 %v6960
    %9209 = vmatpush.bf16.msra.mxu0 %v6944
    %9210 = vmatmul.bf16.gmra.mxu0 %v2290
    %v9211 = vpop.f32.mrf.mxu0
    %v9212 = vadd.f32 %v9198, %v9211
    %v9213 = vpop.f32.mrf.mxu0
    %v9214 = vadd.f32 %v9200, %v9213
    %9215 = vdwg.mxu0
    %9216 = vmatpush.bf16.msra.mxu0 %v7184
    %9217 = vmatpush.bf16.msra.mxu0 %v7168
    %9218 = vmatpush.bf16.msra.mxu0 %v7152
    %9219 = vmatpush.bf16.msra.mxu0 %v7136
    %9220 = vmatpush.bf16.msra.mxu0 %v7120
    %9221 = vmatpush.bf16.msra.mxu0 %v7104
    %9222 = vmatpush.bf16.msra.mxu0 %v7088
    %9223 = vmatpush.bf16.msra.mxu0 %v7072
    %9224 = vmatmul.bf16.gmra.mxu0 %v2291
    %v9225 = vpop.f32.mrf.mxu0
    %v9226 = vadd.f32 %v9212, %v9225
    %v9227 = vpop.f32.mrf.mxu0
    %v9228 = vadd.f32 %v9214, %v9227
    %9229 = vdwg.mxu0
    %9230 = vmatpush.bf16.msra.mxu0 %v7312
    %9231 = vmatpush.bf16.msra.mxu0 %v7296
    %9232 = vmatpush.bf16.msra.mxu0 %v7280
    %9233 = vmatpush.bf16.msra.mxu0 %v7264
    %9234 = vmatpush.bf16.msra.mxu0 %v7248
    %9235 = vmatpush.bf16.msra.mxu0 %v7232
    %9236 = vmatpush.bf16.msra.mxu0 %v7216
    %9237 = vmatpush.bf16.msra.mxu0 %v7200
    %9238 = vmatmul.bf16.gmra.mxu0 %v2292
    %v9239 = vpop.f32.mrf.mxu0
    %v9240 = vadd.f32 %v9226, %v9239
    %v9241 = vpop.f32.mrf.mxu0
    %v9242 = vadd.f32 %v9228, %v9241
    %9243 = vdwg.mxu0
    %9244 = vmatpush.bf16.msra.mxu0 %v7440
    %9245 = vmatpush.bf16.msra.mxu0 %v7424
    %9246 = vmatpush.bf16.msra.mxu0 %v7408
    %9247 = vmatpush.bf16.msra.mxu0 %v7392
    %9248 = vmatpush.bf16.msra.mxu0 %v7376
    %9249 = vmatpush.bf16.msra.mxu0 %v7360
    %9250 = vmatpush.bf16.msra.mxu0 %v7344
    %9251 = vmatpush.bf16.msra.mxu0 %v7328
    %9252 = vmatmul.bf16.gmra.mxu0 %v2293
    %v9253 = vpop.f32.mrf.mxu0
    %v9254 = vadd.f32 %v9240, %v9253
    %v9255 = vpop.f32.mrf.mxu0
    %v9256 = vadd.f32 %v9242, %v9255
    %9257 = vdwg.mxu0
    %9258 = vmatpush.bf16.msra.mxu0 %v6545
    %9259 = vmatpush.bf16.msra.mxu0 %v6529
    %9260 = vmatpush.bf16.msra.mxu0 %v6513
    %9261 = vmatpush.bf16.msra.mxu0 %v6497
    %9262 = vmatpush.bf16.msra.mxu0 %v6481
    %9263 = vmatpush.bf16.msra.mxu0 %v6465
    %9264 = vmatpush.bf16.msra.mxu0 %v6449
    %9265 = vmatpush.bf16.msra.mxu0 %v6433
    %9266 = vmatmul.bf16.gmra.mxu0 %v2286
    %v9267 = vpop.f32.mrf.mxu0
    %v9268 = vadd.f32 %v3329, %v9267
    %v9269 = vpop.f32.mrf.mxu0
    %v9270 = vadd.f32 %v3329, %v9269
    %9271 = vdwg.mxu0
    %9272 = vmatpush.bf16.msra.mxu0 %v6673
    %9273 = vmatpush.bf16.msra.mxu0 %v6657
    %9274 = vmatpush.bf16.msra.mxu0 %v6641
    %9275 = vmatpush.bf16.msra.mxu0 %v6625
    %9276 = vmatpush.bf16.msra.mxu0 %v6609
    %9277 = vmatpush.bf16.msra.mxu0 %v6593
    %9278 = vmatpush.bf16.msra.mxu0 %v6577
    %9279 = vmatpush.bf16.msra.mxu0 %v6561
    %9280 = vmatmul.bf16.gmra.mxu0 %v2287
    %v9281 = vpop.f32.mrf.mxu0
    %v9282 = vadd.f32 %v9268, %v9281
    %v9283 = vpop.f32.mrf.mxu0
    %v9284 = vadd.f32 %v9270, %v9283
    %9285 = vdwg.mxu0
    %9286 = vmatpush.bf16.msra.mxu0 %v6801
    %9287 = vmatpush.bf16.msra.mxu0 %v6785
    %9288 = vmatpush.bf16.msra.mxu0 %v6769
    %9289 = vmatpush.bf16.msra.mxu0 %v6753
    %9290 = vmatpush.bf16.msra.mxu0 %v6737
    %9291 = vmatpush.bf16.msra.mxu0 %v6721
    %9292 = vmatpush.bf16.msra.mxu0 %v6705
    %9293 = vmatpush.bf16.msra.mxu0 %v6689
    %9294 = vmatmul.bf16.gmra.mxu0 %v2288
    %v9295 = vpop.f32.mrf.mxu0
    %v9296 = vadd.f32 %v9282, %v9295
    %v9297 = vpop.f32.mrf.mxu0
    %v9298 = vadd.f32 %v9284, %v9297
    %9299 = vdwg.mxu0
    %9300 = vmatpush.bf16.msra.mxu0 %v6929
    %9301 = vmatpush.bf16.msra.mxu0 %v6913
    %9302 = vmatpush.bf16.msra.mxu0 %v6897
    %9303 = vmatpush.bf16.msra.mxu0 %v6881
    %9304 = vmatpush.bf16.msra.mxu0 %v6865
    %9305 = vmatpush.bf16.msra.mxu0 %v6849
    %9306 = vmatpush.bf16.msra.mxu0 %v6833
    %9307 = vmatpush.bf16.msra.mxu0 %v6817
    %9308 = vmatmul.bf16.gmra.mxu0 %v2289
    %v9309 = vpop.f32.mrf.mxu0
    %v9310 = vadd.f32 %v9296, %v9309
    %v9311 = vpop.f32.mrf.mxu0
    %v9312 = vadd.f32 %v9298, %v9311
    %9313 = vdwg.mxu0
    %9314 = vmatpush.bf16.msra.mxu0 %v7057
    %9315 = vmatpush.bf16.msra.mxu0 %v7041
    %9316 = vmatpush.bf16.msra.mxu0 %v7025
    %9317 = vmatpush.bf16.msra.mxu0 %v7009
    %9318 = vmatpush.bf16.msra.mxu0 %v6993
    %9319 = vmatpush.bf16.msra.mxu0 %v6977
    %9320 = vmatpush.bf16.msra.mxu0 %v6961
    %9321 = vmatpush.bf16.msra.mxu0 %v6945
    %9322 = vmatmul.bf16.gmra.mxu0 %v2290
    %v9323 = vpop.f32.mrf.mxu0
    %v9324 = vadd.f32 %v9310, %v9323
    %v9325 = vpop.f32.mrf.mxu0
    %v9326 = vadd.f32 %v9312, %v9325
    %9327 = vdwg.mxu0
    %9328 = vmatpush.bf16.msra.mxu0 %v7185
    %9329 = vmatpush.bf16.msra.mxu0 %v7169
    %9330 = vmatpush.bf16.msra.mxu0 %v7153
    %9331 = vmatpush.bf16.msra.mxu0 %v7137
    %9332 = vmatpush.bf16.msra.mxu0 %v7121
    %9333 = vmatpush.bf16.msra.mxu0 %v7105
    %9334 = vmatpush.bf16.msra.mxu0 %v7089
    %9335 = vmatpush.bf16.msra.mxu0 %v7073
    %9336 = vmatmul.bf16.gmra.mxu0 %v2291
    %v9337 = vpop.f32.mrf.mxu0
    %v9338 = vadd.f32 %v9324, %v9337
    %v9339 = vpop.f32.mrf.mxu0
    %v9340 = vadd.f32 %v9326, %v9339
    %9341 = vdwg.mxu0
    %9342 = vmatpush.bf16.msra.mxu0 %v7313
    %9343 = vmatpush.bf16.msra.mxu0 %v7297
    %9344 = vmatpush.bf16.msra.mxu0 %v7281
    %9345 = vmatpush.bf16.msra.mxu0 %v7265
    %9346 = vmatpush.bf16.msra.mxu0 %v7249
    %9347 = vmatpush.bf16.msra.mxu0 %v7233
    %9348 = vmatpush.bf16.msra.mxu0 %v7217
    %9349 = vmatpush.bf16.msra.mxu0 %v7201
    %9350 = vmatmul.bf16.gmra.mxu0 %v2292
    %v9351 = vpop.f32.mrf.mxu0
    %v9352 = vadd.f32 %v9338, %v9351
    %v9353 = vpop.f32.mrf.mxu0
    %v9354 = vadd.f32 %v9340, %v9353
    %9355 = vdwg.mxu0
    %9356 = vmatpush.bf16.msra.mxu0 %v7441
    %9357 = vmatpush.bf16.msra.mxu0 %v7425
    %9358 = vmatpush.bf16.msra.mxu0 %v7409
    %9359 = vmatpush.bf16.msra.mxu0 %v7393
    %9360 = vmatpush.bf16.msra.mxu0 %v7377
    %9361 = vmatpush.bf16.msra.mxu0 %v7361
    %9362 = vmatpush.bf16.msra.mxu0 %v7345
    %9363 = vmatpush.bf16.msra.mxu0 %v7329
    %9364 = vmatmul.bf16.gmra.mxu0 %v2293
    %v9365 = vpop.f32.mrf.mxu0
    %v9366 = vadd.f32 %v9352, %v9365
    %v9367 = vpop.f32.mrf.mxu0
    %v9368 = vadd.f32 %v9354, %v9367
    %9369 = vdwg.mxu0
    %9370 = vmatpush.bf16.msra.mxu0 %v6546
    %9371 = vmatpush.bf16.msra.mxu0 %v6530
    %9372 = vmatpush.bf16.msra.mxu0 %v6514
    %9373 = vmatpush.bf16.msra.mxu0 %v6498
    %9374 = vmatpush.bf16.msra.mxu0 %v6482
    %9375 = vmatpush.bf16.msra.mxu0 %v6466
    %9376 = vmatpush.bf16.msra.mxu0 %v6450
    %9377 = vmatpush.bf16.msra.mxu0 %v6434
    %9378 = vmatmul.bf16.gmra.mxu0 %v2286
    %v9379 = vpop.f32.mrf.mxu0
    %v9380 = vadd.f32 %v3330, %v9379
    %v9381 = vpop.f32.mrf.mxu0
    %v9382 = vadd.f32 %v3330, %v9381
    %9383 = vdwg.mxu0
    %9384 = vmatpush.bf16.msra.mxu0 %v6674
    %9385 = vmatpush.bf16.msra.mxu0 %v6658
    %9386 = vmatpush.bf16.msra.mxu0 %v6642
    %9387 = vmatpush.bf16.msra.mxu0 %v6626
    %9388 = vmatpush.bf16.msra.mxu0 %v6610
    %9389 = vmatpush.bf16.msra.mxu0 %v6594
    %9390 = vmatpush.bf16.msra.mxu0 %v6578
    %9391 = vmatpush.bf16.msra.mxu0 %v6562
    %9392 = vmatmul.bf16.gmra.mxu0 %v2287
    %v9393 = vpop.f32.mrf.mxu0
    %v9394 = vadd.f32 %v9380, %v9393
    %v9395 = vpop.f32.mrf.mxu0
    %v9396 = vadd.f32 %v9382, %v9395
    %9397 = vdwg.mxu0
    %9398 = vmatpush.bf16.msra.mxu0 %v6802
    %9399 = vmatpush.bf16.msra.mxu0 %v6786
    %9400 = vmatpush.bf16.msra.mxu0 %v6770
    %9401 = vmatpush.bf16.msra.mxu0 %v6754
    %9402 = vmatpush.bf16.msra.mxu0 %v6738
    %9403 = vmatpush.bf16.msra.mxu0 %v6722
    %9404 = vmatpush.bf16.msra.mxu0 %v6706
    %9405 = vmatpush.bf16.msra.mxu0 %v6690
    %9406 = vmatmul.bf16.gmra.mxu0 %v2288
    %v9407 = vpop.f32.mrf.mxu0
    %v9408 = vadd.f32 %v9394, %v9407
    %v9409 = vpop.f32.mrf.mxu0
    %v9410 = vadd.f32 %v9396, %v9409
    %9411 = vdwg.mxu0
    %9412 = vmatpush.bf16.msra.mxu0 %v6930
    %9413 = vmatpush.bf16.msra.mxu0 %v6914
    %9414 = vmatpush.bf16.msra.mxu0 %v6898
    %9415 = vmatpush.bf16.msra.mxu0 %v6882
    %9416 = vmatpush.bf16.msra.mxu0 %v6866
    %9417 = vmatpush.bf16.msra.mxu0 %v6850
    %9418 = vmatpush.bf16.msra.mxu0 %v6834
    %9419 = vmatpush.bf16.msra.mxu0 %v6818
    %9420 = vmatmul.bf16.gmra.mxu0 %v2289
    %v9421 = vpop.f32.mrf.mxu0
    %v9422 = vadd.f32 %v9408, %v9421
    %v9423 = vpop.f32.mrf.mxu0
    %v9424 = vadd.f32 %v9410, %v9423
    %9425 = vdwg.mxu0
    %9426 = vmatpush.bf16.msra.mxu0 %v7058
    %9427 = vmatpush.bf16.msra.mxu0 %v7042
    %9428 = vmatpush.bf16.msra.mxu0 %v7026
    %9429 = vmatpush.bf16.msra.mxu0 %v7010
    %9430 = vmatpush.bf16.msra.mxu0 %v6994
    %9431 = vmatpush.bf16.msra.mxu0 %v6978
    %9432 = vmatpush.bf16.msra.mxu0 %v6962
    %9433 = vmatpush.bf16.msra.mxu0 %v6946
    %9434 = vmatmul.bf16.gmra.mxu0 %v2290
    %v9435 = vpop.f32.mrf.mxu0
    %v9436 = vadd.f32 %v9422, %v9435
    %v9437 = vpop.f32.mrf.mxu0
    %v9438 = vadd.f32 %v9424, %v9437
    %9439 = vdwg.mxu0
    %9440 = vmatpush.bf16.msra.mxu0 %v7186
    %9441 = vmatpush.bf16.msra.mxu0 %v7170
    %9442 = vmatpush.bf16.msra.mxu0 %v7154
    %9443 = vmatpush.bf16.msra.mxu0 %v7138
    %9444 = vmatpush.bf16.msra.mxu0 %v7122
    %9445 = vmatpush.bf16.msra.mxu0 %v7106
    %9446 = vmatpush.bf16.msra.mxu0 %v7090
    %9447 = vmatpush.bf16.msra.mxu0 %v7074
    %9448 = vmatmul.bf16.gmra.mxu0 %v2291
    %v9449 = vpop.f32.mrf.mxu0
    %v9450 = vadd.f32 %v9436, %v9449
    %v9451 = vpop.f32.mrf.mxu0
    %v9452 = vadd.f32 %v9438, %v9451
    %9453 = vdwg.mxu0
    %9454 = vmatpush.bf16.msra.mxu0 %v7314
    %9455 = vmatpush.bf16.msra.mxu0 %v7298
    %9456 = vmatpush.bf16.msra.mxu0 %v7282
    %9457 = vmatpush.bf16.msra.mxu0 %v7266
    %9458 = vmatpush.bf16.msra.mxu0 %v7250
    %9459 = vmatpush.bf16.msra.mxu0 %v7234
    %9460 = vmatpush.bf16.msra.mxu0 %v7218
    %9461 = vmatpush.bf16.msra.mxu0 %v7202
    %9462 = vmatmul.bf16.gmra.mxu0 %v2292
    %v9463 = vpop.f32.mrf.mxu0
    %v9464 = vadd.f32 %v9450, %v9463
    %v9465 = vpop.f32.mrf.mxu0
    %v9466 = vadd.f32 %v9452, %v9465
    %9467 = vdwg.mxu0
    %9468 = vmatpush.bf16.msra.mxu0 %v7442
    %9469 = vmatpush.bf16.msra.mxu0 %v7426
    %9470 = vmatpush.bf16.msra.mxu0 %v7410
    %9471 = vmatpush.bf16.msra.mxu0 %v7394
    %9472 = vmatpush.bf16.msra.mxu0 %v7378
    %9473 = vmatpush.bf16.msra.mxu0 %v7362
    %9474 = vmatpush.bf16.msra.mxu0 %v7346
    %9475 = vmatpush.bf16.msra.mxu0 %v7330
    %9476 = vmatmul.bf16.gmra.mxu0 %v2293
    %v9477 = vpop.f32.mrf.mxu0
    %v9478 = vadd.f32 %v9464, %v9477
    %v9479 = vpop.f32.mrf.mxu0
    %v9480 = vadd.f32 %v9466, %v9479
    %9481 = vdwg.mxu0
    %9482 = vmatpush.bf16.msra.mxu0 %v6547
    %9483 = vmatpush.bf16.msra.mxu0 %v6531
    %9484 = vmatpush.bf16.msra.mxu0 %v6515
    %9485 = vmatpush.bf16.msra.mxu0 %v6499
    %9486 = vmatpush.bf16.msra.mxu0 %v6483
    %9487 = vmatpush.bf16.msra.mxu0 %v6467
    %9488 = vmatpush.bf16.msra.mxu0 %v6451
    %9489 = vmatpush.bf16.msra.mxu0 %v6435
    %9490 = vmatmul.bf16.gmra.mxu0 %v2286
    %v9491 = vpop.f32.mrf.mxu0
    %v9492 = vadd.f32 %v3331, %v9491
    %v9493 = vpop.f32.mrf.mxu0
    %v9494 = vadd.f32 %v3331, %v9493
    %9495 = vdwg.mxu0
    %9496 = vmatpush.bf16.msra.mxu0 %v6675
    %9497 = vmatpush.bf16.msra.mxu0 %v6659
    %9498 = vmatpush.bf16.msra.mxu0 %v6643
    %9499 = vmatpush.bf16.msra.mxu0 %v6627
    %9500 = vmatpush.bf16.msra.mxu0 %v6611
    %9501 = vmatpush.bf16.msra.mxu0 %v6595
    %9502 = vmatpush.bf16.msra.mxu0 %v6579
    %9503 = vmatpush.bf16.msra.mxu0 %v6563
    %9504 = vmatmul.bf16.gmra.mxu0 %v2287
    %v9505 = vpop.f32.mrf.mxu0
    %v9506 = vadd.f32 %v9492, %v9505
    %v9507 = vpop.f32.mrf.mxu0
    %v9508 = vadd.f32 %v9494, %v9507
    %9509 = vdwg.mxu0
    %9510 = vmatpush.bf16.msra.mxu0 %v6803
    %9511 = vmatpush.bf16.msra.mxu0 %v6787
    %9512 = vmatpush.bf16.msra.mxu0 %v6771
    %9513 = vmatpush.bf16.msra.mxu0 %v6755
    %9514 = vmatpush.bf16.msra.mxu0 %v6739
    %9515 = vmatpush.bf16.msra.mxu0 %v6723
    %9516 = vmatpush.bf16.msra.mxu0 %v6707
    %9517 = vmatpush.bf16.msra.mxu0 %v6691
    %9518 = vmatmul.bf16.gmra.mxu0 %v2288
    %v9519 = vpop.f32.mrf.mxu0
    %v9520 = vadd.f32 %v9506, %v9519
    %v9521 = vpop.f32.mrf.mxu0
    %v9522 = vadd.f32 %v9508, %v9521
    %9523 = vdwg.mxu0
    %9524 = vmatpush.bf16.msra.mxu0 %v6931
    %9525 = vmatpush.bf16.msra.mxu0 %v6915
    %9526 = vmatpush.bf16.msra.mxu0 %v6899
    %9527 = vmatpush.bf16.msra.mxu0 %v6883
    %9528 = vmatpush.bf16.msra.mxu0 %v6867
    %9529 = vmatpush.bf16.msra.mxu0 %v6851
    %9530 = vmatpush.bf16.msra.mxu0 %v6835
    %9531 = vmatpush.bf16.msra.mxu0 %v6819
    %9532 = vmatmul.bf16.gmra.mxu0 %v2289
    %v9533 = vpop.f32.mrf.mxu0
    %v9534 = vadd.f32 %v9520, %v9533
    %v9535 = vpop.f32.mrf.mxu0
    %v9536 = vadd.f32 %v9522, %v9535
    %9537 = vdwg.mxu0
    %9538 = vmatpush.bf16.msra.mxu0 %v7059
    %9539 = vmatpush.bf16.msra.mxu0 %v7043
    %9540 = vmatpush.bf16.msra.mxu0 %v7027
    %9541 = vmatpush.bf16.msra.mxu0 %v7011
    %9542 = vmatpush.bf16.msra.mxu0 %v6995
    %9543 = vmatpush.bf16.msra.mxu0 %v6979
    %9544 = vmatpush.bf16.msra.mxu0 %v6963
    %9545 = vmatpush.bf16.msra.mxu0 %v6947
    %9546 = vmatmul.bf16.gmra.mxu0 %v2290
    %v9547 = vpop.f32.mrf.mxu0
    %v9548 = vadd.f32 %v9534, %v9547
    %v9549 = vpop.f32.mrf.mxu0
    %v9550 = vadd.f32 %v9536, %v9549
    %9551 = vdwg.mxu0
    %9552 = vmatpush.bf16.msra.mxu0 %v7187
    %9553 = vmatpush.bf16.msra.mxu0 %v7171
    %9554 = vmatpush.bf16.msra.mxu0 %v7155
    %9555 = vmatpush.bf16.msra.mxu0 %v7139
    %9556 = vmatpush.bf16.msra.mxu0 %v7123
    %9557 = vmatpush.bf16.msra.mxu0 %v7107
    %9558 = vmatpush.bf16.msra.mxu0 %v7091
    %9559 = vmatpush.bf16.msra.mxu0 %v7075
    %9560 = vmatmul.bf16.gmra.mxu0 %v2291
    %v9561 = vpop.f32.mrf.mxu0
    %v9562 = vadd.f32 %v9548, %v9561
    %v9563 = vpop.f32.mrf.mxu0
    %v9564 = vadd.f32 %v9550, %v9563
    %9565 = vdwg.mxu0
    %9566 = vmatpush.bf16.msra.mxu0 %v7315
    %9567 = vmatpush.bf16.msra.mxu0 %v7299
    %9568 = vmatpush.bf16.msra.mxu0 %v7283
    %9569 = vmatpush.bf16.msra.mxu0 %v7267
    %9570 = vmatpush.bf16.msra.mxu0 %v7251
    %9571 = vmatpush.bf16.msra.mxu0 %v7235
    %9572 = vmatpush.bf16.msra.mxu0 %v7219
    %9573 = vmatpush.bf16.msra.mxu0 %v7203
    %9574 = vmatmul.bf16.gmra.mxu0 %v2292
    %v9575 = vpop.f32.mrf.mxu0
    %v9576 = vadd.f32 %v9562, %v9575
    %v9577 = vpop.f32.mrf.mxu0
    %v9578 = vadd.f32 %v9564, %v9577
    %9579 = vdwg.mxu0
    %9580 = vmatpush.bf16.msra.mxu0 %v7443
    %9581 = vmatpush.bf16.msra.mxu0 %v7427
    %9582 = vmatpush.bf16.msra.mxu0 %v7411
    %9583 = vmatpush.bf16.msra.mxu0 %v7395
    %9584 = vmatpush.bf16.msra.mxu0 %v7379
    %9585 = vmatpush.bf16.msra.mxu0 %v7363
    %9586 = vmatpush.bf16.msra.mxu0 %v7347
    %9587 = vmatpush.bf16.msra.mxu0 %v7331
    %9588 = vmatmul.bf16.gmra.mxu0 %v2293
    %v9589 = vpop.f32.mrf.mxu0
    %v9590 = vadd.f32 %v9576, %v9589
    %v9591 = vpop.f32.mrf.mxu0
    %v9592 = vadd.f32 %v9578, %v9591
    %9593 = vdwg.mxu0
    %9594 = vmatpush.bf16.msra.mxu0 %v6548
    %9595 = vmatpush.bf16.msra.mxu0 %v6532
    %9596 = vmatpush.bf16.msra.mxu0 %v6516
    %9597 = vmatpush.bf16.msra.mxu0 %v6500
    %9598 = vmatpush.bf16.msra.mxu0 %v6484
    %9599 = vmatpush.bf16.msra.mxu0 %v6468
    %9600 = vmatpush.bf16.msra.mxu0 %v6452
    %9601 = vmatpush.bf16.msra.mxu0 %v6436
    %9602 = vmatmul.bf16.gmra.mxu0 %v2286
    %v9603 = vpop.f32.mrf.mxu0
    %v9604 = vadd.f32 %v3332, %v9603
    %v9605 = vpop.f32.mrf.mxu0
    %v9606 = vadd.f32 %v3332, %v9605
    %9607 = vdwg.mxu0
    %9608 = vmatpush.bf16.msra.mxu0 %v6676
    %9609 = vmatpush.bf16.msra.mxu0 %v6660
    %9610 = vmatpush.bf16.msra.mxu0 %v6644
    %9611 = vmatpush.bf16.msra.mxu0 %v6628
    %9612 = vmatpush.bf16.msra.mxu0 %v6612
    %9613 = vmatpush.bf16.msra.mxu0 %v6596
    %9614 = vmatpush.bf16.msra.mxu0 %v6580
    %9615 = vmatpush.bf16.msra.mxu0 %v6564
    %9616 = vmatmul.bf16.gmra.mxu0 %v2287
    %v9617 = vpop.f32.mrf.mxu0
    %v9618 = vadd.f32 %v9604, %v9617
    %v9619 = vpop.f32.mrf.mxu0
    %v9620 = vadd.f32 %v9606, %v9619
    %9621 = vdwg.mxu0
    %9622 = vmatpush.bf16.msra.mxu0 %v6804
    %9623 = vmatpush.bf16.msra.mxu0 %v6788
    %9624 = vmatpush.bf16.msra.mxu0 %v6772
    %9625 = vmatpush.bf16.msra.mxu0 %v6756
    %9626 = vmatpush.bf16.msra.mxu0 %v6740
    %9627 = vmatpush.bf16.msra.mxu0 %v6724
    %9628 = vmatpush.bf16.msra.mxu0 %v6708
    %9629 = vmatpush.bf16.msra.mxu0 %v6692
    %9630 = vmatmul.bf16.gmra.mxu0 %v2288
    %v9631 = vpop.f32.mrf.mxu0
    %v9632 = vadd.f32 %v9618, %v9631
    %v9633 = vpop.f32.mrf.mxu0
    %v9634 = vadd.f32 %v9620, %v9633
    %9635 = vdwg.mxu0
    %9636 = vmatpush.bf16.msra.mxu0 %v6932
    %9637 = vmatpush.bf16.msra.mxu0 %v6916
    %9638 = vmatpush.bf16.msra.mxu0 %v6900
    %9639 = vmatpush.bf16.msra.mxu0 %v6884
    %9640 = vmatpush.bf16.msra.mxu0 %v6868
    %9641 = vmatpush.bf16.msra.mxu0 %v6852
    %9642 = vmatpush.bf16.msra.mxu0 %v6836
    %9643 = vmatpush.bf16.msra.mxu0 %v6820
    %9644 = vmatmul.bf16.gmra.mxu0 %v2289
    %v9645 = vpop.f32.mrf.mxu0
    %v9646 = vadd.f32 %v9632, %v9645
    %v9647 = vpop.f32.mrf.mxu0
    %v9648 = vadd.f32 %v9634, %v9647
    %9649 = vdwg.mxu0
    %9650 = vmatpush.bf16.msra.mxu0 %v7060
    %9651 = vmatpush.bf16.msra.mxu0 %v7044
    %9652 = vmatpush.bf16.msra.mxu0 %v7028
    %9653 = vmatpush.bf16.msra.mxu0 %v7012
    %9654 = vmatpush.bf16.msra.mxu0 %v6996
    %9655 = vmatpush.bf16.msra.mxu0 %v6980
    %9656 = vmatpush.bf16.msra.mxu0 %v6964
    %9657 = vmatpush.bf16.msra.mxu0 %v6948
    %9658 = vmatmul.bf16.gmra.mxu0 %v2290
    %v9659 = vpop.f32.mrf.mxu0
    %v9660 = vadd.f32 %v9646, %v9659
    %v9661 = vpop.f32.mrf.mxu0
    %v9662 = vadd.f32 %v9648, %v9661
    %9663 = vdwg.mxu0
    %9664 = vmatpush.bf16.msra.mxu0 %v7188
    %9665 = vmatpush.bf16.msra.mxu0 %v7172
    %9666 = vmatpush.bf16.msra.mxu0 %v7156
    %9667 = vmatpush.bf16.msra.mxu0 %v7140
    %9668 = vmatpush.bf16.msra.mxu0 %v7124
    %9669 = vmatpush.bf16.msra.mxu0 %v7108
    %9670 = vmatpush.bf16.msra.mxu0 %v7092
    %9671 = vmatpush.bf16.msra.mxu0 %v7076
    %9672 = vmatmul.bf16.gmra.mxu0 %v2291
    %v9673 = vpop.f32.mrf.mxu0
    %v9674 = vadd.f32 %v9660, %v9673
    %v9675 = vpop.f32.mrf.mxu0
    %v9676 = vadd.f32 %v9662, %v9675
    %9677 = vdwg.mxu0
    %9678 = vmatpush.bf16.msra.mxu0 %v7316
    %9679 = vmatpush.bf16.msra.mxu0 %v7300
    %9680 = vmatpush.bf16.msra.mxu0 %v7284
    %9681 = vmatpush.bf16.msra.mxu0 %v7268
    %9682 = vmatpush.bf16.msra.mxu0 %v7252
    %9683 = vmatpush.bf16.msra.mxu0 %v7236
    %9684 = vmatpush.bf16.msra.mxu0 %v7220
    %9685 = vmatpush.bf16.msra.mxu0 %v7204
    %9686 = vmatmul.bf16.gmra.mxu0 %v2292
    %v9687 = vpop.f32.mrf.mxu0
    %v9688 = vadd.f32 %v9674, %v9687
    %v9689 = vpop.f32.mrf.mxu0
    %v9690 = vadd.f32 %v9676, %v9689
    %9691 = vdwg.mxu0
    %9692 = vmatpush.bf16.msra.mxu0 %v7444
    %9693 = vmatpush.bf16.msra.mxu0 %v7428
    %9694 = vmatpush.bf16.msra.mxu0 %v7412
    %9695 = vmatpush.bf16.msra.mxu0 %v7396
    %9696 = vmatpush.bf16.msra.mxu0 %v7380
    %9697 = vmatpush.bf16.msra.mxu0 %v7364
    %9698 = vmatpush.bf16.msra.mxu0 %v7348
    %9699 = vmatpush.bf16.msra.mxu0 %v7332
    %9700 = vmatmul.bf16.gmra.mxu0 %v2293
    %v9701 = vpop.f32.mrf.mxu0
    %v9702 = vadd.f32 %v9688, %v9701
    %v9703 = vpop.f32.mrf.mxu0
    %v9704 = vadd.f32 %v9690, %v9703
    %9705 = vdwg.mxu0
    %9706 = vmatpush.bf16.msra.mxu0 %v6549
    %9707 = vmatpush.bf16.msra.mxu0 %v6533
    %9708 = vmatpush.bf16.msra.mxu0 %v6517
    %9709 = vmatpush.bf16.msra.mxu0 %v6501
    %9710 = vmatpush.bf16.msra.mxu0 %v6485
    %9711 = vmatpush.bf16.msra.mxu0 %v6469
    %9712 = vmatpush.bf16.msra.mxu0 %v6453
    %9713 = vmatpush.bf16.msra.mxu0 %v6437
    %9714 = vmatmul.bf16.gmra.mxu0 %v2286
    %v9715 = vpop.f32.mrf.mxu0
    %v9716 = vadd.f32 %v3333, %v9715
    %v9717 = vpop.f32.mrf.mxu0
    %v9718 = vadd.f32 %v3333, %v9717
    %9719 = vdwg.mxu0
    %9720 = vmatpush.bf16.msra.mxu0 %v6677
    %9721 = vmatpush.bf16.msra.mxu0 %v6661
    %9722 = vmatpush.bf16.msra.mxu0 %v6645
    %9723 = vmatpush.bf16.msra.mxu0 %v6629
    %9724 = vmatpush.bf16.msra.mxu0 %v6613
    %9725 = vmatpush.bf16.msra.mxu0 %v6597
    %9726 = vmatpush.bf16.msra.mxu0 %v6581
    %9727 = vmatpush.bf16.msra.mxu0 %v6565
    %9728 = vmatmul.bf16.gmra.mxu0 %v2287
    %v9729 = vpop.f32.mrf.mxu0
    %v9730 = vadd.f32 %v9716, %v9729
    %v9731 = vpop.f32.mrf.mxu0
    %v9732 = vadd.f32 %v9718, %v9731
    %9733 = vdwg.mxu0
    %9734 = vmatpush.bf16.msra.mxu0 %v6805
    %9735 = vmatpush.bf16.msra.mxu0 %v6789
    %9736 = vmatpush.bf16.msra.mxu0 %v6773
    %9737 = vmatpush.bf16.msra.mxu0 %v6757
    %9738 = vmatpush.bf16.msra.mxu0 %v6741
    %9739 = vmatpush.bf16.msra.mxu0 %v6725
    %9740 = vmatpush.bf16.msra.mxu0 %v6709
    %9741 = vmatpush.bf16.msra.mxu0 %v6693
    %9742 = vmatmul.bf16.gmra.mxu0 %v2288
    %v9743 = vpop.f32.mrf.mxu0
    %v9744 = vadd.f32 %v9730, %v9743
    %v9745 = vpop.f32.mrf.mxu0
    %v9746 = vadd.f32 %v9732, %v9745
    %9747 = vdwg.mxu0
    %9748 = vmatpush.bf16.msra.mxu0 %v6933
    %9749 = vmatpush.bf16.msra.mxu0 %v6917
    %9750 = vmatpush.bf16.msra.mxu0 %v6901
    %9751 = vmatpush.bf16.msra.mxu0 %v6885
    %9752 = vmatpush.bf16.msra.mxu0 %v6869
    %9753 = vmatpush.bf16.msra.mxu0 %v6853
    %9754 = vmatpush.bf16.msra.mxu0 %v6837
    %9755 = vmatpush.bf16.msra.mxu0 %v6821
    %9756 = vmatmul.bf16.gmra.mxu0 %v2289
    %v9757 = vpop.f32.mrf.mxu0
    %v9758 = vadd.f32 %v9744, %v9757
    %v9759 = vpop.f32.mrf.mxu0
    %v9760 = vadd.f32 %v9746, %v9759
    %9761 = vdwg.mxu0
    %9762 = vmatpush.bf16.msra.mxu0 %v7061
    %9763 = vmatpush.bf16.msra.mxu0 %v7045
    %9764 = vmatpush.bf16.msra.mxu0 %v7029
    %9765 = vmatpush.bf16.msra.mxu0 %v7013
    %9766 = vmatpush.bf16.msra.mxu0 %v6997
    %9767 = vmatpush.bf16.msra.mxu0 %v6981
    %9768 = vmatpush.bf16.msra.mxu0 %v6965
    %9769 = vmatpush.bf16.msra.mxu0 %v6949
    %9770 = vmatmul.bf16.gmra.mxu0 %v2290
    %v9771 = vpop.f32.mrf.mxu0
    %v9772 = vadd.f32 %v9758, %v9771
    %v9773 = vpop.f32.mrf.mxu0
    %v9774 = vadd.f32 %v9760, %v9773
    %9775 = vdwg.mxu0
    %9776 = vmatpush.bf16.msra.mxu0 %v7189
    %9777 = vmatpush.bf16.msra.mxu0 %v7173
    %9778 = vmatpush.bf16.msra.mxu0 %v7157
    %9779 = vmatpush.bf16.msra.mxu0 %v7141
    %9780 = vmatpush.bf16.msra.mxu0 %v7125
    %9781 = vmatpush.bf16.msra.mxu0 %v7109
    %9782 = vmatpush.bf16.msra.mxu0 %v7093
    %9783 = vmatpush.bf16.msra.mxu0 %v7077
    %9784 = vmatmul.bf16.gmra.mxu0 %v2291
    %v9785 = vpop.f32.mrf.mxu0
    %v9786 = vadd.f32 %v9772, %v9785
    %v9787 = vpop.f32.mrf.mxu0
    %v9788 = vadd.f32 %v9774, %v9787
    %9789 = vdwg.mxu0
    %9790 = vmatpush.bf16.msra.mxu0 %v7317
    %9791 = vmatpush.bf16.msra.mxu0 %v7301
    %9792 = vmatpush.bf16.msra.mxu0 %v7285
    %9793 = vmatpush.bf16.msra.mxu0 %v7269
    %9794 = vmatpush.bf16.msra.mxu0 %v7253
    %9795 = vmatpush.bf16.msra.mxu0 %v7237
    %9796 = vmatpush.bf16.msra.mxu0 %v7221
    %9797 = vmatpush.bf16.msra.mxu0 %v7205
    %9798 = vmatmul.bf16.gmra.mxu0 %v2292
    %v9799 = vpop.f32.mrf.mxu0
    %v9800 = vadd.f32 %v9786, %v9799
    %v9801 = vpop.f32.mrf.mxu0
    %v9802 = vadd.f32 %v9788, %v9801
    %9803 = vdwg.mxu0
    %9804 = vmatpush.bf16.msra.mxu0 %v7445
    %9805 = vmatpush.bf16.msra.mxu0 %v7429
    %9806 = vmatpush.bf16.msra.mxu0 %v7413
    %9807 = vmatpush.bf16.msra.mxu0 %v7397
    %9808 = vmatpush.bf16.msra.mxu0 %v7381
    %9809 = vmatpush.bf16.msra.mxu0 %v7365
    %9810 = vmatpush.bf16.msra.mxu0 %v7349
    %9811 = vmatpush.bf16.msra.mxu0 %v7333
    %9812 = vmatmul.bf16.gmra.mxu0 %v2293
    %v9813 = vpop.f32.mrf.mxu0
    %v9814 = vadd.f32 %v9800, %v9813
    %v9815 = vpop.f32.mrf.mxu0
    %v9816 = vadd.f32 %v9802, %v9815
    %9817 = vdwg.mxu0
    %9818 = vmatpush.bf16.msra.mxu0 %v6550
    %9819 = vmatpush.bf16.msra.mxu0 %v6534
    %9820 = vmatpush.bf16.msra.mxu0 %v6518
    %9821 = vmatpush.bf16.msra.mxu0 %v6502
    %9822 = vmatpush.bf16.msra.mxu0 %v6486
    %9823 = vmatpush.bf16.msra.mxu0 %v6470
    %9824 = vmatpush.bf16.msra.mxu0 %v6454
    %9825 = vmatpush.bf16.msra.mxu0 %v6438
    %9826 = vmatmul.bf16.gmra.mxu0 %v2286
    %v9827 = vpop.f32.mrf.mxu0
    %v9828 = vadd.f32 %v3334, %v9827
    %v9829 = vpop.f32.mrf.mxu0
    %v9830 = vadd.f32 %v3334, %v9829
    %9831 = vdwg.mxu0
    %9832 = vmatpush.bf16.msra.mxu0 %v6678
    %9833 = vmatpush.bf16.msra.mxu0 %v6662
    %9834 = vmatpush.bf16.msra.mxu0 %v6646
    %9835 = vmatpush.bf16.msra.mxu0 %v6630
    %9836 = vmatpush.bf16.msra.mxu0 %v6614
    %9837 = vmatpush.bf16.msra.mxu0 %v6598
    %9838 = vmatpush.bf16.msra.mxu0 %v6582
    %9839 = vmatpush.bf16.msra.mxu0 %v6566
    %9840 = vmatmul.bf16.gmra.mxu0 %v2287
    %v9841 = vpop.f32.mrf.mxu0
    %v9842 = vadd.f32 %v9828, %v9841
    %v9843 = vpop.f32.mrf.mxu0
    %v9844 = vadd.f32 %v9830, %v9843
    %9845 = vdwg.mxu0
    %9846 = vmatpush.bf16.msra.mxu0 %v6806
    %9847 = vmatpush.bf16.msra.mxu0 %v6790
    %9848 = vmatpush.bf16.msra.mxu0 %v6774
    %9849 = vmatpush.bf16.msra.mxu0 %v6758
    %9850 = vmatpush.bf16.msra.mxu0 %v6742
    %9851 = vmatpush.bf16.msra.mxu0 %v6726
    %9852 = vmatpush.bf16.msra.mxu0 %v6710
    %9853 = vmatpush.bf16.msra.mxu0 %v6694
    %9854 = vmatmul.bf16.gmra.mxu0 %v2288
    %v9855 = vpop.f32.mrf.mxu0
    %v9856 = vadd.f32 %v9842, %v9855
    %v9857 = vpop.f32.mrf.mxu0
    %v9858 = vadd.f32 %v9844, %v9857
    %9859 = vdwg.mxu0
    %9860 = vmatpush.bf16.msra.mxu0 %v6934
    %9861 = vmatpush.bf16.msra.mxu0 %v6918
    %9862 = vmatpush.bf16.msra.mxu0 %v6902
    %9863 = vmatpush.bf16.msra.mxu0 %v6886
    %9864 = vmatpush.bf16.msra.mxu0 %v6870
    %9865 = vmatpush.bf16.msra.mxu0 %v6854
    %9866 = vmatpush.bf16.msra.mxu0 %v6838
    %9867 = vmatpush.bf16.msra.mxu0 %v6822
    %9868 = vmatmul.bf16.gmra.mxu0 %v2289
    %v9869 = vpop.f32.mrf.mxu0
    %v9870 = vadd.f32 %v9856, %v9869
    %v9871 = vpop.f32.mrf.mxu0
    %v9872 = vadd.f32 %v9858, %v9871
    %9873 = vdwg.mxu0
    %9874 = vmatpush.bf16.msra.mxu0 %v7062
    %9875 = vmatpush.bf16.msra.mxu0 %v7046
    %9876 = vmatpush.bf16.msra.mxu0 %v7030
    %9877 = vmatpush.bf16.msra.mxu0 %v7014
    %9878 = vmatpush.bf16.msra.mxu0 %v6998
    %9879 = vmatpush.bf16.msra.mxu0 %v6982
    %9880 = vmatpush.bf16.msra.mxu0 %v6966
    %9881 = vmatpush.bf16.msra.mxu0 %v6950
    %9882 = vmatmul.bf16.gmra.mxu0 %v2290
    %v9883 = vpop.f32.mrf.mxu0
    %v9884 = vadd.f32 %v9870, %v9883
    %v9885 = vpop.f32.mrf.mxu0
    %v9886 = vadd.f32 %v9872, %v9885
    %9887 = vdwg.mxu0
    %9888 = vmatpush.bf16.msra.mxu0 %v7190
    %9889 = vmatpush.bf16.msra.mxu0 %v7174
    %9890 = vmatpush.bf16.msra.mxu0 %v7158
    %9891 = vmatpush.bf16.msra.mxu0 %v7142
    %9892 = vmatpush.bf16.msra.mxu0 %v7126
    %9893 = vmatpush.bf16.msra.mxu0 %v7110
    %9894 = vmatpush.bf16.msra.mxu0 %v7094
    %9895 = vmatpush.bf16.msra.mxu0 %v7078
    %9896 = vmatmul.bf16.gmra.mxu0 %v2291
    %v9897 = vpop.f32.mrf.mxu0
    %v9898 = vadd.f32 %v9884, %v9897
    %v9899 = vpop.f32.mrf.mxu0
    %v9900 = vadd.f32 %v9886, %v9899
    %9901 = vdwg.mxu0
    %9902 = vmatpush.bf16.msra.mxu0 %v7318
    %9903 = vmatpush.bf16.msra.mxu0 %v7302
    %9904 = vmatpush.bf16.msra.mxu0 %v7286
    %9905 = vmatpush.bf16.msra.mxu0 %v7270
    %9906 = vmatpush.bf16.msra.mxu0 %v7254
    %9907 = vmatpush.bf16.msra.mxu0 %v7238
    %9908 = vmatpush.bf16.msra.mxu0 %v7222
    %9909 = vmatpush.bf16.msra.mxu0 %v7206
    %9910 = vmatmul.bf16.gmra.mxu0 %v2292
    %v9911 = vpop.f32.mrf.mxu0
    %v9912 = vadd.f32 %v9898, %v9911
    %v9913 = vpop.f32.mrf.mxu0
    %v9914 = vadd.f32 %v9900, %v9913
    %9915 = vdwg.mxu0
    %9916 = vmatpush.bf16.msra.mxu0 %v7446
    %9917 = vmatpush.bf16.msra.mxu0 %v7430
    %9918 = vmatpush.bf16.msra.mxu0 %v7414
    %9919 = vmatpush.bf16.msra.mxu0 %v7398
    %9920 = vmatpush.bf16.msra.mxu0 %v7382
    %9921 = vmatpush.bf16.msra.mxu0 %v7366
    %9922 = vmatpush.bf16.msra.mxu0 %v7350
    %9923 = vmatpush.bf16.msra.mxu0 %v7334
    %9924 = vmatmul.bf16.gmra.mxu0 %v2293
    %v9925 = vpop.f32.mrf.mxu0
    %v9926 = vadd.f32 %v9912, %v9925
    %v9927 = vpop.f32.mrf.mxu0
    %v9928 = vadd.f32 %v9914, %v9927
    %9929 = vdwg.mxu0
    %9930 = vmatpush.bf16.msra.mxu0 %v6551
    %9931 = vmatpush.bf16.msra.mxu0 %v6535
    %9932 = vmatpush.bf16.msra.mxu0 %v6519
    %9933 = vmatpush.bf16.msra.mxu0 %v6503
    %9934 = vmatpush.bf16.msra.mxu0 %v6487
    %9935 = vmatpush.bf16.msra.mxu0 %v6471
    %9936 = vmatpush.bf16.msra.mxu0 %v6455
    %9937 = vmatpush.bf16.msra.mxu0 %v6439
    %9938 = vmatmul.bf16.gmra.mxu0 %v2286
    %v9939 = vpop.f32.mrf.mxu0
    %v9940 = vadd.f32 %v3335, %v9939
    %v9941 = vpop.f32.mrf.mxu0
    %v9942 = vadd.f32 %v3335, %v9941
    %9943 = vdwg.mxu0
    %9944 = vmatpush.bf16.msra.mxu0 %v6679
    %9945 = vmatpush.bf16.msra.mxu0 %v6663
    %9946 = vmatpush.bf16.msra.mxu0 %v6647
    %9947 = vmatpush.bf16.msra.mxu0 %v6631
    %9948 = vmatpush.bf16.msra.mxu0 %v6615
    %9949 = vmatpush.bf16.msra.mxu0 %v6599
    %9950 = vmatpush.bf16.msra.mxu0 %v6583
    %9951 = vmatpush.bf16.msra.mxu0 %v6567
    %9952 = vmatmul.bf16.gmra.mxu0 %v2287
    %v9953 = vpop.f32.mrf.mxu0
    %v9954 = vadd.f32 %v9940, %v9953
    %v9955 = vpop.f32.mrf.mxu0
    %v9956 = vadd.f32 %v9942, %v9955
    %9957 = vdwg.mxu0
    %9958 = vmatpush.bf16.msra.mxu0 %v6807
    %9959 = vmatpush.bf16.msra.mxu0 %v6791
    %9960 = vmatpush.bf16.msra.mxu0 %v6775
    %9961 = vmatpush.bf16.msra.mxu0 %v6759
    %9962 = vmatpush.bf16.msra.mxu0 %v6743
    %9963 = vmatpush.bf16.msra.mxu0 %v6727
    %9964 = vmatpush.bf16.msra.mxu0 %v6711
    %9965 = vmatpush.bf16.msra.mxu0 %v6695
    %9966 = vmatmul.bf16.gmra.mxu0 %v2288
    %v9967 = vpop.f32.mrf.mxu0
    %v9968 = vadd.f32 %v9954, %v9967
    %v9969 = vpop.f32.mrf.mxu0
    %v9970 = vadd.f32 %v9956, %v9969
    %9971 = vdwg.mxu0
    %9972 = vmatpush.bf16.msra.mxu0 %v6935
    %9973 = vmatpush.bf16.msra.mxu0 %v6919
    %9974 = vmatpush.bf16.msra.mxu0 %v6903
    %9975 = vmatpush.bf16.msra.mxu0 %v6887
    %9976 = vmatpush.bf16.msra.mxu0 %v6871
    %9977 = vmatpush.bf16.msra.mxu0 %v6855
    %9978 = vmatpush.bf16.msra.mxu0 %v6839
    %9979 = vmatpush.bf16.msra.mxu0 %v6823
    %9980 = vmatmul.bf16.gmra.mxu0 %v2289
    %v9981 = vpop.f32.mrf.mxu0
    %v9982 = vadd.f32 %v9968, %v9981
    %v9983 = vpop.f32.mrf.mxu0
    %v9984 = vadd.f32 %v9970, %v9983
    %9985 = vdwg.mxu0
    %9986 = vmatpush.bf16.msra.mxu0 %v7063
    %9987 = vmatpush.bf16.msra.mxu0 %v7047
    %9988 = vmatpush.bf16.msra.mxu0 %v7031
    %9989 = vmatpush.bf16.msra.mxu0 %v7015
    %9990 = vmatpush.bf16.msra.mxu0 %v6999
    %9991 = vmatpush.bf16.msra.mxu0 %v6983
    %9992 = vmatpush.bf16.msra.mxu0 %v6967
    %9993 = vmatpush.bf16.msra.mxu0 %v6951
    %9994 = vmatmul.bf16.gmra.mxu0 %v2290
    %v9995 = vpop.f32.mrf.mxu0
    %v9996 = vadd.f32 %v9982, %v9995
    %v9997 = vpop.f32.mrf.mxu0
    %v9998 = vadd.f32 %v9984, %v9997
    %9999 = vdwg.mxu0
    %10000 = vmatpush.bf16.msra.mxu0 %v7191
    %10001 = vmatpush.bf16.msra.mxu0 %v7175
    %10002 = vmatpush.bf16.msra.mxu0 %v7159
    %10003 = vmatpush.bf16.msra.mxu0 %v7143
    %10004 = vmatpush.bf16.msra.mxu0 %v7127
    %10005 = vmatpush.bf16.msra.mxu0 %v7111
    %10006 = vmatpush.bf16.msra.mxu0 %v7095
    %10007 = vmatpush.bf16.msra.mxu0 %v7079
    %10008 = vmatmul.bf16.gmra.mxu0 %v2291
    %v10009 = vpop.f32.mrf.mxu0
    %v10010 = vadd.f32 %v9996, %v10009
    %v10011 = vpop.f32.mrf.mxu0
    %v10012 = vadd.f32 %v9998, %v10011
    %10013 = vdwg.mxu0
    %10014 = vmatpush.bf16.msra.mxu0 %v7319
    %10015 = vmatpush.bf16.msra.mxu0 %v7303
    %10016 = vmatpush.bf16.msra.mxu0 %v7287
    %10017 = vmatpush.bf16.msra.mxu0 %v7271
    %10018 = vmatpush.bf16.msra.mxu0 %v7255
    %10019 = vmatpush.bf16.msra.mxu0 %v7239
    %10020 = vmatpush.bf16.msra.mxu0 %v7223
    %10021 = vmatpush.bf16.msra.mxu0 %v7207
    %10022 = vmatmul.bf16.gmra.mxu0 %v2292
    %v10023 = vpop.f32.mrf.mxu0
    %v10024 = vadd.f32 %v10010, %v10023
    %v10025 = vpop.f32.mrf.mxu0
    %v10026 = vadd.f32 %v10012, %v10025
    %10027 = vdwg.mxu0
    %10028 = vmatpush.bf16.msra.mxu0 %v7447
    %10029 = vmatpush.bf16.msra.mxu0 %v7431
    %10030 = vmatpush.bf16.msra.mxu0 %v7415
    %10031 = vmatpush.bf16.msra.mxu0 %v7399
    %10032 = vmatpush.bf16.msra.mxu0 %v7383
    %10033 = vmatpush.bf16.msra.mxu0 %v7367
    %10034 = vmatpush.bf16.msra.mxu0 %v7351
    %10035 = vmatpush.bf16.msra.mxu0 %v7335
    %10036 = vmatmul.bf16.gmra.mxu0 %v2293
    %v10037 = vpop.f32.mrf.mxu0
    %v10038 = vadd.f32 %v10024, %v10037
    %v10039 = vpop.f32.mrf.mxu0
    %v10040 = vadd.f32 %v10026, %v10039
    %10041 = vdwg.mxu0
    %10042 = vmatpush.bf16.msra.mxu0 %v6552
    %10043 = vmatpush.bf16.msra.mxu0 %v6536
    %10044 = vmatpush.bf16.msra.mxu0 %v6520
    %10045 = vmatpush.bf16.msra.mxu0 %v6504
    %10046 = vmatpush.bf16.msra.mxu0 %v6488
    %10047 = vmatpush.bf16.msra.mxu0 %v6472
    %10048 = vmatpush.bf16.msra.mxu0 %v6456
    %10049 = vmatpush.bf16.msra.mxu0 %v6440
    %10050 = vmatmul.bf16.gmra.mxu0 %v2286
    %v10051 = vpop.f32.mrf.mxu0
    %v10052 = vadd.f32 %v3336, %v10051
    %v10053 = vpop.f32.mrf.mxu0
    %v10054 = vadd.f32 %v3336, %v10053
    %10055 = vdwg.mxu0
    %10056 = vmatpush.bf16.msra.mxu0 %v6680
    %10057 = vmatpush.bf16.msra.mxu0 %v6664
    %10058 = vmatpush.bf16.msra.mxu0 %v6648
    %10059 = vmatpush.bf16.msra.mxu0 %v6632
    %10060 = vmatpush.bf16.msra.mxu0 %v6616
    %10061 = vmatpush.bf16.msra.mxu0 %v6600
    %10062 = vmatpush.bf16.msra.mxu0 %v6584
    %10063 = vmatpush.bf16.msra.mxu0 %v6568
    %10064 = vmatmul.bf16.gmra.mxu0 %v2287
    %v10065 = vpop.f32.mrf.mxu0
    %v10066 = vadd.f32 %v10052, %v10065
    %v10067 = vpop.f32.mrf.mxu0
    %v10068 = vadd.f32 %v10054, %v10067
    %10069 = vdwg.mxu0
    %10070 = vmatpush.bf16.msra.mxu0 %v6808
    %10071 = vmatpush.bf16.msra.mxu0 %v6792
    %10072 = vmatpush.bf16.msra.mxu0 %v6776
    %10073 = vmatpush.bf16.msra.mxu0 %v6760
    %10074 = vmatpush.bf16.msra.mxu0 %v6744
    %10075 = vmatpush.bf16.msra.mxu0 %v6728
    %10076 = vmatpush.bf16.msra.mxu0 %v6712
    %10077 = vmatpush.bf16.msra.mxu0 %v6696
    %10078 = vmatmul.bf16.gmra.mxu0 %v2288
    %v10079 = vpop.f32.mrf.mxu0
    %v10080 = vadd.f32 %v10066, %v10079
    %v10081 = vpop.f32.mrf.mxu0
    %v10082 = vadd.f32 %v10068, %v10081
    %10083 = vdwg.mxu0
    %10084 = vmatpush.bf16.msra.mxu0 %v6936
    %10085 = vmatpush.bf16.msra.mxu0 %v6920
    %10086 = vmatpush.bf16.msra.mxu0 %v6904
    %10087 = vmatpush.bf16.msra.mxu0 %v6888
    %10088 = vmatpush.bf16.msra.mxu0 %v6872
    %10089 = vmatpush.bf16.msra.mxu0 %v6856
    %10090 = vmatpush.bf16.msra.mxu0 %v6840
    %10091 = vmatpush.bf16.msra.mxu0 %v6824
    %10092 = vmatmul.bf16.gmra.mxu0 %v2289
    %v10093 = vpop.f32.mrf.mxu0
    %v10094 = vadd.f32 %v10080, %v10093
    %v10095 = vpop.f32.mrf.mxu0
    %v10096 = vadd.f32 %v10082, %v10095
    %10097 = vdwg.mxu0
    %10098 = vmatpush.bf16.msra.mxu0 %v7064
    %10099 = vmatpush.bf16.msra.mxu0 %v7048
    %10100 = vmatpush.bf16.msra.mxu0 %v7032
    %10101 = vmatpush.bf16.msra.mxu0 %v7016
    %10102 = vmatpush.bf16.msra.mxu0 %v7000
    %10103 = vmatpush.bf16.msra.mxu0 %v6984
    %10104 = vmatpush.bf16.msra.mxu0 %v6968
    %10105 = vmatpush.bf16.msra.mxu0 %v6952
    %10106 = vmatmul.bf16.gmra.mxu0 %v2290
    %v10107 = vpop.f32.mrf.mxu0
    %v10108 = vadd.f32 %v10094, %v10107
    %v10109 = vpop.f32.mrf.mxu0
    %v10110 = vadd.f32 %v10096, %v10109
    %10111 = vdwg.mxu0
    %10112 = vmatpush.bf16.msra.mxu0 %v7192
    %10113 = vmatpush.bf16.msra.mxu0 %v7176
    %10114 = vmatpush.bf16.msra.mxu0 %v7160
    %10115 = vmatpush.bf16.msra.mxu0 %v7144
    %10116 = vmatpush.bf16.msra.mxu0 %v7128
    %10117 = vmatpush.bf16.msra.mxu0 %v7112
    %10118 = vmatpush.bf16.msra.mxu0 %v7096
    %10119 = vmatpush.bf16.msra.mxu0 %v7080
    %10120 = vmatmul.bf16.gmra.mxu0 %v2291
    %v10121 = vpop.f32.mrf.mxu0
    %v10122 = vadd.f32 %v10108, %v10121
    %v10123 = vpop.f32.mrf.mxu0
    %v10124 = vadd.f32 %v10110, %v10123
    %10125 = vdwg.mxu0
    %10126 = vmatpush.bf16.msra.mxu0 %v7320
    %10127 = vmatpush.bf16.msra.mxu0 %v7304
    %10128 = vmatpush.bf16.msra.mxu0 %v7288
    %10129 = vmatpush.bf16.msra.mxu0 %v7272
    %10130 = vmatpush.bf16.msra.mxu0 %v7256
    %10131 = vmatpush.bf16.msra.mxu0 %v7240
    %10132 = vmatpush.bf16.msra.mxu0 %v7224
    %10133 = vmatpush.bf16.msra.mxu0 %v7208
    %10134 = vmatmul.bf16.gmra.mxu0 %v2292
    %v10135 = vpop.f32.mrf.mxu0
    %v10136 = vadd.f32 %v10122, %v10135
    %v10137 = vpop.f32.mrf.mxu0
    %v10138 = vadd.f32 %v10124, %v10137
    %10139 = vdwg.mxu0
    %10140 = vmatpush.bf16.msra.mxu0 %v7448
    %10141 = vmatpush.bf16.msra.mxu0 %v7432
    %10142 = vmatpush.bf16.msra.mxu0 %v7416
    %10143 = vmatpush.bf16.msra.mxu0 %v7400
    %10144 = vmatpush.bf16.msra.mxu0 %v7384
    %10145 = vmatpush.bf16.msra.mxu0 %v7368
    %10146 = vmatpush.bf16.msra.mxu0 %v7352
    %10147 = vmatpush.bf16.msra.mxu0 %v7336
    %10148 = vmatmul.bf16.gmra.mxu0 %v2293
    %v10149 = vpop.f32.mrf.mxu0
    %v10150 = vadd.f32 %v10136, %v10149
    %v10151 = vpop.f32.mrf.mxu0
    %v10152 = vadd.f32 %v10138, %v10151
    %10153 = vdwg.mxu0
    %10154 = vmatpush.bf16.msra.mxu0 %v6553
    %10155 = vmatpush.bf16.msra.mxu0 %v6537
    %10156 = vmatpush.bf16.msra.mxu0 %v6521
    %10157 = vmatpush.bf16.msra.mxu0 %v6505
    %10158 = vmatpush.bf16.msra.mxu0 %v6489
    %10159 = vmatpush.bf16.msra.mxu0 %v6473
    %10160 = vmatpush.bf16.msra.mxu0 %v6457
    %10161 = vmatpush.bf16.msra.mxu0 %v6441
    %10162 = vmatmul.bf16.gmra.mxu0 %v2286
    %v10163 = vpop.f32.mrf.mxu0
    %v10164 = vadd.f32 %v3337, %v10163
    %v10165 = vpop.f32.mrf.mxu0
    %v10166 = vadd.f32 %v3337, %v10165
    %10167 = vdwg.mxu0
    %10168 = vmatpush.bf16.msra.mxu0 %v6681
    %10169 = vmatpush.bf16.msra.mxu0 %v6665
    %10170 = vmatpush.bf16.msra.mxu0 %v6649
    %10171 = vmatpush.bf16.msra.mxu0 %v6633
    %10172 = vmatpush.bf16.msra.mxu0 %v6617
    %10173 = vmatpush.bf16.msra.mxu0 %v6601
    %10174 = vmatpush.bf16.msra.mxu0 %v6585
    %10175 = vmatpush.bf16.msra.mxu0 %v6569
    %10176 = vmatmul.bf16.gmra.mxu0 %v2287
    %v10177 = vpop.f32.mrf.mxu0
    %v10178 = vadd.f32 %v10164, %v10177
    %v10179 = vpop.f32.mrf.mxu0
    %v10180 = vadd.f32 %v10166, %v10179
    %10181 = vdwg.mxu0
    %10182 = vmatpush.bf16.msra.mxu0 %v6809
    %10183 = vmatpush.bf16.msra.mxu0 %v6793
    %10184 = vmatpush.bf16.msra.mxu0 %v6777
    %10185 = vmatpush.bf16.msra.mxu0 %v6761
    %10186 = vmatpush.bf16.msra.mxu0 %v6745
    %10187 = vmatpush.bf16.msra.mxu0 %v6729
    %10188 = vmatpush.bf16.msra.mxu0 %v6713
    %10189 = vmatpush.bf16.msra.mxu0 %v6697
    %10190 = vmatmul.bf16.gmra.mxu0 %v2288
    %v10191 = vpop.f32.mrf.mxu0
    %v10192 = vadd.f32 %v10178, %v10191
    %v10193 = vpop.f32.mrf.mxu0
    %v10194 = vadd.f32 %v10180, %v10193
    %10195 = vdwg.mxu0
    %10196 = vmatpush.bf16.msra.mxu0 %v6937
    %10197 = vmatpush.bf16.msra.mxu0 %v6921
    %10198 = vmatpush.bf16.msra.mxu0 %v6905
    %10199 = vmatpush.bf16.msra.mxu0 %v6889
    %10200 = vmatpush.bf16.msra.mxu0 %v6873
    %10201 = vmatpush.bf16.msra.mxu0 %v6857
    %10202 = vmatpush.bf16.msra.mxu0 %v6841
    %10203 = vmatpush.bf16.msra.mxu0 %v6825
    %10204 = vmatmul.bf16.gmra.mxu0 %v2289
    %v10205 = vpop.f32.mrf.mxu0
    %v10206 = vadd.f32 %v10192, %v10205
    %v10207 = vpop.f32.mrf.mxu0
    %v10208 = vadd.f32 %v10194, %v10207
    %10209 = vdwg.mxu0
    %10210 = vmatpush.bf16.msra.mxu0 %v7065
    %10211 = vmatpush.bf16.msra.mxu0 %v7049
    %10212 = vmatpush.bf16.msra.mxu0 %v7033
    %10213 = vmatpush.bf16.msra.mxu0 %v7017
    %10214 = vmatpush.bf16.msra.mxu0 %v7001
    %10215 = vmatpush.bf16.msra.mxu0 %v6985
    %10216 = vmatpush.bf16.msra.mxu0 %v6969
    %10217 = vmatpush.bf16.msra.mxu0 %v6953
    %10218 = vmatmul.bf16.gmra.mxu0 %v2290
    %v10219 = vpop.f32.mrf.mxu0
    %v10220 = vadd.f32 %v10206, %v10219
    %v10221 = vpop.f32.mrf.mxu0
    %v10222 = vadd.f32 %v10208, %v10221
    %10223 = vdwg.mxu0
    %10224 = vmatpush.bf16.msra.mxu0 %v7193
    %10225 = vmatpush.bf16.msra.mxu0 %v7177
    %10226 = vmatpush.bf16.msra.mxu0 %v7161
    %10227 = vmatpush.bf16.msra.mxu0 %v7145
    %10228 = vmatpush.bf16.msra.mxu0 %v7129
    %10229 = vmatpush.bf16.msra.mxu0 %v7113
    %10230 = vmatpush.bf16.msra.mxu0 %v7097
    %10231 = vmatpush.bf16.msra.mxu0 %v7081
    %10232 = vmatmul.bf16.gmra.mxu0 %v2291
    %v10233 = vpop.f32.mrf.mxu0
    %v10234 = vadd.f32 %v10220, %v10233
    %v10235 = vpop.f32.mrf.mxu0
    %v10236 = vadd.f32 %v10222, %v10235
    %10237 = vdwg.mxu0
    %10238 = vmatpush.bf16.msra.mxu0 %v7321
    %10239 = vmatpush.bf16.msra.mxu0 %v7305
    %10240 = vmatpush.bf16.msra.mxu0 %v7289
    %10241 = vmatpush.bf16.msra.mxu0 %v7273
    %10242 = vmatpush.bf16.msra.mxu0 %v7257
    %10243 = vmatpush.bf16.msra.mxu0 %v7241
    %10244 = vmatpush.bf16.msra.mxu0 %v7225
    %10245 = vmatpush.bf16.msra.mxu0 %v7209
    %10246 = vmatmul.bf16.gmra.mxu0 %v2292
    %v10247 = vpop.f32.mrf.mxu0
    %v10248 = vadd.f32 %v10234, %v10247
    %v10249 = vpop.f32.mrf.mxu0
    %v10250 = vadd.f32 %v10236, %v10249
    %10251 = vdwg.mxu0
    %10252 = vmatpush.bf16.msra.mxu0 %v7449
    %10253 = vmatpush.bf16.msra.mxu0 %v7433
    %10254 = vmatpush.bf16.msra.mxu0 %v7417
    %10255 = vmatpush.bf16.msra.mxu0 %v7401
    %10256 = vmatpush.bf16.msra.mxu0 %v7385
    %10257 = vmatpush.bf16.msra.mxu0 %v7369
    %10258 = vmatpush.bf16.msra.mxu0 %v7353
    %10259 = vmatpush.bf16.msra.mxu0 %v7337
    %10260 = vmatmul.bf16.gmra.mxu0 %v2293
    %v10261 = vpop.f32.mrf.mxu0
    %v10262 = vadd.f32 %v10248, %v10261
    %v10263 = vpop.f32.mrf.mxu0
    %v10264 = vadd.f32 %v10250, %v10263
    %10265 = vdwg.mxu0
    %10266 = vst [vmem:[#allocation14] sm:$0xff] %v8582
    %10267 = vst [vmem:[#allocation14 + $0x8] sm:$0xff] %v8694
    %10268 = vst [vmem:[#allocation14 + $0x10] sm:$0xff] %v8806
    %10269 = vst [vmem:[#allocation14 + $0x18] sm:$0xff] %v8918
    %10270 = vst [vmem:[#allocation14 + $0x20] sm:$0xff] %v9030
    %10271 = vst [vmem:[#allocation14 + $0x28] sm:$0xff] %v9142
    %10272 = vst [vmem:[#allocation14 + $0x30] sm:$0xff] %v9254
    %10273 = vst [vmem:[#allocation14 + $0x38] sm:$0xff] %v9366
    %10274 = vst [vmem:[#allocation14 + $0x40] sm:$0xff] %v9478
    %10275 = vst [vmem:[#allocation14 + $0x48] sm:$0xff] %v9590
    %10276 = vst [vmem:[#allocation14 + $0x50] sm:$0xff] %v9702
    %10277 = vst [vmem:[#allocation14 + $0x58] sm:$0xff] %v9814
    %10278 = vst [vmem:[#allocation14 + $0x60] sm:$0xff] %v9926
    %10279 = vst [vmem:[#allocation14 + $0x68] sm:$0xff] %v10038
    %10280 = vst [vmem:[#allocation14 + $0x70] sm:$0xff] %v10150
    %10281 = vst [vmem:[#allocation14 + $0x78] sm:$0xff] %v10262
    %10282 = vst [vmem:[#allocation14 + $0x80] sm:$0xff] %v8584
    %10283 = vst [vmem:[#allocation14 + $0x88] sm:$0xff] %v8696
    %10284 = vst [vmem:[#allocation14 + $0x90] sm:$0xff] %v8808
    %10285 = vst [vmem:[#allocation14 + $0x98] sm:$0xff] %v8920
    %10286 = vst [vmem:[#allocation14 + $0xa0] sm:$0xff] %v9032
    %10287 = vst [vmem:[#allocation14 + $0xa8] sm:$0xff] %v9144
    %10288 = vst [vmem:[#allocation14 + $0xb0] sm:$0xff] %v9256
    %10289 = vst [vmem:[#allocation14 + $0xb8] sm:$0xff] %v9368
    %10290 = vst [vmem:[#allocation14 + $0xc0] sm:$0xff] %v9480
    %10291 = vst [vmem:[#allocation14 + $0xc8] sm:$0xff] %v9592
    %10292 = vst [vmem:[#allocation14 + $0xd0] sm:$0xff] %v9704
    %10293 = vst [vmem:[#allocation14 + $0xd8] sm:$0xff] %v9816
    %10294 = vst [vmem:[#allocation14 + $0xe0] sm:$0xff] %v9928
    %10295 = vst [vmem:[#allocation14 + $0xe8] sm:$0xff] %v10040
    %10296 = vst [vmem:[#allocation14 + $0xf0] sm:$0xff] %v10152
    %10297 = vst [vmem:[#allocation14 + $0xf8] sm:$0xff] %v10264
    // Predicated region
    $region58: #{tpu_custom_call.1} parent=1 // pred_check
      _
    $region59: #{tpu_custom_call.1} parent=1 // pred_check_branch
      %10299 = sbr.rel (0) target = $region61
    $region60: #{tpu_custom_call.1} parent=1 // pred_region
      %10301 = vsyncadd [#allocation4], 0
      %s10302 = sshll.u32 [#allocation14], 4
      %s10303 = int_to_ptr.vmem [resolvable:$true] %s10302
      %s10304 = sshll.u32 %s7, 4
      %s10305 = int_to_ptr.hbm [resolvable:$true] %s10304
      %10310 = dma.vmem_to_hbm [thread:$0]  %s10303, 4096, %s10305, [#allocation4], 2048, 2048, 128
    $region61: #{tpu_custom_call.1} parent=1 // pred_fallthru
      _
    // Predicated region
    $region62: #{tpu_custom_call.1} parent=1 // pred_check
      _
    $region63: #{tpu_custom_call.1} parent=1 // pred_check_branch
      %10312 = sbr.rel (0) target = $region65
    $region64: #{tpu_custom_call.1} parent=1 // pred_region
      %10314 = dma.done [#allocation4], 4096
    $region65: #{tpu_custom_call.1} parent=1 // pred_fallthru
      _
    %10315 = vsyncpa [#allocation3], 1
    %10316 = vsyncpa [#allocation6], 1
    %10317 = vsyncpa [#allocation9], 1
    %10318 = vsyncpa [#allocation12], 1
    %10319 = vsyncpa [#allocation4], 1

</llo_original>
